<compile_context>
chip_gen: v7x
topology: tpu7x:2x2x1
jax: 0.10.0
libtpu: 0.0.40
codegen_flags: <defaults>
</compile_context>

<pallas_src>
import math

import jax
import jax.numpy as jnp
from jax.experimental import pallas as pl
from jax.experimental.pallas import tpu as pltpu

# ----------------------------- model config ------------------------------
# (real module: d_model=512, nhead=8, 6+6 layers, dff=2048, vocab=30522;
#  same structure at small TPU-friendly sizes; vocab kept a multiple of 128
#  so the logits writeback is lane-dense — pad the production vocab likewise)
D_MODEL = 32
NHEAD = 4
HEAD_DIM = D_MODEL // NHEAD
NUM_ENC = 2
NUM_DEC = 2
DFF = 64
VOCAB = 128
LN_EPS = 1e-5

# Scoped VMEM budget (re-derive per generation at production sizes:
# v5e/v6e 128 MiB physical, v7x only 64 MiB).
_VMEM_LIMIT = 32 * 1024 * 1024

_ENC_KEYS = ("wq", "wk", "wv", "bq", "bk", "bv", "wo", "bo", "g1", "n1",
             "w1", "b1", "w2", "b2", "g2", "n2")
_DEC_KEYS = ("swq", "swk", "swv", "sbq", "sbk", "sbv", "swo", "sbo",
             "g1", "n1",
             "cwq", "cwk", "cwv", "cbq", "cbk", "cbv", "cwo", "cbo",
             "g2", "n2",
             "w1", "b1", "w2", "b2", "g3", "n3")


# ----------------------- in-kernel building blocks ------------------------
def _layer_norm(z, gamma, beta):
    mu = jnp.mean(z, axis=-1, keepdims=True)
    zc = z - mu
    var = jnp.mean(zc * zc, axis=-1, keepdims=True)
    return zc * jax.lax.rsqrt(var + LN_EPS) * gamma + beta


def _attention(x_q, x_kv, wq_ref, wk_ref, wv_ref, bq_ref, bk_ref, bv_ref,
               wo_ref, bo_ref):
    """Multi-head attention with head-major weight stacks.

    x_q: (Sq, D) f32; x_kv: (Sk, D) f32.
    wq/wk/wv refs: (1, H, D, Dh) bf16; bq/bk/bv: (1, H, 1, Dh) f32;
    wo: (1, H, Dh, D) bf16; bo: (1, 1, D) f32.
    No lane slices of activations, no head concat: the head merge is fused
    into the out-projection as a per-head accumulation.
    """
    scale = 1.0 / math.sqrt(HEAD_DIM)
    xq = x_q.astype(jnp.bfloat16)
    xkv = x_kv.astype(jnp.bfloat16)
    y = jnp.zeros((x_q.shape[0], D_MODEL), jnp.float32)
    for h in range(NHEAD):                       # static unroll (NHEAD small)
        qh = jnp.dot(xq, wq_ref[0, h],
                     preferred_element_type=jnp.float32) + bq_ref[0, h]
        kh = jnp.dot(xkv, wk_ref[0, h],
                     preferred_element_type=jnp.float32) + bk_ref[0, h]
        vh = jnp.dot(xkv, wv_ref[0, h],
                     preferred_element_type=jnp.float32) + bv_ref[0, h]
        # q @ k^T via dot_general contracting last axes (no materialized k.T)
        s = jax.lax.dot_general(qh.astype(jnp.bfloat16),
                                kh.astype(jnp.bfloat16),
                                (((1,), (1,)), ((), ())),
                                preferred_element_type=jnp.float32) * scale
        s = s - jnp.max(s, axis=-1, keepdims=True)
        p = jnp.exp(s)
        p = p * pl.reciprocal(jnp.sum(p, axis=-1, keepdims=True), approx=True)
        oh = jnp.dot(p.astype(jnp.bfloat16), vh.astype(jnp.bfloat16),
                     preferred_element_type=jnp.float32)        # (Sq, Dh)
        # fused head-merge + out-projection (accumulate per-head contribution)
        y = y + jnp.dot(oh.astype(jnp.bfloat16), wo_ref[0, h],
                        preferred_element_type=jnp.float32)     # (Sq, D)
    return y + bo_ref[0]


def _ffn(x, w1_ref, b1_ref, w2_ref, b2_ref):
    h = jnp.dot(x.astype(jnp.bfloat16), w1_ref[0],
                preferred_element_type=jnp.float32) + b1_ref[0]
    h = jnp.maximum(h, 0.0)
    return jnp.dot(h.astype(jnp.bfloat16), w2_ref[0],
                   preferred_element_type=jnp.float32) + b2_ref[0]


# ----------------------------- Pallas kernels -----------------------------
def _encoder_stack_kernel(x_ref,
                          wq_ref, wk_ref, wv_ref, bq_ref, bk_ref, bv_ref,
                          wo_ref, bo_ref, g1_ref, n1_ref,
                          w1_ref, b1_ref, w2_ref, b2_ref, g2_ref, n2_ref,
                          gf_ref, nf_ref,
                          o_ref, act_ref):
    layer = pl.program_id(1)

    @pl.when(layer == 0)
    def _():
        act_ref[...] = x_ref[0]                  # load embedding once per b

    x = act_ref[...]                             # resident (S, D) activation
    attn = _attention(x, x, wq_ref, wk_ref, wv_ref, bq_ref, bk_ref, bv_ref,
                      wo_ref, bo_ref)
    x = _layer_norm(x + attn, g1_ref[0], n1_ref[0])
    ff = _ffn(x, w1_ref, b1_ref, w2_ref, b2_ref)
    x = _layer_norm(x + ff, g2_ref[0], n2_ref[0])
    act_ref[...] = x

    @pl.when(layer == pl.num_programs(1) - 1)
    def _():
        # final encoder LayerNorm fused into the last layer step
        o_ref[0] = _layer_norm(x, gf_ref[...], nf_ref[...])


def _decoder_stack_kernel(x_ref, m_ref,
                          swq_ref, swk_ref, swv_ref, sbq_ref, sbk_ref,
                          sbv_ref, swo_ref, sbo_ref, g1_ref, n1_ref,
                          cwq_ref, cwk_ref, cwv_ref, cbq_ref, cbk_ref,
                          cbv_ref, cwo_ref, cbo_ref, g2_ref, n2_ref,
                          w1_ref, b1_ref, w2_ref, b2_ref, g3_ref, n3_ref,
                          o_ref, act_ref):
    layer = pl.program_id(1)

    @pl.when(layer == 0)
    def _():
        act_ref[...] = x_ref[0]

    x = act_ref[...]                             # (St, D)
    m = m_ref[0]                                 # (Ss, D) encoder memory
    sa = _attention(x, x, swq_ref, swk_ref, swv_ref, sbq_ref, sbk_ref,
                    sbv_ref, swo_ref, sbo_ref)
    x = _layer_norm(x + sa, g1_ref[0], n1_ref[0])
    ca = _attention(x, m, cwq_ref, cwk_ref, cwv_ref, cbq_ref, cbk_ref,
                    cbv_ref, cwo_ref, cbo_ref)
    x = _layer_norm(x + ca, g2_ref[0], n2_ref[0])
    ff = _ffn(x, w1_ref, b1_ref, w2_ref, b2_ref)
    x = _layer_norm(x + ff, g3_ref[0], n3_ref[0])
    act_ref[...] = x
    o_ref[0] = x                                 # last write (layer L-1) wins


def _final_norm_logits_kernel(x_ref, g_ref, b_ref, w_ref, fb_ref,
                              o_ref, xn_ref):
    # final decoder LayerNorm computed once per token tile, cached across
    # vocab tiles; each (TM, TV) logits slab is lane-dense (TV % 128 == 0).
    @pl.when(pl.program_id(1) == 0)
    def _():
        xn_ref[...] = _layer_norm(x_ref[...], g_ref[...], b_ref[...])
    o_ref[...] = (jnp.dot(xn_ref[...].astype(jnp.bfloat16), w_ref[...],
                          preferred_element_type=jnp.float32) + fb_ref[...])


# ----------------------------- kernel wrappers ----------------------------
def _stack_spec(arr):
    """Per-layer stacked weight: one layer's slab, indexed by layer id."""
    nd = arr.ndim
    return pl.BlockSpec((1,) + arr.shape[1:],
                        lambda b, l, nd=nd: (l,) + (0,) * (nd - 1))


def _replicated_spec(arr):
    nd = arr.ndim
    return pl.BlockSpec(arr.shape, lambda *_, nd=nd: (0,) * nd)


def encoder_stack(x_bsd, w, final_g, final_b):
    B, S, D = x_bsd.shape
    L = w["wq"].shape[0]
    weights = [w[k] for k in _ENC_KEYS]
    return pl.pallas_call(
        _encoder_stack_kernel,
        grid=(B, L),
        out_shape=jax.ShapeDtypeStruct((B, S, D), jnp.float32),
        in_specs=([pl.BlockSpec((1, S, D), lambda b, l: (b, 0, 0))]
                  + [_stack_spec(a) for a in weights]
                  + [_replicated_spec(final_g), _replicated_spec(final_b)]),
        out_specs=pl.BlockSpec((1, S, D), lambda b, l: (b, 0, 0)),
        scratch_shapes=[pltpu.VMEM((S, D), jnp.float32)],
        compiler_params=pltpu.CompilerParams(
            dimension_semantics=("parallel", "arbitrary"),
            vmem_limit_bytes=_VMEM_LIMIT),
    )(x_bsd, *weights, final_g, final_b)


def decoder_stack(x_bsd, mem_bsd, w):
    B, St, D = x_bsd.shape
    Ss = mem_bsd.shape[1]
    L = w["swq"].shape[0]
    weights = [w[k] for k in _DEC_KEYS]
    return pl.pallas_call(
        _decoder_stack_kernel,
        grid=(B, L),
        out_shape=jax.ShapeDtypeStruct((B, St, D), jnp.float32),
        in_specs=([pl.BlockSpec((1, St, D), lambda b, l: (b, 0, 0)),
                   pl.BlockSpec((1, Ss, D), lambda b, l: (b, 0, 0))]
                  + [_stack_spec(a) for a in weights]),
        out_specs=pl.BlockSpec((1, St, D), lambda b, l: (b, 0, 0)),
        scratch_shapes=[pltpu.VMEM((St, D), jnp.float32)],
        compiler_params=pltpu.CompilerParams(
            dimension_semantics=("parallel", "arbitrary"),
            vmem_limit_bytes=_VMEM_LIMIT),
    )(x_bsd, mem_bsd, *weights)


def final_norm_logits(x_md, gamma, beta, fc_w, fc_b):
    """Fused final decoder LayerNorm + fc_out, tiled over vocab (lane-dense)."""
    M, D = x_md.shape
    V = fc_w.shape[1]
    if V % 2048 == 0:
        TV = 2048
    elif V % 128 == 0:
        TV = min(V, 128)
    else:
        TV = V            # TODO(synk): pad production vocab to a multiple of 128
    TM = 256 if M % 256 == 0 else M
    return pl.pallas_call(
        _final_norm_logits_kernel,
        grid=(M // TM, V // TV),
        out_shape=jax.ShapeDtypeStruct((M, V), jnp.float32),
        in_specs=[pl.BlockSpec((TM, D), lambda i, v: (i, 0)),
                  pl.BlockSpec((1, D), lambda i, v: (0, 0)),
                  pl.BlockSpec((1, D), lambda i, v: (0, 0)),
                  pl.BlockSpec((D, TV), lambda i, v: (0, v)),
                  pl.BlockSpec((1, TV), lambda i, v: (0, v))],
        out_specs=pl.BlockSpec((TM, TV), lambda i, v: (i, v)),
        scratch_shapes=[pltpu.VMEM((TM, D), jnp.float32)],
        compiler_params=pltpu.CompilerParams(
            dimension_semantics=("parallel", "arbitrary"),
            vmem_limit_bytes=_VMEM_LIMIT),
    )(x_md, gamma, beta, fc_w, fc_b)


# ----------------------------- forward pass -------------------------------
def transformer_translation_forward(params, src, tgt):
    """src, tgt: (B, S) int32 token ids.  Returns logits (S_tgt, B, VOCAB)."""
    emb = params["embedding"]
    # TODO(synk): embedding gather kept in plain JAX (data-dependent gather).
    src_e = jnp.take(emb, src, axis=0)            # (B, Ss, D) batch-first
    tgt_e = jnp.take(emb, tgt, axis=0)            # (B, St, D)

    mem = encoder_stack(src_e, params["enc"],
                        params["enc_norm_g"], params["enc_norm_b"])
    out = decoder_stack(tgt_e, mem, params["dec"])

    B, St, D = out.shape
    # Tiny (B,St,D)->(St,B,D) layout change in XLA so the vocab projection
    # emits seq-first logits directly (no (St,B,V)-sized logits transpose).
    x_sf = jnp.transpose(out, (1, 0, 2)).reshape(St * B, D)
    logits = final_norm_logits(x_sf, params["dec_norm_g"],
                               params["dec_norm_b"],
                               params["fc_w"], params["fc_b"])   # (St*B, V)
    return logits.reshape(St, B, VOCAB)           # (St, B, V) seq-first


# ----------------------------- parameter init -----------------------------
def init_params(key):
    kit = iter(jax.random.split(key, 64))

    def dense(shape, scale=0.05):
        return (scale * jax.random.normal(next(kit), shape, jnp.float32)
                ).astype(jnp.bfloat16)            # matmul weights stored bf16

    def attn(L, p=""):
        # Head-major stacks: wq/wk/wv = in_proj_weight.T split per head,
        # wo = out_proj.weight.T split per head (rows).
        return {
            p + "wq": dense((L, NHEAD, D_MODEL, HEAD_DIM)),
            p + "wk": dense((L, NHEAD, D_MODEL, HEAD_DIM)),
            p + "wv": dense((L, NHEAD, D_MODEL, HEAD_DIM)),
            p + "bq": jnp.zeros((L, NHEAD, 1, HEAD_DIM), jnp.float32),
            p + "bk": jnp.zeros((L, NHEAD, 1, HEAD_DIM), jnp.float32),
            p + "bv": jnp.zeros((L, NHEAD, 1, HEAD_DIM), jnp.float32),
            p + "wo": dense((L, NHEAD, HEAD_DIM, D_MODEL)),
            p + "bo": jnp.zeros((L, 1, D_MODEL), jnp.float32),
        }

    def ln(L, idx):
        return {f"g{idx}": jnp.ones((L, 1, D_MODEL), jnp.float32),
                f"n{idx}": jnp.zeros((L, 1, D_MODEL), jnp.float32)}

    def ffn(L):
        return {"w1": dense((L, D_MODEL, DFF)),
                "b1": jnp.zeros((L, 1, DFF), jnp.float32),
                "w2": dense((L, DFF, D_MODEL)),
                "b2": jnp.zeros((L, 1, D_MODEL), jnp.float32)}

    enc = {}
    enc.update(attn(NUM_ENC));      enc.update(ln(NUM_ENC, 1))
    enc.update(ffn(NUM_ENC));       enc.update(ln(NUM_ENC, 2))

    dec = {}
    dec.update(attn(NUM_DEC, "s")); dec.update(ln(NUM_DEC, 1))
    dec.update(attn(NUM_DEC, "c")); dec.update(ln(NUM_DEC, 2))
    dec.update(ffn(NUM_DEC));       dec.update(ln(NUM_DEC, 3))

    return dict(
        embedding=0.1 * jax.random.normal(next(kit), (VOCAB, D_MODEL),
                                          jnp.float32),
        enc=enc, dec=dec,
        enc_norm_g=jnp.ones((1, D_MODEL), jnp.float32),
        enc_norm_b=jnp.zeros((1, D_MODEL), jnp.float32),
        dec_norm_g=jnp.ones((1, D_MODEL), jnp.float32),
        dec_norm_b=jnp.zeros((1, D_MODEL), jnp.float32),
        fc_w=dense((D_MODEL, VOCAB)),             # torch fc_out.weight.T
        fc_b=jnp.zeros((1, VOCAB), jnp.float32),
    )


# --------------------------------- main ------------------------------------
if __name__ == "__main__":
    key = jax.random.PRNGKey(0)
    pkey, skey, tkey = jax.random.split(key, 3)

    B, S_SRC, S_TGT = 2, 8, 8                     # B=2 keeps both v7x TCs busy
    params = init_params(pkey)
    src = jax.random.randint(skey, (B, S_SRC), 0, VOCAB, dtype=jnp.int32)
    tgt = jax.random.randint(tkey, (B, S_TGT), 0, VOCAB, dtype=jnp.int32)

    fwd = jax.jit(transformer_translation_forward)
    logits = fwd(params, src, tgt)
    jax.block_until_ready(logits)

    assert logits.shape == (S_TGT, B, VOCAB), logits.shape
    assert bool(jnp.all(jnp.isfinite(logits)))
    print("KERNEL_OK")
</pallas_src>

<mosaic_0001>
module attributes {stable_mosaic.version = 11 : i64} {
  func.func @_final_norm_logits_kernel(%arg0: i32, %arg1: i32, %arg2: memref<16x32xf32, #tpu.memory_space<vmem>>, %arg3: memref<1x32xf32, #tpu.memory_space<vmem>>, %arg4: memref<1x32xf32, #tpu.memory_space<vmem>>, %arg5: memref<32x128xbf16, #tpu.memory_space<vmem>>, %arg6: memref<1x128xf32, #tpu.memory_space<vmem>>, %arg7: memref<16x128xf32, #tpu.memory_space<vmem>>, %arg8: memref<16x32xf32, #tpu.memory_space<vmem>>) attributes {dimension_semantics = [#tpu.dimension_semantics<parallel>, #tpu.dimension_semantics<arbitrary>], iteration_bounds = array<i64: 1, 1>, scalar_prefetch = 0 : i64, scratch_operands = 1 : i64, tpu.core_type = #tpu.core_type<tc>, window_params = [{transform_indices = @transform_0, window_bounds = array<i64: 16, 32>}, {pipeline_mode = #tpu.pipeline_mode<synchronous>, transform_indices = @transform_1, window_bounds = array<i64: 1, 32>}, {pipeline_mode = #tpu.pipeline_mode<synchronous>, transform_indices = @transform_2, window_bounds = array<i64: 1, 32>}, {transform_indices = @transform_3, window_bounds = array<i64: 32, 128>}, {transform_indices = @transform_4, window_bounds = array<i64: 1, 128>}, {transform_indices = @transform_5, window_bounds = array<i64: 16, 128>}]} {
    %c0_i32 = arith.constant 0 : i32
    %0 = arith.cmpi eq, %arg1, %c0_i32 : i32
    %1 = arith.extui %0 : i1 to i32
    %c0_i32_0 = arith.constant 0 : i32
    %2 = arith.cmpi ne, %1, %c0_i32_0 : i32
    scf.if %2 {
      %c0_8 = arith.constant 0 : index
      %c0_9 = arith.constant 0 : index
      %11 = vector.load %arg2[%c0_8, %c0_9] : memref<16x32xf32, #tpu.memory_space<vmem>>, vector<16x32xf32>
      %c0_10 = arith.constant 0 : index
      %c0_11 = arith.constant 0 : index
      %12 = vector.load %arg3[%c0_10, %c0_11] : memref<1x32xf32, #tpu.memory_space<vmem>>, vector<1x32xf32>
      %c0_12 = arith.constant 0 : index
      %c0_13 = arith.constant 0 : index
      %13 = vector.load %arg4[%c0_12, %c0_13] : memref<1x32xf32, #tpu.memory_space<vmem>>, vector<1x32xf32>
      %cst_14 = arith.constant dense<0.000000e+00> : vector<16xf32>
      %14 = vector.multi_reduction <add>, %11, %cst_14 [1] : vector<16x32xf32> to vector<16xf32>
      %15 = vector.shape_cast %14 : vector<16xf32> to vector<16x1xf32>
      %cst_15 = arith.constant 3.200000e+01 : f32
      %16 = vector.broadcast %cst_15 : f32 to vector<16x1xf32>
      %17 = arith.divf %15, %16 : vector<16x1xf32>
      %18 = vector.broadcast %17 : vector<16x1xf32> to vector<16x32xf32>
      %19 = arith.subf %11, %18 : vector<16x32xf32>
      %20 = arith.mulf %19, %19 : vector<16x32xf32>
      %cst_16 = arith.constant dense<0.000000e+00> : vector<16xf32>
      %21 = vector.multi_reduction <add>, %20, %cst_16 [1] : vector<16x32xf32> to vector<16xf32>
      %22 = vector.shape_cast %21 : vector<16xf32> to vector<16x1xf32>
      %cst_17 = arith.constant 3.200000e+01 : f32
      %23 = vector.broadcast %cst_17 : f32 to vector<16x1xf32>
      %24 = arith.divf %22, %23 : vector<16x1xf32>
      %cst_18 = arith.constant 9.99999974E-6 : f32
      %25 = vector.broadcast %cst_18 : f32 to vector<16x1xf32>
      %26 = arith.addf %24, %25 : vector<16x1xf32>
      %27 = math.rsqrt %26 : vector<16x1xf32>
      %28 = vector.broadcast %27 : vector<16x1xf32> to vector<16x32xf32>
      %29 = arith.mulf %19, %28 : vector<16x32xf32>
      %30 = vector.broadcast %12 : vector<1x32xf32> to vector<16x32xf32>
      %31 = arith.mulf %29, %30 : vector<16x32xf32>
      %32 = vector.broadcast %13 : vector<1x32xf32> to vector<16x32xf32>
      %33 = arith.addf %31, %32 : vector<16x32xf32>
      %c0_19 = arith.constant 0 : index
      %c0_20 = arith.constant 0 : index
      %34 = vector.load %arg8[%c0_19, %c0_20] : memref<16x32xf32, #tpu.memory_space<vmem>>, vector<16x32xf32>
      tpu.vector_store %arg8[%c0_19, %c0_20], %33 {strides = array<i32>} : memref<16x32xf32, #tpu.memory_space<vmem>>, vector<16x32xf32>,
    } else {
    }
    %c0 = arith.constant 0 : index
    %c0_1 = arith.constant 0 : index
    %3 = vector.load %arg8[%c0, %c0_1] : memref<16x32xf32, #tpu.memory_space<vmem>>, vector<16x32xf32>
    %4 = arith.truncf %3 : vector<16x32xf32> to vector<16x32xbf16>
    %c0_2 = arith.constant 0 : index
    %c0_3 = arith.constant 0 : index
    %5 = vector.load %arg5[%c0_2, %c0_3] : memref<32x128xbf16, #tpu.memory_space<vmem>>, vector<32x128xbf16>
    %cst = arith.constant dense<0.000000e+00> : vector<16x128xf32>
    %6 = tpu.matmul %4, %5, %cst {dimension_numbers = #tpu.dot_dimension_numbers<[1], [0], [0], [1], [0, 0, 1, 1], [], []>} : vector<16x32xbf16>, vector<32x128xbf16>, vector<16x128xf32> -> vector<16x128xf32>
    %c0_4 = arith.constant 0 : index
    %c0_5 = arith.constant 0 : index
    %7 = vector.load %arg6[%c0_4, %c0_5] : memref<1x128xf32, #tpu.memory_space<vmem>>, vector<1x128xf32>
    %8 = vector.broadcast %7 : vector<1x128xf32> to vector<16x128xf32>
    %9 = arith.addf %6, %8 : vector<16x128xf32>
    %c0_6 = arith.constant 0 : index
    %c0_7 = arith.constant 0 : index
    %10 = vector.load %arg7[%c0_6, %c0_7] : memref<16x128xf32, #tpu.memory_space<vmem>>, vector<16x128xf32>
    tpu.vector_store %arg7[%c0_6, %c0_7], %9 {strides = array<i32>} : memref<16x128xf32, #tpu.memory_space<vmem>>, vector<16x128xf32>,
    return
  }
  func.func @transform_0(%arg0: i32, %arg1: i32) -> (i32, i32) {
    %c0_i32 = arith.constant 0 : i32
    %c0_i32_0 = arith.constant 0 : i32
    return %arg0, %c0_i32 : i32, i32
  }
  func.func @transform_1(%arg0: i32, %arg1: i32) -> (i32, i32) {
    %c0_i32 = arith.constant 0 : i32
    %c0_i32_0 = arith.constant 0 : i32
    %c0_i32_1 = arith.constant 0 : i32
    return %c0_i32, %c0_i32_0 : i32, i32
  }
  func.func @transform_2(%arg0: i32, %arg1: i32) -> (i32, i32) {
    %c0_i32 = arith.constant 0 : i32
    %c0_i32_0 = arith.constant 0 : i32
    %c0_i32_1 = arith.constant 0 : i32
    return %c0_i32, %c0_i32_0 : i32, i32
  }
  func.func @transform_3(%arg0: i32, %arg1: i32) -> (i32, i32) {
    %c0_i32 = arith.constant 0 : i32
    %c0_i32_0 = arith.constant 0 : i32
    return %c0_i32, %arg1 : i32, i32
  }
  func.func @transform_4(%arg0: i32, %arg1: i32) -> (i32, i32) {
    %c0_i32 = arith.constant 0 : i32
    %c0_i32_0 = arith.constant 0 : i32
    return %c0_i32, %arg1 : i32, i32
  }
  func.func @transform_5(%arg0: i32, %arg1: i32) -> (i32, i32) {
    %c0_i32 = arith.constant 0 : i32
    return %arg0, %arg1 : i32, i32
  }
}

module attributes {stable_mosaic.version = 11 : i64} {
  func.func @_encoder_stack_kernel(%arg0: i32, %arg1: i32, %arg2: memref<1x8x32xf32, #tpu.memory_space<vmem>>, %arg3: memref<1x4x32x8xbf16, #tpu.memory_space<vmem>>, %arg4: memref<1x4x32x8xbf16, #tpu.memory_space<vmem>>, %arg5: memref<1x4x32x8xbf16, #tpu.memory_space<vmem>>, %arg6: memref<1x4x1x8xf32, #tpu.memory_space<vmem>>, %arg7: memref<1x4x1x8xf32, #tpu.memory_space<vmem>>, %arg8: memref<1x4x1x8xf32, #tpu.memory_space<vmem>>, %arg9: memref<1x4x8x32xbf16, #tpu.memory_space<vmem>>, %arg10: memref<1x1x32xf32, #tpu.memory_space<vmem>>, %arg11: memref<1x1x32xf32, #tpu.memory_space<vmem>>, %arg12: memref<1x1x32xf32, #tpu.memory_space<vmem>>, %arg13: memref<1x32x64xbf16, #tpu.memory_space<vmem>>, %arg14: memref<1x1x64xf32, #tpu.memory_space<vmem>>, %arg15: memref<1x64x32xbf16, #tpu.memory_space<vmem>>, %arg16: memref<1x1x32xf32, #tpu.memory_space<vmem>>, %arg17: memref<1x1x32xf32, #tpu.memory_space<vmem>>, %arg18: memref<1x1x32xf32, #tpu.memory_space<vmem>>, %arg19: memref<1x32xf32, #tpu.memory_space<vmem>>, %arg20: memref<1x32xf32, #tpu.memory_space<vmem>>, %arg21: memref<1x8x32xf32, #tpu.memory_space<vmem>>, %arg22: memref<8x32xf32, #tpu.memory_space<vmem>>) attributes {dimension_semantics = [#tpu.dimension_semantics<parallel>, #tpu.dimension_semantics<arbitrary>], iteration_bounds = array<i64: 2, 2>, scalar_prefetch = 0 : i64, scratch_operands = 1 : i64, tpu.core_type = #tpu.core_type<tc>, window_params = [{transform_indices = @transform_0, window_bounds = array<i64: 1, 8, 32>}, {transform_indices = @transform_1, window_bounds = array<i64: 1, 4, 32, 8>}, {transform_indices = @transform_2, window_bounds = array<i64: 1, 4, 32, 8>}, {transform_indices = @transform_3, window_bounds = array<i64: 1, 4, 32, 8>}, {transform_indices = @transform_4, window_bounds = array<i64: 1, 4, 1, 8>}, {transform_indices = @transform_5, window_bounds = array<i64: 1, 4, 1, 8>}, {transform_indices = @transform_6, window_bounds = array<i64: 1, 4, 1, 8>}, {transform_indices = @transform_7, window_bounds = array<i64: 1, 4, 8, 32>}, {transform_indices = @transform_8, window_bounds = array<i64: 1, 1, 32>}, {transform_indices = @transform_9, window_bounds = array<i64: 1, 1, 32>}, {transform_indices = @transform_10, window_bounds = array<i64: 1, 1, 32>}, {transform_indices = @transform_11, window_bounds = array<i64: 1, 32, 64>}, {transform_indices = @transform_12, window_bounds = array<i64: 1, 1, 64>}, {transform_indices = @transform_13, window_bounds = array<i64: 1, 64, 32>}, {transform_indices = @transform_14, window_bounds = array<i64: 1, 1, 32>}, {transform_indices = @transform_15, window_bounds = array<i64: 1, 1, 32>}, {transform_indices = @transform_16, window_bounds = array<i64: 1, 1, 32>}, {pipeline_mode = #tpu.pipeline_mode<synchronous>, transform_indices = @transform_17, window_bounds = array<i64: 1, 32>}, {pipeline_mode = #tpu.pipeline_mode<synchronous>, transform_indices = @transform_18, window_bounds = array<i64: 1, 32>}, {transform_indices = @transform_19, window_bounds = array<i64: 1, 8, 32>}]} {
    %c0_i32 = arith.constant 0 : i32
    %0 = arith.cmpi eq, %arg1, %c0_i32 : i32
    %1 = arith.extui %0 : i1 to i32
    %c0_i32_0 = arith.constant 0 : i32
    %2 = arith.cmpi ne, %1, %c0_i32_0 : i32
    scf.if %2 {
      %c0_190 = arith.constant 0 : index
      %c0_191 = arith.constant 0 : index
      %c0_192 = arith.constant 0 : index
      %259 = vector.load %arg2[%c0_190, %c0_191, %c0_192] : memref<1x8x32xf32, #tpu.memory_space<vmem>>, vector<1x8x32xf32>
      %260 = vector.shape_cast %259 : vector<1x8x32xf32> to vector<8x32xf32>
      %c0_193 = arith.constant 0 : index
      %c0_194 = arith.constant 0 : index
      %261 = vector.load %arg22[%c0_193, %c0_194] : memref<8x32xf32, #tpu.memory_space<vmem>>, vector<8x32xf32>
      tpu.vector_store %arg22[%c0_193, %c0_194], %260 {strides = array<i32>} : memref<8x32xf32, #tpu.memory_space<vmem>>, vector<8x32xf32>,
    } else {
    }
    %c0 = arith.constant 0 : index
    %c0_1 = arith.constant 0 : index
    %3 = vector.load %arg22[%c0, %c0_1] : memref<8x32xf32, #tpu.memory_space<vmem>>, vector<8x32xf32>
    %4 = arith.truncf %3 : vector<8x32xf32> to vector<8x32xbf16>
    %5 = arith.truncf %3 : vector<8x32xf32> to vector<8x32xbf16>
    %cst = arith.constant 0.000000e+00 : f32
    %6 = vector.broadcast %cst : f32 to vector<8x32xf32>
    %c0_2 = arith.constant 0 : index
    %c0_3 = arith.constant 0 : index
    %c0_4 = arith.constant 0 : index
    %c0_5 = arith.constant 0 : index
    %7 = vector.load %arg3[%c0_2, %c0_3, %c0_4, %c0_5] : memref<1x4x32x8xbf16, #tpu.memory_space<vmem>>, vector<1x1x32x8xbf16>
    %8 = vector.shape_cast %7 : vector<1x1x32x8xbf16> to vector<32x8xbf16>
    %cst_6 = arith.constant dense<0.000000e+00> : vector<8x8xf32>
    %9 = tpu.matmul %4, %8, %cst_6 {dimension_numbers = #tpu.dot_dimension_numbers<[1], [0], [0], [1], [0, 0, 1, 1], [], []>} : vector<8x32xbf16>, vector<32x8xbf16>, vector<8x8xf32> -> vector<8x8xf32>
    %c0_7 = arith.constant 0 : index
    %c0_8 = arith.constant 0 : index
    %c0_9 = arith.constant 0 : index
    %c0_10 = arith.constant 0 : index
    %10 = vector.load %arg6[%c0_7, %c0_8, %c0_9, %c0_10] : memref<1x4x1x8xf32, #tpu.memory_space<vmem>>, vector<1x1x1x8xf32>
    %11 = vector.shape_cast %10 : vector<1x1x1x8xf32> to vector<1x8xf32>
    %12 = vector.broadcast %11 : vector<1x8xf32> to vector<8x8xf32>
    %13 = arith.addf %9, %12 : vector<8x8xf32>
    %c0_11 = arith.constant 0 : index
    %c0_12 = arith.constant 0 : index
    %c0_13 = arith.constant 0 : index
    %c0_14 = arith.constant 0 : index
    %14 = vector.load %arg4[%c0_11, %c0_12, %c0_13, %c0_14] : memref<1x4x32x8xbf16, #tpu.memory_space<vmem>>, vector<1x1x32x8xbf16>
    %15 = vector.shape_cast %14 : vector<1x1x32x8xbf16> to vector<32x8xbf16>
    %cst_15 = arith.constant dense<0.000000e+00> : vector<8x8xf32>
    %16 = tpu.matmul %5, %15, %cst_15 {dimension_numbers = #tpu.dot_dimension_numbers<[1], [0], [0], [1], [0, 0, 1, 1], [], []>} : vector<8x32xbf16>, vector<32x8xbf16>, vector<8x8xf32> -> vector<8x8xf32>
    %c0_16 = arith.constant 0 : index
    %c0_17 = arith.constant 0 : index
    %c0_18 = arith.constant 0 : index
    %c0_19 = arith.constant 0 : index
    %17 = vector.load %arg7[%c0_16, %c0_17, %c0_18, %c0_19] : memref<1x4x1x8xf32, #tpu.memory_space<vmem>>, vector<1x1x1x8xf32>
    %18 = vector.shape_cast %17 : vector<1x1x1x8xf32> to vector<1x8xf32>
    %19 = vector.broadcast %18 : vector<1x8xf32> to vector<8x8xf32>
    %20 = arith.addf %16, %19 : vector<8x8xf32>
    %c0_20 = arith.constant 0 : index
    %c0_21 = arith.constant 0 : index
    %c0_22 = arith.constant 0 : index
    %c0_23 = arith.constant 0 : index
    %21 = vector.load %arg5[%c0_20, %c0_21, %c0_22, %c0_23] : memref<1x4x32x8xbf16, #tpu.memory_space<vmem>>, vector<1x1x32x8xbf16>
    %22 = vector.shape_cast %21 : vector<1x1x32x8xbf16> to vector<32x8xbf16>
    %cst_24 = arith.constant dense<0.000000e+00> : vector<8x8xf32>
    %23 = tpu.matmul %5, %22, %cst_24 {dimension_numbers = #tpu.dot_dimension_numbers<[1], [0], [0], [1], [0, 0, 1, 1], [], []>} : vector<8x32xbf16>, vector<32x8xbf16>, vector<8x8xf32> -> vector<8x8xf32>
    %c0_25 = arith.constant 0 : index
    %c0_26 = arith.constant 0 : index
    %c0_27 = arith.constant 0 : index
    %c0_28 = arith.constant 0 : index
    %24 = vector.load %arg8[%c0_25, %c0_26, %c0_27, %c0_28] : memref<1x4x1x8xf32, #tpu.memory_space<vmem>>, vector<1x1x1x8xf32>
    %25 = vector.shape_cast %24 : vector<1x1x1x8xf32> to vector<1x8xf32>
    %26 = vector.broadcast %25 : vector<1x8xf32> to vector<8x8xf32>
    %27 = arith.addf %23, %26 : vector<8x8xf32>
    %28 = arith.truncf %13 : vector<8x8xf32> to vector<8x8xbf16>
    %29 = arith.truncf %20 : vector<8x8xf32> to vector<8x8xbf16>
    %cst_29 = arith.constant dense<0.000000e+00> : vector<8x8xf32>
    %30 = tpu.matmul %28, %29, %cst_29 {dimension_numbers = #tpu.dot_dimension_numbers<[1], [1], [0], [0], [0, 0, 1, 0], [], []>} : vector<8x8xbf16>, vector<8x8xbf16>, vector<8x8xf32> -> vector<8x8xf32>
    %cst_30 = arith.constant 0.353553385 : f32
    %31 = vector.broadcast %cst_30 : f32 to vector<8x8xf32>
    %32 = arith.mulf %30, %31 : vector<8x8xf32>
    %cst_31 = arith.constant dense<0xFF800000> : vector<8xf32>
    %33 = vector.multi_reduction <maximumf>, %32, %cst_31 [1] : vector<8x8xf32> to vector<8xf32>
    %34 = vector.shape_cast %33 : vector<8xf32> to vector<8x1xf32>
    %35 = vector.broadcast %34 : vector<8x1xf32> to vector<8x8xf32>
    %36 = arith.subf %32, %35 : vector<8x8xf32>
    %37 = math.exp %36 : vector<8x8xf32>
    %cst_32 = arith.constant dense<0.000000e+00> : vector<8xf32>
    %38 = vector.multi_reduction <add>, %37, %cst_32 [1] : vector<8x8xf32> to vector<8xf32>
    %39 = vector.shape_cast %38 : vector<8xf32> to vector<8x1xf32>
    %40 = tpu.reciprocal %39 {approx = true} : vector<8x1xf32> -> vector<8x1xf32>
    %41 = vector.broadcast %40 : vector<8x1xf32> to vector<8x8xf32>
    %42 = arith.mulf %37, %41 : vector<8x8xf32>
    %43 = arith.truncf %42 : vector<8x8xf32> to vector<8x8xbf16>
    %44 = arith.truncf %27 : vector<8x8xf32> to vector<8x8xbf16>
    %cst_33 = arith.constant dense<0.000000e+00> : vector<8x8xf32>
    %45 = tpu.matmul %43, %44, %cst_33 {dimension_numbers = #tpu.dot_dimension_numbers<[1], [0], [0], [1], [0, 0, 1, 1], [], []>} : vector<8x8xbf16>, vector<8x8xbf16>, vector<8x8xf32> -> vector<8x8xf32>
    %46 = arith.truncf %45 : vector<8x8xf32> to vector<8x8xbf16>
    %c0_34 = arith.constant 0 : index
    %c0_35 = arith.constant 0 : index
    %c0_36 = arith.constant 0 : index
    %c0_37 = arith.constant 0 : index
    %47 = vector.load %arg9[%c0_34, %c0_35, %c0_36, %c0_37] : memref<1x4x8x32xbf16, #tpu.memory_space<vmem>>, vector<1x1x8x32xbf16>
    %48 = vector.shape_cast %47 : vector<1x1x8x32xbf16> to vector<8x32xbf16>
    %cst_38 = arith.constant dense<0.000000e+00> : vector<8x32xf32>
    %49 = tpu.matmul %46, %48, %cst_38 {dimension_numbers = #tpu.dot_dimension_numbers<[1], [0], [0], [1], [0, 0, 1, 1], [], []>} : vector<8x8xbf16>, vector<8x32xbf16>, vector<8x32xf32> -> vector<8x32xf32>
    %50 = arith.addf %6, %49 : vector<8x32xf32>
    %c0_39 = arith.constant 0 : index
    %c1 = arith.constant 1 : index
    %c0_40 = arith.constant 0 : index
    %c0_41 = arith.constant 0 : index
    %51 = vector.load %arg3[%c0_39, %c1, %c0_40, %c0_41] : memref<1x4x32x8xbf16, #tpu.memory_space<vmem>>, vector<1x1x32x8xbf16>
    %52 = vector.shape_cast %51 : vector<1x1x32x8xbf16> to vector<32x8xbf16>
    %cst_42 = arith.constant dense<0.000000e+00> : vector<8x8xf32>
    %53 = tpu.matmul %4, %52, %cst_42 {dimension_numbers = #tpu.dot_dimension_numbers<[1], [0], [0], [1], [0, 0, 1, 1], [], []>} : vector<8x32xbf16>, vector<32x8xbf16>, vector<8x8xf32> -> vector<8x8xf32>
    %c0_43 = arith.constant 0 : index
    %c1_44 = arith.constant 1 : index
    %c0_45 = arith.constant 0 : index
    %c0_46 = arith.constant 0 : index
    %54 = vector.load %arg6[%c0_43, %c1_44, %c0_45, %c0_46] : memref<1x4x1x8xf32, #tpu.memory_space<vmem>>, vector<1x1x1x8xf32>
    %55 = vector.shape_cast %54 : vector<1x1x1x8xf32> to vector<1x8xf32>
    %56 = vector.broadcast %55 : vector<1x8xf32> to vector<8x8xf32>
    %57 = arith.addf %53, %56 : vector<8x8xf32>
    %c0_47 = arith.constant 0 : index
    %c1_48 = arith.constant 1 : index
    %c0_49 = arith.constant 0 : index
    %c0_50 = arith.constant 0 : index
    %58 = vector.load %arg4[%c0_47, %c1_48, %c0_49, %c0_50] : memref<1x4x32x8xbf16, #tpu.memory_space<vmem>>, vector<1x1x32x8xbf16>
    %59 = vector.shape_cast %58 : vector<1x1x32x8xbf16> to vector<32x8xbf16>
    %cst_51 = arith.constant dense<0.000000e+00> : vector<8x8xf32>
    %60 = tpu.matmul %5, %59, %cst_51 {dimension_numbers = #tpu.dot_dimension_numbers<[1], [0], [0], [1], [0, 0, 1, 1], [], []>} : vector<8x32xbf16>, vector<32x8xbf16>, vector<8x8xf32> -> vector<8x8xf32>
    %c0_52 = arith.constant 0 : index
    %c1_53 = arith.constant 1 : index
    %c0_54 = arith.constant 0 : index
    %c0_55 = arith.constant 0 : index
    %61 = vector.load %arg7[%c0_52, %c1_53, %c0_54, %c0_55] : memref<1x4x1x8xf32, #tpu.memory_space<vmem>>, vector<1x1x1x8xf32>
    %62 = vector.shape_cast %61 : vector<1x1x1x8xf32> to vector<1x8xf32>
    %63 = vector.broadcast %62 : vector<1x8xf32> to vector<8x8xf32>
    %64 = arith.addf %60, %63 : vector<8x8xf32>
    %c0_56 = arith.constant 0 : index
    %c1_57 = arith.constant 1 : index
    %c0_58 = arith.constant 0 : index
    %c0_59 = arith.constant 0 : index
    %65 = vector.load %arg5[%c0_56, %c1_57, %c0_58, %c0_59] : memref<1x4x32x8xbf16, #tpu.memory_space<vmem>>, vector<1x1x32x8xbf16>
    %66 = vector.shape_cast %65 : vector<1x1x32x8xbf16> to vector<32x8xbf16>
    %cst_60 = arith.constant dense<0.000000e+00> : vector<8x8xf32>
    %67 = tpu.matmul %5, %66, %cst_60 {dimension_numbers = #tpu.dot_dimension_numbers<[1], [0], [0], [1], [0, 0, 1, 1], [], []>} : vector<8x32xbf16>, vector<32x8xbf16>, vector<8x8xf32> -> vector<8x8xf32>
    %c0_61 = arith.constant 0 : index
    %c1_62 = arith.constant 1 : index
    %c0_63 = arith.constant 0 : index
    %c0_64 = arith.constant 0 : index
    %68 = vector.load %arg8[%c0_61, %c1_62, %c0_63, %c0_64] : memref<1x4x1x8xf32, #tpu.memory_space<vmem>>, vector<1x1x1x8xf32>
    %69 = vector.shape_cast %68 : vector<1x1x1x8xf32> to vector<1x8xf32>
    %70 = vector.broadcast %69 : vector<1x8xf32> to vector<8x8xf32>
    %71 = arith.addf %67, %70 : vector<8x8xf32>
    %72 = arith.truncf %57 : vector<8x8xf32> to vector<8x8xbf16>
    %73 = arith.truncf %64 : vector<8x8xf32> to vector<8x8xbf16>
    %cst_65 = arith.constant dense<0.000000e+00> : vector<8x8xf32>
    %74 = tpu.matmul %72, %73, %cst_65 {dimension_numbers = #tpu.dot_dimension_numbers<[1], [1], [0], [0], [0, 0, 1, 0], [], []>} : vector<8x8xbf16>, vector<8x8xbf16>, vector<8x8xf32> -> vector<8x8xf32>
    %cst_66 = arith.constant 0.353553385 : f32
    %75 = vector.broadcast %cst_66 : f32 to vector<8x8xf32>
    %76 = arith.mulf %74, %75 : vector<8x8xf32>
    %cst_67 = arith.constant dense<0xFF800000> : vector<8xf32>
    %77 = vector.multi_reduction <maximumf>, %76, %cst_67 [1] : vector<8x8xf32> to vector<8xf32>
    %78 = vector.shape_cast %77 : vector<8xf32> to vector<8x1xf32>
    %79 = vector.broadcast %78 : vector<8x1xf32> to vector<8x8xf32>
    %80 = arith.subf %76, %79 : vector<8x8xf32>
    %81 = math.exp %80 : vector<8x8xf32>
    %cst_68 = arith.constant dense<0.000000e+00> : vector<8xf32>
    %82 = vector.multi_reduction <add>, %81, %cst_68 [1] : vector<8x8xf32> to vector<8xf32>
    %83 = vector.shape_cast %82 : vector<8xf32> to vector<8x1xf32>
    %84 = tpu.reciprocal %83 {approx = true} : vector<8x1xf32> -> vector<8x1xf32>
    %85 = vector.broadcast %84 : vector<8x1xf32> to vector<8x8xf32>
    %86 = arith.mulf %81, %85 : vector<8x8xf32>
    %87 = arith.truncf %86 : vector<8x8xf32> to vector<8x8xbf16>
    %88 = arith.truncf %71 : vector<8x8xf32> to vector<8x8xbf16>
    %cst_69 = arith.constant dense<0.000000e+00> : vector<8x8xf32>
    %89 = tpu.matmul %87, %88, %cst_69 {dimension_numbers = #tpu.dot_dimension_numbers<[1], [0], [0], [1], [0, 0, 1, 1], [], []>} : vector<8x8xbf16>, vector<8x8xbf16>, vector<8x8xf32> -> vector<8x8xf32>
    %90 = arith.truncf %89 : vector<8x8xf32> to vector<8x8xbf16>
    %c0_70 = arith.constant 0 : index
    %c1_71 = arith.constant 1 : index
    %c0_72 = arith.constant 0 : index
    %c0_73 = arith.constant 0 : index
    %91 = vector.load %arg9[%c0_70, %c1_71, %c0_72, %c0_73] : memref<1x4x8x32xbf16, #tpu.memory_space<vmem>>, vector<1x1x8x32xbf16>
    %92 = vector.shape_cast %91 : vector<1x1x8x32xbf16> to vector<8x32xbf16>
    %cst_74 = arith.constant dense<0.000000e+00> : vector<8x32xf32>
    %93 = tpu.matmul %90, %92, %cst_74 {dimension_numbers = #tpu.dot_dimension_numbers<[1], [0], [0], [1], [0, 0, 1, 1], [], []>} : vector<8x8xbf16>, vector<8x32xbf16>, vector<8x32xf32> -> vector<8x32xf32>
    %94 = arith.addf %50, %93 : vector<8x32xf32>
    %c0_75 = arith.constant 0 : index
    %c2 = arith.constant 2 : index
    %c0_76 = arith.constant 0 : index
    %c0_77 = arith.constant 0 : index
    %95 = vector.load %arg3[%c0_75, %c2, %c0_76, %c0_77] : memref<1x4x32x8xbf16, #tpu.memory_space<vmem>>, vector<1x1x32x8xbf16>
    %96 = vector.shape_cast %95 : vector<1x1x32x8xbf16> to vector<32x8xbf16>
    %cst_78 = arith.constant dense<0.000000e+00> : vector<8x8xf32>
    %97 = tpu.matmul %4, %96, %cst_78 {dimension_numbers = #tpu.dot_dimension_numbers<[1], [0], [0], [1], [0, 0, 1, 1], [], []>} : vector<8x32xbf16>, vector<32x8xbf16>, vector<8x8xf32> -> vector<8x8xf32>
    %c0_79 = arith.constant 0 : index
    %c2_80 = arith.constant 2 : index
    %c0_81 = arith.constant 0 : index
    %c0_82 = arith.constant 0 : index
    %98 = vector.load %arg6[%c0_79, %c2_80, %c0_81, %c0_82] : memref<1x4x1x8xf32, #tpu.memory_space<vmem>>, vector<1x1x1x8xf32>
    %99 = vector.shape_cast %98 : vector<1x1x1x8xf32> to vector<1x8xf32>
    %100 = vector.broadcast %99 : vector<1x8xf32> to vector<8x8xf32>
    %101 = arith.addf %97, %100 : vector<8x8xf32>
    %c0_83 = arith.constant 0 : index
    %c2_84 = arith.constant 2 : index
    %c0_85 = arith.constant 0 : index
    %c0_86 = arith.constant 0 : index
    %102 = vector.load %arg4[%c0_83, %c2_84, %c0_85, %c0_86] : memref<1x4x32x8xbf16, #tpu.memory_space<vmem>>, vector<1x1x32x8xbf16>
    %103 = vector.shape_cast %102 : vector<1x1x32x8xbf16> to vector<32x8xbf16>
    %cst_87 = arith.constant dense<0.000000e+00> : vector<8x8xf32>
    %104 = tpu.matmul %5, %103, %cst_87 {dimension_numbers = #tpu.dot_dimension_numbers<[1], [0], [0], [1], [0, 0, 1, 1], [], []>} : vector<8x32xbf16>, vector<32x8xbf16>, vector<8x8xf32> -> vector<8x8xf32>
    %c0_88 = arith.constant 0 : index
    %c2_89 = arith.constant 2 : index
    %c0_90 = arith.constant 0 : index
    %c0_91 = arith.constant 0 : index
    %105 = vector.load %arg7[%c0_88, %c2_89, %c0_90, %c0_91] : memref<1x4x1x8xf32, #tpu.memory_space<vmem>>, vector<1x1x1x8xf32>
    %106 = vector.shape_cast %105 : vector<1x1x1x8xf32> to vector<1x8xf32>
    %107 = vector.broadcast %106 : vector<1x8xf32> to vector<8x8xf32>
    %108 = arith.addf %104, %107 : vector<8x8xf32>
    %c0_92 = arith.constant 0 : index
    %c2_93 = arith.constant 2 : index
    %c0_94 = arith.constant 0 : index
    %c0_95 = arith.constant 0 : index
    %109 = vector.load %arg5[%c0_92, %c2_93, %c0_94, %c0_95] : memref<1x4x32x8xbf16, #tpu.memory_space<vmem>>, vector<1x1x32x8xbf16>
    %110 = vector.shape_cast %109 : vector<1x1x32x8xbf16> to vector<32x8xbf16>
    %cst_96 = arith.constant dense<0.000000e+00> : vector<8x8xf32>
    %111 = tpu.matmul %5, %110, %cst_96 {dimension_numbers = #tpu.dot_dimension_numbers<[1], [0], [0], [1], [0, 0, 1, 1], [], []>} : vector<8x32xbf16>, vector<32x8xbf16>, vector<8x8xf32> -> vector<8x8xf32>
    %c0_97 = arith.constant 0 : index
    %c2_98 = arith.constant 2 : index
    %c0_99 = arith.constant 0 : index
    %c0_100 = arith.constant 0 : index
    %112 = vector.load %arg8[%c0_97, %c2_98, %c0_99, %c0_100] : memref<1x4x1x8xf32, #tpu.memory_space<vmem>>, vector<1x1x1x8xf32>
    %113 = vector.shape_cast %112 : vector<1x1x1x8xf32> to vector<1x8xf32>
    %114 = vector.broadcast %113 : vector<1x8xf32> to vector<8x8xf32>
    %115 = arith.addf %111, %114 : vector<8x8xf32>
    %116 = arith.truncf %101 : vector<8x8xf32> to vector<8x8xbf16>
    %117 = arith.truncf %108 : vector<8x8xf32> to vector<8x8xbf16>
    %cst_101 = arith.constant dense<0.000000e+00> : vector<8x8xf32>
    %118 = tpu.matmul %116, %117, %cst_101 {dimension_numbers = #tpu.dot_dimension_numbers<[1], [1], [0], [0], [0, 0, 1, 0], [], []>} : vector<8x8xbf16>, vector<8x8xbf16>, vector<8x8xf32> -> vector<8x8xf32>
    %cst_102 = arith.constant 0.353553385 : f32
    %119 = vector.broadcast %cst_102 : f32 to vector<8x8xf32>
    %120 = arith.mulf %118, %119 : vector<8x8xf32>
    %cst_103 = arith.constant dense<0xFF800000> : vector<8xf32>
    %121 = vector.multi_reduction <maximumf>, %120, %cst_103 [1] : vector<8x8xf32> to vector<8xf32>
    %122 = vector.shape_cast %121 : vector<8xf32> to vector<8x1xf32>
    %123 = vector.broadcast %122 : vector<8x1xf32> to vector<8x8xf32>
    %124 = arith.subf %120, %123 : vector<8x8xf32>
    %125 = math.exp %124 : vector<8x8xf32>
    %cst_104 = arith.constant dense<0.000000e+00> : vector<8xf32>
    %126 = vector.multi_reduction <add>, %125, %cst_104 [1] : vector<8x8xf32> to vector<8xf32>
    %127 = vector.shape_cast %126 : vector<8xf32> to vector<8x1xf32>
    %128 = tpu.reciprocal %127 {approx = true} : vector<8x1xf32> -> vector<8x1xf32>
    %129 = vector.broadcast %128 : vector<8x1xf32> to vector<8x8xf32>
    %130 = arith.mulf %125, %129 : vector<8x8xf32>
    %131 = arith.truncf %130 : vector<8x8xf32> to vector<8x8xbf16>
    %132 = arith.truncf %115 : vector<8x8xf32> to vector<8x8xbf16>
    %cst_105 = arith.constant dense<0.000000e+00> : vector<8x8xf32>
    %133 = tpu.matmul %131, %132, %cst_105 {dimension_numbers = #tpu.dot_dimension_numbers<[1], [0], [0], [1], [0, 0, 1, 1], [], []>} : vector<8x8xbf16>, vector<8x8xbf16>, vector<8x8xf32> -> vector<8x8xf32>
    %134 = arith.truncf %133 : vector<8x8xf32> to vector<8x8xbf16>
    %c0_106 = arith.constant 0 : index
    %c2_107 = arith.constant 2 : index
    %c0_108 = arith.constant 0 : index
    %c0_109 = arith.constant 0 : index
    %135 = vector.load %arg9[%c0_106, %c2_107, %c0_108, %c0_109] : memref<1x4x8x32xbf16, #tpu.memory_space<vmem>>, vector<1x1x8x32xbf16>
    %136 = vector.shape_cast %135 : vector<1x1x8x32xbf16> to vector<8x32xbf16>
    %cst_110 = arith.constant dense<0.000000e+00> : vector<8x32xf32>
    %137 = tpu.matmul %134, %136, %cst_110 {dimension_numbers = #tpu.dot_dimension_numbers<[1], [0], [0], [1], [0, 0, 1, 1], [], []>} : vector<8x8xbf16>, vector<8x32xbf16>, vector<8x32xf32> -> vector<8x32xf32>
    %138 = arith.addf %94, %137 : vector<8x32xf32>
    %c0_111 = arith.constant 0 : index
    %c3 = arith.constant 3 : index
    %c0_112 = arith.constant 0 : index
    %c0_113 = arith.constant 0 : index
    %139 = vector.load %arg3[%c0_111, %c3, %c0_112, %c0_113] : memref<1x4x32x8xbf16, #tpu.memory_space<vmem>>, vector<1x1x32x8xbf16>
    %140 = vector.shape_cast %139 : vector<1x1x32x8xbf16> to vector<32x8xbf16>
    %cst_114 = arith.constant dense<0.000000e+00> : vector<8x8xf32>
    %141 = tpu.matmul %4, %140, %cst_114 {dimension_numbers = #tpu.dot_dimension_numbers<[1], [0], [0], [1], [0, 0, 1, 1], [], []>} : vector<8x32xbf16>, vector<32x8xbf16>, vector<8x8xf32> -> vector<8x8xf32>
    %c0_115 = arith.constant 0 : index
    %c3_116 = arith.constant 3 : index
    %c0_117 = arith.constant 0 : index
    %c0_118 = arith.constant 0 : index
    %142 = vector.load %arg6[%c0_115, %c3_116, %c0_117, %c0_118] : memref<1x4x1x8xf32, #tpu.memory_space<vmem>>, vector<1x1x1x8xf32>
    %143 = vector.shape_cast %142 : vector<1x1x1x8xf32> to vector<1x8xf32>
    %144 = vector.broadcast %143 : vector<1x8xf32> to vector<8x8xf32>
    %145 = arith.addf %141, %144 : vector<8x8xf32>
    %c0_119 = arith.constant 0 : index
    %c3_120 = arith.constant 3 : index
    %c0_121 = arith.constant 0 : index
    %c0_122 = arith.constant 0 : index
    %146 = vector.load %arg4[%c0_119, %c3_120, %c0_121, %c0_122] : memref<1x4x32x8xbf16, #tpu.memory_space<vmem>>, vector<1x1x32x8xbf16>
    %147 = vector.shape_cast %146 : vector<1x1x32x8xbf16> to vector<32x8xbf16>
    %cst_123 = arith.constant dense<0.000000e+00> : vector<8x8xf32>
    %148 = tpu.matmul %5, %147, %cst_123 {dimension_numbers = #tpu.dot_dimension_numbers<[1], [0], [0], [1], [0, 0, 1, 1], [], []>} : vector<8x32xbf16>, vector<32x8xbf16>, vector<8x8xf32> -> vector<8x8xf32>
    %c0_124 = arith.constant 0 : index
    %c3_125 = arith.constant 3 : index
    %c0_126 = arith.constant 0 : index
    %c0_127 = arith.constant 0 : index
    %149 = vector.load %arg7[%c0_124, %c3_125, %c0_126, %c0_127] : memref<1x4x1x8xf32, #tpu.memory_space<vmem>>, vector<1x1x1x8xf32>
    %150 = vector.shape_cast %149 : vector<1x1x1x8xf32> to vector<1x8xf32>
    %151 = vector.broadcast %150 : vector<1x8xf32> to vector<8x8xf32>
    %152 = arith.addf %148, %151 : vector<8x8xf32>
    %c0_128 = arith.constant 0 : index
    %c3_129 = arith.constant 3 : index
    %c0_130 = arith.constant 0 : index
    %c0_131 = arith.constant 0 : index
    %153 = vector.load %arg5[%c0_128, %c3_129, %c0_130, %c0_131] : memref<1x4x32x8xbf16, #tpu.memory_space<vmem>>, vector<1x1x32x8xbf16>
    %154 = vector.shape_cast %153 : vector<1x1x32x8xbf16> to vector<32x8xbf16>
    %cst_132 = arith.constant dense<0.000000e+00> : vector<8x8xf32>
    %155 = tpu.matmul %5, %154, %cst_132 {dimension_numbers = #tpu.dot_dimension_numbers<[1], [0], [0], [1], [0, 0, 1, 1], [], []>} : vector<8x32xbf16>, vector<32x8xbf16>, vector<8x8xf32> -> vector<8x8xf32>
    %c0_133 = arith.constant 0 : index
    %c3_134 = arith.constant 3 : index
    %c0_135 = arith.constant 0 : index
    %c0_136 = arith.constant 0 : index
    %156 = vector.load %arg8[%c0_133, %c3_134, %c0_135, %c0_136] : memref<1x4x1x8xf32, #tpu.memory_space<vmem>>, vector<1x1x1x8xf32>
    %157 = vector.shape_cast %156 : vector<1x1x1x8xf32> to vector<1x8xf32>
    %158 = vector.broadcast %157 : vector<1x8xf32> to vector<8x8xf32>
    %159 = arith.addf %155, %158 : vector<8x8xf32>
    %160 = arith.truncf %145 : vector<8x8xf32> to vector<8x8xbf16>
    %161 = arith.truncf %152 : vector<8x8xf32> to vector<8x8xbf16>
    %cst_137 = arith.constant dense<0.000000e+00> : vector<8x8xf32>
    %162 = tpu.matmul %160, %161, %cst_137 {dimension_numbers = #tpu.dot_dimension_numbers<[1], [1], [0], [0], [0, 0, 1, 0], [], []>} : vector<8x8xbf16>, vector<8x8xbf16>, vector<8x8xf32> -> vector<8x8xf32>
    %cst_138 = arith.constant 0.353553385 : f32
    %163 = vector.broadcast %cst_138 : f32 to vector<8x8xf32>
    %164 = arith.mulf %162, %163 : vector<8x8xf32>
    %cst_139 = arith.constant dense<0xFF800000> : vector<8xf32>
    %165 = vector.multi_reduction <maximumf>, %164, %cst_139 [1] : vector<8x8xf32> to vector<8xf32>
    %166 = vector.shape_cast %165 : vector<8xf32> to vector<8x1xf32>
    %167 = vector.broadcast %166 : vector<8x1xf32> to vector<8x8xf32>
    %168 = arith.subf %164, %167 : vector<8x8xf32>
    %169 = math.exp %168 : vector<8x8xf32>
    %cst_140 = arith.constant dense<0.000000e+00> : vector<8xf32>
    %170 = vector.multi_reduction <add>, %169, %cst_140 [1] : vector<8x8xf32> to vector<8xf32>
    %171 = vector.shape_cast %170 : vector<8xf32> to vector<8x1xf32>
    %172 = tpu.reciprocal %171 {approx = true} : vector<8x1xf32> -> vector<8x1xf32>
    %173 = vector.broadcast %172 : vector<8x1xf32> to vector<8x8xf32>
    %174 = arith.mulf %169, %173 : vector<8x8xf32>
    %175 = arith.truncf %174 : vector<8x8xf32> to vector<8x8xbf16>
    %176 = arith.truncf %159 : vector<8x8xf32> to vector<8x8xbf16>
    %cst_141 = arith.constant dense<0.000000e+00> : vector<8x8xf32>
    %177 = tpu.matmul %175, %176, %cst_141 {dimension_numbers = #tpu.dot_dimension_numbers<[1], [0], [0], [1], [0, 0, 1, 1], [], []>} : vector<8x8xbf16>, vector<8x8xbf16>, vector<8x8xf32> -> vector<8x8xf32>
    %178 = arith.truncf %177 : vector<8x8xf32> to vector<8x8xbf16>
    %c0_142 = arith.constant 0 : index
    %c3_143 = arith.constant 3 : index
    %c0_144 = arith.constant 0 : index
    %c0_145 = arith.constant 0 : index
    %179 = vector.load %arg9[%c0_142, %c3_143, %c0_144, %c0_145] : memref<1x4x8x32xbf16, #tpu.memory_space<vmem>>, vector<1x1x8x32xbf16>
    %180 = vector.shape_cast %179 : vector<1x1x8x32xbf16> to vector<8x32xbf16>
    %cst_146 = arith.constant dense<0.000000e+00> : vector<8x32xf32>
    %181 = tpu.matmul %178, %180, %cst_146 {dimension_numbers = #tpu.dot_dimension_numbers<[1], [0], [0], [1], [0, 0, 1, 1], [], []>} : vector<8x8xbf16>, vector<8x32xbf16>, vector<8x32xf32> -> vector<8x32xf32>
    %182 = arith.addf %138, %181 : vector<8x32xf32>
    %c0_147 = arith.constant 0 : index
    %c0_148 = arith.constant 0 : index
    %c0_149 = arith.constant 0 : index
    %183 = vector.load %arg10[%c0_147, %c0_148, %c0_149] : memref<1x1x32xf32, #tpu.memory_space<vmem>>, vector<1x1x32xf32>
    %184 = vector.shape_cast %183 : vector<1x1x32xf32> to vector<1x32xf32>
    %185 = vector.broadcast %184 : vector<1x32xf32> to vector<8x32xf32>
    %186 = arith.addf %182, %185 : vector<8x32xf32>
    %187 = arith.addf %3, %186 : vector<8x32xf32>
    %c0_150 = arith.constant 0 : index
    %c0_151 = arith.constant 0 : index
    %c0_152 = arith.constant 0 : index
    %188 = vector.load %arg11[%c0_150, %c0_151, %c0_152] : memref<1x1x32xf32, #tpu.memory_space<vmem>>, vector<1x1x32xf32>
    %189 = vector.shape_cast %188 : vector<1x1x32xf32> to vector<1x32xf32>
    %c0_153 = arith.constant 0 : index
    %c0_154 = arith.constant 0 : index
    %c0_155 = arith.constant 0 : index
    %190 = vector.load %arg12[%c0_153, %c0_154, %c0_155] : memref<1x1x32xf32, #tpu.memory_space<vmem>>, vector<1x1x32xf32>
    %191 = vector.shape_cast %190 : vector<1x1x32xf32> to vector<1x32xf32>
    %cst_156 = arith.constant dense<0.000000e+00> : vector<8xf32>
    %192 = vector.multi_reduction <add>, %187, %cst_156 [1] : vector<8x32xf32> to vector<8xf32>
    %193 = vector.shape_cast %192 : vector<8xf32> to vector<8x1xf32>
    %cst_157 = arith.constant 3.200000e+01 : f32
    %194 = vector.broadcast %cst_157 : f32 to vector<8x1xf32>
    %195 = arith.divf %193, %194 : vector<8x1xf32>
    %196 = vector.broadcast %195 : vector<8x1xf32> to vector<8x32xf32>
    %197 = arith.subf %187, %196 : vector<8x32xf32>
    %198 = arith.mulf %197, %197 : vector<8x32xf32>
    %cst_158 = arith.constant dense<0.000000e+00> : vector<8xf32>
    %199 = vector.multi_reduction <add>, %198, %cst_158 [1] : vector<8x32xf32> to vector<8xf32>
    %200 = vector.shape_cast %199 : vector<8xf32> to vector<8x1xf32>
    %cst_159 = arith.constant 3.200000e+01 : f32
    %201 = vector.broadcast %cst_159 : f32 to vector<8x1xf32>
    %202 = arith.divf %200, %201 : vector<8x1xf32>
    %cst_160 = arith.constant 9.99999974E-6 : f32
    %203 = vector.broadcast %cst_160 : f32 to vector<8x1xf32>
    %204 = arith.addf %202, %203 : vector<8x1xf32>
    %205 = math.rsqrt %204 : vector<8x1xf32>
    %206 = vector.broadcast %205 : vector<8x1xf32> to vector<8x32xf32>
    %207 = arith.mulf %197, %206 : vector<8x32xf32>
    %208 = vector.broadcast %189 : vector<1x32xf32> to vector<8x32xf32>
    %209 = arith.mulf %207, %208 : vector<8x32xf32>
    %210 = vector.broadcast %191 : vector<1x32xf32> to vector<8x32xf32>
    %211 = arith.addf %209, %210 : vector<8x32xf32>
    %212 = arith.truncf %211 : vector<8x32xf32> to vector<8x32xbf16>
    %c0_161 = arith.constant 0 : index
    %c0_162 = arith.constant 0 : index
    %c0_163 = arith.constant 0 : index
    %213 = vector.load %arg13[%c0_161, %c0_162, %c0_163] : memref<1x32x64xbf16, #tpu.memory_space<vmem>>, vector<1x32x64xbf16>
    %214 = vector.shape_cast %213 : vector<1x32x64xbf16> to vector<32x64xbf16>
    %cst_164 = arith.constant dense<0.000000e+00> : vector<8x64xf32>
    %215 = tpu.matmul %212, %214, %cst_164 {dimension_numbers = #tpu.dot_dimension_numbers<[1], [0], [0], [1], [0, 0, 1, 1], [], []>} : vector<8x32xbf16>, vector<32x64xbf16>, vector<8x64xf32> -> vector<8x64xf32>
    %c0_165 = arith.constant 0 : index
    %c0_166 = arith.constant 0 : index
    %c0_167 = arith.constant 0 : index
    %216 = vector.load %arg14[%c0_165, %c0_166, %c0_167] : memref<1x1x64xf32, #tpu.memory_space<vmem>>, vector<1x1x64xf32>
    %217 = vector.shape_cast %216 : vector<1x1x64xf32> to vector<1x64xf32>
    %218 = vector.broadcast %217 : vector<1x64xf32> to vector<8x64xf32>
    %219 = arith.addf %215, %218 : vector<8x64xf32>
    %cst_168 = arith.constant 0.000000e+00 : f32
    %220 = vector.broadcast %cst_168 : f32 to vector<8x64xf32>
    %221 = arith.maximumf %219, %220 : vector<8x64xf32>
    %222 = arith.truncf %221 : vector<8x64xf32> to vector<8x64xbf16>
    %c0_169 = arith.constant 0 : index
    %c0_170 = arith.constant 0 : index
    %c0_171 = arith.constant 0 : index
    %223 = vector.load %arg15[%c0_169, %c0_170, %c0_171] : memref<1x64x32xbf16, #tpu.memory_space<vmem>>, vector<1x64x32xbf16>
    %224 = vector.shape_cast %223 : vector<1x64x32xbf16> to vector<64x32xbf16>
    %cst_172 = arith.constant dense<0.000000e+00> : vector<8x32xf32>
    %225 = tpu.matmul %222, %224, %cst_172 {dimension_numbers = #tpu.dot_dimension_numbers<[1], [0], [0], [1], [0, 0, 1, 1], [], []>} : vector<8x64xbf16>, vector<64x32xbf16>, vector<8x32xf32> -> vector<8x32xf32>
    %c0_173 = arith.constant 0 : index
    %c0_174 = arith.constant 0 : index
    %c0_175 = arith.constant 0 : index
    %226 = vector.load %arg16[%c0_173, %c0_174, %c0_175] : memref<1x1x32xf32, #tpu.memory_space<vmem>>, vector<1x1x32xf32>
    %227 = vector.shape_cast %226 : vector<1x1x32xf32> to vector<1x32xf32>
    %228 = vector.broadcast %227 : vector<1x32xf32> to vector<8x32xf32>
    %229 = arith.addf %225, %228 : vector<8x32xf32>
    %230 = arith.addf %211, %229 : vector<8x32xf32>
    %c0_176 = arith.constant 0 : index
    %c0_177 = arith.constant 0 : index
    %c0_178 = arith.constant 0 : index
    %231 = vector.load %arg17[%c0_176, %c0_177, %c0_178] : memref<1x1x32xf32, #tpu.memory_space<vmem>>, vector<1x1x32xf32>
    %232 = vector.shape_cast %231 : vector<1x1x32xf32> to vector<1x32xf32>
    %c0_179 = arith.constant 0 : index
    %c0_180 = arith.constant 0 : index
    %c0_181 = arith.constant 0 : index
    %233 = vector.load %arg18[%c0_179, %c0_180, %c0_181] : memref<1x1x32xf32, #tpu.memory_space<vmem>>, vector<1x1x32xf32>
    %234 = vector.shape_cast %233 : vector<1x1x32xf32> to vector<1x32xf32>
    %cst_182 = arith.constant dense<0.000000e+00> : vector<8xf32>
    %235 = vector.multi_reduction <add>, %230, %cst_182 [1] : vector<8x32xf32> to vector<8xf32>
    %236 = vector.shape_cast %235 : vector<8xf32> to vector<8x1xf32>
    %cst_183 = arith.constant 3.200000e+01 : f32
    %237 = vector.broadcast %cst_183 : f32 to vector<8x1xf32>
    %238 = arith.divf %236, %237 : vector<8x1xf32>
    %239 = vector.broadcast %238 : vector<8x1xf32> to vector<8x32xf32>
    %240 = arith.subf %230, %239 : vector<8x32xf32>
    %241 = arith.mulf %240, %240 : vector<8x32xf32>
    %cst_184 = arith.constant dense<0.000000e+00> : vector<8xf32>
    %242 = vector.multi_reduction <add>, %241, %cst_184 [1] : vector<8x32xf32> to vector<8xf32>
    %243 = vector.shape_cast %242 : vector<8xf32> to vector<8x1xf32>
    %cst_185 = arith.constant 3.200000e+01 : f32
    %244 = vector.broadcast %cst_185 : f32 to vector<8x1xf32>
    %245 = arith.divf %243, %244 : vector<8x1xf32>
    %cst_186 = arith.constant 9.99999974E-6 : f32
    %246 = vector.broadcast %cst_186 : f32 to vector<8x1xf32>
    %247 = arith.addf %245, %246 : vector<8x1xf32>
    %248 = math.rsqrt %247 : vector<8x1xf32>
    %249 = vector.broadcast %248 : vector<8x1xf32> to vector<8x32xf32>
    %250 = arith.mulf %240, %249 : vector<8x32xf32>
    %251 = vector.broadcast %232 : vector<1x32xf32> to vector<8x32xf32>
    %252 = arith.mulf %250, %251 : vector<8x32xf32>
    %253 = vector.broadcast %234 : vector<1x32xf32> to vector<8x32xf32>
    %254 = arith.addf %252, %253 : vector<8x32xf32>
    %c0_187 = arith.constant 0 : index
    %c0_188 = arith.constant 0 : index
    %255 = vector.load %arg22[%c0_187, %c0_188] : memref<8x32xf32, #tpu.memory_space<vmem>>, vector<8x32xf32>
    tpu.vector_store %arg22[%c0_187, %c0_188], %254 {strides = array<i32>} : memref<8x32xf32, #tpu.memory_space<vmem>>, vector<8x32xf32>,
    %c1_i32 = arith.constant 1 : i32
    %256 = arith.cmpi eq, %arg1, %c1_i32 : i32
    %257 = arith.extui %256 : i1 to i32
    %c0_i32_189 = arith.constant 0 : i32
    %258 = arith.cmpi ne, %257, %c0_i32_189 : i32
    scf.if %258 {
      %c0_190 = arith.constant 0 : index
      %c0_191 = arith.constant 0 : index
      %259 = vector.load %arg19[%c0_190, %c0_191] : memref<1x32xf32, #tpu.memory_space<vmem>>, vector<1x32xf32>
      %c0_192 = arith.constant 0 : index
      %c0_193 = arith.constant 0 : index
      %260 = vector.load %arg20[%c0_192, %c0_193] : memref<1x32xf32, #tpu.memory_space<vmem>>, vector<1x32xf32>
      %cst_194 = arith.constant dense<0.000000e+00> : vector<8xf32>
      %261 = vector.multi_reduction <add>, %254, %cst_194 [1] : vector<8x32xf32> to vector<8xf32>
      %262 = vector.shape_cast %261 : vector<8xf32> to vector<8x1xf32>
      %cst_195 = arith.constant 3.200000e+01 : f32
      %263 = vector.broadcast %cst_195 : f32 to vector<8x1xf32>
      %264 = arith.divf %262, %263 : vector<8x1xf32>
      %265 = vector.broadcast %264 : vector<8x1xf32> to vector<8x32xf32>
      %266 = arith.subf %254, %265 : vector<8x32xf32>
      %267 = arith.mulf %266, %266 : vector<8x32xf32>
      %cst_196 = arith.constant dense<0.000000e+00> : vector<8xf32>
      %268 = vector.multi_reduction <add>, %267, %cst_196 [1] : vector<8x32xf32> to vector<8xf32>
      %269 = vector.shape_cast %268 : vector<8xf32> to vector<8x1xf32>
      %cst_197 = arith.constant 3.200000e+01 : f32
      %270 = vector.broadcast %cst_197 : f32 to vector<8x1xf32>
      %271 = arith.divf %269, %270 : vector<8x1xf32>
      %cst_198 = arith.constant 9.99999974E-6 : f32
      %272 = vector.broadcast %cst_198 : f32 to vector<8x1xf32>
      %273 = arith.addf %271, %272 : vector<8x1xf32>
      %274 = math.rsqrt %273 : vector<8x1xf32>
      %275 = vector.broadcast %274 : vector<8x1xf32> to vector<8x32xf32>
      %276 = arith.mulf %266, %275 : vector<8x32xf32>
      %277 = vector.broadcast %259 : vector<1x32xf32> to vector<8x32xf32>
      %278 = arith.mulf %276, %277 : vector<8x32xf32>
      %279 = vector.broadcast %260 : vector<1x32xf32> to vector<8x32xf32>
      %280 = arith.addf %278, %279 : vector<8x32xf32>
      %c0_199 = arith.constant 0 : index
      %c0_200 = arith.constant 0 : index
      %c0_201 = arith.constant 0 : index
      %281 = vector.load %arg21[%c0_199, %c0_200, %c0_201] : memref<1x8x32xf32, #tpu.memory_space<vmem>>, vector<1x8x32xf32>
      %282 = vector.shape_cast %281 : vector<1x8x32xf32> to vector<8x32xf32>
      %283 = vector.shape_cast %280 : vector<8x32xf32> to vector<1x8x32xf32>
      tpu.vector_store %arg21[%c0_199, %c0_200, %c0_201], %283 {strides = array<i32>} : memref<1x8x32xf32, #tpu.memory_space<vmem>>, vector<1x8x32xf32>,
    } else {
    }
    return
  }
  func.func @transform_0(%arg0: i32, %arg1: i32) -> (i32, i32, i32) {
    %c0_i32 = arith.constant 0 : i32
    %c0_i32_0 = arith.constant 0 : i32
    %c0_i32_1 = arith.constant 0 : i32
    return %arg0, %c0_i32, %c0_i32_0 : i32, i32, i32
  }
  func.func @transform_1(%arg0: i32, %arg1: i32) -> (i32, i32, i32, i32) {
    %c0_i32 = arith.constant 0 : i32
    %c0_i32_0 = arith.constant 0 : i32
    %c0_i32_1 = arith.constant 0 : i32
    %c0_i32_2 = arith.constant 0 : i32
    return %arg1, %c0_i32, %c0_i32_0, %c0_i32_1 : i32, i32, i32, i32
  }
  func.func @transform_2(%arg0: i32, %arg1: i32) -> (i32, i32, i32, i32) {
    %c0_i32 = arith.constant 0 : i32
    %c0_i32_0 = arith.constant 0 : i32
    %c0_i32_1 = arith.constant 0 : i32
    %c0_i32_2 = arith.constant 0 : i32
    return %arg1, %c0_i32, %c0_i32_0, %c0_i32_1 : i32, i32, i32, i32
  }
  func.func @transform_3(%arg0: i32, %arg1: i32) -> (i32, i32, i32, i32) {
    %c0_i32 = arith.constant 0 : i32
    %c0_i32_0 = arith.constant 0 : i32
    %c0_i32_1 = arith.constant 0 : i32
    %c0_i32_2 = arith.constant 0 : i32
    return %arg1, %c0_i32, %c0_i32_0, %c0_i32_1 : i32, i32, i32, i32
  }
  func.func @transform_4(%arg0: i32, %arg1: i32) -> (i32, i32, i32, i32) {
    %c0_i32 = arith.constant 0 : i32
    %c0_i32_0 = arith.constant 0 : i32
    %c0_i32_1 = arith.constant 0 : i32
    %c0_i32_2 = arith.constant 0 : i32
    return %arg1, %c0_i32, %c0_i32_0, %c0_i32_1 : i32, i32, i32, i32
  }
  func.func @transform_5(%arg0: i32, %arg1: i32) -> (i32, i32, i32, i32) {
    %c0_i32 = arith.constant 0 : i32
    %c0_i32_0 = arith.constant 0 : i32
    %c0_i32_1 = arith.constant 0 : i32
    %c0_i32_2 = arith.constant 0 : i32
    return %arg1, %c0_i32, %c0_i32_0, %c0_i32_1 : i32, i32, i32, i32
  }
  func.func @transform_6(%arg0: i32, %arg1: i32) -> (i32, i32, i32, i32) {
    %c0_i32 = arith.constant 0 : i32
    %c0_i32_0 = arith.constant 0 : i32
    %c0_i32_1 = arith.constant 0 : i32
    %c0_i32_2 = arith.constant 0 : i32
    return %arg1, %c0_i32, %c0_i32_0, %c0_i32_1 : i32, i32, i32, i32
  }
  func.func @transform_7(%arg0: i32, %arg1: i32) -> (i32, i32, i32, i32) {
    %c0_i32 = arith.constant 0 : i32
    %c0_i32_0 = arith.constant 0 : i32
    %c0_i32_1 = arith.constant 0 : i32
    %c0_i32_2 = arith.constant 0 : i32
    return %arg1, %c0_i32, %c0_i32_0, %c0_i32_1 : i32, i32, i32, i32
  }
  func.func @transform_8(%arg0: i32, %arg1: i32) -> (i32, i32, i32) {
    %c0_i32 = arith.constant 0 : i32
    %c0_i32_0 = arith.constant 0 : i32
    %c0_i32_1 = arith.constant 0 : i32
    return %arg1, %c0_i32, %c0_i32_0 : i32, i32, i32
  }
  func.func @transform_9(%arg0: i32, %arg1: i32) -> (i32, i32, i32) {
    %c0_i32 = arith.constant 0 : i32
    %c0_i32_0 = arith.constant 0 : i32
    %c0_i32_1 = arith.constant 0 : i32
    return %arg1, %c0_i32, %c0_i32_0 : i32, i32, i32
  }
  func.func @transform_10(%arg0: i32, %arg1: i32) -> (i32, i32, i32) {
    %c0_i32 = arith.constant 0 : i32
    %c0_i32_0 = arith.constant 0 : i32
    %c0_i32_1 = arith.constant 0 : i32
    return %arg1, %c0_i32, %c0_i32_0 : i32, i32, i32
  }
  func.func @transform_11(%arg0: i32, %arg1: i32) -> (i32, i32, i32) {
    %c0_i32 = arith.constant 0 : i32
    %c0_i32_0 = arith.constant 0 : i32
    %c0_i32_1 = arith.constant 0 : i32
    return %arg1, %c0_i32, %c0_i32_0 : i32, i32, i32
  }
  func.func @transform_12(%arg0: i32, %arg1: i32) -> (i32, i32, i32) {
    %c0_i32 = arith.constant 0 : i32
    %c0_i32_0 = arith.constant 0 : i32
    %c0_i32_1 = arith.constant 0 : i32
    return %arg1, %c0_i32, %c0_i32_0 : i32, i32, i32
  }
  func.func @transform_13(%arg0: i32, %arg1: i32) -> (i32, i32, i32) {
    %c0_i32 = arith.constant 0 : i32
    %c0_i32_0 = arith.constant 0 : i32
    %c0_i32_1 = arith.constant 0 : i32
    return %arg1, %c0_i32, %c0_i32_0 : i32, i32, i32
  }
  func.func @transform_14(%arg0: i32, %arg1: i32) -> (i32, i32, i32) {
    %c0_i32 = arith.constant 0 : i32
    %c0_i32_0 = arith.constant 0 : i32
    %c0_i32_1 = arith.constant 0 : i32
    return %arg1, %c0_i32, %c0_i32_0 : i32, i32, i32
  }
  func.func @transform_15(%arg0: i32, %arg1: i32) -> (i32, i32, i32) {
    %c0_i32 = arith.constant 0 : i32
    %c0_i32_0 = arith.constant 0 : i32
    %c0_i32_1 = arith.constant 0 : i32
    return %arg1, %c0_i32, %c0_i32_0 : i32, i32, i32
  }
  func.func @transform_16(%arg0: i32, %arg1: i32) -> (i32, i32, i32) {
    %c0_i32 = arith.constant 0 : i32
    %c0_i32_0 = arith.constant 0 : i32
    %c0_i32_1 = arith.constant 0 : i32
    return %arg1, %c0_i32, %c0_i32_0 : i32, i32, i32
  }
  func.func @transform_17(%arg0: i32, %arg1: i32) -> (i32, i32) {
    %c0_i32 = arith.constant 0 : i32
    %c0_i32_0 = arith.constant 0 : i32
    %c0_i32_1 = arith.constant 0 : i32
    return %c0_i32, %c0_i32_0 : i32, i32
  }
  func.func @transform_18(%arg0: i32, %arg1: i32) -> (i32, i32) {
    %c0_i32 = arith.constant 0 : i32
    %c0_i32_0 = arith.constant 0 : i32
    %c0_i32_1 = arith.constant 0 : i32
    return %c0_i32, %c0_i32_0 : i32, i32
  }
  func.func @transform_19(%arg0: i32, %arg1: i32) -> (i32, i32, i32) {
    %c0_i32 = arith.constant 0 : i32
    %c0_i32_0 = arith.constant 0 : i32
    %c0_i32_1 = arith.constant 0 : i32
    return %arg0, %c0_i32, %c0_i32_0 : i32, i32, i32
  }
}

module attributes {stable_mosaic.version = 11 : i64} {
  func.func @_decoder_stack_kernel(%arg0: i32, %arg1: i32, %arg2: memref<1x8x32xf32, #tpu.memory_space<vmem>>, %arg3: memref<1x8x32xf32, #tpu.memory_space<vmem>>, %arg4: memref<1x4x32x8xbf16, #tpu.memory_space<vmem>>, %arg5: memref<1x4x32x8xbf16, #tpu.memory_space<vmem>>, %arg6: memref<1x4x32x8xbf16, #tpu.memory_space<vmem>>, %arg7: memref<1x4x1x8xf32, #tpu.memory_space<vmem>>, %arg8: memref<1x4x1x8xf32, #tpu.memory_space<vmem>>, %arg9: memref<1x4x1x8xf32, #tpu.memory_space<vmem>>, %arg10: memref<1x4x8x32xbf16, #tpu.memory_space<vmem>>, %arg11: memref<1x1x32xf32, #tpu.memory_space<vmem>>, %arg12: memref<1x1x32xf32, #tpu.memory_space<vmem>>, %arg13: memref<1x1x32xf32, #tpu.memory_space<vmem>>, %arg14: memref<1x4x32x8xbf16, #tpu.memory_space<vmem>>, %arg15: memref<1x4x32x8xbf16, #tpu.memory_space<vmem>>, %arg16: memref<1x4x32x8xbf16, #tpu.memory_space<vmem>>, %arg17: memref<1x4x1x8xf32, #tpu.memory_space<vmem>>, %arg18: memref<1x4x1x8xf32, #tpu.memory_space<vmem>>, %arg19: memref<1x4x1x8xf32, #tpu.memory_space<vmem>>, %arg20: memref<1x4x8x32xbf16, #tpu.memory_space<vmem>>, %arg21: memref<1x1x32xf32, #tpu.memory_space<vmem>>, %arg22: memref<1x1x32xf32, #tpu.memory_space<vmem>>, %arg23: memref<1x1x32xf32, #tpu.memory_space<vmem>>, %arg24: memref<1x32x64xbf16, #tpu.memory_space<vmem>>, %arg25: memref<1x1x64xf32, #tpu.memory_space<vmem>>, %arg26: memref<1x64x32xbf16, #tpu.memory_space<vmem>>, %arg27: memref<1x1x32xf32, #tpu.memory_space<vmem>>, %arg28: memref<1x1x32xf32, #tpu.memory_space<vmem>>, %arg29: memref<1x1x32xf32, #tpu.memory_space<vmem>>, %arg30: memref<1x8x32xf32, #tpu.memory_space<vmem>>, %arg31: memref<8x32xf32, #tpu.memory_space<vmem>>) attributes {dimension_semantics = [#tpu.dimension_semantics<parallel>, #tpu.dimension_semantics<arbitrary>], iteration_bounds = array<i64: 2, 2>, scalar_prefetch = 0 : i64, scratch_operands = 1 : i64, tpu.core_type = #tpu.core_type<tc>, window_params = [{transform_indices = @transform_0, window_bounds = array<i64: 1, 8, 32>}, {transform_indices = @transform_1, window_bounds = array<i64: 1, 8, 32>}, {transform_indices = @transform_2, window_bounds = array<i64: 1, 4, 32, 8>}, {transform_indices = @transform_3, window_bounds = array<i64: 1, 4, 32, 8>}, {transform_indices = @transform_4, window_bounds = array<i64: 1, 4, 32, 8>}, {transform_indices = @transform_5, window_bounds = array<i64: 1, 4, 1, 8>}, {transform_indices = @transform_6, window_bounds = array<i64: 1, 4, 1, 8>}, {transform_indices = @transform_7, window_bounds = array<i64: 1, 4, 1, 8>}, {transform_indices = @transform_8, window_bounds = array<i64: 1, 4, 8, 32>}, {transform_indices = @transform_9, window_bounds = array<i64: 1, 1, 32>}, {transform_indices = @transform_10, window_bounds = array<i64: 1, 1, 32>}, {transform_indices = @transform_11, window_bounds = array<i64: 1, 1, 32>}, {transform_indices = @transform_12, window_bounds = array<i64: 1, 4, 32, 8>}, {transform_indices = @transform_13, window_bounds = array<i64: 1, 4, 32, 8>}, {transform_indices = @transform_14, window_bounds = array<i64: 1, 4, 32, 8>}, {transform_indices = @transform_15, window_bounds = array<i64: 1, 4, 1, 8>}, {transform_indices = @transform_16, window_bounds = array<i64: 1, 4, 1, 8>}, {transform_indices = @transform_17, window_bounds = array<i64: 1, 4, 1, 8>}, {transform_indices = @transform_18, window_bounds = array<i64: 1, 4, 8, 32>}, {transform_indices = @transform_19, window_bounds = array<i64: 1, 1, 32>}, {transform_indices = @transform_20, window_bounds = array<i64: 1, 1, 32>}, {transform_indices = @transform_21, window_bounds = array<i64: 1, 1, 32>}, {transform_indices = @transform_22, window_bounds = array<i64: 1, 32, 64>}, {transform_indices = @transform_23, window_bounds = array<i64: 1, 1, 64>}, {transform_indices = @transform_24, window_bounds = array<i64: 1, 64, 32>}, {transform_indices = @transform_25, window_bounds = array<i64: 1, 1, 32>}, {transform_indices = @transform_26, window_bounds = array<i64: 1, 1, 32>}, {transform_indices = @transform_27, window_bounds = array<i64: 1, 1, 32>}, {transform_indices = @transform_28, window_bounds = array<i64: 1, 8, 32>}]} {
    %c0_i32 = arith.constant 0 : i32
    %0 = arith.cmpi eq, %arg1, %c0_i32 : i32
    %1 = arith.extui %0 : i1 to i32
    %c0_i32_0 = arith.constant 0 : i32
    %2 = arith.cmpi ne, %1, %c0_i32_0 : i32
    scf.if %2 {
      %c0_358 = arith.constant 0 : index
      %c0_359 = arith.constant 0 : index
      %c0_360 = arith.constant 0 : index
      %469 = vector.load %arg2[%c0_358, %c0_359, %c0_360] : memref<1x8x32xf32, #tpu.memory_space<vmem>>, vector<1x8x32xf32>
      %470 = vector.shape_cast %469 : vector<1x8x32xf32> to vector<8x32xf32>
      %c0_361 = arith.constant 0 : index
      %c0_362 = arith.constant 0 : index
      %471 = vector.load %arg31[%c0_361, %c0_362] : memref<8x32xf32, #tpu.memory_space<vmem>>, vector<8x32xf32>
      tpu.vector_store %arg31[%c0_361, %c0_362], %470 {strides = array<i32>} : memref<8x32xf32, #tpu.memory_space<vmem>>, vector<8x32xf32>,
    } else {
    }
    %c0 = arith.constant 0 : index
    %c0_1 = arith.constant 0 : index
    %3 = vector.load %arg31[%c0, %c0_1] : memref<8x32xf32, #tpu.memory_space<vmem>>, vector<8x32xf32>
    %c0_2 = arith.constant 0 : index
    %c0_3 = arith.constant 0 : index
    %c0_4 = arith.constant 0 : index
    %4 = vector.load %arg3[%c0_2, %c0_3, %c0_4] : memref<1x8x32xf32, #tpu.memory_space<vmem>>, vector<1x8x32xf32>
    %5 = vector.shape_cast %4 : vector<1x8x32xf32> to vector<8x32xf32>
    %6 = arith.truncf %3 : vector<8x32xf32> to vector<8x32xbf16>
    %7 = arith.truncf %3 : vector<8x32xf32> to vector<8x32xbf16>
    %cst = arith.constant 0.000000e+00 : f32
    %8 = vector.broadcast %cst : f32 to vector<8x32xf32>
    %c0_5 = arith.constant 0 : index
    %c0_6 = arith.constant 0 : index
    %c0_7 = arith.constant 0 : index
    %c0_8 = arith.constant 0 : index
    %9 = vector.load %arg4[%c0_5, %c0_6, %c0_7, %c0_8] : memref<1x4x32x8xbf16, #tpu.memory_space<vmem>>, vector<1x1x32x8xbf16>
    %10 = vector.shape_cast %9 : vector<1x1x32x8xbf16> to vector<32x8xbf16>
    %cst_9 = arith.constant dense<0.000000e+00> : vector<8x8xf32>
    %11 = tpu.matmul %6, %10, %cst_9 {dimension_numbers = #tpu.dot_dimension_numbers<[1], [0], [0], [1], [0, 0, 1, 1], [], []>} : vector<8x32xbf16>, vector<32x8xbf16>, vector<8x8xf32> -> vector<8x8xf32>
    %c0_10 = arith.constant 0 : index
    %c0_11 = arith.constant 0 : index
    %c0_12 = arith.constant 0 : index
    %c0_13 = arith.constant 0 : index
    %12 = vector.load %arg7[%c0_10, %c0_11, %c0_12, %c0_13] : memref<1x4x1x8xf32, #tpu.memory_space<vmem>>, vector<1x1x1x8xf32>
    %13 = vector.shape_cast %12 : vector<1x1x1x8xf32> to vector<1x8xf32>
    %14 = vector.broadcast %13 : vector<1x8xf32> to vector<8x8xf32>
    %15 = arith.addf %11, %14 : vector<8x8xf32>
    %c0_14 = arith.constant 0 : index
    %c0_15 = arith.constant 0 : index
    %c0_16 = arith.constant 0 : index
    %c0_17 = arith.constant 0 : index
    %16 = vector.load %arg5[%c0_14, %c0_15, %c0_16, %c0_17] : memref<1x4x32x8xbf16, #tpu.memory_space<vmem>>, vector<1x1x32x8xbf16>
    %17 = vector.shape_cast %16 : vector<1x1x32x8xbf16> to vector<32x8xbf16>
    %cst_18 = arith.constant dense<0.000000e+00> : vector<8x8xf32>
    %18 = tpu.matmul %7, %17, %cst_18 {dimension_numbers = #tpu.dot_dimension_numbers<[1], [0], [0], [1], [0, 0, 1, 1], [], []>} : vector<8x32xbf16>, vector<32x8xbf16>, vector<8x8xf32> -> vector<8x8xf32>
    %c0_19 = arith.constant 0 : index
    %c0_20 = arith.constant 0 : index
    %c0_21 = arith.constant 0 : index
    %c0_22 = arith.constant 0 : index
    %19 = vector.load %arg8[%c0_19, %c0_20, %c0_21, %c0_22] : memref<1x4x1x8xf32, #tpu.memory_space<vmem>>, vector<1x1x1x8xf32>
    %20 = vector.shape_cast %19 : vector<1x1x1x8xf32> to vector<1x8xf32>
    %21 = vector.broadcast %20 : vector<1x8xf32> to vector<8x8xf32>
    %22 = arith.addf %18, %21 : vector<8x8xf32>
    %c0_23 = arith.constant 0 : index
    %c0_24 = arith.constant 0 : index
    %c0_25 = arith.constant 0 : index
    %c0_26 = arith.constant 0 : index
    %23 = vector.load %arg6[%c0_23, %c0_24, %c0_25, %c0_26] : memref<1x4x32x8xbf16, #tpu.memory_space<vmem>>, vector<1x1x32x8xbf16>
    %24 = vector.shape_cast %23 : vector<1x1x32x8xbf16> to vector<32x8xbf16>
    %cst_27 = arith.constant dense<0.000000e+00> : vector<8x8xf32>
    %25 = tpu.matmul %7, %24, %cst_27 {dimension_numbers = #tpu.dot_dimension_numbers<[1], [0], [0], [1], [0, 0, 1, 1], [], []>} : vector<8x32xbf16>, vector<32x8xbf16>, vector<8x8xf32> -> vector<8x8xf32>
    %c0_28 = arith.constant 0 : index
    %c0_29 = arith.constant 0 : index
    %c0_30 = arith.constant 0 : index
    %c0_31 = arith.constant 0 : index
    %26 = vector.load %arg9[%c0_28, %c0_29, %c0_30, %c0_31] : memref<1x4x1x8xf32, #tpu.memory_space<vmem>>, vector<1x1x1x8xf32>
    %27 = vector.shape_cast %26 : vector<1x1x1x8xf32> to vector<1x8xf32>
    %28 = vector.broadcast %27 : vector<1x8xf32> to vector<8x8xf32>
    %29 = arith.addf %25, %28 : vector<8x8xf32>
    %30 = arith.truncf %15 : vector<8x8xf32> to vector<8x8xbf16>
    %31 = arith.truncf %22 : vector<8x8xf32> to vector<8x8xbf16>
    %cst_32 = arith.constant dense<0.000000e+00> : vector<8x8xf32>
    %32 = tpu.matmul %30, %31, %cst_32 {dimension_numbers = #tpu.dot_dimension_numbers<[1], [1], [0], [0], [0, 0, 1, 0], [], []>} : vector<8x8xbf16>, vector<8x8xbf16>, vector<8x8xf32> -> vector<8x8xf32>
    %cst_33 = arith.constant 0.353553385 : f32
    %33 = vector.broadcast %cst_33 : f32 to vector<8x8xf32>
    %34 = arith.mulf %32, %33 : vector<8x8xf32>
    %cst_34 = arith.constant dense<0xFF800000> : vector<8xf32>
    %35 = vector.multi_reduction <maximumf>, %34, %cst_34 [1] : vector<8x8xf32> to vector<8xf32>
    %36 = vector.shape_cast %35 : vector<8xf32> to vector<8x1xf32>
    %37 = vector.broadcast %36 : vector<8x1xf32> to vector<8x8xf32>
    %38 = arith.subf %34, %37 : vector<8x8xf32>
    %39 = math.exp %38 : vector<8x8xf32>
    %cst_35 = arith.constant dense<0.000000e+00> : vector<8xf32>
    %40 = vector.multi_reduction <add>, %39, %cst_35 [1] : vector<8x8xf32> to vector<8xf32>
    %41 = vector.shape_cast %40 : vector<8xf32> to vector<8x1xf32>
    %42 = tpu.reciprocal %41 {approx = true} : vector<8x1xf32> -> vector<8x1xf32>
    %43 = vector.broadcast %42 : vector<8x1xf32> to vector<8x8xf32>
    %44 = arith.mulf %39, %43 : vector<8x8xf32>
    %45 = arith.truncf %44 : vector<8x8xf32> to vector<8x8xbf16>
    %46 = arith.truncf %29 : vector<8x8xf32> to vector<8x8xbf16>
    %cst_36 = arith.constant dense<0.000000e+00> : vector<8x8xf32>
    %47 = tpu.matmul %45, %46, %cst_36 {dimension_numbers = #tpu.dot_dimension_numbers<[1], [0], [0], [1], [0, 0, 1, 1], [], []>} : vector<8x8xbf16>, vector<8x8xbf16>, vector<8x8xf32> -> vector<8x8xf32>
    %48 = arith.truncf %47 : vector<8x8xf32> to vector<8x8xbf16>
    %c0_37 = arith.constant 0 : index
    %c0_38 = arith.constant 0 : index
    %c0_39 = arith.constant 0 : index
    %c0_40 = arith.constant 0 : index
    %49 = vector.load %arg10[%c0_37, %c0_38, %c0_39, %c0_40] : memref<1x4x8x32xbf16, #tpu.memory_space<vmem>>, vector<1x1x8x32xbf16>
    %50 = vector.shape_cast %49 : vector<1x1x8x32xbf16> to vector<8x32xbf16>
    %cst_41 = arith.constant dense<0.000000e+00> : vector<8x32xf32>
    %51 = tpu.matmul %48, %50, %cst_41 {dimension_numbers = #tpu.dot_dimension_numbers<[1], [0], [0], [1], [0, 0, 1, 1], [], []>} : vector<8x8xbf16>, vector<8x32xbf16>, vector<8x32xf32> -> vector<8x32xf32>
    %52 = arith.addf %8, %51 : vector<8x32xf32>
    %c0_42 = arith.constant 0 : index
    %c1 = arith.constant 1 : index
    %c0_43 = arith.constant 0 : index
    %c0_44 = arith.constant 0 : index
    %53 = vector.load %arg4[%c0_42, %c1, %c0_43, %c0_44] : memref<1x4x32x8xbf16, #tpu.memory_space<vmem>>, vector<1x1x32x8xbf16>
    %54 = vector.shape_cast %53 : vector<1x1x32x8xbf16> to vector<32x8xbf16>
    %cst_45 = arith.constant dense<0.000000e+00> : vector<8x8xf32>
    %55 = tpu.matmul %6, %54, %cst_45 {dimension_numbers = #tpu.dot_dimension_numbers<[1], [0], [0], [1], [0, 0, 1, 1], [], []>} : vector<8x32xbf16>, vector<32x8xbf16>, vector<8x8xf32> -> vector<8x8xf32>
    %c0_46 = arith.constant 0 : index
    %c1_47 = arith.constant 1 : index
    %c0_48 = arith.constant 0 : index
    %c0_49 = arith.constant 0 : index
    %56 = vector.load %arg7[%c0_46, %c1_47, %c0_48, %c0_49] : memref<1x4x1x8xf32, #tpu.memory_space<vmem>>, vector<1x1x1x8xf32>
    %57 = vector.shape_cast %56 : vector<1x1x1x8xf32> to vector<1x8xf32>
    %58 = vector.broadcast %57 : vector<1x8xf32> to vector<8x8xf32>
    %59 = arith.addf %55, %58 : vector<8x8xf32>
    %c0_50 = arith.constant 0 : index
    %c1_51 = arith.constant 1 : index
    %c0_52 = arith.constant 0 : index
    %c0_53 = arith.constant 0 : index
    %60 = vector.load %arg5[%c0_50, %c1_51, %c0_52, %c0_53] : memref<1x4x32x8xbf16, #tpu.memory_space<vmem>>, vector<1x1x32x8xbf16>
    %61 = vector.shape_cast %60 : vector<1x1x32x8xbf16> to vector<32x8xbf16>
    %cst_54 = arith.constant dense<0.000000e+00> : vector<8x8xf32>
    %62 = tpu.matmul %7, %61, %cst_54 {dimension_numbers = #tpu.dot_dimension_numbers<[1], [0], [0], [1], [0, 0, 1, 1], [], []>} : vector<8x32xbf16>, vector<32x8xbf16>, vector<8x8xf32> -> vector<8x8xf32>
    %c0_55 = arith.constant 0 : index
    %c1_56 = arith.constant 1 : index
    %c0_57 = arith.constant 0 : index
    %c0_58 = arith.constant 0 : index
    %63 = vector.load %arg8[%c0_55, %c1_56, %c0_57, %c0_58] : memref<1x4x1x8xf32, #tpu.memory_space<vmem>>, vector<1x1x1x8xf32>
    %64 = vector.shape_cast %63 : vector<1x1x1x8xf32> to vector<1x8xf32>
    %65 = vector.broadcast %64 : vector<1x8xf32> to vector<8x8xf32>
    %66 = arith.addf %62, %65 : vector<8x8xf32>
    %c0_59 = arith.constant 0 : index
    %c1_60 = arith.constant 1 : index
    %c0_61 = arith.constant 0 : index
    %c0_62 = arith.constant 0 : index
    %67 = vector.load %arg6[%c0_59, %c1_60, %c0_61, %c0_62] : memref<1x4x32x8xbf16, #tpu.memory_space<vmem>>, vector<1x1x32x8xbf16>
    %68 = vector.shape_cast %67 : vector<1x1x32x8xbf16> to vector<32x8xbf16>
    %cst_63 = arith.constant dense<0.000000e+00> : vector<8x8xf32>
    %69 = tpu.matmul %7, %68, %cst_63 {dimension_numbers = #tpu.dot_dimension_numbers<[1], [0], [0], [1], [0, 0, 1, 1], [], []>} : vector<8x32xbf16>, vector<32x8xbf16>, vector<8x8xf32> -> vector<8x8xf32>
    %c0_64 = arith.constant 0 : index
    %c1_65 = arith.constant 1 : index
    %c0_66 = arith.constant 0 : index
    %c0_67 = arith.constant 0 : index
    %70 = vector.load %arg9[%c0_64, %c1_65, %c0_66, %c0_67] : memref<1x4x1x8xf32, #tpu.memory_space<vmem>>, vector<1x1x1x8xf32>
    %71 = vector.shape_cast %70 : vector<1x1x1x8xf32> to vector<1x8xf32>
    %72 = vector.broadcast %71 : vector<1x8xf32> to vector<8x8xf32>
    %73 = arith.addf %69, %72 : vector<8x8xf32>
    %74 = arith.truncf %59 : vector<8x8xf32> to vector<8x8xbf16>
    %75 = arith.truncf %66 : vector<8x8xf32> to vector<8x8xbf16>
    %cst_68 = arith.constant dense<0.000000e+00> : vector<8x8xf32>
    %76 = tpu.matmul %74, %75, %cst_68 {dimension_numbers = #tpu.dot_dimension_numbers<[1], [1], [0], [0], [0, 0, 1, 0], [], []>} : vector<8x8xbf16>, vector<8x8xbf16>, vector<8x8xf32> -> vector<8x8xf32>
    %cst_69 = arith.constant 0.353553385 : f32
    %77 = vector.broadcast %cst_69 : f32 to vector<8x8xf32>
    %78 = arith.mulf %76, %77 : vector<8x8xf32>
    %cst_70 = arith.constant dense<0xFF800000> : vector<8xf32>
    %79 = vector.multi_reduction <maximumf>, %78, %cst_70 [1] : vector<8x8xf32> to vector<8xf32>
    %80 = vector.shape_cast %79 : vector<8xf32> to vector<8x1xf32>
    %81 = vector.broadcast %80 : vector<8x1xf32> to vector<8x8xf32>
    %82 = arith.subf %78, %81 : vector<8x8xf32>
    %83 = math.exp %82 : vector<8x8xf32>
    %cst_71 = arith.constant dense<0.000000e+00> : vector<8xf32>
    %84 = vector.multi_reduction <add>, %83, %cst_71 [1] : vector<8x8xf32> to vector<8xf32>
    %85 = vector.shape_cast %84 : vector<8xf32> to vector<8x1xf32>
    %86 = tpu.reciprocal %85 {approx = true} : vector<8x1xf32> -> vector<8x1xf32>
    %87 = vector.broadcast %86 : vector<8x1xf32> to vector<8x8xf32>
    %88 = arith.mulf %83, %87 : vector<8x8xf32>
    %89 = arith.truncf %88 : vector<8x8xf32> to vector<8x8xbf16>
    %90 = arith.truncf %73 : vector<8x8xf32> to vector<8x8xbf16>
    %cst_72 = arith.constant dense<0.000000e+00> : vector<8x8xf32>
    %91 = tpu.matmul %89, %90, %cst_72 {dimension_numbers = #tpu.dot_dimension_numbers<[1], [0], [0], [1], [0, 0, 1, 1], [], []>} : vector<8x8xbf16>, vector<8x8xbf16>, vector<8x8xf32> -> vector<8x8xf32>
    %92 = arith.truncf %91 : vector<8x8xf32> to vector<8x8xbf16>
    %c0_73 = arith.constant 0 : index
    %c1_74 = arith.constant 1 : index
    %c0_75 = arith.constant 0 : index
    %c0_76 = arith.constant 0 : index
    %93 = vector.load %arg10[%c0_73, %c1_74, %c0_75, %c0_76] : memref<1x4x8x32xbf16, #tpu.memory_space<vmem>>, vector<1x1x8x32xbf16>
    %94 = vector.shape_cast %93 : vector<1x1x8x32xbf16> to vector<8x32xbf16>
    %cst_77 = arith.constant dense<0.000000e+00> : vector<8x32xf32>
    %95 = tpu.matmul %92, %94, %cst_77 {dimension_numbers = #tpu.dot_dimension_numbers<[1], [0], [0], [1], [0, 0, 1, 1], [], []>} : vector<8x8xbf16>, vector<8x32xbf16>, vector<8x32xf32> -> vector<8x32xf32>
    %96 = arith.addf %52, %95 : vector<8x32xf32>
    %c0_78 = arith.constant 0 : index
    %c2 = arith.constant 2 : index
    %c0_79 = arith.constant 0 : index
    %c0_80 = arith.constant 0 : index
    %97 = vector.load %arg4[%c0_78, %c2, %c0_79, %c0_80] : memref<1x4x32x8xbf16, #tpu.memory_space<vmem>>, vector<1x1x32x8xbf16>
    %98 = vector.shape_cast %97 : vector<1x1x32x8xbf16> to vector<32x8xbf16>
    %cst_81 = arith.constant dense<0.000000e+00> : vector<8x8xf32>
    %99 = tpu.matmul %6, %98, %cst_81 {dimension_numbers = #tpu.dot_dimension_numbers<[1], [0], [0], [1], [0, 0, 1, 1], [], []>} : vector<8x32xbf16>, vector<32x8xbf16>, vector<8x8xf32> -> vector<8x8xf32>
    %c0_82 = arith.constant 0 : index
    %c2_83 = arith.constant 2 : index
    %c0_84 = arith.constant 0 : index
    %c0_85 = arith.constant 0 : index
    %100 = vector.load %arg7[%c0_82, %c2_83, %c0_84, %c0_85] : memref<1x4x1x8xf32, #tpu.memory_space<vmem>>, vector<1x1x1x8xf32>
    %101 = vector.shape_cast %100 : vector<1x1x1x8xf32> to vector<1x8xf32>
    %102 = vector.broadcast %101 : vector<1x8xf32> to vector<8x8xf32>
    %103 = arith.addf %99, %102 : vector<8x8xf32>
    %c0_86 = arith.constant 0 : index
    %c2_87 = arith.constant 2 : index
    %c0_88 = arith.constant 0 : index
    %c0_89 = arith.constant 0 : index
    %104 = vector.load %arg5[%c0_86, %c2_87, %c0_88, %c0_89] : memref<1x4x32x8xbf16, #tpu.memory_space<vmem>>, vector<1x1x32x8xbf16>
    %105 = vector.shape_cast %104 : vector<1x1x32x8xbf16> to vector<32x8xbf16>
    %cst_90 = arith.constant dense<0.000000e+00> : vector<8x8xf32>
    %106 = tpu.matmul %7, %105, %cst_90 {dimension_numbers = #tpu.dot_dimension_numbers<[1], [0], [0], [1], [0, 0, 1, 1], [], []>} : vector<8x32xbf16>, vector<32x8xbf16>, vector<8x8xf32> -> vector<8x8xf32>
    %c0_91 = arith.constant 0 : index
    %c2_92 = arith.constant 2 : index
    %c0_93 = arith.constant 0 : index
    %c0_94 = arith.constant 0 : index
    %107 = vector.load %arg8[%c0_91, %c2_92, %c0_93, %c0_94] : memref<1x4x1x8xf32, #tpu.memory_space<vmem>>, vector<1x1x1x8xf32>
    %108 = vector.shape_cast %107 : vector<1x1x1x8xf32> to vector<1x8xf32>
    %109 = vector.broadcast %108 : vector<1x8xf32> to vector<8x8xf32>
    %110 = arith.addf %106, %109 : vector<8x8xf32>
    %c0_95 = arith.constant 0 : index
    %c2_96 = arith.constant 2 : index
    %c0_97 = arith.constant 0 : index
    %c0_98 = arith.constant 0 : index
    %111 = vector.load %arg6[%c0_95, %c2_96, %c0_97, %c0_98] : memref<1x4x32x8xbf16, #tpu.memory_space<vmem>>, vector<1x1x32x8xbf16>
    %112 = vector.shape_cast %111 : vector<1x1x32x8xbf16> to vector<32x8xbf16>
    %cst_99 = arith.constant dense<0.000000e+00> : vector<8x8xf32>
    %113 = tpu.matmul %7, %112, %cst_99 {dimension_numbers = #tpu.dot_dimension_numbers<[1], [0], [0], [1], [0, 0, 1, 1], [], []>} : vector<8x32xbf16>, vector<32x8xbf16>, vector<8x8xf32> -> vector<8x8xf32>
    %c0_100 = arith.constant 0 : index
    %c2_101 = arith.constant 2 : index
    %c0_102 = arith.constant 0 : index
    %c0_103 = arith.constant 0 : index
    %114 = vector.load %arg9[%c0_100, %c2_101, %c0_102, %c0_103] : memref<1x4x1x8xf32, #tpu.memory_space<vmem>>, vector<1x1x1x8xf32>
    %115 = vector.shape_cast %114 : vector<1x1x1x8xf32> to vector<1x8xf32>
    %116 = vector.broadcast %115 : vector<1x8xf32> to vector<8x8xf32>
    %117 = arith.addf %113, %116 : vector<8x8xf32>
    %118 = arith.truncf %103 : vector<8x8xf32> to vector<8x8xbf16>
    %119 = arith.truncf %110 : vector<8x8xf32> to vector<8x8xbf16>
    %cst_104 = arith.constant dense<0.000000e+00> : vector<8x8xf32>
    %120 = tpu.matmul %118, %119, %cst_104 {dimension_numbers = #tpu.dot_dimension_numbers<[1], [1], [0], [0], [0, 0, 1, 0], [], []>} : vector<8x8xbf16>, vector<8x8xbf16>, vector<8x8xf32> -> vector<8x8xf32>
    %cst_105 = arith.constant 0.353553385 : f32
    %121 = vector.broadcast %cst_105 : f32 to vector<8x8xf32>
    %122 = arith.mulf %120, %121 : vector<8x8xf32>
    %cst_106 = arith.constant dense<0xFF800000> : vector<8xf32>
    %123 = vector.multi_reduction <maximumf>, %122, %cst_106 [1] : vector<8x8xf32> to vector<8xf32>
    %124 = vector.shape_cast %123 : vector<8xf32> to vector<8x1xf32>
    %125 = vector.broadcast %124 : vector<8x1xf32> to vector<8x8xf32>
    %126 = arith.subf %122, %125 : vector<8x8xf32>
    %127 = math.exp %126 : vector<8x8xf32>
    %cst_107 = arith.constant dense<0.000000e+00> : vector<8xf32>
    %128 = vector.multi_reduction <add>, %127, %cst_107 [1] : vector<8x8xf32> to vector<8xf32>
    %129 = vector.shape_cast %128 : vector<8xf32> to vector<8x1xf32>
    %130 = tpu.reciprocal %129 {approx = true} : vector<8x1xf32> -> vector<8x1xf32>
    %131 = vector.broadcast %130 : vector<8x1xf32> to vector<8x8xf32>
    %132 = arith.mulf %127, %131 : vector<8x8xf32>
    %133 = arith.truncf %132 : vector<8x8xf32> to vector<8x8xbf16>
    %134 = arith.truncf %117 : vector<8x8xf32> to vector<8x8xbf16>
    %cst_108 = arith.constant dense<0.000000e+00> : vector<8x8xf32>
    %135 = tpu.matmul %133, %134, %cst_108 {dimension_numbers = #tpu.dot_dimension_numbers<[1], [0], [0], [1], [0, 0, 1, 1], [], []>} : vector<8x8xbf16>, vector<8x8xbf16>, vector<8x8xf32> -> vector<8x8xf32>
    %136 = arith.truncf %135 : vector<8x8xf32> to vector<8x8xbf16>
    %c0_109 = arith.constant 0 : index
    %c2_110 = arith.constant 2 : index
    %c0_111 = arith.constant 0 : index
    %c0_112 = arith.constant 0 : index
    %137 = vector.load %arg10[%c0_109, %c2_110, %c0_111, %c0_112] : memref<1x4x8x32xbf16, #tpu.memory_space<vmem>>, vector<1x1x8x32xbf16>
    %138 = vector.shape_cast %137 : vector<1x1x8x32xbf16> to vector<8x32xbf16>
    %cst_113 = arith.constant dense<0.000000e+00> : vector<8x32xf32>
    %139 = tpu.matmul %136, %138, %cst_113 {dimension_numbers = #tpu.dot_dimension_numbers<[1], [0], [0], [1], [0, 0, 1, 1], [], []>} : vector<8x8xbf16>, vector<8x32xbf16>, vector<8x32xf32> -> vector<8x32xf32>
    %140 = arith.addf %96, %139 : vector<8x32xf32>
    %c0_114 = arith.constant 0 : index
    %c3 = arith.constant 3 : index
    %c0_115 = arith.constant 0 : index
    %c0_116 = arith.constant 0 : index
    %141 = vector.load %arg4[%c0_114, %c3, %c0_115, %c0_116] : memref<1x4x32x8xbf16, #tpu.memory_space<vmem>>, vector<1x1x32x8xbf16>
    %142 = vector.shape_cast %141 : vector<1x1x32x8xbf16> to vector<32x8xbf16>
    %cst_117 = arith.constant dense<0.000000e+00> : vector<8x8xf32>
    %143 = tpu.matmul %6, %142, %cst_117 {dimension_numbers = #tpu.dot_dimension_numbers<[1], [0], [0], [1], [0, 0, 1, 1], [], []>} : vector<8x32xbf16>, vector<32x8xbf16>, vector<8x8xf32> -> vector<8x8xf32>
    %c0_118 = arith.constant 0 : index
    %c3_119 = arith.constant 3 : index
    %c0_120 = arith.constant 0 : index
    %c0_121 = arith.constant 0 : index
    %144 = vector.load %arg7[%c0_118, %c3_119, %c0_120, %c0_121] : memref<1x4x1x8xf32, #tpu.memory_space<vmem>>, vector<1x1x1x8xf32>
    %145 = vector.shape_cast %144 : vector<1x1x1x8xf32> to vector<1x8xf32>
    %146 = vector.broadcast %145 : vector<1x8xf32> to vector<8x8xf32>
    %147 = arith.addf %143, %146 : vector<8x8xf32>
    %c0_122 = arith.constant 0 : index
    %c3_123 = arith.constant 3 : index
    %c0_124 = arith.constant 0 : index
    %c0_125 = arith.constant 0 : index
    %148 = vector.load %arg5[%c0_122, %c3_123, %c0_124, %c0_125] : memref<1x4x32x8xbf16, #tpu.memory_space<vmem>>, vector<1x1x32x8xbf16>
    %149 = vector.shape_cast %148 : vector<1x1x32x8xbf16> to vector<32x8xbf16>
    %cst_126 = arith.constant dense<0.000000e+00> : vector<8x8xf32>
    %150 = tpu.matmul %7, %149, %cst_126 {dimension_numbers = #tpu.dot_dimension_numbers<[1], [0], [0], [1], [0, 0, 1, 1], [], []>} : vector<8x32xbf16>, vector<32x8xbf16>, vector<8x8xf32> -> vector<8x8xf32>
    %c0_127 = arith.constant 0 : index
    %c3_128 = arith.constant 3 : index
    %c0_129 = arith.constant 0 : index
    %c0_130 = arith.constant 0 : index
    %151 = vector.load %arg8[%c0_127, %c3_128, %c0_129, %c0_130] : memref<1x4x1x8xf32, #tpu.memory_space<vmem>>, vector<1x1x1x8xf32>
    %152 = vector.shape_cast %151 : vector<1x1x1x8xf32> to vector<1x8xf32>
    %153 = vector.broadcast %152 : vector<1x8xf32> to vector<8x8xf32>
    %154 = arith.addf %150, %153 : vector<8x8xf32>
    %c0_131 = arith.constant 0 : index
    %c3_132 = arith.constant 3 : index
    %c0_133 = arith.constant 0 : index
    %c0_134 = arith.constant 0 : index
    %155 = vector.load %arg6[%c0_131, %c3_132, %c0_133, %c0_134] : memref<1x4x32x8xbf16, #tpu.memory_space<vmem>>, vector<1x1x32x8xbf16>
    %156 = vector.shape_cast %155 : vector<1x1x32x8xbf16> to vector<32x8xbf16>
    %cst_135 = arith.constant dense<0.000000e+00> : vector<8x8xf32>
    %157 = tpu.matmul %7, %156, %cst_135 {dimension_numbers = #tpu.dot_dimension_numbers<[1], [0], [0], [1], [0, 0, 1, 1], [], []>} : vector<8x32xbf16>, vector<32x8xbf16>, vector<8x8xf32> -> vector<8x8xf32>
    %c0_136 = arith.constant 0 : index
    %c3_137 = arith.constant 3 : index
    %c0_138 = arith.constant 0 : index
    %c0_139 = arith.constant 0 : index
    %158 = vector.load %arg9[%c0_136, %c3_137, %c0_138, %c0_139] : memref<1x4x1x8xf32, #tpu.memory_space<vmem>>, vector<1x1x1x8xf32>
    %159 = vector.shape_cast %158 : vector<1x1x1x8xf32> to vector<1x8xf32>
    %160 = vector.broadcast %159 : vector<1x8xf32> to vector<8x8xf32>
    %161 = arith.addf %157, %160 : vector<8x8xf32>
    %162 = arith.truncf %147 : vector<8x8xf32> to vector<8x8xbf16>
    %163 = arith.truncf %154 : vector<8x8xf32> to vector<8x8xbf16>
    %cst_140 = arith.constant dense<0.000000e+00> : vector<8x8xf32>
    %164 = tpu.matmul %162, %163, %cst_140 {dimension_numbers = #tpu.dot_dimension_numbers<[1], [1], [0], [0], [0, 0, 1, 0], [], []>} : vector<8x8xbf16>, vector<8x8xbf16>, vector<8x8xf32> -> vector<8x8xf32>
    %cst_141 = arith.constant 0.353553385 : f32
    %165 = vector.broadcast %cst_141 : f32 to vector<8x8xf32>
    %166 = arith.mulf %164, %165 : vector<8x8xf32>
    %cst_142 = arith.constant dense<0xFF800000> : vector<8xf32>
    %167 = vector.multi_reduction <maximumf>, %166, %cst_142 [1] : vector<8x8xf32> to vector<8xf32>
    %168 = vector.shape_cast %167 : vector<8xf32> to vector<8x1xf32>
    %169 = vector.broadcast %168 : vector<8x1xf32> to vector<8x8xf32>
    %170 = arith.subf %166, %169 : vector<8x8xf32>
    %171 = math.exp %170 : vector<8x8xf32>
    %cst_143 = arith.constant dense<0.000000e+00> : vector<8xf32>
    %172 = vector.multi_reduction <add>, %171, %cst_143 [1] : vector<8x8xf32> to vector<8xf32>
    %173 = vector.shape_cast %172 : vector<8xf32> to vector<8x1xf32>
    %174 = tpu.reciprocal %173 {approx = true} : vector<8x1xf32> -> vector<8x1xf32>
    %175 = vector.broadcast %174 : vector<8x1xf32> to vector<8x8xf32>
    %176 = arith.mulf %171, %175 : vector<8x8xf32>
    %177 = arith.truncf %176 : vector<8x8xf32> to vector<8x8xbf16>
    %178 = arith.truncf %161 : vector<8x8xf32> to vector<8x8xbf16>
    %cst_144 = arith.constant dense<0.000000e+00> : vector<8x8xf32>
    %179 = tpu.matmul %177, %178, %cst_144 {dimension_numbers = #tpu.dot_dimension_numbers<[1], [0], [0], [1], [0, 0, 1, 1], [], []>} : vector<8x8xbf16>, vector<8x8xbf16>, vector<8x8xf32> -> vector<8x8xf32>
    %180 = arith.truncf %179 : vector<8x8xf32> to vector<8x8xbf16>
    %c0_145 = arith.constant 0 : index
    %c3_146 = arith.constant 3 : index
    %c0_147 = arith.constant 0 : index
    %c0_148 = arith.constant 0 : index
    %181 = vector.load %arg10[%c0_145, %c3_146, %c0_147, %c0_148] : memref<1x4x8x32xbf16, #tpu.memory_space<vmem>>, vector<1x1x8x32xbf16>
    %182 = vector.shape_cast %181 : vector<1x1x8x32xbf16> to vector<8x32xbf16>
    %cst_149 = arith.constant dense<0.000000e+00> : vector<8x32xf32>
    %183 = tpu.matmul %180, %182, %cst_149 {dimension_numbers = #tpu.dot_dimension_numbers<[1], [0], [0], [1], [0, 0, 1, 1], [], []>} : vector<8x8xbf16>, vector<8x32xbf16>, vector<8x32xf32> -> vector<8x32xf32>
    %184 = arith.addf %140, %183 : vector<8x32xf32>
    %c0_150 = arith.constant 0 : index
    %c0_151 = arith.constant 0 : index
    %c0_152 = arith.constant 0 : index
    %185 = vector.load %arg11[%c0_150, %c0_151, %c0_152] : memref<1x1x32xf32, #tpu.memory_space<vmem>>, vector<1x1x32xf32>
    %186 = vector.shape_cast %185 : vector<1x1x32xf32> to vector<1x32xf32>
    %187 = vector.broadcast %186 : vector<1x32xf32> to vector<8x32xf32>
    %188 = arith.addf %184, %187 : vector<8x32xf32>
    %189 = arith.addf %3, %188 : vector<8x32xf32>
    %c0_153 = arith.constant 0 : index
    %c0_154 = arith.constant 0 : index
    %c0_155 = arith.constant 0 : index
    %190 = vector.load %arg12[%c0_153, %c0_154, %c0_155] : memref<1x1x32xf32, #tpu.memory_space<vmem>>, vector<1x1x32xf32>
    %191 = vector.shape_cast %190 : vector<1x1x32xf32> to vector<1x32xf32>
    %c0_156 = arith.constant 0 : index
    %c0_157 = arith.constant 0 : index
    %c0_158 = arith.constant 0 : index
    %192 = vector.load %arg13[%c0_156, %c0_157, %c0_158] : memref<1x1x32xf32, #tpu.memory_space<vmem>>, vector<1x1x32xf32>
    %193 = vector.shape_cast %192 : vector<1x1x32xf32> to vector<1x32xf32>
    %cst_159 = arith.constant dense<0.000000e+00> : vector<8xf32>
    %194 = vector.multi_reduction <add>, %189, %cst_159 [1] : vector<8x32xf32> to vector<8xf32>
    %195 = vector.shape_cast %194 : vector<8xf32> to vector<8x1xf32>
    %cst_160 = arith.constant 3.200000e+01 : f32
    %196 = vector.broadcast %cst_160 : f32 to vector<8x1xf32>
    %197 = arith.divf %195, %196 : vector<8x1xf32>
    %198 = vector.broadcast %197 : vector<8x1xf32> to vector<8x32xf32>
    %199 = arith.subf %189, %198 : vector<8x32xf32>
    %200 = arith.mulf %199, %199 : vector<8x32xf32>
    %cst_161 = arith.constant dense<0.000000e+00> : vector<8xf32>
    %201 = vector.multi_reduction <add>, %200, %cst_161 [1] : vector<8x32xf32> to vector<8xf32>
    %202 = vector.shape_cast %201 : vector<8xf32> to vector<8x1xf32>
    %cst_162 = arith.constant 3.200000e+01 : f32
    %203 = vector.broadcast %cst_162 : f32 to vector<8x1xf32>
    %204 = arith.divf %202, %203 : vector<8x1xf32>
    %cst_163 = arith.constant 9.99999974E-6 : f32
    %205 = vector.broadcast %cst_163 : f32 to vector<8x1xf32>
    %206 = arith.addf %204, %205 : vector<8x1xf32>
    %207 = math.rsqrt %206 : vector<8x1xf32>
    %208 = vector.broadcast %207 : vector<8x1xf32> to vector<8x32xf32>
    %209 = arith.mulf %199, %208 : vector<8x32xf32>
    %210 = vector.broadcast %191 : vector<1x32xf32> to vector<8x32xf32>
    %211 = arith.mulf %209, %210 : vector<8x32xf32>
    %212 = vector.broadcast %193 : vector<1x32xf32> to vector<8x32xf32>
    %213 = arith.addf %211, %212 : vector<8x32xf32>
    %214 = arith.truncf %213 : vector<8x32xf32> to vector<8x32xbf16>
    %215 = arith.truncf %5 : vector<8x32xf32> to vector<8x32xbf16>
    %cst_164 = arith.constant 0.000000e+00 : f32
    %216 = vector.broadcast %cst_164 : f32 to vector<8x32xf32>
    %c0_165 = arith.constant 0 : index
    %c0_166 = arith.constant 0 : index
    %c0_167 = arith.constant 0 : index
    %c0_168 = arith.constant 0 : index
    %217 = vector.load %arg14[%c0_165, %c0_166, %c0_167, %c0_168] : memref<1x4x32x8xbf16, #tpu.memory_space<vmem>>, vector<1x1x32x8xbf16>
    %218 = vector.shape_cast %217 : vector<1x1x32x8xbf16> to vector<32x8xbf16>
    %cst_169 = arith.constant dense<0.000000e+00> : vector<8x8xf32>
    %219 = tpu.matmul %214, %218, %cst_169 {dimension_numbers = #tpu.dot_dimension_numbers<[1], [0], [0], [1], [0, 0, 1, 1], [], []>} : vector<8x32xbf16>, vector<32x8xbf16>, vector<8x8xf32> -> vector<8x8xf32>
    %c0_170 = arith.constant 0 : index
    %c0_171 = arith.constant 0 : index
    %c0_172 = arith.constant 0 : index
    %c0_173 = arith.constant 0 : index
    %220 = vector.load %arg17[%c0_170, %c0_171, %c0_172, %c0_173] : memref<1x4x1x8xf32, #tpu.memory_space<vmem>>, vector<1x1x1x8xf32>
    %221 = vector.shape_cast %220 : vector<1x1x1x8xf32> to vector<1x8xf32>
    %222 = vector.broadcast %221 : vector<1x8xf32> to vector<8x8xf32>
    %223 = arith.addf %219, %222 : vector<8x8xf32>
    %c0_174 = arith.constant 0 : index
    %c0_175 = arith.constant 0 : index
    %c0_176 = arith.constant 0 : index
    %c0_177 = arith.constant 0 : index
    %224 = vector.load %arg15[%c0_174, %c0_175, %c0_176, %c0_177] : memref<1x4x32x8xbf16, #tpu.memory_space<vmem>>, vector<1x1x32x8xbf16>
    %225 = vector.shape_cast %224 : vector<1x1x32x8xbf16> to vector<32x8xbf16>
    %cst_178 = arith.constant dense<0.000000e+00> : vector<8x8xf32>
    %226 = tpu.matmul %215, %225, %cst_178 {dimension_numbers = #tpu.dot_dimension_numbers<[1], [0], [0], [1], [0, 0, 1, 1], [], []>} : vector<8x32xbf16>, vector<32x8xbf16>, vector<8x8xf32> -> vector<8x8xf32>
    %c0_179 = arith.constant 0 : index
    %c0_180 = arith.constant 0 : index
    %c0_181 = arith.constant 0 : index
    %c0_182 = arith.constant 0 : index
    %227 = vector.load %arg18[%c0_179, %c0_180, %c0_181, %c0_182] : memref<1x4x1x8xf32, #tpu.memory_space<vmem>>, vector<1x1x1x8xf32>
    %228 = vector.shape_cast %227 : vector<1x1x1x8xf32> to vector<1x8xf32>
    %229 = vector.broadcast %228 : vector<1x8xf32> to vector<8x8xf32>
    %230 = arith.addf %226, %229 : vector<8x8xf32>
    %c0_183 = arith.constant 0 : index
    %c0_184 = arith.constant 0 : index
    %c0_185 = arith.constant 0 : index
    %c0_186 = arith.constant 0 : index
    %231 = vector.load %arg16[%c0_183, %c0_184, %c0_185, %c0_186] : memref<1x4x32x8xbf16, #tpu.memory_space<vmem>>, vector<1x1x32x8xbf16>
    %232 = vector.shape_cast %231 : vector<1x1x32x8xbf16> to vector<32x8xbf16>
    %cst_187 = arith.constant dense<0.000000e+00> : vector<8x8xf32>
    %233 = tpu.matmul %215, %232, %cst_187 {dimension_numbers = #tpu.dot_dimension_numbers<[1], [0], [0], [1], [0, 0, 1, 1], [], []>} : vector<8x32xbf16>, vector<32x8xbf16>, vector<8x8xf32> -> vector<8x8xf32>
    %c0_188 = arith.constant 0 : index
    %c0_189 = arith.constant 0 : index
    %c0_190 = arith.constant 0 : index
    %c0_191 = arith.constant 0 : index
    %234 = vector.load %arg19[%c0_188, %c0_189, %c0_190, %c0_191] : memref<1x4x1x8xf32, #tpu.memory_space<vmem>>, vector<1x1x1x8xf32>
    %235 = vector.shape_cast %234 : vector<1x1x1x8xf32> to vector<1x8xf32>
    %236 = vector.broadcast %235 : vector<1x8xf32> to vector<8x8xf32>
    %237 = arith.addf %233, %236 : vector<8x8xf32>
    %238 = arith.truncf %223 : vector<8x8xf32> to vector<8x8xbf16>
    %239 = arith.truncf %230 : vector<8x8xf32> to vector<8x8xbf16>
    %cst_192 = arith.constant dense<0.000000e+00> : vector<8x8xf32>
    %240 = tpu.matmul %238, %239, %cst_192 {dimension_numbers = #tpu.dot_dimension_numbers<[1], [1], [0], [0], [0, 0, 1, 0], [], []>} : vector<8x8xbf16>, vector<8x8xbf16>, vector<8x8xf32> -> vector<8x8xf32>
    %cst_193 = arith.constant 0.353553385 : f32
    %241 = vector.broadcast %cst_193 : f32 to vector<8x8xf32>
    %242 = arith.mulf %240, %241 : vector<8x8xf32>
    %cst_194 = arith.constant dense<0xFF800000> : vector<8xf32>
    %243 = vector.multi_reduction <maximumf>, %242, %cst_194 [1] : vector<8x8xf32> to vector<8xf32>
    %244 = vector.shape_cast %243 : vector<8xf32> to vector<8x1xf32>
    %245 = vector.broadcast %244 : vector<8x1xf32> to vector<8x8xf32>
    %246 = arith.subf %242, %245 : vector<8x8xf32>
    %247 = math.exp %246 : vector<8x8xf32>
    %cst_195 = arith.constant dense<0.000000e+00> : vector<8xf32>
    %248 = vector.multi_reduction <add>, %247, %cst_195 [1] : vector<8x8xf32> to vector<8xf32>
    %249 = vector.shape_cast %248 : vector<8xf32> to vector<8x1xf32>
    %250 = tpu.reciprocal %249 {approx = true} : vector<8x1xf32> -> vector<8x1xf32>
    %251 = vector.broadcast %250 : vector<8x1xf32> to vector<8x8xf32>
    %252 = arith.mulf %247, %251 : vector<8x8xf32>
    %253 = arith.truncf %252 : vector<8x8xf32> to vector<8x8xbf16>
    %254 = arith.truncf %237 : vector<8x8xf32> to vector<8x8xbf16>
    %cst_196 = arith.constant dense<0.000000e+00> : vector<8x8xf32>
    %255 = tpu.matmul %253, %254, %cst_196 {dimension_numbers = #tpu.dot_dimension_numbers<[1], [0], [0], [1], [0, 0, 1, 1], [], []>} : vector<8x8xbf16>, vector<8x8xbf16>, vector<8x8xf32> -> vector<8x8xf32>
    %256 = arith.truncf %255 : vector<8x8xf32> to vector<8x8xbf16>
    %c0_197 = arith.constant 0 : index
    %c0_198 = arith.constant 0 : index
    %c0_199 = arith.constant 0 : index
    %c0_200 = arith.constant 0 : index
    %257 = vector.load %arg20[%c0_197, %c0_198, %c0_199, %c0_200] : memref<1x4x8x32xbf16, #tpu.memory_space<vmem>>, vector<1x1x8x32xbf16>
    %258 = vector.shape_cast %257 : vector<1x1x8x32xbf16> to vector<8x32xbf16>
    %cst_201 = arith.constant dense<0.000000e+00> : vector<8x32xf32>
    %259 = tpu.matmul %256, %258, %cst_201 {dimension_numbers = #tpu.dot_dimension_numbers<[1], [0], [0], [1], [0, 0, 1, 1], [], []>} : vector<8x8xbf16>, vector<8x32xbf16>, vector<8x32xf32> -> vector<8x32xf32>
    %260 = arith.addf %216, %259 : vector<8x32xf32>
    %c0_202 = arith.constant 0 : index
    %c1_203 = arith.constant 1 : index
    %c0_204 = arith.constant 0 : index
    %c0_205 = arith.constant 0 : index
    %261 = vector.load %arg14[%c0_202, %c1_203, %c0_204, %c0_205] : memref<1x4x32x8xbf16, #tpu.memory_space<vmem>>, vector<1x1x32x8xbf16>
    %262 = vector.shape_cast %261 : vector<1x1x32x8xbf16> to vector<32x8xbf16>
    %cst_206 = arith.constant dense<0.000000e+00> : vector<8x8xf32>
    %263 = tpu.matmul %214, %262, %cst_206 {dimension_numbers = #tpu.dot_dimension_numbers<[1], [0], [0], [1], [0, 0, 1, 1], [], []>} : vector<8x32xbf16>, vector<32x8xbf16>, vector<8x8xf32> -> vector<8x8xf32>
    %c0_207 = arith.constant 0 : index
    %c1_208 = arith.constant 1 : index
    %c0_209 = arith.constant 0 : index
    %c0_210 = arith.constant 0 : index
    %264 = vector.load %arg17[%c0_207, %c1_208, %c0_209, %c0_210] : memref<1x4x1x8xf32, #tpu.memory_space<vmem>>, vector<1x1x1x8xf32>
    %265 = vector.shape_cast %264 : vector<1x1x1x8xf32> to vector<1x8xf32>
    %266 = vector.broadcast %265 : vector<1x8xf32> to vector<8x8xf32>
    %267 = arith.addf %263, %266 : vector<8x8xf32>
    %c0_211 = arith.constant 0 : index
    %c1_212 = arith.constant 1 : index
    %c0_213 = arith.constant 0 : index
    %c0_214 = arith.constant 0 : index
    %268 = vector.load %arg15[%c0_211, %c1_212, %c0_213, %c0_214] : memref<1x4x32x8xbf16, #tpu.memory_space<vmem>>, vector<1x1x32x8xbf16>
    %269 = vector.shape_cast %268 : vector<1x1x32x8xbf16> to vector<32x8xbf16>
    %cst_215 = arith.constant dense<0.000000e+00> : vector<8x8xf32>
    %270 = tpu.matmul %215, %269, %cst_215 {dimension_numbers = #tpu.dot_dimension_numbers<[1], [0], [0], [1], [0, 0, 1, 1], [], []>} : vector<8x32xbf16>, vector<32x8xbf16>, vector<8x8xf32> -> vector<8x8xf32>
    %c0_216 = arith.constant 0 : index
    %c1_217 = arith.constant 1 : index
    %c0_218 = arith.constant 0 : index
    %c0_219 = arith.constant 0 : index
    %271 = vector.load %arg18[%c0_216, %c1_217, %c0_218, %c0_219] : memref<1x4x1x8xf32, #tpu.memory_space<vmem>>, vector<1x1x1x8xf32>
    %272 = vector.shape_cast %271 : vector<1x1x1x8xf32> to vector<1x8xf32>
    %273 = vector.broadcast %272 : vector<1x8xf32> to vector<8x8xf32>
    %274 = arith.addf %270, %273 : vector<8x8xf32>
    %c0_220 = arith.constant 0 : index
    %c1_221 = arith.constant 1 : index
    %c0_222 = arith.constant 0 : index
    %c0_223 = arith.constant 0 : index
    %275 = vector.load %arg16[%c0_220, %c1_221, %c0_222, %c0_223] : memref<1x4x32x8xbf16, #tpu.memory_space<vmem>>, vector<1x1x32x8xbf16>
    %276 = vector.shape_cast %275 : vector<1x1x32x8xbf16> to vector<32x8xbf16>
    %cst_224 = arith.constant dense<0.000000e+00> : vector<8x8xf32>
    %277 = tpu.matmul %215, %276, %cst_224 {dimension_numbers = #tpu.dot_dimension_numbers<[1], [0], [0], [1], [0, 0, 1, 1], [], []>} : vector<8x32xbf16>, vector<32x8xbf16>, vector<8x8xf32> -> vector<8x8xf32>
    %c0_225 = arith.constant 0 : index
    %c1_226 = arith.constant 1 : index
    %c0_227 = arith.constant 0 : index
    %c0_228 = arith.constant 0 : index
    %278 = vector.load %arg19[%c0_225, %c1_226, %c0_227, %c0_228] : memref<1x4x1x8xf32, #tpu.memory_space<vmem>>, vector<1x1x1x8xf32>
    %279 = vector.shape_cast %278 : vector<1x1x1x8xf32> to vector<1x8xf32>
    %280 = vector.broadcast %279 : vector<1x8xf32> to vector<8x8xf32>
    %281 = arith.addf %277, %280 : vector<8x8xf32>
    %282 = arith.truncf %267 : vector<8x8xf32> to vector<8x8xbf16>
    %283 = arith.truncf %274 : vector<8x8xf32> to vector<8x8xbf16>
    %cst_229 = arith.constant dense<0.000000e+00> : vector<8x8xf32>
    %284 = tpu.matmul %282, %283, %cst_229 {dimension_numbers = #tpu.dot_dimension_numbers<[1], [1], [0], [0], [0, 0, 1, 0], [], []>} : vector<8x8xbf16>, vector<8x8xbf16>, vector<8x8xf32> -> vector<8x8xf32>
    %cst_230 = arith.constant 0.353553385 : f32
    %285 = vector.broadcast %cst_230 : f32 to vector<8x8xf32>
    %286 = arith.mulf %284, %285 : vector<8x8xf32>
    %cst_231 = arith.constant dense<0xFF800000> : vector<8xf32>
    %287 = vector.multi_reduction <maximumf>, %286, %cst_231 [1] : vector<8x8xf32> to vector<8xf32>
    %288 = vector.shape_cast %287 : vector<8xf32> to vector<8x1xf32>
    %289 = vector.broadcast %288 : vector<8x1xf32> to vector<8x8xf32>
    %290 = arith.subf %286, %289 : vector<8x8xf32>
    %291 = math.exp %290 : vector<8x8xf32>
    %cst_232 = arith.constant dense<0.000000e+00> : vector<8xf32>
    %292 = vector.multi_reduction <add>, %291, %cst_232 [1] : vector<8x8xf32> to vector<8xf32>
    %293 = vector.shape_cast %292 : vector<8xf32> to vector<8x1xf32>
    %294 = tpu.reciprocal %293 {approx = true} : vector<8x1xf32> -> vector<8x1xf32>
    %295 = vector.broadcast %294 : vector<8x1xf32> to vector<8x8xf32>
    %296 = arith.mulf %291, %295 : vector<8x8xf32>
    %297 = arith.truncf %296 : vector<8x8xf32> to vector<8x8xbf16>
    %298 = arith.truncf %281 : vector<8x8xf32> to vector<8x8xbf16>
    %cst_233 = arith.constant dense<0.000000e+00> : vector<8x8xf32>
    %299 = tpu.matmul %297, %298, %cst_233 {dimension_numbers = #tpu.dot_dimension_numbers<[1], [0], [0], [1], [0, 0, 1, 1], [], []>} : vector<8x8xbf16>, vector<8x8xbf16>, vector<8x8xf32> -> vector<8x8xf32>
    %300 = arith.truncf %299 : vector<8x8xf32> to vector<8x8xbf16>
    %c0_234 = arith.constant 0 : index
    %c1_235 = arith.constant 1 : index
    %c0_236 = arith.constant 0 : index
    %c0_237 = arith.constant 0 : index
    %301 = vector.load %arg20[%c0_234, %c1_235, %c0_236, %c0_237] : memref<1x4x8x32xbf16, #tpu.memory_space<vmem>>, vector<1x1x8x32xbf16>
    %302 = vector.shape_cast %301 : vector<1x1x8x32xbf16> to vector<8x32xbf16>
    %cst_238 = arith.constant dense<0.000000e+00> : vector<8x32xf32>
    %303 = tpu.matmul %300, %302, %cst_238 {dimension_numbers = #tpu.dot_dimension_numbers<[1], [0], [0], [1], [0, 0, 1, 1], [], []>} : vector<8x8xbf16>, vector<8x32xbf16>, vector<8x32xf32> -> vector<8x32xf32>
    %304 = arith.addf %260, %303 : vector<8x32xf32>
    %c0_239 = arith.constant 0 : index
    %c2_240 = arith.constant 2 : index
    %c0_241 = arith.constant 0 : index
    %c0_242 = arith.constant 0 : index
    %305 = vector.load %arg14[%c0_239, %c2_240, %c0_241, %c0_242] : memref<1x4x32x8xbf16, #tpu.memory_space<vmem>>, vector<1x1x32x8xbf16>
    %306 = vector.shape_cast %305 : vector<1x1x32x8xbf16> to vector<32x8xbf16>
    %cst_243 = arith.constant dense<0.000000e+00> : vector<8x8xf32>
    %307 = tpu.matmul %214, %306, %cst_243 {dimension_numbers = #tpu.dot_dimension_numbers<[1], [0], [0], [1], [0, 0, 1, 1], [], []>} : vector<8x32xbf16>, vector<32x8xbf16>, vector<8x8xf32> -> vector<8x8xf32>
    %c0_244 = arith.constant 0 : index
    %c2_245 = arith.constant 2 : index
    %c0_246 = arith.constant 0 : index
    %c0_247 = arith.constant 0 : index
    %308 = vector.load %arg17[%c0_244, %c2_245, %c0_246, %c0_247] : memref<1x4x1x8xf32, #tpu.memory_space<vmem>>, vector<1x1x1x8xf32>
    %309 = vector.shape_cast %308 : vector<1x1x1x8xf32> to vector<1x8xf32>
    %310 = vector.broadcast %309 : vector<1x8xf32> to vector<8x8xf32>
    %311 = arith.addf %307, %310 : vector<8x8xf32>
    %c0_248 = arith.constant 0 : index
    %c2_249 = arith.constant 2 : index
    %c0_250 = arith.constant 0 : index
    %c0_251 = arith.constant 0 : index
    %312 = vector.load %arg15[%c0_248, %c2_249, %c0_250, %c0_251] : memref<1x4x32x8xbf16, #tpu.memory_space<vmem>>, vector<1x1x32x8xbf16>
    %313 = vector.shape_cast %312 : vector<1x1x32x8xbf16> to vector<32x8xbf16>
    %cst_252 = arith.constant dense<0.000000e+00> : vector<8x8xf32>
    %314 = tpu.matmul %215, %313, %cst_252 {dimension_numbers = #tpu.dot_dimension_numbers<[1], [0], [0], [1], [0, 0, 1, 1], [], []>} : vector<8x32xbf16>, vector<32x8xbf16>, vector<8x8xf32> -> vector<8x8xf32>
    %c0_253 = arith.constant 0 : index
    %c2_254 = arith.constant 2 : index
    %c0_255 = arith.constant 0 : index
    %c0_256 = arith.constant 0 : index
    %315 = vector.load %arg18[%c0_253, %c2_254, %c0_255, %c0_256] : memref<1x4x1x8xf32, #tpu.memory_space<vmem>>, vector<1x1x1x8xf32>
    %316 = vector.shape_cast %315 : vector<1x1x1x8xf32> to vector<1x8xf32>
    %317 = vector.broadcast %316 : vector<1x8xf32> to vector<8x8xf32>
    %318 = arith.addf %314, %317 : vector<8x8xf32>
    %c0_257 = arith.constant 0 : index
    %c2_258 = arith.constant 2 : index
    %c0_259 = arith.constant 0 : index
    %c0_260 = arith.constant 0 : index
    %319 = vector.load %arg16[%c0_257, %c2_258, %c0_259, %c0_260] : memref<1x4x32x8xbf16, #tpu.memory_space<vmem>>, vector<1x1x32x8xbf16>
    %320 = vector.shape_cast %319 : vector<1x1x32x8xbf16> to vector<32x8xbf16>
    %cst_261 = arith.constant dense<0.000000e+00> : vector<8x8xf32>
    %321 = tpu.matmul %215, %320, %cst_261 {dimension_numbers = #tpu.dot_dimension_numbers<[1], [0], [0], [1], [0, 0, 1, 1], [], []>} : vector<8x32xbf16>, vector<32x8xbf16>, vector<8x8xf32> -> vector<8x8xf32>
    %c0_262 = arith.constant 0 : index
    %c2_263 = arith.constant 2 : index
    %c0_264 = arith.constant 0 : index
    %c0_265 = arith.constant 0 : index
    %322 = vector.load %arg19[%c0_262, %c2_263, %c0_264, %c0_265] : memref<1x4x1x8xf32, #tpu.memory_space<vmem>>, vector<1x1x1x8xf32>
    %323 = vector.shape_cast %322 : vector<1x1x1x8xf32> to vector<1x8xf32>
    %324 = vector.broadcast %323 : vector<1x8xf32> to vector<8x8xf32>
    %325 = arith.addf %321, %324 : vector<8x8xf32>
    %326 = arith.truncf %311 : vector<8x8xf32> to vector<8x8xbf16>
    %327 = arith.truncf %318 : vector<8x8xf32> to vector<8x8xbf16>
    %cst_266 = arith.constant dense<0.000000e+00> : vector<8x8xf32>
    %328 = tpu.matmul %326, %327, %cst_266 {dimension_numbers = #tpu.dot_dimension_numbers<[1], [1], [0], [0], [0, 0, 1, 0], [], []>} : vector<8x8xbf16>, vector<8x8xbf16>, vector<8x8xf32> -> vector<8x8xf32>
    %cst_267 = arith.constant 0.353553385 : f32
    %329 = vector.broadcast %cst_267 : f32 to vector<8x8xf32>
    %330 = arith.mulf %328, %329 : vector<8x8xf32>
    %cst_268 = arith.constant dense<0xFF800000> : vector<8xf32>
    %331 = vector.multi_reduction <maximumf>, %330, %cst_268 [1] : vector<8x8xf32> to vector<8xf32>
    %332 = vector.shape_cast %331 : vector<8xf32> to vector<8x1xf32>
    %333 = vector.broadcast %332 : vector<8x1xf32> to vector<8x8xf32>
    %334 = arith.subf %330, %333 : vector<8x8xf32>
    %335 = math.exp %334 : vector<8x8xf32>
    %cst_269 = arith.constant dense<0.000000e+00> : vector<8xf32>
    %336 = vector.multi_reduction <add>, %335, %cst_269 [1] : vector<8x8xf32> to vector<8xf32>
    %337 = vector.shape_cast %336 : vector<8xf32> to vector<8x1xf32>
    %338 = tpu.reciprocal %337 {approx = true} : vector<8x1xf32> -> vector<8x1xf32>
    %339 = vector.broadcast %338 : vector<8x1xf32> to vector<8x8xf32>
    %340 = arith.mulf %335, %339 : vector<8x8xf32>
    %341 = arith.truncf %340 : vector<8x8xf32> to vector<8x8xbf16>
    %342 = arith.truncf %325 : vector<8x8xf32> to vector<8x8xbf16>
    %cst_270 = arith.constant dense<0.000000e+00> : vector<8x8xf32>
    %343 = tpu.matmul %341, %342, %cst_270 {dimension_numbers = #tpu.dot_dimension_numbers<[1], [0], [0], [1], [0, 0, 1, 1], [], []>} : vector<8x8xbf16>, vector<8x8xbf16>, vector<8x8xf32> -> vector<8x8xf32>
    %344 = arith.truncf %343 : vector<8x8xf32> to vector<8x8xbf16>
    %c0_271 = arith.constant 0 : index
    %c2_272 = arith.constant 2 : index
    %c0_273 = arith.constant 0 : index
    %c0_274 = arith.constant 0 : index
    %345 = vector.load %arg20[%c0_271, %c2_272, %c0_273, %c0_274] : memref<1x4x8x32xbf16, #tpu.memory_space<vmem>>, vector<1x1x8x32xbf16>
    %346 = vector.shape_cast %345 : vector<1x1x8x32xbf16> to vector<8x32xbf16>
    %cst_275 = arith.constant dense<0.000000e+00> : vector<8x32xf32>
    %347 = tpu.matmul %344, %346, %cst_275 {dimension_numbers = #tpu.dot_dimension_numbers<[1], [0], [0], [1], [0, 0, 1, 1], [], []>} : vector<8x8xbf16>, vector<8x32xbf16>, vector<8x32xf32> -> vector<8x32xf32>
    %348 = arith.addf %304, %347 : vector<8x32xf32>
    %c0_276 = arith.constant 0 : index
    %c3_277 = arith.constant 3 : index
    %c0_278 = arith.constant 0 : index
    %c0_279 = arith.constant 0 : index
    %349 = vector.load %arg14[%c0_276, %c3_277, %c0_278, %c0_279] : memref<1x4x32x8xbf16, #tpu.memory_space<vmem>>, vector<1x1x32x8xbf16>
    %350 = vector.shape_cast %349 : vector<1x1x32x8xbf16> to vector<32x8xbf16>
    %cst_280 = arith.constant dense<0.000000e+00> : vector<8x8xf32>
    %351 = tpu.matmul %214, %350, %cst_280 {dimension_numbers = #tpu.dot_dimension_numbers<[1], [0], [0], [1], [0, 0, 1, 1], [], []>} : vector<8x32xbf16>, vector<32x8xbf16>, vector<8x8xf32> -> vector<8x8xf32>
    %c0_281 = arith.constant 0 : index
    %c3_282 = arith.constant 3 : index
    %c0_283 = arith.constant 0 : index
    %c0_284 = arith.constant 0 : index
    %352 = vector.load %arg17[%c0_281, %c3_282, %c0_283, %c0_284] : memref<1x4x1x8xf32, #tpu.memory_space<vmem>>, vector<1x1x1x8xf32>
    %353 = vector.shape_cast %352 : vector<1x1x1x8xf32> to vector<1x8xf32>
    %354 = vector.broadcast %353 : vector<1x8xf32> to vector<8x8xf32>
    %355 = arith.addf %351, %354 : vector<8x8xf32>
    %c0_285 = arith.constant 0 : index
    %c3_286 = arith.constant 3 : index
    %c0_287 = arith.constant 0 : index
    %c0_288 = arith.constant 0 : index
    %356 = vector.load %arg15[%c0_285, %c3_286, %c0_287, %c0_288] : memref<1x4x32x8xbf16, #tpu.memory_space<vmem>>, vector<1x1x32x8xbf16>
    %357 = vector.shape_cast %356 : vector<1x1x32x8xbf16> to vector<32x8xbf16>
    %cst_289 = arith.constant dense<0.000000e+00> : vector<8x8xf32>
    %358 = tpu.matmul %215, %357, %cst_289 {dimension_numbers = #tpu.dot_dimension_numbers<[1], [0], [0], [1], [0, 0, 1, 1], [], []>} : vector<8x32xbf16>, vector<32x8xbf16>, vector<8x8xf32> -> vector<8x8xf32>
    %c0_290 = arith.constant 0 : index
    %c3_291 = arith.constant 3 : index
    %c0_292 = arith.constant 0 : index
    %c0_293 = arith.constant 0 : index
    %359 = vector.load %arg18[%c0_290, %c3_291, %c0_292, %c0_293] : memref<1x4x1x8xf32, #tpu.memory_space<vmem>>, vector<1x1x1x8xf32>
    %360 = vector.shape_cast %359 : vector<1x1x1x8xf32> to vector<1x8xf32>
    %361 = vector.broadcast %360 : vector<1x8xf32> to vector<8x8xf32>
    %362 = arith.addf %358, %361 : vector<8x8xf32>
    %c0_294 = arith.constant 0 : index
    %c3_295 = arith.constant 3 : index
    %c0_296 = arith.constant 0 : index
    %c0_297 = arith.constant 0 : index
    %363 = vector.load %arg16[%c0_294, %c3_295, %c0_296, %c0_297] : memref<1x4x32x8xbf16, #tpu.memory_space<vmem>>, vector<1x1x32x8xbf16>
    %364 = vector.shape_cast %363 : vector<1x1x32x8xbf16> to vector<32x8xbf16>
    %cst_298 = arith.constant dense<0.000000e+00> : vector<8x8xf32>
    %365 = tpu.matmul %215, %364, %cst_298 {dimension_numbers = #tpu.dot_dimension_numbers<[1], [0], [0], [1], [0, 0, 1, 1], [], []>} : vector<8x32xbf16>, vector<32x8xbf16>, vector<8x8xf32> -> vector<8x8xf32>
    %c0_299 = arith.constant 0 : index
    %c3_300 = arith.constant 3 : index
    %c0_301 = arith.constant 0 : index
    %c0_302 = arith.constant 0 : index
    %366 = vector.load %arg19[%c0_299, %c3_300, %c0_301, %c0_302] : memref<1x4x1x8xf32, #tpu.memory_space<vmem>>, vector<1x1x1x8xf32>
    %367 = vector.shape_cast %366 : vector<1x1x1x8xf32> to vector<1x8xf32>
    %368 = vector.broadcast %367 : vector<1x8xf32> to vector<8x8xf32>
    %369 = arith.addf %365, %368 : vector<8x8xf32>
    %370 = arith.truncf %355 : vector<8x8xf32> to vector<8x8xbf16>
    %371 = arith.truncf %362 : vector<8x8xf32> to vector<8x8xbf16>
    %cst_303 = arith.constant dense<0.000000e+00> : vector<8x8xf32>
    %372 = tpu.matmul %370, %371, %cst_303 {dimension_numbers = #tpu.dot_dimension_numbers<[1], [1], [0], [0], [0, 0, 1, 0], [], []>} : vector<8x8xbf16>, vector<8x8xbf16>, vector<8x8xf32> -> vector<8x8xf32>
    %cst_304 = arith.constant 0.353553385 : f32
    %373 = vector.broadcast %cst_304 : f32 to vector<8x8xf32>
    %374 = arith.mulf %372, %373 : vector<8x8xf32>
    %cst_305 = arith.constant dense<0xFF800000> : vector<8xf32>
    %375 = vector.multi_reduction <maximumf>, %374, %cst_305 [1] : vector<8x8xf32> to vector<8xf32>
    %376 = vector.shape_cast %375 : vector<8xf32> to vector<8x1xf32>
    %377 = vector.broadcast %376 : vector<8x1xf32> to vector<8x8xf32>
    %378 = arith.subf %374, %377 : vector<8x8xf32>
    %379 = math.exp %378 : vector<8x8xf32>
    %cst_306 = arith.constant dense<0.000000e+00> : vector<8xf32>
    %380 = vector.multi_reduction <add>, %379, %cst_306 [1] : vector<8x8xf32> to vector<8xf32>
    %381 = vector.shape_cast %380 : vector<8xf32> to vector<8x1xf32>
    %382 = tpu.reciprocal %381 {approx = true} : vector<8x1xf32> -> vector<8x1xf32>
    %383 = vector.broadcast %382 : vector<8x1xf32> to vector<8x8xf32>
    %384 = arith.mulf %379, %383 : vector<8x8xf32>
    %385 = arith.truncf %384 : vector<8x8xf32> to vector<8x8xbf16>
    %386 = arith.truncf %369 : vector<8x8xf32> to vector<8x8xbf16>
    %cst_307 = arith.constant dense<0.000000e+00> : vector<8x8xf32>
    %387 = tpu.matmul %385, %386, %cst_307 {dimension_numbers = #tpu.dot_dimension_numbers<[1], [0], [0], [1], [0, 0, 1, 1], [], []>} : vector<8x8xbf16>, vector<8x8xbf16>, vector<8x8xf32> -> vector<8x8xf32>
    %388 = arith.truncf %387 : vector<8x8xf32> to vector<8x8xbf16>
    %c0_308 = arith.constant 0 : index
    %c3_309 = arith.constant 3 : index
    %c0_310 = arith.constant 0 : index
    %c0_311 = arith.constant 0 : index
    %389 = vector.load %arg20[%c0_308, %c3_309, %c0_310, %c0_311] : memref<1x4x8x32xbf16, #tpu.memory_space<vmem>>, vector<1x1x8x32xbf16>
    %390 = vector.shape_cast %389 : vector<1x1x8x32xbf16> to vector<8x32xbf16>
    %cst_312 = arith.constant dense<0.000000e+00> : vector<8x32xf32>
    %391 = tpu.matmul %388, %390, %cst_312 {dimension_numbers = #tpu.dot_dimension_numbers<[1], [0], [0], [1], [0, 0, 1, 1], [], []>} : vector<8x8xbf16>, vector<8x32xbf16>, vector<8x32xf32> -> vector<8x32xf32>
    %392 = arith.addf %348, %391 : vector<8x32xf32>
    %c0_313 = arith.constant 0 : index
    %c0_314 = arith.constant 0 : index
    %c0_315 = arith.constant 0 : index
    %393 = vector.load %arg21[%c0_313, %c0_314, %c0_315] : memref<1x1x32xf32, #tpu.memory_space<vmem>>, vector<1x1x32xf32>
    %394 = vector.shape_cast %393 : vector<1x1x32xf32> to vector<1x32xf32>
    %395 = vector.broadcast %394 : vector<1x32xf32> to vector<8x32xf32>
    %396 = arith.addf %392, %395 : vector<8x32xf32>
    %397 = arith.addf %213, %396 : vector<8x32xf32>
    %c0_316 = arith.constant 0 : index
    %c0_317 = arith.constant 0 : index
    %c0_318 = arith.constant 0 : index
    %398 = vector.load %arg22[%c0_316, %c0_317, %c0_318] : memref<1x1x32xf32, #tpu.memory_space<vmem>>, vector<1x1x32xf32>
    %399 = vector.shape_cast %398 : vector<1x1x32xf32> to vector<1x32xf32>
    %c0_319 = arith.constant 0 : index
    %c0_320 = arith.constant 0 : index
    %c0_321 = arith.constant 0 : index
    %400 = vector.load %arg23[%c0_319, %c0_320, %c0_321] : memref<1x1x32xf32, #tpu.memory_space<vmem>>, vector<1x1x32xf32>
    %401 = vector.shape_cast %400 : vector<1x1x32xf32> to vector<1x32xf32>
    %cst_322 = arith.constant dense<0.000000e+00> : vector<8xf32>
    %402 = vector.multi_reduction <add>, %397, %cst_322 [1] : vector<8x32xf32> to vector<8xf32>
    %403 = vector.shape_cast %402 : vector<8xf32> to vector<8x1xf32>
    %cst_323 = arith.constant 3.200000e+01 : f32
    %404 = vector.broadcast %cst_323 : f32 to vector<8x1xf32>
    %405 = arith.divf %403, %404 : vector<8x1xf32>
    %406 = vector.broadcast %405 : vector<8x1xf32> to vector<8x32xf32>
    %407 = arith.subf %397, %406 : vector<8x32xf32>
    %408 = arith.mulf %407, %407 : vector<8x32xf32>
    %cst_324 = arith.constant dense<0.000000e+00> : vector<8xf32>
    %409 = vector.multi_reduction <add>, %408, %cst_324 [1] : vector<8x32xf32> to vector<8xf32>
    %410 = vector.shape_cast %409 : vector<8xf32> to vector<8x1xf32>
    %cst_325 = arith.constant 3.200000e+01 : f32
    %411 = vector.broadcast %cst_325 : f32 to vector<8x1xf32>
    %412 = arith.divf %410, %411 : vector<8x1xf32>
    %cst_326 = arith.constant 9.99999974E-6 : f32
    %413 = vector.broadcast %cst_326 : f32 to vector<8x1xf32>
    %414 = arith.addf %412, %413 : vector<8x1xf32>
    %415 = math.rsqrt %414 : vector<8x1xf32>
    %416 = vector.broadcast %415 : vector<8x1xf32> to vector<8x32xf32>
    %417 = arith.mulf %407, %416 : vector<8x32xf32>
    %418 = vector.broadcast %399 : vector<1x32xf32> to vector<8x32xf32>
    %419 = arith.mulf %417, %418 : vector<8x32xf32>
    %420 = vector.broadcast %401 : vector<1x32xf32> to vector<8x32xf32>
    %421 = arith.addf %419, %420 : vector<8x32xf32>
    %422 = arith.truncf %421 : vector<8x32xf32> to vector<8x32xbf16>
    %c0_327 = arith.constant 0 : index
    %c0_328 = arith.constant 0 : index
    %c0_329 = arith.constant 0 : index
    %423 = vector.load %arg24[%c0_327, %c0_328, %c0_329] : memref<1x32x64xbf16, #tpu.memory_space<vmem>>, vector<1x32x64xbf16>
    %424 = vector.shape_cast %423 : vector<1x32x64xbf16> to vector<32x64xbf16>
    %cst_330 = arith.constant dense<0.000000e+00> : vector<8x64xf32>
    %425 = tpu.matmul %422, %424, %cst_330 {dimension_numbers = #tpu.dot_dimension_numbers<[1], [0], [0], [1], [0, 0, 1, 1], [], []>} : vector<8x32xbf16>, vector<32x64xbf16>, vector<8x64xf32> -> vector<8x64xf32>
    %c0_331 = arith.constant 0 : index
    %c0_332 = arith.constant 0 : index
    %c0_333 = arith.constant 0 : index
    %426 = vector.load %arg25[%c0_331, %c0_332, %c0_333] : memref<1x1x64xf32, #tpu.memory_space<vmem>>, vector<1x1x64xf32>
    %427 = vector.shape_cast %426 : vector<1x1x64xf32> to vector<1x64xf32>
    %428 = vector.broadcast %427 : vector<1x64xf32> to vector<8x64xf32>
    %429 = arith.addf %425, %428 : vector<8x64xf32>
    %cst_334 = arith.constant 0.000000e+00 : f32
    %430 = vector.broadcast %cst_334 : f32 to vector<8x64xf32>
    %431 = arith.maximumf %429, %430 : vector<8x64xf32>
    %432 = arith.truncf %431 : vector<8x64xf32> to vector<8x64xbf16>
    %c0_335 = arith.constant 0 : index
    %c0_336 = arith.constant 0 : index
    %c0_337 = arith.constant 0 : index
    %433 = vector.load %arg26[%c0_335, %c0_336, %c0_337] : memref<1x64x32xbf16, #tpu.memory_space<vmem>>, vector<1x64x32xbf16>
    %434 = vector.shape_cast %433 : vector<1x64x32xbf16> to vector<64x32xbf16>
    %cst_338 = arith.constant dense<0.000000e+00> : vector<8x32xf32>
    %435 = tpu.matmul %432, %434, %cst_338 {dimension_numbers = #tpu.dot_dimension_numbers<[1], [0], [0], [1], [0, 0, 1, 1], [], []>} : vector<8x64xbf16>, vector<64x32xbf16>, vector<8x32xf32> -> vector<8x32xf32>
    %c0_339 = arith.constant 0 : index
    %c0_340 = arith.constant 0 : index
    %c0_341 = arith.constant 0 : index
    %436 = vector.load %arg27[%c0_339, %c0_340, %c0_341] : memref<1x1x32xf32, #tpu.memory_space<vmem>>, vector<1x1x32xf32>
    %437 = vector.shape_cast %436 : vector<1x1x32xf32> to vector<1x32xf32>
    %438 = vector.broadcast %437 : vector<1x32xf32> to vector<8x32xf32>
    %439 = arith.addf %435, %438 : vector<8x32xf32>
    %440 = arith.addf %421, %439 : vector<8x32xf32>
    %c0_342 = arith.constant 0 : index
    %c0_343 = arith.constant 0 : index
    %c0_344 = arith.constant 0 : index
    %441 = vector.load %arg28[%c0_342, %c0_343, %c0_344] : memref<1x1x32xf32, #tpu.memory_space<vmem>>, vector<1x1x32xf32>
    %442 = vector.shape_cast %441 : vector<1x1x32xf32> to vector<1x32xf32>
    %c0_345 = arith.constant 0 : index
    %c0_346 = arith.constant 0 : index
    %c0_347 = arith.constant 0 : index
    %443 = vector.load %arg29[%c0_345, %c0_346, %c0_347] : memref<1x1x32xf32, #tpu.memory_space<vmem>>, vector<1x1x32xf32>
    %444 = vector.shape_cast %443 : vector<1x1x32xf32> to vector<1x32xf32>
    %cst_348 = arith.constant dense<0.000000e+00> : vector<8xf32>
    %445 = vector.multi_reduction <add>, %440, %cst_348 [1] : vector<8x32xf32> to vector<8xf32>
    %446 = vector.shape_cast %445 : vector<8xf32> to vector<8x1xf32>
    %cst_349 = arith.constant 3.200000e+01 : f32
    %447 = vector.broadcast %cst_349 : f32 to vector<8x1xf32>
    %448 = arith.divf %446, %447 : vector<8x1xf32>
    %449 = vector.broadcast %448 : vector<8x1xf32> to vector<8x32xf32>
    %450 = arith.subf %440, %449 : vector<8x32xf32>
    %451 = arith.mulf %450, %450 : vector<8x32xf32>
    %cst_350 = arith.constant dense<0.000000e+00> : vector<8xf32>
    %452 = vector.multi_reduction <add>, %451, %cst_350 [1] : vector<8x32xf32> to vector<8xf32>
    %453 = vector.shape_cast %452 : vector<8xf32> to vector<8x1xf32>
    %cst_351 = arith.constant 3.200000e+01 : f32
    %454 = vector.broadcast %cst_351 : f32 to vector<8x1xf32>
    %455 = arith.divf %453, %454 : vector<8x1xf32>
    %cst_352 = arith.constant 9.99999974E-6 : f32
    %456 = vector.broadcast %cst_352 : f32 to vector<8x1xf32>
    %457 = arith.addf %455, %456 : vector<8x1xf32>
    %458 = math.rsqrt %457 : vector<8x1xf32>
    %459 = vector.broadcast %458 : vector<8x1xf32> to vector<8x32xf32>
    %460 = arith.mulf %450, %459 : vector<8x32xf32>
    %461 = vector.broadcast %442 : vector<1x32xf32> to vector<8x32xf32>
    %462 = arith.mulf %460, %461 : vector<8x32xf32>
    %463 = vector.broadcast %444 : vector<1x32xf32> to vector<8x32xf32>
    %464 = arith.addf %462, %463 : vector<8x32xf32>
    %c0_353 = arith.constant 0 : index
    %c0_354 = arith.constant 0 : index
    %465 = vector.load %arg31[%c0_353, %c0_354] : memref<8x32xf32, #tpu.memory_space<vmem>>, vector<8x32xf32>
    tpu.vector_store %arg31[%c0_353, %c0_354], %464 {strides = array<i32>} : memref<8x32xf32, #tpu.memory_space<vmem>>, vector<8x32xf32>,
    %c0_355 = arith.constant 0 : index
    %c0_356 = arith.constant 0 : index
    %c0_357 = arith.constant 0 : index
    %466 = vector.load %arg30[%c0_355, %c0_356, %c0_357] : memref<1x8x32xf32, #tpu.memory_space<vmem>>, vector<1x8x32xf32>
    %467 = vector.shape_cast %466 : vector<1x8x32xf32> to vector<8x32xf32>
    %468 = vector.shape_cast %464 : vector<8x32xf32> to vector<1x8x32xf32>
    tpu.vector_store %arg30[%c0_355, %c0_356, %c0_357], %468 {strides = array<i32>} : memref<1x8x32xf32, #tpu.memory_space<vmem>>, vector<1x8x32xf32>,
    return
  }
  func.func @transform_0(%arg0: i32, %arg1: i32) -> (i32, i32, i32) {
    %c0_i32 = arith.constant 0 : i32
    %c0_i32_0 = arith.constant 0 : i32
    %c0_i32_1 = arith.constant 0 : i32
    return %arg0, %c0_i32, %c0_i32_0 : i32, i32, i32
  }
  func.func @transform_1(%arg0: i32, %arg1: i32) -> (i32, i32, i32) {
    %c0_i32 = arith.constant 0 : i32
    %c0_i32_0 = arith.constant 0 : i32
    %c0_i32_1 = arith.constant 0 : i32
    return %arg0, %c0_i32, %c0_i32_0 : i32, i32, i32
  }
  func.func @transform_2(%arg0: i32, %arg1: i32) -> (i32, i32, i32, i32) {
    %c0_i32 = arith.constant 0 : i32
    %c0_i32_0 = arith.constant 0 : i32
    %c0_i32_1 = arith.constant 0 : i32
    %c0_i32_2 = arith.constant 0 : i32
    return %arg1, %c0_i32, %c0_i32_0, %c0_i32_1 : i32, i32, i32, i32
  }
  func.func @transform_3(%arg0: i32, %arg1: i32) -> (i32, i32, i32, i32) {
    %c0_i32 = arith.constant 0 : i32
    %c0_i32_0 = arith.constant 0 : i32
    %c0_i32_1 = arith.constant 0 : i32
    %c0_i32_2 = arith.constant 0 : i32
    return %arg1, %c0_i32, %c0_i32_0, %c0_i32_1 : i32, i32, i32, i32
  }
  func.func @transform_4(%arg0: i32, %arg1: i32) -> (i32, i32, i32, i32) {
    %c0_i32 = arith.constant 0 : i32
    %c0_i32_0 = arith.constant 0 : i32
    %c0_i32_1 = arith.constant 0 : i32
    %c0_i32_2 = arith.constant 0 : i32
    return %arg1, %c0_i32, %c0_i32_0, %c0_i32_1 : i32, i32, i32, i32
  }
  func.func @transform_5(%arg0: i32, %arg1: i32) -> (i32, i32, i32, i32) {
    %c0_i32 = arith.constant 0 : i32
    %c0_i32_0 = arith.constant 0 : i32
    %c0_i32_1 = arith.constant 0 : i32
    %c0_i32_2 = arith.constant 0 : i32
    return %arg1, %c0_i32, %c0_i32_0, %c0_i32_1 : i32, i32, i32, i32
  }
  func.func @transform_6(%arg0: i32, %arg1: i32) -> (i32, i32, i32, i32) {
    %c0_i32 = arith.constant 0 : i32
    %c0_i32_0 = arith.constant 0 : i32
    %c0_i32_1 = arith.constant 0 : i32
    %c0_i32_2 = arith.constant 0 : i32
    return %arg1, %c0_i32, %c0_i32_0, %c0_i32_1 : i32, i32, i32, i32
  }
  func.func @transform_7(%arg0: i32, %arg1: i32) -> (i32, i32, i32, i32) {
    %c0_i32 = arith.constant 0 : i32
    %c0_i32_0 = arith.constant 0 : i32
    %c0_i32_1 = arith.constant 0 : i32
    %c0_i32_2 = arith.constant 0 : i32
    return %arg1, %c0_i32, %c0_i32_0, %c0_i32_1 : i32, i32, i32, i32
  }
  func.func @transform_8(%arg0: i32, %arg1: i32) -> (i32, i32, i32, i32) {
    %c0_i32 = arith.constant 0 : i32
    %c0_i32_0 = arith.constant 0 : i32
    %c0_i32_1 = arith.constant 0 : i32
    %c0_i32_2 = arith.constant 0 : i32
    return %arg1, %c0_i32, %c0_i32_0, %c0_i32_1 : i32, i32, i32, i32
  }
  func.func @transform_9(%arg0: i32, %arg1: i32) -> (i32, i32, i32) {
    %c0_i32 = arith.constant 0 : i32
    %c0_i32_0 = arith.constant 0 : i32
    %c0_i32_1 = arith.constant 0 : i32
    return %arg1, %c0_i32, %c0_i32_0 : i32, i32, i32
  }
  func.func @transform_10(%arg0: i32, %arg1: i32) -> (i32, i32, i32) {
    %c0_i32 = arith.constant 0 : i32
    %c0_i32_0 = arith.constant 0 : i32
    %c0_i32_1 = arith.constant 0 : i32
    return %arg1, %c0_i32, %c0_i32_0 : i32, i32, i32
  }
  func.func @transform_11(%arg0: i32, %arg1: i32) -> (i32, i32, i32) {
    %c0_i32 = arith.constant 0 : i32
    %c0_i32_0 = arith.constant 0 : i32
    %c0_i32_1 = arith.constant 0 : i32
    return %arg1, %c0_i32, %c0_i32_0 : i32, i32, i32
  }
  func.func @transform_12(%arg0: i32, %arg1: i32) -> (i32, i32, i32, i32) {
    %c0_i32 = arith.constant 0 : i32
    %c0_i32_0 = arith.constant 0 : i32
    %c0_i32_1 = arith.constant 0 : i32
    %c0_i32_2 = arith.constant 0 : i32
    return %arg1, %c0_i32, %c0_i32_0, %c0_i32_1 : i32, i32, i32, i32
  }
  func.func @transform_13(%arg0: i32, %arg1: i32) -> (i32, i32, i32, i32) {
    %c0_i32 = arith.constant 0 : i32
    %c0_i32_0 = arith.constant 0 : i32
    %c0_i32_1 = arith.constant 0 : i32
    %c0_i32_2 = arith.constant 0 : i32
    return %arg1, %c0_i32, %c0_i32_0, %c0_i32_1 : i32, i32, i32, i32
  }
  func.func @transform_14(%arg0: i32, %arg1: i32) -> (i32, i32, i32, i32) {
    %c0_i32 = arith.constant 0 : i32
    %c0_i32_0 = arith.constant 0 : i32
    %c0_i32_1 = arith.constant 0 : i32
    %c0_i32_2 = arith.constant 0 : i32
    return %arg1, %c0_i32, %c0_i32_0, %c0_i32_1 : i32, i32, i32, i32
  }
  func.func @transform_15(%arg0: i32, %arg1: i32) -> (i32, i32, i32, i32) {
    %c0_i32 = arith.constant 0 : i32
    %c0_i32_0 = arith.constant 0 : i32
    %c0_i32_1 = arith.constant 0 : i32
    %c0_i32_2 = arith.constant 0 : i32
    return %arg1, %c0_i32, %c0_i32_0, %c0_i32_1 : i32, i32, i32, i32
  }
  func.func @transform_16(%arg0: i32, %arg1: i32) -> (i32, i32, i32, i32) {
    %c0_i32 = arith.constant 0 : i32
    %c0_i32_0 = arith.constant 0 : i32
    %c0_i32_1 = arith.constant 0 : i32
    %c0_i32_2 = arith.constant 0 : i32
    return %arg1, %c0_i32, %c0_i32_0, %c0_i32_1 : i32, i32, i32, i32
  }
  func.func @transform_17(%arg0: i32, %arg1: i32) -> (i32, i32, i32, i32) {
    %c0_i32 = arith.constant 0 : i32
    %c0_i32_0 = arith.constant 0 : i32
    %c0_i32_1 = arith.constant 0 : i32
    %c0_i32_2 = arith.constant 0 : i32
    return %arg1, %c0_i32, %c0_i32_0, %c0_i32_1 : i32, i32, i32, i32
  }
  func.func @transform_18(%arg0: i32, %arg1: i32) -> (i32, i32, i32, i32) {
    %c0_i32 = arith.constant 0 : i32
    %c0_i32_0 = arith.constant 0 : i32
    %c0_i32_1 = arith.constant 0 : i32
    %c0_i32_2 = arith.constant 0 : i32
    return %arg1, %c0_i32, %c0_i32_0, %c0_i32_1 : i32, i32, i32, i32
  }
  func.func @transform_19(%arg0: i32, %arg1: i32) -> (i32, i32, i32) {
    %c0_i32 = arith.constant 0 : i32
    %c0_i32_0 = arith.constant 0 : i32
    %c0_i32_1 = arith.constant 0 : i32
    return %arg1, %c0_i32, %c0_i32_0 : i32, i32, i32
  }
  func.func @transform_20(%arg0: i32, %arg1: i32) -> (i32, i32, i32) {
    %c0_i32 = arith.constant 0 : i32
    %c0_i32_0 = arith.constant 0 : i32
    %c0_i32_1 = arith.constant 0 : i32
    return %arg1, %c0_i32, %c0_i32_0 : i32, i32, i32
  }
  func.func @transform_21(%arg0: i32, %arg1: i32) -> (i32, i32, i32) {
    %c0_i32 = arith.constant 0 : i32
    %c0_i32_0 = arith.constant 0 : i32
    %c0_i32_1 = arith.constant 0 : i32
    return %arg1, %c0_i32, %c0_i32_0 : i32, i32, i32
  }
  func.func @transform_22(%arg0: i32, %arg1: i32) -> (i32, i32, i32) {
    %c0_i32 = arith.constant 0 : i32
    %c0_i32_0 = arith.constant 0 : i32
    %c0_i32_1 = arith.constant 0 : i32
    return %arg1, %c0_i32, %c0_i32_0 : i32, i32, i32
  }
  func.func @transform_23(%arg0: i32, %arg1: i32) -> (i32, i32, i32) {
    %c0_i32 = arith.constant 0 : i32
    %c0_i32_0 = arith.constant 0 : i32
    %c0_i32_1 = arith.constant 0 : i32
    return %arg1, %c0_i32, %c0_i32_0 : i32, i32, i32
  }
  func.func @transform_24(%arg0: i32, %arg1: i32) -> (i32, i32, i32) {
    %c0_i32 = arith.constant 0 : i32
    %c0_i32_0 = arith.constant 0 : i32
    %c0_i32_1 = arith.constant 0 : i32
    return %arg1, %c0_i32, %c0_i32_0 : i32, i32, i32
  }
  func.func @transform_25(%arg0: i32, %arg1: i32) -> (i32, i32, i32) {
    %c0_i32 = arith.constant 0 : i32
    %c0_i32_0 = arith.constant 0 : i32
    %c0_i32_1 = arith.constant 0 : i32
    return %arg1, %c0_i32, %c0_i32_0 : i32, i32, i32
  }
  func.func @transform_26(%arg0: i32, %arg1: i32) -> (i32, i32, i32) {
    %c0_i32 = arith.constant 0 : i32
    %c0_i32_0 = arith.constant 0 : i32
    %c0_i32_1 = arith.constant 0 : i32
    return %arg1, %c0_i32, %c0_i32_0 : i32, i32, i32
  }
  func.func @transform_27(%arg0: i32, %arg1: i32) -> (i32, i32, i32) {
    %c0_i32 = arith.constant 0 : i32
    %c0_i32_0 = arith.constant 0 : i32
    %c0_i32_1 = arith.constant 0 : i32
    return %arg1, %c0_i32, %c0_i32_0 : i32, i32, i32
  }
  func.func @transform_28(%arg0: i32, %arg1: i32) -> (i32, i32, i32) {
    %c0_i32 = arith.constant 0 : i32
    %c0_i32_0 = arith.constant 0 : i32
    %c0_i32_1 = arith.constant 0 : i32
    return %arg0, %c0_i32, %c0_i32_0 : i32, i32, i32
  }
}

</mosaic_0001>

<llo_original>
// kernel: transformer_translation_forward.5
$region0: #{transformer_translation_forward.5}
  #allocation0 [shape = 'u32[]', space=smem, size = 0x4, offset = 0x4, fixed_abs, tag = 'smem constant byte address 0x4 - core index']
  #allocation1 [shape = 'u32[144,128]{1,0:T(1,128)}', space=vmem, size = 0x12000, scoped, tag = 'internal scratch']
  #allocation2 [shape = 'f32[16,32]{1,0:T(8,128)}', space=vmem, size = 0x2000, scoped, tag = 'scratch operand']
  %s0 = inlined_call_operand.vmem [shape: f32[16,32], index: 0, kind: input, shape index: {}]
  %s1 = inlined_call_operand.vmem [shape: f32[1,32], index: 1, kind: input, shape index: {}]
  %s2 = inlined_call_operand.vmem [shape: f32[1,32], index: 2, kind: input, shape index: {}]
  %s3 = inlined_call_operand.vmem [shape: bf16[32,128], index: 3, kind: input, shape index: {}]
  %s4 = inlined_call_operand.vmem [shape: f32[1,128], index: 4, kind: input, shape index: {}]
  %s5 = inlined_call_operand.hbm [shape: f32[16,128], index: 5, kind: output, shape index: {}]
  %s6 = sld [smem:[#allocation0]]
  $region34: #{transformer_translation_forward.5} parent=0
    _
  %s8 = ssub.s32 1, %s6
  %s9 = scalar_select 0, %s8, %s6
  $region1: #{transformer_translation_forward.5} parent=0
    #allocation3 [shape = 'u8[8192]{0}', space=vmem, size = 0x2000, scoped, tag = 'output window, operand 0, single buffered']
    #allocation4 [shape = 's32[1]{0}', space=sflag, size = 0x4, scoped, tag = 'scoped memory for transformer_translation_forward.5']
    %10 = vsyncpa [#allocation4], 0
    // Predicated region
    $region2: #{transformer_translation_forward.5} parent=1 // pred_check
      _
    $region3: #{transformer_translation_forward.5} parent=1 // pred_check_branch
      %12 = sbr.rel (0) target = $region5
    $region4: #{transformer_translation_forward.5} parent=1 // pred_region
      _
    $region5: #{transformer_translation_forward.5} parent=1 // pred_fallthru
      _
    // Predicated region
    $region6: #{transformer_translation_forward.5} parent=1 // pred_check
      _
    $region7: #{transformer_translation_forward.5} parent=1 // pred_check_branch
      %14 = sbr.rel (0) target = $region9
    $region8: #{transformer_translation_forward.5} parent=1 // pred_region
      _
    $region9: #{transformer_translation_forward.5} parent=1 // pred_fallthru
      _
    // Predicated region
    $region10: #{transformer_translation_forward.5} parent=1 // pred_check
      _
    $region11: #{transformer_translation_forward.5} parent=1 // pred_check_branch
      %16 = sbr.rel (0) target = $region13
    $region12: #{transformer_translation_forward.5} parent=1 // pred_region
      _
    $region13: #{transformer_translation_forward.5} parent=1 // pred_fallthru
      _
    // Predicated region
    $region14: #{transformer_translation_forward.5} parent=1 // pred_check
      _
    $region15: #{transformer_translation_forward.5} parent=1 // pred_check_branch
      %18 = sbr.rel (0) target = $region17
    $region16: #{transformer_translation_forward.5} parent=1 // pred_region
      _
    $region17: #{transformer_translation_forward.5} parent=1 // pred_fallthru
      _
    // Predicated region
    $region18: #{transformer_translation_forward.5} parent=1 // pred_check
      _
    $region19: #{transformer_translation_forward.5} parent=1 // pred_check_branch
      %20 = sbr.rel (0) target = $region21
    $region20: #{transformer_translation_forward.5} parent=1 // pred_region
      _
    $region21: #{transformer_translation_forward.5} parent=1 // pred_fallthru
      _
    %p22 = scmp.eq.s32.totalorder 0, 0
    // Predicated region
    $region22: #{transformer_translation_forward.5} parent=1 // pred_check
      %p23 = pneg %p22
    $region23: #{transformer_translation_forward.5} parent=1 // pred_check_branch
      %25 = sbr.rel (%p23) target = $region25
    $region24: #{transformer_translation_forward.5} parent=1 // pred_region
      %v26 = vld [vmem:[%s0] sm:$0xff]
      %v27 = vld [vmem:[%s0 + $0x8] sm:$0xff]
      %v28 = vld [vmem:[%s1] sm:$0x1]
      %v29 = vld [vmem:[%s2] sm:$0x1]
      %vm30 = vcmask 261120
      %v31 = vsel %vm30, %v26, 0.0
      %32 = vadd.xlane.f32.xlu0 %v31
      %v33 = vpop.xlane.xlu0 %32
      %v34 = vsel %vm30, %v27, 0.0
      %35 = vadd.xlane.f32.xlu0 %v34
      %v36 = vpop.xlane.xlu0 %35
      %v37 = vrcp.pop 32.0
      %v38 = vmul.f32 %v33, %v37
      %v39 = vmul.f32 %v36, %v37
      %v40 = vsub.f32 %v26, %v38
      %v41 = vsub.f32 %v27, %v39
      %v42 = vmul.f32 %v40, %v40
      %v43 = vmul.f32 %v41, %v41
      %v44 = vsel %vm30, %v42, 0.0
      %45 = vadd.xlane.f32.xlu0 %v44
      %v46 = vpop.xlane.xlu0 %45
      %v47 = vsel %vm30, %v43, 0.0
      %48 = vadd.xlane.f32.xlu0 %v47
      %v49 = vpop.xlane.xlu0 %48
      %v50 = vmul.f32 %v46, %v37
      %v51 = vmul.f32 %v49, %v37
      %v52 = vadd.f32 %v50, 1e-05
      %v53 = vadd.f32 %v51, 1e-05
      %v54 = vrsqrt.pop %v52
      %v55 = vrsqrt.pop %v53
      %v56 = vmul.f32 %v40, %v54
      %v57 = vmul.f32 %v41, %v55
      %v59 = vlaneseq
      %v60 = vshrl.u32 %v59, 7
      %v61 = vsub.s32 0, %v60
      %v62 = vrot.slane %v28, %v61
      %v64 = vmul.f32 %v56, %v62
      %v65 = vmul.f32 %v57, %v62
      %v67 = vlaneseq
      %v68 = vshrl.u32 %v67, 7
      %v69 = vsub.s32 0, %v68
      %v70 = vrot.slane %v29, %v69
      %v72 = vadd.f32 %v64, %v70
      %v73 = vadd.f32 %v65, %v70
      %74 = vst.msk [vmem:[#allocation2] sm:$0xff] %vm30, %v72
      %75 = vst.msk [vmem:[#allocation2 + $0x8] sm:$0xff] %vm30, %v73
    $region25: #{transformer_translation_forward.5} parent=1 // pred_fallthru
      _
    %v76 = vld [vmem:[#allocation2] sm:$0xff]
    %v77 = vld [vmem:[#allocation2 + $0x8] sm:$0xff]
    %v78 = vpack.c.bf16 %v77, %v76
    %v79 = vld [vmem:[%s3] sm:$0xf]
    %v80 = vld [vmem:[%s3 + $0x4] sm:$0xf]
    %v81 = vld [vmem:[%s3 + $0x8] sm:$0xf]
    %v82 = vld [vmem:[%s3 + $0xc] sm:$0xf]
    %v83 = vld [vmem:[%s4] sm:$0x1]
    %v85 = vlaneseq
    %v86 = vshrl.u32 %v85, 7
    %v87 = vsub.s32 0, %v86
    %v88 = vrot.slane %v83, %v87
    %v94 = vunpack.c.l.b16 %v79
    %v95 = vunpack.c.l.b16 %v80
    %v96 = vunpack.c.l.b16 %v81
    %v97 = vunpack.c.l.b16 %v82
    %v98 = vpack.c.b16 %v95, %v94
    %v99 = vpack.c.b16 %v97, %v96
    %vm102 = vcmask 261120
    %v104 = vsel %vm102, %v78, 0
    %106 = vmatprep.subr.bf16.mxu0 0
    %107 = vmatpush1.bf16.msra.mxu0 %v98
    %108 = vmatprep.subr.bf16.mxu0 0
    %109 = vmatpush1.bf16.msra.mxu0 %v99
    %110 = vmatprep.subr.bf16.mxu0 0
    %111 = vmatpush1.bf16.msra.mxu0 0
    %112 = vmatprep.subr.bf16.mxu0 0
    %113 = vmatpush1.bf16.msra.mxu0 0
    %114 = vmatprep.subr.bf16.mxu0 0
    %115 = vmatpush1.bf16.msra.mxu0 0
    %116 = vmatprep.subr.bf16.mxu0 0
    %117 = vmatpush1.bf16.msra.mxu0 0
    %118 = vmatprep.subr.bf16.mxu0 0
    %119 = vmatpush1.bf16.msra.mxu0 0
    %120 = vmatprep.subr.bf16.mxu0 0
    %121 = vmatpush1.bf16.msra.mxu0 0
    %122 = vmatprep.subr.bf16.mxu0 0
    %123 = vmatpush1.bf16.msra.mxu0 0
    %124 = vmatprep.subr.bf16.mxu0 0
    %125 = vmatpush1.bf16.msra.mxu0 0
    %126 = vmatprep.subr.bf16.mxu0 0
    %127 = vmatpush1.bf16.msra.mxu0 0
    %128 = vmatprep.subr.bf16.mxu0 0
    %129 = vmatpush1.bf16.msra.mxu0 0
    %130 = vmatprep.subr.bf16.mxu0 0
    %131 = vmatpush1.bf16.msra.mxu0 0
    %132 = vmatprep.subr.bf16.mxu0 0
    %133 = vmatpush1.bf16.msra.mxu0 0
    %134 = vmatprep.subr.bf16.mxu0 0
    %135 = vmatpush1.bf16.msra.mxu0 0
    %136 = vmatprep.subr.bf16.mxu0 0
    %137 = vmatpush1.bf16.msra.mxu0 0
    %138 = vmatprep.mubr.bf16.mxu0 0
    %139 = vmatmul.mubr.bf16.gmra.mrb[0].mxu0 %v104
    %v140 = vpop.f32.mrb[0].mxu0
    %v141 = vadd.f32 %v88, %v140
    %v142 = vpop.f32.mrb[0].mxu0
    %v143 = vpop.f32.mrb[0].mxu0
    %v144 = vadd.f32 %v88, %v143
    %v145 = vpop.f32.mrb[0].mxu0
    %146 = vdwg.mxu0
    %147 = vst [vmem:[#allocation3] sm:$0xff] %v141
    %148 = vst [vmem:[#allocation3 + $0x8] sm:$0xff] %v144
    // Predicated region
    $region26: #{transformer_translation_forward.5} parent=1 // pred_check
      _
    $region27: #{transformer_translation_forward.5} parent=1 // pred_check_branch
      %150 = sbr.rel (0) target = $region29
    $region28: #{transformer_translation_forward.5} parent=1 // pred_region
      %s152 = ssub.s32 256, 256
      %153 = vsyncadd [#allocation4], %s152
      %s154 = sshll.u32 [#allocation3], 4
      %s155 = int_to_ptr.vmem [resolvable:$true] %s154
      %160 = dma.vmem_to_hbm [thread:$0]  %s155, 256, %s5, [#allocation4], 128, 128, 8
    $region29: #{transformer_translation_forward.5} parent=1 // pred_fallthru
      _
    // Predicated region
    $region30: #{transformer_translation_forward.5} parent=1 // pred_check
      _
    $region31: #{transformer_translation_forward.5} parent=1 // pred_check_branch
      %162 = sbr.rel (0) target = $region33
    $region32: #{transformer_translation_forward.5} parent=1 // pred_region
      %163 = dma.done [#allocation4], 256
    $region33: #{transformer_translation_forward.5} parent=1 // pred_fallthru
      _
    %164 = vsyncpa [#allocation4], 1

// kernel: transformer_translation_forward.3
$region0: #{transformer_translation_forward.3}
  #allocation0 [shape = 'u32[]', space=smem, size = 0x4, offset = 0x4, fixed_abs, tag = 'smem constant byte address 0x4 - core index']
  #allocation1 [shape = 'u32[144,128]{1,0:T(1,128)}', space=vmem, size = 0x12000, scoped, tag = 'internal scratch']
  #allocation2 [shape = 'f32[8,32]{1,0:T(8,128)}', space=vmem, size = 0x1000, scoped, tag = 'scratch operand']
  %s0 = inlined_call_operand.vmem [shape: f32[2,8,32], index: 0, kind: input, shape index: {}]
  %s1 = inlined_call_operand.vmem [shape: bf16[2,4,32,8], index: 1, kind: input, shape index: {}]
  %s2 = inlined_call_operand.vmem [shape: bf16[2,4,32,8], index: 2, kind: input, shape index: {}]
  %s3 = inlined_call_operand.vmem [shape: bf16[2,4,32,8], index: 3, kind: input, shape index: {}]
  %s4 = inlined_call_operand.vmem [shape: f32[2,4,1,8], index: 4, kind: input, shape index: {}]
  %s5 = inlined_call_operand.vmem [shape: f32[2,4,1,8], index: 5, kind: input, shape index: {}]
  %s6 = inlined_call_operand.vmem [shape: f32[2,4,1,8], index: 6, kind: input, shape index: {}]
  %s7 = inlined_call_operand.vmem [shape: bf16[2,4,8,32], index: 7, kind: input, shape index: {}]
  %s8 = inlined_call_operand.vmem [shape: f32[2,1,32], index: 8, kind: input, shape index: {}]
  %s9 = inlined_call_operand.vmem [shape: f32[2,1,32], index: 9, kind: input, shape index: {}]
  %s10 = inlined_call_operand.vmem [shape: f32[2,1,32], index: 10, kind: input, shape index: {}]
  %s11 = inlined_call_operand.vmem [shape: bf16[2,32,64], index: 11, kind: input, shape index: {}]
  %s12 = inlined_call_operand.vmem [shape: f32[2,1,64], index: 12, kind: input, shape index: {}]
  %s13 = inlined_call_operand.vmem [shape: bf16[2,64,32], index: 13, kind: input, shape index: {}]
  %s14 = inlined_call_operand.vmem [shape: f32[2,1,32], index: 14, kind: input, shape index: {}]
  %s15 = inlined_call_operand.vmem [shape: f32[2,1,32], index: 15, kind: input, shape index: {}]
  %s16 = inlined_call_operand.vmem [shape: f32[2,1,32], index: 16, kind: input, shape index: {}]
  %s17 = inlined_call_operand.vmem [shape: f32[1,32], index: 17, kind: input, shape index: {}]
  %s18 = inlined_call_operand.vmem [shape: f32[1,32], index: 18, kind: input, shape index: {}]
  %s19 = inlined_call_operand.vmem [shape: f32[2,8,32], index: 19, kind: output, shape index: {}]
  %s20 = sld [smem:[#allocation0]]
  $region117: #{transformer_translation_forward.3} parent=0
    _
  %s22 = ssub.s32 1, %s20
  %s23 = scalar_select 0, %s22, %s20
  loop: start=0, step=1, limit=6
  $region2: #{transformer_translation_forward.3} parent=0 // loop_pre_header
    _
  $region3: #{transformer_translation_forward.3} parent=0 // loop_header
    %s25 = sphi 0, %s29
    %p26 = scmp.ge.s32.totalorder %s25, 6
    %s32 = sphi 0, %s44
    %s33 = sphi 0, %s40
    %s34 = sphi 0, %s32
    %s35 = sphi 0, %s33
    %s36 = sphi 0, %s34
    %s37 = sphi 0, %s35
    %s47 = sphi 0, %s49
    %s50 = sphi 0, %s47
    %s51 = sphi 0, %s50
    %s67 = sphi 0, %s51
    %s73 = sphi 0, %s75
    %s76 = sphi 0, %s73
    %s77 = sphi 0, %s76
    %s93 = sphi 0, %s77
    %s99 = sphi 0, %s101
    %s102 = sphi 0, %s99
    %s103 = sphi 0, %s102
    %s119 = sphi 0, %s103
    %s125 = sphi 0, %s127
    %s128 = sphi 0, %s125
    %s129 = sphi 0, %s128
    %s145 = sphi 0, %s129
    %s151 = sphi 0, %s153
    %s154 = sphi 0, %s151
    %s155 = sphi 0, %s154
    %s171 = sphi 0, %s155
    %s177 = sphi 0, %s179
    %s180 = sphi 0, %s177
    %s181 = sphi 0, %s180
    %s197 = sphi 0, %s181
    %s203 = sphi 0, %s205
    %s206 = sphi 0, %s203
    %s207 = sphi 0, %s206
    %s223 = sphi 0, %s207
    %s229 = sphi 0, %s231
    %s232 = sphi 0, %s229
    %s233 = sphi 0, %s232
    %s249 = sphi 0, %s233
    %s255 = sphi 0, %s257
    %s258 = sphi 0, %s255
    %s259 = sphi 0, %s258
    %s275 = sphi 0, %s259
    %s281 = sphi 0, %s283
    %s284 = sphi 0, %s281
    %s285 = sphi 0, %s284
    %s301 = sphi 0, %s285
    %s307 = sphi 0, %s309
    %s310 = sphi 0, %s307
    %s311 = sphi 0, %s310
    %s327 = sphi 0, %s311
    %s333 = sphi 0, %s335
    %s336 = sphi 0, %s333
    %s337 = sphi 0, %s336
    %s353 = sphi 0, %s337
    %s359 = sphi 0, %s361
    %s362 = sphi 0, %s359
    %s363 = sphi 0, %s362
    %s379 = sphi 0, %s363
    %s385 = sphi 0, %s387
    %s388 = sphi 0, %s385
    %s389 = sphi 0, %s388
    %s405 = sphi 0, %s389
    %s411 = sphi 0, %s413
    %s414 = sphi 0, %s411
    %s415 = sphi 0, %s414
    %s431 = sphi 0, %s415
    %s437 = sphi 0, %s439
    %s440 = sphi 0, %s437
    %s441 = sphi 0, %s440
    %s457 = sphi 0, %s441
    %s463 = sphi 0, %s465
    %s466 = sphi 0, %s463
    %s467 = sphi 0, %s466
    %s483 = sphi 0, %s467
    %s487 = sphi 0, %s487
    %s489 = sphi 0, %s487
    %s490 = sphi 0, %s489
    %s504 = sphi 0, %s490
    %s508 = sphi 0, %s508
    %s510 = sphi 0, %s508
    %s511 = sphi 0, %s510
    %s525 = sphi 0, %s511
    %s531 = sphi 0, %s533
    %s534 = sphi 0, %s531
    %s535 = sphi 0, %s534
    %s551 = sphi 0, %s535
  $region4: #{transformer_translation_forward.3} parent=0 // loop_header_branch
    %28 = sbr.rel (%p26) target = $region8
  $region5: #{transformer_translation_forward.3} parent=0 // loop_body
    %s30 = ssub.s32 %s25, 1
    %s31 = ssub.s32 %s25, 2
    %s38 = sadd.s32 1, %s33
    %p39 = scmp.ge.s32.totalorder %s38, 2
    %s40 = scalar_select %p39, 0, %s38
    %s41 = sadd.s32 1, %s32
    %s42 = scalar_select %p39, %s41, %s32
    %p43 = scmp.ge.s32.totalorder %s42, 2
    %s44 = scalar_select %p43, 0, %s42
    %s45 = ssub.s32 %s32, %s44
    %p46 = scmp.eq.s32.totalorder %s45, 0
    %s48 = sadd.s32 %s47, 1
    %s49 = scalar_select %p46, %s47, %s48
    %p52 = pneg %p46
    %p53 = scmp.eq.s32.totalorder %s25, 3
    %p54 = por %p52, %p53
    %p55 = scmp.ne.s32.totalorder %s47, %s50
    %p56 = scmp.eq.s32.totalorder %s25, 0
    %p57 = por %p55, %p56
    %p58 = scmp.ne.s32.totalorder %s47, %s50
    %p59 = scmp.eq.s32.totalorder %s30, 3
    %p60 = por %p58, %p59
    %p61 = scmp.ne.s32.totalorder %s50, %s51
    %p62 = scmp.eq.s32.totalorder %s30, 0
    %p63 = por %p61, %p62
    %p64 = scmp.ne.s32.totalorder %s50, %s51
    %p65 = scmp.eq.s32.totalorder %s31, 3
    %p66 = por %p64, %p65
    %p68 = scmp.ne.s32.totalorder %s51, %s67
    %p69 = scmp.eq.s32.totalorder %s31, 0
    %p70 = por %p68, %p69
    %s71 = ssub.s32 %s33, %s40
    %p72 = scmp.eq.s32.totalorder %s71, 0
    %s74 = sadd.s32 %s73, 1
    %s75 = scalar_select %p72, %s73, %s74
    %p78 = pneg %p72
    %p79 = scmp.eq.s32.totalorder %s25, 3
    %p80 = por %p78, %p79
    %p81 = scmp.ne.s32.totalorder %s73, %s76
    %p82 = scmp.eq.s32.totalorder %s25, 0
    %p83 = por %p81, %p82
    %p84 = scmp.ne.s32.totalorder %s73, %s76
    %p85 = scmp.eq.s32.totalorder %s30, 3
    %p86 = por %p84, %p85
    %p87 = scmp.ne.s32.totalorder %s76, %s77
    %p88 = scmp.eq.s32.totalorder %s30, 0
    %p89 = por %p87, %p88
    %p90 = scmp.ne.s32.totalorder %s76, %s77
    %p91 = scmp.eq.s32.totalorder %s31, 3
    %p92 = por %p90, %p91
    %p94 = scmp.ne.s32.totalorder %s77, %s93
    %p95 = scmp.eq.s32.totalorder %s31, 0
    %p96 = por %p94, %p95
    %s97 = ssub.s32 %s33, %s40
    %p98 = scmp.eq.s32.totalorder %s97, 0
    %s100 = sadd.s32 %s99, 1
    %s101 = scalar_select %p98, %s99, %s100
    %p104 = pneg %p98
    %p105 = scmp.eq.s32.totalorder %s25, 3
    %p106 = por %p104, %p105
    %p107 = scmp.ne.s32.totalorder %s99, %s102
    %p108 = scmp.eq.s32.totalorder %s25, 0
    %p109 = por %p107, %p108
    %p110 = scmp.ne.s32.totalorder %s99, %s102
    %p111 = scmp.eq.s32.totalorder %s30, 3
    %p112 = por %p110, %p111
    %p113 = scmp.ne.s32.totalorder %s102, %s103
    %p114 = scmp.eq.s32.totalorder %s30, 0
    %p115 = por %p113, %p114
    %p116 = scmp.ne.s32.totalorder %s102, %s103
    %p117 = scmp.eq.s32.totalorder %s31, 3
    %p118 = por %p116, %p117
    %p120 = scmp.ne.s32.totalorder %s103, %s119
    %p121 = scmp.eq.s32.totalorder %s31, 0
    %p122 = por %p120, %p121
    %s123 = ssub.s32 %s33, %s40
    %p124 = scmp.eq.s32.totalorder %s123, 0
    %s126 = sadd.s32 %s125, 1
    %s127 = scalar_select %p124, %s125, %s126
    %p130 = pneg %p124
    %p131 = scmp.eq.s32.totalorder %s25, 3
    %p132 = por %p130, %p131
    %p133 = scmp.ne.s32.totalorder %s125, %s128
    %p134 = scmp.eq.s32.totalorder %s25, 0
    %p135 = por %p133, %p134
    %p136 = scmp.ne.s32.totalorder %s125, %s128
    %p137 = scmp.eq.s32.totalorder %s30, 3
    %p138 = por %p136, %p137
    %p139 = scmp.ne.s32.totalorder %s128, %s129
    %p140 = scmp.eq.s32.totalorder %s30, 0
    %p141 = por %p139, %p140
    %p142 = scmp.ne.s32.totalorder %s128, %s129
    %p143 = scmp.eq.s32.totalorder %s31, 3
    %p144 = por %p142, %p143
    %p146 = scmp.ne.s32.totalorder %s129, %s145
    %p147 = scmp.eq.s32.totalorder %s31, 0
    %p148 = por %p146, %p147
    %s149 = ssub.s32 %s33, %s40
    %p150 = scmp.eq.s32.totalorder %s149, 0
    %s152 = sadd.s32 %s151, 1
    %s153 = scalar_select %p150, %s151, %s152
    %p156 = pneg %p150
    %p157 = scmp.eq.s32.totalorder %s25, 3
    %p158 = por %p156, %p157
    %p159 = scmp.ne.s32.totalorder %s151, %s154
    %p160 = scmp.eq.s32.totalorder %s25, 0
    %p161 = por %p159, %p160
    %p162 = scmp.ne.s32.totalorder %s151, %s154
    %p163 = scmp.eq.s32.totalorder %s30, 3
    %p164 = por %p162, %p163
    %p165 = scmp.ne.s32.totalorder %s154, %s155
    %p166 = scmp.eq.s32.totalorder %s30, 0
    %p167 = por %p165, %p166
    %p168 = scmp.ne.s32.totalorder %s154, %s155
    %p169 = scmp.eq.s32.totalorder %s31, 3
    %p170 = por %p168, %p169
    %p172 = scmp.ne.s32.totalorder %s155, %s171
    %p173 = scmp.eq.s32.totalorder %s31, 0
    %p174 = por %p172, %p173
    %s175 = ssub.s32 %s33, %s40
    %p176 = scmp.eq.s32.totalorder %s175, 0
    %s178 = sadd.s32 %s177, 1
    %s179 = scalar_select %p176, %s177, %s178
    %p182 = pneg %p176
    %p183 = scmp.eq.s32.totalorder %s25, 3
    %p184 = por %p182, %p183
    %p185 = scmp.ne.s32.totalorder %s177, %s180
    %p186 = scmp.eq.s32.totalorder %s25, 0
    %p187 = por %p185, %p186
    %p188 = scmp.ne.s32.totalorder %s177, %s180
    %p189 = scmp.eq.s32.totalorder %s30, 3
    %p190 = por %p188, %p189
    %p191 = scmp.ne.s32.totalorder %s180, %s181
    %p192 = scmp.eq.s32.totalorder %s30, 0
    %p193 = por %p191, %p192
    %p194 = scmp.ne.s32.totalorder %s180, %s181
    %p195 = scmp.eq.s32.totalorder %s31, 3
    %p196 = por %p194, %p195
    %p198 = scmp.ne.s32.totalorder %s181, %s197
    %p199 = scmp.eq.s32.totalorder %s31, 0
    %p200 = por %p198, %p199
    %s201 = ssub.s32 %s33, %s40
    %p202 = scmp.eq.s32.totalorder %s201, 0
    %s204 = sadd.s32 %s203, 1
    %s205 = scalar_select %p202, %s203, %s204
    %p208 = pneg %p202
    %p209 = scmp.eq.s32.totalorder %s25, 3
    %p210 = por %p208, %p209
    %p211 = scmp.ne.s32.totalorder %s203, %s206
    %p212 = scmp.eq.s32.totalorder %s25, 0
    %p213 = por %p211, %p212
    %p214 = scmp.ne.s32.totalorder %s203, %s206
    %p215 = scmp.eq.s32.totalorder %s30, 3
    %p216 = por %p214, %p215
    %p217 = scmp.ne.s32.totalorder %s206, %s207
    %p218 = scmp.eq.s32.totalorder %s30, 0
    %p219 = por %p217, %p218
    %p220 = scmp.ne.s32.totalorder %s206, %s207
    %p221 = scmp.eq.s32.totalorder %s31, 3
    %p222 = por %p220, %p221
    %p224 = scmp.ne.s32.totalorder %s207, %s223
    %p225 = scmp.eq.s32.totalorder %s31, 0
    %p226 = por %p224, %p225
    %s227 = ssub.s32 %s33, %s40
    %p228 = scmp.eq.s32.totalorder %s227, 0
    %s230 = sadd.s32 %s229, 1
    %s231 = scalar_select %p228, %s229, %s230
    %p234 = pneg %p228
    %p235 = scmp.eq.s32.totalorder %s25, 3
    %p236 = por %p234, %p235
    %p237 = scmp.ne.s32.totalorder %s229, %s232
    %p238 = scmp.eq.s32.totalorder %s25, 0
    %p239 = por %p237, %p238
    %p240 = scmp.ne.s32.totalorder %s229, %s232
    %p241 = scmp.eq.s32.totalorder %s30, 3
    %p242 = por %p240, %p241
    %p243 = scmp.ne.s32.totalorder %s232, %s233
    %p244 = scmp.eq.s32.totalorder %s30, 0
    %p245 = por %p243, %p244
    %p246 = scmp.ne.s32.totalorder %s232, %s233
    %p247 = scmp.eq.s32.totalorder %s31, 3
    %p248 = por %p246, %p247
    %p250 = scmp.ne.s32.totalorder %s233, %s249
    %p251 = scmp.eq.s32.totalorder %s31, 0
    %p252 = por %p250, %p251
    %s253 = ssub.s32 %s33, %s40
    %p254 = scmp.eq.s32.totalorder %s253, 0
    %s256 = sadd.s32 %s255, 1
    %s257 = scalar_select %p254, %s255, %s256
    %p260 = pneg %p254
    %p261 = scmp.eq.s32.totalorder %s25, 3
    %p262 = por %p260, %p261
    %p263 = scmp.ne.s32.totalorder %s255, %s258
    %p264 = scmp.eq.s32.totalorder %s25, 0
    %p265 = por %p263, %p264
    %p266 = scmp.ne.s32.totalorder %s255, %s258
    %p267 = scmp.eq.s32.totalorder %s30, 3
    %p268 = por %p266, %p267
    %p269 = scmp.ne.s32.totalorder %s258, %s259
    %p270 = scmp.eq.s32.totalorder %s30, 0
    %p271 = por %p269, %p270
    %p272 = scmp.ne.s32.totalorder %s258, %s259
    %p273 = scmp.eq.s32.totalorder %s31, 3
    %p274 = por %p272, %p273
    %p276 = scmp.ne.s32.totalorder %s259, %s275
    %p277 = scmp.eq.s32.totalorder %s31, 0
    %p278 = por %p276, %p277
    %s279 = ssub.s32 %s33, %s40
    %p280 = scmp.eq.s32.totalorder %s279, 0
    %s282 = sadd.s32 %s281, 1
    %s283 = scalar_select %p280, %s281, %s282
    %p286 = pneg %p280
    %p287 = scmp.eq.s32.totalorder %s25, 3
    %p288 = por %p286, %p287
    %p289 = scmp.ne.s32.totalorder %s281, %s284
    %p290 = scmp.eq.s32.totalorder %s25, 0
    %p291 = por %p289, %p290
    %p292 = scmp.ne.s32.totalorder %s281, %s284
    %p293 = scmp.eq.s32.totalorder %s30, 3
    %p294 = por %p292, %p293
    %p295 = scmp.ne.s32.totalorder %s284, %s285
    %p296 = scmp.eq.s32.totalorder %s30, 0
    %p297 = por %p295, %p296
    %p298 = scmp.ne.s32.totalorder %s284, %s285
    %p299 = scmp.eq.s32.totalorder %s31, 3
    %p300 = por %p298, %p299
    %p302 = scmp.ne.s32.totalorder %s285, %s301
    %p303 = scmp.eq.s32.totalorder %s31, 0
    %p304 = por %p302, %p303
    %s305 = ssub.s32 %s33, %s40
    %p306 = scmp.eq.s32.totalorder %s305, 0
    %s308 = sadd.s32 %s307, 1
    %s309 = scalar_select %p306, %s307, %s308
    %p312 = pneg %p306
    %p313 = scmp.eq.s32.totalorder %s25, 3
    %p314 = por %p312, %p313
    %p315 = scmp.ne.s32.totalorder %s307, %s310
    %p316 = scmp.eq.s32.totalorder %s25, 0
    %p317 = por %p315, %p316
    %p318 = scmp.ne.s32.totalorder %s307, %s310
    %p319 = scmp.eq.s32.totalorder %s30, 3
    %p320 = por %p318, %p319
    %p321 = scmp.ne.s32.totalorder %s310, %s311
    %p322 = scmp.eq.s32.totalorder %s30, 0
    %p323 = por %p321, %p322
    %p324 = scmp.ne.s32.totalorder %s310, %s311
    %p325 = scmp.eq.s32.totalorder %s31, 3
    %p326 = por %p324, %p325
    %p328 = scmp.ne.s32.totalorder %s311, %s327
    %p329 = scmp.eq.s32.totalorder %s31, 0
    %p330 = por %p328, %p329
    %s331 = ssub.s32 %s33, %s40
    %p332 = scmp.eq.s32.totalorder %s331, 0
    %s334 = sadd.s32 %s333, 1
    %s335 = scalar_select %p332, %s333, %s334
    %p338 = pneg %p332
    %p339 = scmp.eq.s32.totalorder %s25, 3
    %p340 = por %p338, %p339
    %p341 = scmp.ne.s32.totalorder %s333, %s336
    %p342 = scmp.eq.s32.totalorder %s25, 0
    %p343 = por %p341, %p342
    %p344 = scmp.ne.s32.totalorder %s333, %s336
    %p345 = scmp.eq.s32.totalorder %s30, 3
    %p346 = por %p344, %p345
    %p347 = scmp.ne.s32.totalorder %s336, %s337
    %p348 = scmp.eq.s32.totalorder %s30, 0
    %p349 = por %p347, %p348
    %p350 = scmp.ne.s32.totalorder %s336, %s337
    %p351 = scmp.eq.s32.totalorder %s31, 3
    %p352 = por %p350, %p351
    %p354 = scmp.ne.s32.totalorder %s337, %s353
    %p355 = scmp.eq.s32.totalorder %s31, 0
    %p356 = por %p354, %p355
    %s357 = ssub.s32 %s33, %s40
    %p358 = scmp.eq.s32.totalorder %s357, 0
    %s360 = sadd.s32 %s359, 1
    %s361 = scalar_select %p358, %s359, %s360
    %p364 = pneg %p358
    %p365 = scmp.eq.s32.totalorder %s25, 3
    %p366 = por %p364, %p365
    %p367 = scmp.ne.s32.totalorder %s359, %s362
    %p368 = scmp.eq.s32.totalorder %s25, 0
    %p369 = por %p367, %p368
    %p370 = scmp.ne.s32.totalorder %s359, %s362
    %p371 = scmp.eq.s32.totalorder %s30, 3
    %p372 = por %p370, %p371
    %p373 = scmp.ne.s32.totalorder %s362, %s363
    %p374 = scmp.eq.s32.totalorder %s30, 0
    %p375 = por %p373, %p374
    %p376 = scmp.ne.s32.totalorder %s362, %s363
    %p377 = scmp.eq.s32.totalorder %s31, 3
    %p378 = por %p376, %p377
    %p380 = scmp.ne.s32.totalorder %s363, %s379
    %p381 = scmp.eq.s32.totalorder %s31, 0
    %p382 = por %p380, %p381
    %s383 = ssub.s32 %s33, %s40
    %p384 = scmp.eq.s32.totalorder %s383, 0
    %s386 = sadd.s32 %s385, 1
    %s387 = scalar_select %p384, %s385, %s386
    %p390 = pneg %p384
    %p391 = scmp.eq.s32.totalorder %s25, 3
    %p392 = por %p390, %p391
    %p393 = scmp.ne.s32.totalorder %s385, %s388
    %p394 = scmp.eq.s32.totalorder %s25, 0
    %p395 = por %p393, %p394
    %p396 = scmp.ne.s32.totalorder %s385, %s388
    %p397 = scmp.eq.s32.totalorder %s30, 3
    %p398 = por %p396, %p397
    %p399 = scmp.ne.s32.totalorder %s388, %s389
    %p400 = scmp.eq.s32.totalorder %s30, 0
    %p401 = por %p399, %p400
    %p402 = scmp.ne.s32.totalorder %s388, %s389
    %p403 = scmp.eq.s32.totalorder %s31, 3
    %p404 = por %p402, %p403
    %p406 = scmp.ne.s32.totalorder %s389, %s405
    %p407 = scmp.eq.s32.totalorder %s31, 0
    %p408 = por %p406, %p407
    %s409 = ssub.s32 %s33, %s40
    %p410 = scmp.eq.s32.totalorder %s409, 0
    %s412 = sadd.s32 %s411, 1
    %s413 = scalar_select %p410, %s411, %s412
    %p416 = pneg %p410
    %p417 = scmp.eq.s32.totalorder %s25, 3
    %p418 = por %p416, %p417
    %p419 = scmp.ne.s32.totalorder %s411, %s414
    %p420 = scmp.eq.s32.totalorder %s25, 0
    %p421 = por %p419, %p420
    %p422 = scmp.ne.s32.totalorder %s411, %s414
    %p423 = scmp.eq.s32.totalorder %s30, 3
    %p424 = por %p422, %p423
    %p425 = scmp.ne.s32.totalorder %s414, %s415
    %p426 = scmp.eq.s32.totalorder %s30, 0
    %p427 = por %p425, %p426
    %p428 = scmp.ne.s32.totalorder %s414, %s415
    %p429 = scmp.eq.s32.totalorder %s31, 3
    %p430 = por %p428, %p429
    %p432 = scmp.ne.s32.totalorder %s415, %s431
    %p433 = scmp.eq.s32.totalorder %s31, 0
    %p434 = por %p432, %p433
    %s435 = ssub.s32 %s33, %s40
    %p436 = scmp.eq.s32.totalorder %s435, 0
    %s438 = sadd.s32 %s437, 1
    %s439 = scalar_select %p436, %s437, %s438
    %p442 = pneg %p436
    %p443 = scmp.eq.s32.totalorder %s25, 3
    %p444 = por %p442, %p443
    %p445 = scmp.ne.s32.totalorder %s437, %s440
    %p446 = scmp.eq.s32.totalorder %s25, 0
    %p447 = por %p445, %p446
    %p448 = scmp.ne.s32.totalorder %s437, %s440
    %p449 = scmp.eq.s32.totalorder %s30, 3
    %p450 = por %p448, %p449
    %p451 = scmp.ne.s32.totalorder %s440, %s441
    %p452 = scmp.eq.s32.totalorder %s30, 0
    %p453 = por %p451, %p452
    %p454 = scmp.ne.s32.totalorder %s440, %s441
    %p455 = scmp.eq.s32.totalorder %s31, 3
    %p456 = por %p454, %p455
    %p458 = scmp.ne.s32.totalorder %s441, %s457
    %p459 = scmp.eq.s32.totalorder %s31, 0
    %p460 = por %p458, %p459
    %s461 = ssub.s32 %s33, %s40
    %p462 = scmp.eq.s32.totalorder %s461, 0
    %s464 = sadd.s32 %s463, 1
    %s465 = scalar_select %p462, %s463, %s464
    %p468 = pneg %p462
    %p469 = scmp.eq.s32.totalorder %s25, 3
    %p470 = por %p468, %p469
    %p471 = scmp.ne.s32.totalorder %s463, %s466
    %p472 = scmp.eq.s32.totalorder %s25, 0
    %p473 = por %p471, %p472
    %p474 = scmp.ne.s32.totalorder %s463, %s466
    %p475 = scmp.eq.s32.totalorder %s30, 3
    %p476 = por %p474, %p475
    %p477 = scmp.ne.s32.totalorder %s466, %s467
    %p478 = scmp.eq.s32.totalorder %s30, 0
    %p479 = por %p477, %p478
    %p480 = scmp.ne.s32.totalorder %s466, %s467
    %p481 = scmp.eq.s32.totalorder %s31, 3
    %p482 = por %p480, %p481
    %p484 = scmp.ne.s32.totalorder %s467, %s483
    %p485 = scmp.eq.s32.totalorder %s31, 0
    %p486 = por %p484, %p485
    %s488 = sadd.s32 %s487, 1
    %p491 = scmp.eq.s32.totalorder %s25, 3
    %p492 = scmp.ne.s32.totalorder %s487, %s489
    %p493 = scmp.eq.s32.totalorder %s25, 0
    %p494 = por %p492, %p493
    %p495 = scmp.ne.s32.totalorder %s487, %s489
    %p496 = scmp.eq.s32.totalorder %s30, 3
    %p497 = por %p495, %p496
    %p498 = scmp.ne.s32.totalorder %s489, %s490
    %p499 = scmp.eq.s32.totalorder %s30, 0
    %p500 = por %p498, %p499
    %p501 = scmp.ne.s32.totalorder %s489, %s490
    %p502 = scmp.eq.s32.totalorder %s31, 3
    %p503 = por %p501, %p502
    %p505 = scmp.ne.s32.totalorder %s490, %s504
    %p506 = scmp.eq.s32.totalorder %s31, 0
    %p507 = por %p505, %p506
    %s509 = sadd.s32 %s508, 1
    %p512 = scmp.eq.s32.totalorder %s25, 3
    %p513 = scmp.ne.s32.totalorder %s508, %s510
    %p514 = scmp.eq.s32.totalorder %s25, 0
    %p515 = por %p513, %p514
    %p516 = scmp.ne.s32.totalorder %s508, %s510
    %p517 = scmp.eq.s32.totalorder %s30, 3
    %p518 = por %p516, %p517
    %p519 = scmp.ne.s32.totalorder %s510, %s511
    %p520 = scmp.eq.s32.totalorder %s30, 0
    %p521 = por %p519, %p520
    %p522 = scmp.ne.s32.totalorder %s510, %s511
    %p523 = scmp.eq.s32.totalorder %s31, 3
    %p524 = por %p522, %p523
    %p526 = scmp.ne.s32.totalorder %s511, %s525
    %p527 = scmp.eq.s32.totalorder %s31, 0
    %p528 = por %p526, %p527
    %s529 = ssub.s32 %s32, %s44
    %p530 = scmp.eq.s32.totalorder %s529, 0
    %s532 = sadd.s32 %s531, 1
    %s533 = scalar_select %p530, %s531, %s532
    %p536 = pneg %p530
    %p537 = scmp.eq.s32.totalorder %s25, 3
    %p538 = por %p536, %p537
    %p539 = scmp.ne.s32.totalorder %s531, %s534
    %p540 = scmp.eq.s32.totalorder %s25, 0
    %p541 = por %p539, %p540
    %p542 = scmp.ne.s32.totalorder %s531, %s534
    %p543 = scmp.eq.s32.totalorder %s30, 3
    %p544 = por %p542, %p543
    %p545 = scmp.ne.s32.totalorder %s534, %s535
    %p546 = scmp.eq.s32.totalorder %s30, 0
    %p547 = por %p545, %p546
    %p548 = scmp.ne.s32.totalorder %s534, %s535
    %p549 = scmp.eq.s32.totalorder %s31, 3
    %p550 = por %p548, %p549
    %p552 = scmp.ne.s32.totalorder %s535, %s551
    %p553 = scmp.eq.s32.totalorder %s31, 0
    %p554 = por %p552, %p553
    %p555 = scmp.le.s32.totalorder 1, %s25
    %p556 = scmp.lt.s32.totalorder %s25, 5
    %p557 = pnand %p555, %p556
    %p558 = pneg %p557
    // Predicated region
    $region9: #{transformer_translation_forward.3} parent=5 // pred_check
      _
    $region10: #{transformer_translation_forward.3} parent=5 // pred_check_branch
      %560 = sbr.rel (%p557) target = $region12
    $region11: #{transformer_translation_forward.3} parent=5 // pred_region
      %s561 = ssub.s32 %s25, 1
      // Predicated region
      $region13: #{transformer_translation_forward.3} parent=11 // pred_check
        %p562 = pneg %p500
      $region14: #{transformer_translation_forward.3} parent=11 // pred_check_branch
        %564 = sbr.rel (%p562) target = $region16
      $region15: #{transformer_translation_forward.3} parent=11 // pred_region
        _
      $region16: #{transformer_translation_forward.3} parent=11 // pred_fallthru
        _
      // Predicated region
      $region17: #{transformer_translation_forward.3} parent=11 // pred_check
        %p565 = pneg %p521
      $region18: #{transformer_translation_forward.3} parent=11 // pred_check_branch
        %567 = sbr.rel (%p565) target = $region20
      $region19: #{transformer_translation_forward.3} parent=11 // pred_region
        _
      $region20: #{transformer_translation_forward.3} parent=11 // pred_fallthru
        _
    $region12: #{transformer_translation_forward.3} parent=5 // pred_fallthru
      _
    %p568 = scmp.lt.s32.totalorder %s25, 4
    // Predicated region
    $region21: #{transformer_translation_forward.3} parent=5 // pred_check
      %p569 = pneg %p568
    $region22: #{transformer_translation_forward.3} parent=5 // pred_check_branch
      %571 = sbr.rel (%p569) target = $region24
    $region23: #{transformer_translation_forward.3} parent=5 // pred_region
      // Predicated region
      $region25: #{transformer_translation_forward.3} parent=23 // pred_check
        %p572 = pneg %p57
      $region26: #{transformer_translation_forward.3} parent=23 // pred_check_branch
        %574 = sbr.rel (%p572) target = $region28
      $region27: #{transformer_translation_forward.3} parent=23 // pred_region
        %p575 = scmp.lt.s32.totalorder %s32, 1
        %s576 = scalar_select %p575, %s32, 1
        %s577 = smul.addr %s576, 8
        %s578 = scalar_lea.vmem %s0, %s577
      $region28: #{transformer_translation_forward.3} parent=23 // pred_fallthru
        _
      // Predicated region
      $region29: #{transformer_translation_forward.3} parent=23 // pred_check
        %p579 = pneg %p83
      $region30: #{transformer_translation_forward.3} parent=23 // pred_check_branch
        %581 = sbr.rel (%p579) target = $region32
      $region31: #{transformer_translation_forward.3} parent=23 // pred_region
        %p582 = scmp.lt.s32.totalorder %s33, 1
        %s583 = scalar_select %p582, %s33, 1
        %s584 = smul.addr %s583, 16
        %s585 = smul.addr %s584, 4
        %s586 = scalar_lea.vmem %s1, %s585
      $region32: #{transformer_translation_forward.3} parent=23 // pred_fallthru
        _
      // Predicated region
      $region33: #{transformer_translation_forward.3} parent=23 // pred_check
        %p587 = pneg %p109
      $region34: #{transformer_translation_forward.3} parent=23 // pred_check_branch
        %589 = sbr.rel (%p587) target = $region36
      $region35: #{transformer_translation_forward.3} parent=23 // pred_region
        %p590 = scmp.lt.s32.totalorder %s33, 1
        %s591 = scalar_select %p590, %s33, 1
        %s592 = smul.addr %s591, 16
        %s593 = smul.addr %s592, 4
        %s594 = scalar_lea.vmem %s2, %s593
      $region36: #{transformer_translation_forward.3} parent=23 // pred_fallthru
        _
      // Predicated region
      $region37: #{transformer_translation_forward.3} parent=23 // pred_check
        %p595 = pneg %p135
      $region38: #{transformer_translation_forward.3} parent=23 // pred_check_branch
        %597 = sbr.rel (%p595) target = $region40
      $region39: #{transformer_translation_forward.3} parent=23 // pred_region
        %p598 = scmp.lt.s32.totalorder %s33, 1
        %s599 = scalar_select %p598, %s33, 1
        %s600 = smul.addr %s599, 16
        %s601 = smul.addr %s600, 4
        %s602 = scalar_lea.vmem %s3, %s601
      $region40: #{transformer_translation_forward.3} parent=23 // pred_fallthru
        _
      // Predicated region
      $region41: #{transformer_translation_forward.3} parent=23 // pred_check
        %p603 = pneg %p161
      $region42: #{transformer_translation_forward.3} parent=23 // pred_check_branch
        %605 = sbr.rel (%p603) target = $region44
      $region43: #{transformer_translation_forward.3} parent=23 // pred_region
        %p606 = scmp.lt.s32.totalorder %s33, 1
        %s607 = scalar_select %p606, %s33, 1
        %s608 = smul.addr %s607, 4
        %s609 = scalar_lea.vmem %s4, %s608
      $region44: #{transformer_translation_forward.3} parent=23 // pred_fallthru
        _
      // Predicated region
      $region45: #{transformer_translation_forward.3} parent=23 // pred_check
        %p610 = pneg %p187
      $region46: #{transformer_translation_forward.3} parent=23 // pred_check_branch
        %612 = sbr.rel (%p610) target = $region48
      $region47: #{transformer_translation_forward.3} parent=23 // pred_region
        %p613 = scmp.lt.s32.totalorder %s33, 1
        %s614 = scalar_select %p613, %s33, 1
        %s615 = smul.addr %s614, 4
        %s616 = scalar_lea.vmem %s5, %s615
      $region48: #{transformer_translation_forward.3} parent=23 // pred_fallthru
        _
      // Predicated region
      $region49: #{transformer_translation_forward.3} parent=23 // pred_check
        %p617 = pneg %p213
      $region50: #{transformer_translation_forward.3} parent=23 // pred_check_branch
        %619 = sbr.rel (%p617) target = $region52
      $region51: #{transformer_translation_forward.3} parent=23 // pred_region
        %p620 = scmp.lt.s32.totalorder %s33, 1
        %s621 = scalar_select %p620, %s33, 1
        %s622 = smul.addr %s621, 4
        %s623 = scalar_lea.vmem %s6, %s622
      $region52: #{transformer_translation_forward.3} parent=23 // pred_fallthru
        _
      // Predicated region
      $region53: #{transformer_translation_forward.3} parent=23 // pred_check
        %p624 = pneg %p239
      $region54: #{transformer_translation_forward.3} parent=23 // pred_check_branch
        %626 = sbr.rel (%p624) target = $region56
      $region55: #{transformer_translation_forward.3} parent=23 // pred_region
        %p627 = scmp.lt.s32.totalorder %s33, 1
        %s628 = scalar_select %p627, %s33, 1
        %s629 = smul.addr %s628, 4
        %s630 = smul.addr %s629, 4
        %s631 = scalar_lea.vmem %s7, %s630
      $region56: #{transformer_translation_forward.3} parent=23 // pred_fallthru
        _
      // Predicated region
      $region57: #{transformer_translation_forward.3} parent=23 // pred_check
        %p632 = pneg %p265
      $region58: #{transformer_translation_forward.3} parent=23 // pred_check_branch
        %634 = sbr.rel (%p632) target = $region60
      $region59: #{transformer_translation_forward.3} parent=23 // pred_region
        %p635 = scmp.lt.s32.totalorder %s33, 1
        %s636 = scalar_select %p635, %s33, 1
        %s637 = scalar_lea.vmem %s8, %s636
      $region60: #{transformer_translation_forward.3} parent=23 // pred_fallthru
        _
      // Predicated region
      $region61: #{transformer_translation_forward.3} parent=23 // pred_check
        %p638 = pneg %p291
      $region62: #{transformer_translation_forward.3} parent=23 // pred_check_branch
        %640 = sbr.rel (%p638) target = $region64
      $region63: #{transformer_translation_forward.3} parent=23 // pred_region
        %p641 = scmp.lt.s32.totalorder %s33, 1
        %s642 = scalar_select %p641, %s33, 1
        %s643 = scalar_lea.vmem %s9, %s642
      $region64: #{transformer_translation_forward.3} parent=23 // pred_fallthru
        _
      // Predicated region
      $region65: #{transformer_translation_forward.3} parent=23 // pred_check
        %p644 = pneg %p317
      $region66: #{transformer_translation_forward.3} parent=23 // pred_check_branch
        %646 = sbr.rel (%p644) target = $region68
      $region67: #{transformer_translation_forward.3} parent=23 // pred_region
        %p647 = scmp.lt.s32.totalorder %s33, 1
        %s648 = scalar_select %p647, %s33, 1
        %s649 = scalar_lea.vmem %s10, %s648
      $region68: #{transformer_translation_forward.3} parent=23 // pred_fallthru
        _
      // Predicated region
      $region69: #{transformer_translation_forward.3} parent=23 // pred_check
        %p650 = pneg %p343
      $region70: #{transformer_translation_forward.3} parent=23 // pred_check_branch
        %652 = sbr.rel (%p650) target = $region72
      $region71: #{transformer_translation_forward.3} parent=23 // pred_region
        %p653 = scmp.lt.s32.totalorder %s33, 1
        %s654 = scalar_select %p653, %s33, 1
        %s655 = smul.addr %s654, 4
        %s656 = smul.addr %s655, 4
        %s657 = scalar_lea.vmem %s11, %s656
      $region72: #{transformer_translation_forward.3} parent=23 // pred_fallthru
        _
      // Predicated region
      $region73: #{transformer_translation_forward.3} parent=23 // pred_check
        %p658 = pneg %p369
      $region74: #{transformer_translation_forward.3} parent=23 // pred_check_branch
        %660 = sbr.rel (%p658) target = $region76
      $region75: #{transformer_translation_forward.3} parent=23 // pred_region
        %p661 = scmp.lt.s32.totalorder %s33, 1
        %s662 = scalar_select %p661, %s33, 1
        %s663 = scalar_lea.vmem %s12, %s662
      $region76: #{transformer_translation_forward.3} parent=23 // pred_fallthru
        _
      // Predicated region
      $region77: #{transformer_translation_forward.3} parent=23 // pred_check
        %p664 = pneg %p395
      $region78: #{transformer_translation_forward.3} parent=23 // pred_check_branch
        %666 = sbr.rel (%p664) target = $region80
      $region79: #{transformer_translation_forward.3} parent=23 // pred_region
        %p667 = scmp.lt.s32.totalorder %s33, 1
        %s668 = scalar_select %p667, %s33, 1
        %s669 = smul.addr %s668, 8
        %s670 = smul.addr %s669, 4
        %s671 = scalar_lea.vmem %s13, %s670
      $region80: #{transformer_translation_forward.3} parent=23 // pred_fallthru
        _
      // Predicated region
      $region81: #{transformer_translation_forward.3} parent=23 // pred_check
        %p672 = pneg %p421
      $region82: #{transformer_translation_forward.3} parent=23 // pred_check_branch
        %674 = sbr.rel (%p672) target = $region84
      $region83: #{transformer_translation_forward.3} parent=23 // pred_region
        %p675 = scmp.lt.s32.totalorder %s33, 1
        %s676 = scalar_select %p675, %s33, 1
        %s677 = scalar_lea.vmem %s14, %s676
      $region84: #{transformer_translation_forward.3} parent=23 // pred_fallthru
        _
      // Predicated region
      $region85: #{transformer_translation_forward.3} parent=23 // pred_check
        %p678 = pneg %p447
      $region86: #{transformer_translation_forward.3} parent=23 // pred_check_branch
        %680 = sbr.rel (%p678) target = $region88
      $region87: #{transformer_translation_forward.3} parent=23 // pred_region
        %p681 = scmp.lt.s32.totalorder %s33, 1
        %s682 = scalar_select %p681, %s33, 1
        %s683 = scalar_lea.vmem %s15, %s682
      $region88: #{transformer_translation_forward.3} parent=23 // pred_fallthru
        _
      // Predicated region
      $region89: #{transformer_translation_forward.3} parent=23 // pred_check
        %p684 = pneg %p473
      $region90: #{transformer_translation_forward.3} parent=23 // pred_check_branch
        %686 = sbr.rel (%p684) target = $region92
      $region91: #{transformer_translation_forward.3} parent=23 // pred_region
        %p687 = scmp.lt.s32.totalorder %s33, 1
        %s688 = scalar_select %p687, %s33, 1
        %s689 = scalar_lea.vmem %s16, %s688
      $region92: #{transformer_translation_forward.3} parent=23 // pred_fallthru
        _
    $region24: #{transformer_translation_forward.3} parent=5 // pred_fallthru
      _
    %p690 = scmp.le.s32.totalorder 1, %s25
    %p691 = scmp.lt.s32.totalorder %s25, 5
    %p692 = pnand %p690, %p691
    %p693 = pneg %p692
    // Predicated region
    $region93: #{transformer_translation_forward.3} parent=5 // pred_check
      _
    $region94: #{transformer_translation_forward.3} parent=5 // pred_check_branch
      %695 = sbr.rel (%p692) target = $region96
    $region95: #{transformer_translation_forward.3} parent=5 // pred_region
      %s696 = ssub.s32 %s25, 1
      %p697 = scmp.lt.s32.totalorder %s34, 1
      %s698 = scalar_select %p697, %s34, 1
      %s699 = smul.addr %s698, 8
      %s700 = scalar_lea.vmem %s0, %s699
      %p701 = pneg %p63
      %p702 = pneg %p60
      %p703 = scmp.lt.s32.totalorder %s35, 1
      %s704 = scalar_select %p703, %s35, 1
      %s705 = smul.addr %s704, 16
      %s706 = smul.addr %s705, 4
      %s707 = scalar_lea.vmem %s1, %s706
      %p708 = pneg %p89
      %p709 = pneg %p86
      %p710 = scmp.lt.s32.totalorder %s35, 1
      %s711 = scalar_select %p710, %s35, 1
      %s712 = smul.addr %s711, 16
      %s713 = smul.addr %s712, 4
      %s714 = scalar_lea.vmem %s2, %s713
      %p715 = pneg %p115
      %p716 = pneg %p112
      %p717 = scmp.lt.s32.totalorder %s35, 1
      %s718 = scalar_select %p717, %s35, 1
      %s719 = smul.addr %s718, 16
      %s720 = smul.addr %s719, 4
      %s721 = scalar_lea.vmem %s3, %s720
      %p722 = pneg %p141
      %p723 = pneg %p138
      %p724 = scmp.lt.s32.totalorder %s35, 1
      %s725 = scalar_select %p724, %s35, 1
      %s726 = smul.addr %s725, 4
      %s727 = scalar_lea.vmem %s4, %s726
      %p728 = pneg %p167
      %p729 = pneg %p164
      %p730 = scmp.lt.s32.totalorder %s35, 1
      %s731 = scalar_select %p730, %s35, 1
      %s732 = smul.addr %s731, 4
      %s733 = scalar_lea.vmem %s5, %s732
      %p734 = pneg %p193
      %p735 = pneg %p190
      %p736 = scmp.lt.s32.totalorder %s35, 1
      %s737 = scalar_select %p736, %s35, 1
      %s738 = smul.addr %s737, 4
      %s739 = scalar_lea.vmem %s6, %s738
      %p740 = pneg %p219
      %p741 = pneg %p216
      %p742 = scmp.lt.s32.totalorder %s35, 1
      %s743 = scalar_select %p742, %s35, 1
      %s744 = smul.addr %s743, 4
      %s745 = smul.addr %s744, 4
      %s746 = scalar_lea.vmem %s7, %s745
      %p747 = pneg %p245
      %p748 = pneg %p242
      %p749 = scmp.lt.s32.totalorder %s35, 1
      %s750 = scalar_select %p749, %s35, 1
      %s751 = scalar_lea.vmem %s8, %s750
      %p752 = pneg %p271
      %p753 = pneg %p268
      %p754 = scmp.lt.s32.totalorder %s35, 1
      %s755 = scalar_select %p754, %s35, 1
      %s756 = scalar_lea.vmem %s9, %s755
      %p757 = pneg %p297
      %p758 = pneg %p294
      %p759 = scmp.lt.s32.totalorder %s35, 1
      %s760 = scalar_select %p759, %s35, 1
      %s761 = scalar_lea.vmem %s10, %s760
      %p762 = pneg %p323
      %p763 = pneg %p320
      %p764 = scmp.lt.s32.totalorder %s35, 1
      %s765 = scalar_select %p764, %s35, 1
      %s766 = smul.addr %s765, 4
      %s767 = smul.addr %s766, 4
      %s768 = scalar_lea.vmem %s11, %s767
      %p769 = pneg %p349
      %p770 = pneg %p346
      %p771 = scmp.lt.s32.totalorder %s35, 1
      %s772 = scalar_select %p771, %s35, 1
      %s773 = scalar_lea.vmem %s12, %s772
      %p774 = pneg %p375
      %p775 = pneg %p372
      %p776 = scmp.lt.s32.totalorder %s35, 1
      %s777 = scalar_select %p776, %s35, 1
      %s778 = smul.addr %s777, 8
      %s779 = smul.addr %s778, 4
      %s780 = scalar_lea.vmem %s13, %s779
      %p781 = pneg %p401
      %p782 = pneg %p398
      %p783 = scmp.lt.s32.totalorder %s35, 1
      %s784 = scalar_select %p783, %s35, 1
      %s785 = scalar_lea.vmem %s14, %s784
      %p786 = pneg %p427
      %p787 = pneg %p424
      %p788 = scmp.lt.s32.totalorder %s35, 1
      %s789 = scalar_select %p788, %s35, 1
      %s790 = scalar_lea.vmem %s15, %s789
      %p791 = pneg %p453
      %p792 = pneg %p450
      %p793 = scmp.lt.s32.totalorder %s35, 1
      %s794 = scalar_select %p793, %s35, 1
      %s795 = scalar_lea.vmem %s16, %s794
      %p796 = pneg %p479
      %p797 = pneg %p476
      %p798 = pneg %p500
      %p799 = pneg %p497
      %p800 = pneg %p521
      %p801 = pneg %p518
      %p802 = pneg %p547
      %p803 = pneg %p544
      %p804 = scmp.lt.s32.totalorder %s34, 1
      %s805 = scalar_select %p804, %s34, 1
      %s806 = smul.addr %s805, 8
      %s807 = scalar_lea.vmem %s19, %s806
      %p808 = scmp.lt.s32.totalorder %s34, 1
      %s809 = scalar_select %p808, %s34, 1
      %s810 = smul.addr %s809, 8
      %s811 = scalar_lea.vmem %s0, %s810
      %p812 = scmp.lt.s32.totalorder %s35, 1
      %s813 = scalar_select %p812, %s35, 1
      %s814 = smul.addr %s813, 16
      %s815 = smul.addr %s814, 4
      %s816 = scalar_lea.vmem %s1, %s815
      %p817 = scmp.lt.s32.totalorder %s35, 1
      %s818 = scalar_select %p817, %s35, 1
      %s819 = smul.addr %s818, 16
      %s820 = smul.addr %s819, 4
      %s821 = scalar_lea.vmem %s2, %s820
      %p822 = scmp.lt.s32.totalorder %s35, 1
      %s823 = scalar_select %p822, %s35, 1
      %s824 = smul.addr %s823, 16
      %s825 = smul.addr %s824, 4
      %s826 = scalar_lea.vmem %s3, %s825
      %p827 = scmp.lt.s32.totalorder %s35, 1
      %s828 = scalar_select %p827, %s35, 1
      %s829 = smul.addr %s828, 4
      %s830 = scalar_lea.vmem %s4, %s829
      %p831 = scmp.lt.s32.totalorder %s35, 1
      %s832 = scalar_select %p831, %s35, 1
      %s833 = smul.addr %s832, 4
      %s834 = scalar_lea.vmem %s5, %s833
      %p835 = scmp.lt.s32.totalorder %s35, 1
      %s836 = scalar_select %p835, %s35, 1
      %s837 = smul.addr %s836, 4
      %s838 = scalar_lea.vmem %s6, %s837
      %p839 = scmp.lt.s32.totalorder %s35, 1
      %s840 = scalar_select %p839, %s35, 1
      %s841 = smul.addr %s840, 4
      %s842 = smul.addr %s841, 4
      %s843 = scalar_lea.vmem %s7, %s842
      %p844 = scmp.lt.s32.totalorder %s35, 1
      %s845 = scalar_select %p844, %s35, 1
      %s846 = scalar_lea.vmem %s8, %s845
      %p847 = scmp.lt.s32.totalorder %s35, 1
      %s848 = scalar_select %p847, %s35, 1
      %s849 = scalar_lea.vmem %s9, %s848
      %p850 = scmp.lt.s32.totalorder %s35, 1
      %s851 = scalar_select %p850, %s35, 1
      %s852 = scalar_lea.vmem %s10, %s851
      %p853 = scmp.lt.s32.totalorder %s35, 1
      %s854 = scalar_select %p853, %s35, 1
      %s855 = smul.addr %s854, 4
      %s856 = smul.addr %s855, 4
      %s857 = scalar_lea.vmem %s11, %s856
      %p858 = scmp.lt.s32.totalorder %s35, 1
      %s859 = scalar_select %p858, %s35, 1
      %s860 = scalar_lea.vmem %s12, %s859
      %p861 = scmp.lt.s32.totalorder %s35, 1
      %s862 = scalar_select %p861, %s35, 1
      %s863 = smul.addr %s862, 8
      %s864 = smul.addr %s863, 4
      %s865 = scalar_lea.vmem %s13, %s864
      %p866 = scmp.lt.s32.totalorder %s35, 1
      %s867 = scalar_select %p866, %s35, 1
      %s868 = scalar_lea.vmem %s14, %s867
      %p869 = scmp.lt.s32.totalorder %s35, 1
      %s870 = scalar_select %p869, %s35, 1
      %s871 = scalar_lea.vmem %s15, %s870
      %p872 = scmp.lt.s32.totalorder %s35, 1
      %s873 = scalar_select %p872, %s35, 1
      %s874 = scalar_lea.vmem %s16, %s873
      %p875 = scmp.lt.s32.totalorder %s34, 1
      %s876 = scalar_select %p875, %s34, 1
      %s877 = smul.addr %s876, 8
      %s878 = scalar_lea.vmem %s19, %s877
      %p880 = scmp.eq.s32.totalorder %s35, 0
      // Predicated region
      $region97: #{transformer_translation_forward.3} parent=95 // pred_check
        %p881 = pneg %p880
      $region98: #{transformer_translation_forward.3} parent=95 // pred_check_branch
        %883 = sbr.rel (%p881) target = $region100
      $region99: #{transformer_translation_forward.3} parent=95 // pred_region
        %v884 = vld [vmem:[%s811] sm:$0xff]
        %vm885 = vcmask 261120
        %886 = vst.msk [vmem:[#allocation2] sm:$0xff] %vm885, %v884
      $region100: #{transformer_translation_forward.3} parent=95 // pred_fallthru
        _
      %v887 = vld [vmem:[#allocation2] sm:$0xff]
      %v888 = vpack.c.bf16 %v887, %v887
      %v889 = vld [vmem:[%s816] sm:$0xf]
      %v890 = vld [vmem:[%s816 + $0x4] sm:$0xf]
      %v891 = vld [vmem:[%s816 + $0x8] sm:$0xf]
      %v892 = vld [vmem:[%s816 + $0xc] sm:$0xf]
      %v893 = vld [vmem:[%s830] sm:$0x1]
      %v895 = vlaneseq
      %v896 = vshrl.u32 %v895, 7
      %v897 = vsub.s32 0, %v896
      %v898 = vrot.slane %v893, %v897
      %v904 = vunpack.c.l.b16 %v889
      %v905 = vunpack.c.l.b16 %v890
      %v906 = vunpack.c.l.b16 %v891
      %v907 = vunpack.c.l.b16 %v892
      %v908 = vpack.c.b16 %v905, %v904
      %v909 = vpack.c.b16 %v907, %v906
      %vm912 = vcmask 261120
      %v914 = vsel %vm912, %v888, 0
      %916 = vmatprep.subr.bf16.mxu0 0
      %917 = vmatpush1.bf16.msra.mxu0 %v908
      %918 = vmatprep.subr.bf16.mxu0 0
      %919 = vmatpush1.bf16.msra.mxu0 %v909
      %920 = vmatprep.subr.bf16.mxu0 0
      %921 = vmatpush1.bf16.msra.mxu0 0
      %922 = vmatprep.subr.bf16.mxu0 0
      %923 = vmatpush1.bf16.msra.mxu0 0
      %924 = vmatprep.subr.bf16.mxu0 0
      %925 = vmatpush1.bf16.msra.mxu0 0
      %926 = vmatprep.subr.bf16.mxu0 0
      %927 = vmatpush1.bf16.msra.mxu0 0
      %928 = vmatprep.subr.bf16.mxu0 0
      %929 = vmatpush1.bf16.msra.mxu0 0
      %930 = vmatprep.subr.bf16.mxu0 0
      %931 = vmatpush1.bf16.msra.mxu0 0
      %932 = vmatprep.subr.bf16.mxu0 0
      %933 = vmatpush1.bf16.msra.mxu0 0
      %934 = vmatprep.subr.bf16.mxu0 0
      %935 = vmatpush1.bf16.msra.mxu0 0
      %936 = vmatprep.subr.bf16.mxu0 0
      %937 = vmatpush1.bf16.msra.mxu0 0
      %938 = vmatprep.subr.bf16.mxu0 0
      %939 = vmatpush1.bf16.msra.mxu0 0
      %940 = vmatprep.subr.bf16.mxu0 0
      %941 = vmatpush1.bf16.msra.mxu0 0
      %942 = vmatprep.subr.bf16.mxu0 0
      %943 = vmatpush1.bf16.msra.mxu0 0
      %944 = vmatprep.subr.bf16.mxu0 0
      %945 = vmatpush1.bf16.msra.mxu0 0
      %946 = vmatprep.subr.bf16.mxu0 0
      %947 = vmatpush1.bf16.msra.mxu0 0
      %948 = vmatprep.mubr.bf16.mxu0 0
      %949 = vmatmul.mubr.bf16.gmra.mrb[0].mxu0 %v914
      %v950 = vpop.f32.mrb[0].mxu0
      %v951 = vadd.f32 %v898, %v950
      %v952 = vpop.f32.mrb[0].mxu0
      %v953 = vpop.f32.mrb[0].mxu0
      %v954 = vpop.f32.mrb[0].mxu0
      %955 = vdwg.mxu0
      %v956 = vld [vmem:[%s821] sm:$0xf]
      %v957 = vld [vmem:[%s821 + $0x4] sm:$0xf]
      %v958 = vld [vmem:[%s821 + $0x8] sm:$0xf]
      %v959 = vld [vmem:[%s821 + $0xc] sm:$0xf]
      %v960 = vld [vmem:[%s834] sm:$0x1]
      %v962 = vlaneseq
      %v963 = vshrl.u32 %v962, 7
      %v964 = vsub.s32 0, %v963
      %v965 = vrot.slane %v960, %v964
      %v971 = vunpack.c.l.b16 %v956
      %v972 = vunpack.c.l.b16 %v957
      %v973 = vunpack.c.l.b16 %v958
      %v974 = vunpack.c.l.b16 %v959
      %v975 = vpack.c.b16 %v972, %v971
      %v976 = vpack.c.b16 %v974, %v973
      %979 = vmatprep.subr.bf16.mxu0 0
      %980 = vmatpush1.bf16.msra.mxu0 %v975
      %981 = vmatprep.subr.bf16.mxu0 0
      %982 = vmatpush1.bf16.msra.mxu0 %v976
      %983 = vmatprep.subr.bf16.mxu0 0
      %984 = vmatpush1.bf16.msra.mxu0 0
      %985 = vmatprep.subr.bf16.mxu0 0
      %986 = vmatpush1.bf16.msra.mxu0 0
      %987 = vmatprep.subr.bf16.mxu0 0
      %988 = vmatpush1.bf16.msra.mxu0 0
      %989 = vmatprep.subr.bf16.mxu0 0
      %990 = vmatpush1.bf16.msra.mxu0 0
      %991 = vmatprep.subr.bf16.mxu0 0
      %992 = vmatpush1.bf16.msra.mxu0 0
      %993 = vmatprep.subr.bf16.mxu0 0
      %994 = vmatpush1.bf16.msra.mxu0 0
      %995 = vmatprep.subr.bf16.mxu0 0
      %996 = vmatpush1.bf16.msra.mxu0 0
      %997 = vmatprep.subr.bf16.mxu0 0
      %998 = vmatpush1.bf16.msra.mxu0 0
      %999 = vmatprep.subr.bf16.mxu0 0
      %1000 = vmatpush1.bf16.msra.mxu0 0
      %1001 = vmatprep.subr.bf16.mxu0 0
      %1002 = vmatpush1.bf16.msra.mxu0 0
      %1003 = vmatprep.subr.bf16.mxu0 0
      %1004 = vmatpush1.bf16.msra.mxu0 0
      %1005 = vmatprep.subr.bf16.mxu0 0
      %1006 = vmatpush1.bf16.msra.mxu0 0
      %1007 = vmatprep.subr.bf16.mxu0 0
      %1008 = vmatpush1.bf16.msra.mxu0 0
      %1009 = vmatprep.subr.bf16.mxu0 0
      %1010 = vmatpush1.bf16.msra.mxu0 0
      %1011 = vmatprep.mubr.bf16.mxu0 0
      %1012 = vmatmul.mubr.bf16.gmra.mrb[0].mxu0 %v914
      %v1013 = vpop.f32.mrb[0].mxu0
      %v1014 = vadd.f32 %v965, %v1013
      %v1015 = vpop.f32.mrb[0].mxu0
      %v1016 = vpop.f32.mrb[0].mxu0
      %v1017 = vpop.f32.mrb[0].mxu0
      %1018 = vdwg.mxu0
      %v1019 = vld [vmem:[%s826] sm:$0xf]
      %v1020 = vld [vmem:[%s826 + $0x4] sm:$0xf]
      %v1021 = vld [vmem:[%s826 + $0x8] sm:$0xf]
      %v1022 = vld [vmem:[%s826 + $0xc] sm:$0xf]
      %v1023 = vld [vmem:[%s838] sm:$0x1]
      %v1025 = vlaneseq
      %v1026 = vshrl.u32 %v1025, 7
      %v1027 = vsub.s32 0, %v1026
      %v1028 = vrot.slane %v1023, %v1027
      %v1034 = vunpack.c.l.b16 %v1019
      %v1035 = vunpack.c.l.b16 %v1020
      %v1036 = vunpack.c.l.b16 %v1021
      %v1037 = vunpack.c.l.b16 %v1022
      %v1038 = vpack.c.b16 %v1035, %v1034
      %v1039 = vpack.c.b16 %v1037, %v1036
      %1042 = vmatprep.subr.bf16.mxu0 0
      %1043 = vmatpush1.bf16.msra.mxu0 %v1038
      %1044 = vmatprep.subr.bf16.mxu0 0
      %1045 = vmatpush1.bf16.msra.mxu0 %v1039
      %1046 = vmatprep.subr.bf16.mxu0 0
      %1047 = vmatpush1.bf16.msra.mxu0 0
      %1048 = vmatprep.subr.bf16.mxu0 0
      %1049 = vmatpush1.bf16.msra.mxu0 0
      %1050 = vmatprep.subr.bf16.mxu0 0
      %1051 = vmatpush1.bf16.msra.mxu0 0
      %1052 = vmatprep.subr.bf16.mxu0 0
      %1053 = vmatpush1.bf16.msra.mxu0 0
      %1054 = vmatprep.subr.bf16.mxu0 0
      %1055 = vmatpush1.bf16.msra.mxu0 0
      %1056 = vmatprep.subr.bf16.mxu0 0
      %1057 = vmatpush1.bf16.msra.mxu0 0
      %1058 = vmatprep.subr.bf16.mxu0 0
      %1059 = vmatpush1.bf16.msra.mxu0 0
      %1060 = vmatprep.subr.bf16.mxu0 0
      %1061 = vmatpush1.bf16.msra.mxu0 0
      %1062 = vmatprep.subr.bf16.mxu0 0
      %1063 = vmatpush1.bf16.msra.mxu0 0
      %1064 = vmatprep.subr.bf16.mxu0 0
      %1065 = vmatpush1.bf16.msra.mxu0 0
      %1066 = vmatprep.subr.bf16.mxu0 0
      %1067 = vmatpush1.bf16.msra.mxu0 0
      %1068 = vmatprep.subr.bf16.mxu0 0
      %1069 = vmatpush1.bf16.msra.mxu0 0
      %1070 = vmatprep.subr.bf16.mxu0 0
      %1071 = vmatpush1.bf16.msra.mxu0 0
      %1072 = vmatprep.subr.bf16.mxu0 0
      %1073 = vmatpush1.bf16.msra.mxu0 0
      %1074 = vmatprep.mubr.bf16.mxu0 0
      %1075 = vmatmul.mubr.bf16.gmra.mrb[0].mxu0 %v914
      %v1076 = vpop.f32.mrb[0].mxu0
      %v1077 = vadd.f32 %v1028, %v1076
      %v1078 = vpop.f32.mrb[0].mxu0
      %v1079 = vpop.f32.mrb[0].mxu0
      %v1080 = vpop.f32.mrb[0].mxu0
      %1081 = vdwg.mxu0
      %v1082 = vpack.c.bf16 %v951, %v951
      %v1083 = vpack.c.bf16 %v1014, %v1014
      %vm1084 = vcmask 64512
      %v1086 = vsel %vm1084, %v1082, 0
      %v1089 = vsel %vm1084, %v1083, 0
      %1091 = vmatprep.subr.bf16.mxu0 0
      %1092 = vmatpush1.bf16.xpose.msra.mxu0 %v1089
      %1093 = vmatprep.subr.bf16.mxu0 0
      %1094 = vmatpush1.bf16.xpose.msra.mxu0 0
      %1095 = vmatprep.subr.bf16.mxu0 0
      %1096 = vmatpush1.bf16.xpose.msra.mxu0 0
      %1097 = vmatprep.subr.bf16.mxu0 0
      %1098 = vmatpush1.bf16.xpose.msra.mxu0 0
      %1099 = vmatprep.subr.bf16.mxu0 0
      %1100 = vmatpush1.bf16.xpose.msra.mxu0 0
      %1101 = vmatprep.subr.bf16.mxu0 0
      %1102 = vmatpush1.bf16.xpose.msra.mxu0 0
      %1103 = vmatprep.subr.bf16.mxu0 0
      %1104 = vmatpush1.bf16.xpose.msra.mxu0 0
      %1105 = vmatprep.subr.bf16.mxu0 0
      %1106 = vmatpush1.bf16.xpose.msra.mxu0 0
      %1107 = vmatprep.subr.bf16.mxu0 0
      %1108 = vmatpush1.bf16.xpose.msra.mxu0 0
      %1109 = vmatprep.subr.bf16.mxu0 0
      %1110 = vmatpush1.bf16.xpose.msra.mxu0 0
      %1111 = vmatprep.subr.bf16.mxu0 0
      %1112 = vmatpush1.bf16.xpose.msra.mxu0 0
      %1113 = vmatprep.subr.bf16.mxu0 0
      %1114 = vmatpush1.bf16.xpose.msra.mxu0 0
      %1115 = vmatprep.subr.bf16.mxu0 0
      %1116 = vmatpush1.bf16.xpose.msra.mxu0 0
      %1117 = vmatprep.subr.bf16.mxu0 0
      %1118 = vmatpush1.bf16.xpose.msra.mxu0 0
      %1119 = vmatprep.subr.bf16.mxu0 0
      %1120 = vmatpush1.bf16.xpose.msra.mxu0 0
      %1121 = vmatprep.subr.bf16.mxu0 0
      %1122 = vmatpush1.bf16.xpose.msra.mxu0 0
      %1123 = vmatprep.mubr.bf16.mxu0 0
      %1124 = vmatmul.mubr.bf16.gmra.mrb[0].mxu0 %v1086
      %v1125 = vpop.f32.mrb[0].mxu0
      %v1126 = vadd.f32 0.0, %v1125
      %v1127 = vpop.f32.mrb[0].mxu0
      %v1128 = vpop.f32.mrb[0].mxu0
      %v1129 = vpop.f32.mrb[0].mxu0
      %1130 = vdwg.mxu0
      %v1131 = vmul.f32 %v1126, 0.35355338
      %v1132 = vsel %vm1084, %v1131, -inf
      %1133 = vmax.xlane.f32.xlu0 %v1132
      %v1134 = vpop.xlane.xlu0 %1133
      %v1135 = vsub.f32 %v1131, %v1134
      %v1136 = vmul.f32 %v1135, 1.442695
      %v1137 = vpow.pop %v1136
      %v1138 = vsel %vm1084, %v1137, 0.0
      %1139 = vadd.xlane.f32.xlu0 %v1138
      %v1140 = vpop.xlane.xlu0 %1139
      %v1141 = vrcp.pop %v1140
      %v1142 = vmul.f32 %v1137, %v1141
      %v1143 = vpack.c.bf16 %v1142, %v1142
      %v1144 = vpack.c.bf16 %v1077, %v1077
      %v1146 = vsel %vm1084, %v1143, 0
      %vm1148 = vcmask 1043456
      %v1150 = vsel %vm1148, %v1144, 0
      %1152 = vmatprep.subr.bf16.mxu0 0
      %1153 = vmatpush1.bf16.msra.mxu0 %v1150
      %1154 = vmatprep.subr.bf16.mxu0 0
      %1155 = vmatpush1.bf16.msra.mxu0 0
      %1156 = vmatprep.subr.bf16.mxu0 0
      %1157 = vmatpush1.bf16.msra.mxu0 0
      %1158 = vmatprep.subr.bf16.mxu0 0
      %1159 = vmatpush1.bf16.msra.mxu0 0
      %1160 = vmatprep.subr.bf16.mxu0 0
      %1161 = vmatpush1.bf16.msra.mxu0 0
      %1162 = vmatprep.subr.bf16.mxu0 0
      %1163 = vmatpush1.bf16.msra.mxu0 0
      %1164 = vmatprep.subr.bf16.mxu0 0
      %1165 = vmatpush1.bf16.msra.mxu0 0
      %1166 = vmatprep.subr.bf16.mxu0 0
      %1167 = vmatpush1.bf16.msra.mxu0 0
      %1168 = vmatprep.subr.bf16.mxu0 0
      %1169 = vmatpush1.bf16.msra.mxu0 0
      %1170 = vmatprep.subr.bf16.mxu0 0
      %1171 = vmatpush1.bf16.msra.mxu0 0
      %1172 = vmatprep.subr.bf16.mxu0 0
      %1173 = vmatpush1.bf16.msra.mxu0 0
      %1174 = vmatprep.subr.bf16.mxu0 0
      %1175 = vmatpush1.bf16.msra.mxu0 0
      %1176 = vmatprep.subr.bf16.mxu0 0
      %1177 = vmatpush1.bf16.msra.mxu0 0
      %1178 = vmatprep.subr.bf16.mxu0 0
      %1179 = vmatpush1.bf16.msra.mxu0 0
      %1180 = vmatprep.subr.bf16.mxu0 0
      %1181 = vmatpush1.bf16.msra.mxu0 0
      %1182 = vmatprep.subr.bf16.mxu0 0
      %1183 = vmatpush1.bf16.msra.mxu0 0
      %1184 = vmatprep.mubr.bf16.mxu0 0
      %1185 = vmatmul.mubr.bf16.gmra.mrb[0].mxu0 %v1146
      %v1186 = vpop.f32.mrb[0].mxu0
      %v1187 = vadd.f32 0.0, %v1186
      %v1188 = vpop.f32.mrb[0].mxu0
      %v1189 = vpop.f32.mrb[0].mxu0
      %v1190 = vpop.f32.mrb[0].mxu0
      %1191 = vdwg.mxu0
      %v1192 = vpack.c.bf16 %v1187, %v1187
      %v1193 = vld [vmem:[%s843] sm:$0xf]
      %s1194 = scalar_lea.vmem %s816, 16
      %v1195 = vld [vmem:[%s1194] sm:$0xf]
      %v1196 = vld [vmem:[%s1194 + $0x4] sm:$0xf]
      %v1197 = vld [vmem:[%s1194 + $0x8] sm:$0xf]
      %v1198 = vld [vmem:[%s1194 + $0xc] sm:$0xf]
      %s1199 = scalar_lea.vmem %s830, 1
      %v1200 = vld [vmem:[%s1199] sm:$0x1]
      %v1202 = vlaneseq
      %v1203 = vshrl.u32 %v1202, 7
      %v1204 = vsub.s32 0, %v1203
      %v1205 = vrot.slane %v1200, %v1204
      %v1211 = vunpack.c.l.b16 %v1195
      %v1212 = vunpack.c.l.b16 %v1196
      %v1213 = vunpack.c.l.b16 %v1197
      %v1214 = vunpack.c.l.b16 %v1198
      %v1215 = vpack.c.b16 %v1212, %v1211
      %v1216 = vpack.c.b16 %v1214, %v1213
      %1219 = vmatprep.subr.bf16.mxu0 0
      %1220 = vmatpush1.bf16.msra.mxu0 %v1215
      %1221 = vmatprep.subr.bf16.mxu0 0
      %1222 = vmatpush1.bf16.msra.mxu0 %v1216
      %1223 = vmatprep.subr.bf16.mxu0 0
      %1224 = vmatpush1.bf16.msra.mxu0 0
      %1225 = vmatprep.subr.bf16.mxu0 0
      %1226 = vmatpush1.bf16.msra.mxu0 0
      %1227 = vmatprep.subr.bf16.mxu0 0
      %1228 = vmatpush1.bf16.msra.mxu0 0
      %1229 = vmatprep.subr.bf16.mxu0 0
      %1230 = vmatpush1.bf16.msra.mxu0 0
      %1231 = vmatprep.subr.bf16.mxu0 0
      %1232 = vmatpush1.bf16.msra.mxu0 0
      %1233 = vmatprep.subr.bf16.mxu0 0
      %1234 = vmatpush1.bf16.msra.mxu0 0
      %1235 = vmatprep.subr.bf16.mxu0 0
      %1236 = vmatpush1.bf16.msra.mxu0 0
      %1237 = vmatprep.subr.bf16.mxu0 0
      %1238 = vmatpush1.bf16.msra.mxu0 0
      %1239 = vmatprep.subr.bf16.mxu0 0
      %1240 = vmatpush1.bf16.msra.mxu0 0
      %1241 = vmatprep.subr.bf16.mxu0 0
      %1242 = vmatpush1.bf16.msra.mxu0 0
      %1243 = vmatprep.subr.bf16.mxu0 0
      %1244 = vmatpush1.bf16.msra.mxu0 0
      %1245 = vmatprep.subr.bf16.mxu0 0
      %1246 = vmatpush1.bf16.msra.mxu0 0
      %1247 = vmatprep.subr.bf16.mxu0 0
      %1248 = vmatpush1.bf16.msra.mxu0 0
      %1249 = vmatprep.subr.bf16.mxu0 0
      %1250 = vmatpush1.bf16.msra.mxu0 0
      %1251 = vmatprep.mubr.bf16.mxu0 0
      %1252 = vmatmul.mubr.bf16.gmra.mrb[0].mxu0 %v914
      %v1253 = vpop.f32.mrb[0].mxu0
      %v1254 = vadd.f32 %v1205, %v1253
      %v1255 = vpop.f32.mrb[0].mxu0
      %v1256 = vpop.f32.mrb[0].mxu0
      %v1257 = vpop.f32.mrb[0].mxu0
      %1258 = vdwg.mxu0
      %s1259 = scalar_lea.vmem %s821, 16
      %v1260 = vld [vmem:[%s1259] sm:$0xf]
      %v1261 = vld [vmem:[%s1259 + $0x4] sm:$0xf]
      %v1262 = vld [vmem:[%s1259 + $0x8] sm:$0xf]
      %v1263 = vld [vmem:[%s1259 + $0xc] sm:$0xf]
      %s1264 = scalar_lea.vmem %s834, 1
      %v1265 = vld [vmem:[%s1264] sm:$0x1]
      %v1267 = vlaneseq
      %v1268 = vshrl.u32 %v1267, 7
      %v1269 = vsub.s32 0, %v1268
      %v1270 = vrot.slane %v1265, %v1269
      %v1276 = vunpack.c.l.b16 %v1260
      %v1277 = vunpack.c.l.b16 %v1261
      %v1278 = vunpack.c.l.b16 %v1262
      %v1279 = vunpack.c.l.b16 %v1263
      %v1280 = vpack.c.b16 %v1277, %v1276
      %v1281 = vpack.c.b16 %v1279, %v1278
      %1284 = vmatprep.subr.bf16.mxu0 0
      %1285 = vmatpush1.bf16.msra.mxu0 %v1280
      %1286 = vmatprep.subr.bf16.mxu0 0
      %1287 = vmatpush1.bf16.msra.mxu0 %v1281
      %1288 = vmatprep.subr.bf16.mxu0 0
      %1289 = vmatpush1.bf16.msra.mxu0 0
      %1290 = vmatprep.subr.bf16.mxu0 0
      %1291 = vmatpush1.bf16.msra.mxu0 0
      %1292 = vmatprep.subr.bf16.mxu0 0
      %1293 = vmatpush1.bf16.msra.mxu0 0
      %1294 = vmatprep.subr.bf16.mxu0 0
      %1295 = vmatpush1.bf16.msra.mxu0 0
      %1296 = vmatprep.subr.bf16.mxu0 0
      %1297 = vmatpush1.bf16.msra.mxu0 0
      %1298 = vmatprep.subr.bf16.mxu0 0
      %1299 = vmatpush1.bf16.msra.mxu0 0
      %1300 = vmatprep.subr.bf16.mxu0 0
      %1301 = vmatpush1.bf16.msra.mxu0 0
      %1302 = vmatprep.subr.bf16.mxu0 0
      %1303 = vmatpush1.bf16.msra.mxu0 0
      %1304 = vmatprep.subr.bf16.mxu0 0
      %1305 = vmatpush1.bf16.msra.mxu0 0
      %1306 = vmatprep.subr.bf16.mxu0 0
      %1307 = vmatpush1.bf16.msra.mxu0 0
      %1308 = vmatprep.subr.bf16.mxu0 0
      %1309 = vmatpush1.bf16.msra.mxu0 0
      %1310 = vmatprep.subr.bf16.mxu0 0
      %1311 = vmatpush1.bf16.msra.mxu0 0
      %1312 = vmatprep.subr.bf16.mxu0 0
      %1313 = vmatpush1.bf16.msra.mxu0 0
      %1314 = vmatprep.subr.bf16.mxu0 0
      %1315 = vmatpush1.bf16.msra.mxu0 0
      %1316 = vmatprep.mubr.bf16.mxu0 0
      %1317 = vmatmul.mubr.bf16.gmra.mrb[0].mxu0 %v914
      %v1318 = vpop.f32.mrb[0].mxu0
      %v1319 = vadd.f32 %v1270, %v1318
      %v1320 = vpop.f32.mrb[0].mxu0
      %v1321 = vpop.f32.mrb[0].mxu0
      %v1322 = vpop.f32.mrb[0].mxu0
      %1323 = vdwg.mxu0
      %s1324 = scalar_lea.vmem %s826, 16
      %v1325 = vld [vmem:[%s1324] sm:$0xf]
      %v1326 = vld [vmem:[%s1324 + $0x4] sm:$0xf]
      %v1327 = vld [vmem:[%s1324 + $0x8] sm:$0xf]
      %v1328 = vld [vmem:[%s1324 + $0xc] sm:$0xf]
      %s1329 = scalar_lea.vmem %s838, 1
      %v1330 = vld [vmem:[%s1329] sm:$0x1]
      %v1332 = vlaneseq
      %v1333 = vshrl.u32 %v1332, 7
      %v1334 = vsub.s32 0, %v1333
      %v1335 = vrot.slane %v1330, %v1334
      %v1341 = vunpack.c.l.b16 %v1325
      %v1342 = vunpack.c.l.b16 %v1326
      %v1343 = vunpack.c.l.b16 %v1327
      %v1344 = vunpack.c.l.b16 %v1328
      %v1345 = vpack.c.b16 %v1342, %v1341
      %v1346 = vpack.c.b16 %v1344, %v1343
      %1349 = vmatprep.subr.bf16.mxu0 0
      %1350 = vmatpush1.bf16.msra.mxu0 %v1345
      %1351 = vmatprep.subr.bf16.mxu0 0
      %1352 = vmatpush1.bf16.msra.mxu0 %v1346
      %1353 = vmatprep.subr.bf16.mxu0 0
      %1354 = vmatpush1.bf16.msra.mxu0 0
      %1355 = vmatprep.subr.bf16.mxu0 0
      %1356 = vmatpush1.bf16.msra.mxu0 0
      %1357 = vmatprep.subr.bf16.mxu0 0
      %1358 = vmatpush1.bf16.msra.mxu0 0
      %1359 = vmatprep.subr.bf16.mxu0 0
      %1360 = vmatpush1.bf16.msra.mxu0 0
      %1361 = vmatprep.subr.bf16.mxu0 0
      %1362 = vmatpush1.bf16.msra.mxu0 0
      %1363 = vmatprep.subr.bf16.mxu0 0
      %1364 = vmatpush1.bf16.msra.mxu0 0
      %1365 = vmatprep.subr.bf16.mxu0 0
      %1366 = vmatpush1.bf16.msra.mxu0 0
      %1367 = vmatprep.subr.bf16.mxu0 0
      %1368 = vmatpush1.bf16.msra.mxu0 0
      %1369 = vmatprep.subr.bf16.mxu0 0
      %1370 = vmatpush1.bf16.msra.mxu0 0
      %1371 = vmatprep.subr.bf16.mxu0 0
      %1372 = vmatpush1.bf16.msra.mxu0 0
      %1373 = vmatprep.subr.bf16.mxu0 0
      %1374 = vmatpush1.bf16.msra.mxu0 0
      %1375 = vmatprep.subr.bf16.mxu0 0
      %1376 = vmatpush1.bf16.msra.mxu0 0
      %1377 = vmatprep.subr.bf16.mxu0 0
      %1378 = vmatpush1.bf16.msra.mxu0 0
      %1379 = vmatprep.subr.bf16.mxu0 0
      %1380 = vmatpush1.bf16.msra.mxu0 0
      %1381 = vmatprep.mubr.bf16.mxu0 0
      %1382 = vmatmul.mubr.bf16.gmra.mrb[0].mxu0 %v914
      %v1383 = vpop.f32.mrb[0].mxu0
      %v1384 = vadd.f32 %v1335, %v1383
      %v1385 = vpop.f32.mrb[0].mxu0
      %v1386 = vpop.f32.mrb[0].mxu0
      %v1387 = vpop.f32.mrb[0].mxu0
      %1388 = vdwg.mxu0
      %v1389 = vpack.c.bf16 %v1254, %v1254
      %v1390 = vpack.c.bf16 %v1319, %v1319
      %v1392 = vsel %vm1084, %v1389, 0
      %v1395 = vsel %vm1084, %v1390, 0
      %1397 = vmatprep.subr.bf16.mxu0 0
      %1398 = vmatpush1.bf16.xpose.msra.mxu0 %v1395
      %1399 = vmatprep.subr.bf16.mxu0 0
      %1400 = vmatpush1.bf16.xpose.msra.mxu0 0
      %1401 = vmatprep.subr.bf16.mxu0 0
      %1402 = vmatpush1.bf16.xpose.msra.mxu0 0
      %1403 = vmatprep.subr.bf16.mxu0 0
      %1404 = vmatpush1.bf16.xpose.msra.mxu0 0
      %1405 = vmatprep.subr.bf16.mxu0 0
      %1406 = vmatpush1.bf16.xpose.msra.mxu0 0
      %1407 = vmatprep.subr.bf16.mxu0 0
      %1408 = vmatpush1.bf16.xpose.msra.mxu0 0
      %1409 = vmatprep.subr.bf16.mxu0 0
      %1410 = vmatpush1.bf16.xpose.msra.mxu0 0
      %1411 = vmatprep.subr.bf16.mxu0 0
      %1412 = vmatpush1.bf16.xpose.msra.mxu0 0
      %1413 = vmatprep.subr.bf16.mxu0 0
      %1414 = vmatpush1.bf16.xpose.msra.mxu0 0
      %1415 = vmatprep.subr.bf16.mxu0 0
      %1416 = vmatpush1.bf16.xpose.msra.mxu0 0
      %1417 = vmatprep.subr.bf16.mxu0 0
      %1418 = vmatpush1.bf16.xpose.msra.mxu0 0
      %1419 = vmatprep.subr.bf16.mxu0 0
      %1420 = vmatpush1.bf16.xpose.msra.mxu0 0
      %1421 = vmatprep.subr.bf16.mxu0 0
      %1422 = vmatpush1.bf16.xpose.msra.mxu0 0
      %1423 = vmatprep.subr.bf16.mxu0 0
      %1424 = vmatpush1.bf16.xpose.msra.mxu0 0
      %1425 = vmatprep.subr.bf16.mxu0 0
      %1426 = vmatpush1.bf16.xpose.msra.mxu0 0
      %1427 = vmatprep.subr.bf16.mxu0 0
      %1428 = vmatpush1.bf16.xpose.msra.mxu0 0
      %1429 = vmatprep.mubr.bf16.mxu0 0
      %1430 = vmatmul.mubr.bf16.gmra.mrb[0].mxu0 %v1392
      %v1431 = vpop.f32.mrb[0].mxu0
      %v1432 = vadd.f32 0.0, %v1431
      %v1433 = vpop.f32.mrb[0].mxu0
      %v1434 = vpop.f32.mrb[0].mxu0
      %v1435 = vpop.f32.mrb[0].mxu0
      %1436 = vdwg.mxu0
      %v1437 = vmul.f32 %v1432, 0.35355338
      %v1438 = vsel %vm1084, %v1437, -inf
      %1439 = vmax.xlane.f32.xlu0 %v1438
      %v1440 = vpop.xlane.xlu0 %1439
      %v1441 = vsub.f32 %v1437, %v1440
      %v1442 = vmul.f32 %v1441, 1.442695
      %v1443 = vpow.pop %v1442
      %v1444 = vsel %vm1084, %v1443, 0.0
      %1445 = vadd.xlane.f32.xlu0 %v1444
      %v1446 = vpop.xlane.xlu0 %1445
      %v1447 = vrcp.pop %v1446
      %v1448 = vmul.f32 %v1443, %v1447
      %v1449 = vpack.c.bf16 %v1448, %v1448
      %v1450 = vpack.c.bf16 %v1384, %v1384
      %v1452 = vsel %vm1084, %v1449, 0
      %v1455 = vsel %vm1148, %v1450, 0
      %1457 = vmatprep.subr.bf16.mxu0 0
      %1458 = vmatpush1.bf16.msra.mxu0 %v1455
      %1459 = vmatprep.subr.bf16.mxu0 0
      %1460 = vmatpush1.bf16.msra.mxu0 0
      %1461 = vmatprep.subr.bf16.mxu0 0
      %1462 = vmatpush1.bf16.msra.mxu0 0
      %1463 = vmatprep.subr.bf16.mxu0 0
      %1464 = vmatpush1.bf16.msra.mxu0 0
      %1465 = vmatprep.subr.bf16.mxu0 0
      %1466 = vmatpush1.bf16.msra.mxu0 0
      %1467 = vmatprep.subr.bf16.mxu0 0
      %1468 = vmatpush1.bf16.msra.mxu0 0
      %1469 = vmatprep.subr.bf16.mxu0 0
      %1470 = vmatpush1.bf16.msra.mxu0 0
      %1471 = vmatprep.subr.bf16.mxu0 0
      %1472 = vmatpush1.bf16.msra.mxu0 0
      %1473 = vmatprep.subr.bf16.mxu0 0
      %1474 = vmatpush1.bf16.msra.mxu0 0
      %1475 = vmatprep.subr.bf16.mxu0 0
      %1476 = vmatpush1.bf16.msra.mxu0 0
      %1477 = vmatprep.subr.bf16.mxu0 0
      %1478 = vmatpush1.bf16.msra.mxu0 0
      %1479 = vmatprep.subr.bf16.mxu0 0
      %1480 = vmatpush1.bf16.msra.mxu0 0
      %1481 = vmatprep.subr.bf16.mxu0 0
      %1482 = vmatpush1.bf16.msra.mxu0 0
      %1483 = vmatprep.subr.bf16.mxu0 0
      %1484 = vmatpush1.bf16.msra.mxu0 0
      %1485 = vmatprep.subr.bf16.mxu0 0
      %1486 = vmatpush1.bf16.msra.mxu0 0
      %1487 = vmatprep.subr.bf16.mxu0 0
      %1488 = vmatpush1.bf16.msra.mxu0 0
      %1489 = vmatprep.mubr.bf16.mxu0 0
      %1490 = vmatmul.mubr.bf16.gmra.mrb[0].mxu0 %v1452
      %v1491 = vpop.f32.mrb[0].mxu0
      %v1492 = vadd.f32 0.0, %v1491
      %v1493 = vpop.f32.mrb[0].mxu0
      %v1494 = vpop.f32.mrb[0].mxu0
      %v1495 = vpop.f32.mrb[0].mxu0
      %1496 = vdwg.mxu0
      %v1497 = vpack.c.bf16 %v1492, %v1492
      %s1498 = scalar_lea.vmem %s843, 4
      %v1499 = vld [vmem:[%s1498] sm:$0xf]
      %v1501 = vsel %vm1084, %v1497, 0
      %v1504 = vsel %vm1148, %v1499, 0
      %1506 = vmatprep.subr.bf16.mxu0 0
      %1507 = vmatpush1.bf16.msra.mxu0 %v1504
      %1508 = vmatprep.subr.bf16.mxu0 0
      %1509 = vmatpush1.bf16.msra.mxu0 0
      %1510 = vmatprep.subr.bf16.mxu0 0
      %1511 = vmatpush1.bf16.msra.mxu0 0
      %1512 = vmatprep.subr.bf16.mxu0 0
      %1513 = vmatpush1.bf16.msra.mxu0 0
      %1514 = vmatprep.subr.bf16.mxu0 0
      %1515 = vmatpush1.bf16.msra.mxu0 0
      %1516 = vmatprep.subr.bf16.mxu0 0
      %1517 = vmatpush1.bf16.msra.mxu0 0
      %1518 = vmatprep.subr.bf16.mxu0 0
      %1519 = vmatpush1.bf16.msra.mxu0 0
      %1520 = vmatprep.subr.bf16.mxu0 0
      %1521 = vmatpush1.bf16.msra.mxu0 0
      %1522 = vmatprep.subr.bf16.mxu0 0
      %1523 = vmatpush1.bf16.msra.mxu0 0
      %1524 = vmatprep.subr.bf16.mxu0 0
      %1525 = vmatpush1.bf16.msra.mxu0 0
      %1526 = vmatprep.subr.bf16.mxu0 0
      %1527 = vmatpush1.bf16.msra.mxu0 0
      %1528 = vmatprep.subr.bf16.mxu0 0
      %1529 = vmatpush1.bf16.msra.mxu0 0
      %1530 = vmatprep.subr.bf16.mxu0 0
      %1531 = vmatpush1.bf16.msra.mxu0 0
      %1532 = vmatprep.subr.bf16.mxu0 0
      %1533 = vmatpush1.bf16.msra.mxu0 0
      %1534 = vmatprep.subr.bf16.mxu0 0
      %1535 = vmatpush1.bf16.msra.mxu0 0
      %1536 = vmatprep.subr.bf16.mxu0 0
      %1537 = vmatpush1.bf16.msra.mxu0 0
      %1538 = vmatprep.mubr.bf16.mxu0 0
      %1539 = vmatmul.mubr.bf16.gmra.mrb[0].mxu0 %v1501
      %v1540 = vpop.f32.mrb[0].mxu0
      %v1541 = vadd.f32 0.0, %v1540
      %v1542 = vpop.f32.mrb[0].mxu0
      %v1543 = vpop.f32.mrb[0].mxu0
      %v1544 = vpop.f32.mrb[0].mxu0
      %1545 = vdwg.mxu0
      %v1547 = vsel %vm1084, %v1192, 0
      %v1550 = vsel %vm1148, %v1193, 0
      %1552 = vmatprep.subr.bf16.mxu0 0
      %1553 = vmatpush1.bf16.msra.mxu0 %v1550
      %1554 = vmatprep.subr.bf16.mxu0 0
      %1555 = vmatpush1.bf16.msra.mxu0 0
      %1556 = vmatprep.subr.bf16.mxu0 0
      %1557 = vmatpush1.bf16.msra.mxu0 0
      %1558 = vmatprep.subr.bf16.mxu0 0
      %1559 = vmatpush1.bf16.msra.mxu0 0
      %1560 = vmatprep.subr.bf16.mxu0 0
      %1561 = vmatpush1.bf16.msra.mxu0 0
      %1562 = vmatprep.subr.bf16.mxu0 0
      %1563 = vmatpush1.bf16.msra.mxu0 0
      %1564 = vmatprep.subr.bf16.mxu0 0
      %1565 = vmatpush1.bf16.msra.mxu0 0
      %1566 = vmatprep.subr.bf16.mxu0 0
      %1567 = vmatpush1.bf16.msra.mxu0 0
      %1568 = vmatprep.subr.bf16.mxu0 0
      %1569 = vmatpush1.bf16.msra.mxu0 0
      %1570 = vmatprep.subr.bf16.mxu0 0
      %1571 = vmatpush1.bf16.msra.mxu0 0
      %1572 = vmatprep.subr.bf16.mxu0 0
      %1573 = vmatpush1.bf16.msra.mxu0 0
      %1574 = vmatprep.subr.bf16.mxu0 0
      %1575 = vmatpush1.bf16.msra.mxu0 0
      %1576 = vmatprep.subr.bf16.mxu0 0
      %1577 = vmatpush1.bf16.msra.mxu0 0
      %1578 = vmatprep.subr.bf16.mxu0 0
      %1579 = vmatpush1.bf16.msra.mxu0 0
      %1580 = vmatprep.subr.bf16.mxu0 0
      %1581 = vmatpush1.bf16.msra.mxu0 0
      %1582 = vmatprep.subr.bf16.mxu0 0
      %1583 = vmatpush1.bf16.msra.mxu0 0
      %1584 = vmatprep.mubr.bf16.mxu0 0
      %1585 = vmatmul.mubr.bf16.gmra.mrb[0].mxu0 %v1547
      %v1586 = vpop.f32.mrb[0].mxu0
      %v1587 = vadd.f32 %v1541, %v1586
      %v1588 = vpop.f32.mrb[0].mxu0
      %v1589 = vpop.f32.mrb[0].mxu0
      %v1590 = vpop.f32.mrb[0].mxu0
      %1591 = vdwg.mxu0
      %s1592 = scalar_lea.vmem %s816, 32
      %v1593 = vld [vmem:[%s1592] sm:$0xf]
      %v1594 = vld [vmem:[%s1592 + $0x4] sm:$0xf]
      %v1595 = vld [vmem:[%s1592 + $0x8] sm:$0xf]
      %v1596 = vld [vmem:[%s1592 + $0xc] sm:$0xf]
      %s1597 = scalar_lea.vmem %s830, 2
      %v1598 = vld [vmem:[%s1597] sm:$0x1]
      %v1600 = vlaneseq
      %v1601 = vshrl.u32 %v1600, 7
      %v1602 = vsub.s32 0, %v1601
      %v1603 = vrot.slane %v1598, %v1602
      %v1609 = vunpack.c.l.b16 %v1593
      %v1610 = vunpack.c.l.b16 %v1594
      %v1611 = vunpack.c.l.b16 %v1595
      %v1612 = vunpack.c.l.b16 %v1596
      %v1613 = vpack.c.b16 %v1610, %v1609
      %v1614 = vpack.c.b16 %v1612, %v1611
      %1617 = vmatprep.subr.bf16.mxu0 0
      %1618 = vmatpush1.bf16.msra.mxu0 %v1613
      %1619 = vmatprep.subr.bf16.mxu0 0
      %1620 = vmatpush1.bf16.msra.mxu0 %v1614
      %1621 = vmatprep.subr.bf16.mxu0 0
      %1622 = vmatpush1.bf16.msra.mxu0 0
      %1623 = vmatprep.subr.bf16.mxu0 0
      %1624 = vmatpush1.bf16.msra.mxu0 0
      %1625 = vmatprep.subr.bf16.mxu0 0
      %1626 = vmatpush1.bf16.msra.mxu0 0
      %1627 = vmatprep.subr.bf16.mxu0 0
      %1628 = vmatpush1.bf16.msra.mxu0 0
      %1629 = vmatprep.subr.bf16.mxu0 0
      %1630 = vmatpush1.bf16.msra.mxu0 0
      %1631 = vmatprep.subr.bf16.mxu0 0
      %1632 = vmatpush1.bf16.msra.mxu0 0
      %1633 = vmatprep.subr.bf16.mxu0 0
      %1634 = vmatpush1.bf16.msra.mxu0 0
      %1635 = vmatprep.subr.bf16.mxu0 0
      %1636 = vmatpush1.bf16.msra.mxu0 0
      %1637 = vmatprep.subr.bf16.mxu0 0
      %1638 = vmatpush1.bf16.msra.mxu0 0
      %1639 = vmatprep.subr.bf16.mxu0 0
      %1640 = vmatpush1.bf16.msra.mxu0 0
      %1641 = vmatprep.subr.bf16.mxu0 0
      %1642 = vmatpush1.bf16.msra.mxu0 0
      %1643 = vmatprep.subr.bf16.mxu0 0
      %1644 = vmatpush1.bf16.msra.mxu0 0
      %1645 = vmatprep.subr.bf16.mxu0 0
      %1646 = vmatpush1.bf16.msra.mxu0 0
      %1647 = vmatprep.subr.bf16.mxu0 0
      %1648 = vmatpush1.bf16.msra.mxu0 0
      %1649 = vmatprep.mubr.bf16.mxu0 0
      %1650 = vmatmul.mubr.bf16.gmra.mrb[0].mxu0 %v914
      %v1651 = vpop.f32.mrb[0].mxu0
      %v1652 = vadd.f32 %v1603, %v1651
      %v1653 = vpop.f32.mrb[0].mxu0
      %v1654 = vpop.f32.mrb[0].mxu0
      %v1655 = vpop.f32.mrb[0].mxu0
      %1656 = vdwg.mxu0
      %s1657 = scalar_lea.vmem %s821, 32
      %v1658 = vld [vmem:[%s1657] sm:$0xf]
      %v1659 = vld [vmem:[%s1657 + $0x4] sm:$0xf]
      %v1660 = vld [vmem:[%s1657 + $0x8] sm:$0xf]
      %v1661 = vld [vmem:[%s1657 + $0xc] sm:$0xf]
      %s1662 = scalar_lea.vmem %s834, 2
      %v1663 = vld [vmem:[%s1662] sm:$0x1]
      %v1665 = vlaneseq
      %v1666 = vshrl.u32 %v1665, 7
      %v1667 = vsub.s32 0, %v1666
      %v1668 = vrot.slane %v1663, %v1667
      %v1674 = vunpack.c.l.b16 %v1658
      %v1675 = vunpack.c.l.b16 %v1659
      %v1676 = vunpack.c.l.b16 %v1660
      %v1677 = vunpack.c.l.b16 %v1661
      %v1678 = vpack.c.b16 %v1675, %v1674
      %v1679 = vpack.c.b16 %v1677, %v1676
      %1682 = vmatprep.subr.bf16.mxu0 0
      %1683 = vmatpush1.bf16.msra.mxu0 %v1678
      %1684 = vmatprep.subr.bf16.mxu0 0
      %1685 = vmatpush1.bf16.msra.mxu0 %v1679
      %1686 = vmatprep.subr.bf16.mxu0 0
      %1687 = vmatpush1.bf16.msra.mxu0 0
      %1688 = vmatprep.subr.bf16.mxu0 0
      %1689 = vmatpush1.bf16.msra.mxu0 0
      %1690 = vmatprep.subr.bf16.mxu0 0
      %1691 = vmatpush1.bf16.msra.mxu0 0
      %1692 = vmatprep.subr.bf16.mxu0 0
      %1693 = vmatpush1.bf16.msra.mxu0 0
      %1694 = vmatprep.subr.bf16.mxu0 0
      %1695 = vmatpush1.bf16.msra.mxu0 0
      %1696 = vmatprep.subr.bf16.mxu0 0
      %1697 = vmatpush1.bf16.msra.mxu0 0
      %1698 = vmatprep.subr.bf16.mxu0 0
      %1699 = vmatpush1.bf16.msra.mxu0 0
      %1700 = vmatprep.subr.bf16.mxu0 0
      %1701 = vmatpush1.bf16.msra.mxu0 0
      %1702 = vmatprep.subr.bf16.mxu0 0
      %1703 = vmatpush1.bf16.msra.mxu0 0
      %1704 = vmatprep.subr.bf16.mxu0 0
      %1705 = vmatpush1.bf16.msra.mxu0 0
      %1706 = vmatprep.subr.bf16.mxu0 0
      %1707 = vmatpush1.bf16.msra.mxu0 0
      %1708 = vmatprep.subr.bf16.mxu0 0
      %1709 = vmatpush1.bf16.msra.mxu0 0
      %1710 = vmatprep.subr.bf16.mxu0 0
      %1711 = vmatpush1.bf16.msra.mxu0 0
      %1712 = vmatprep.subr.bf16.mxu0 0
      %1713 = vmatpush1.bf16.msra.mxu0 0
      %1714 = vmatprep.mubr.bf16.mxu0 0
      %1715 = vmatmul.mubr.bf16.gmra.mrb[0].mxu0 %v914
      %v1716 = vpop.f32.mrb[0].mxu0
      %v1717 = vadd.f32 %v1668, %v1716
      %v1718 = vpop.f32.mrb[0].mxu0
      %v1719 = vpop.f32.mrb[0].mxu0
      %v1720 = vpop.f32.mrb[0].mxu0
      %1721 = vdwg.mxu0
      %s1722 = scalar_lea.vmem %s826, 32
      %v1723 = vld [vmem:[%s1722] sm:$0xf]
      %v1724 = vld [vmem:[%s1722 + $0x4] sm:$0xf]
      %v1725 = vld [vmem:[%s1722 + $0x8] sm:$0xf]
      %v1726 = vld [vmem:[%s1722 + $0xc] sm:$0xf]
      %s1727 = scalar_lea.vmem %s838, 2
      %v1728 = vld [vmem:[%s1727] sm:$0x1]
      %v1730 = vlaneseq
      %v1731 = vshrl.u32 %v1730, 7
      %v1732 = vsub.s32 0, %v1731
      %v1733 = vrot.slane %v1728, %v1732
      %v1739 = vunpack.c.l.b16 %v1723
      %v1740 = vunpack.c.l.b16 %v1724
      %v1741 = vunpack.c.l.b16 %v1725
      %v1742 = vunpack.c.l.b16 %v1726
      %v1743 = vpack.c.b16 %v1740, %v1739
      %v1744 = vpack.c.b16 %v1742, %v1741
      %1747 = vmatprep.subr.bf16.mxu0 0
      %1748 = vmatpush1.bf16.msra.mxu0 %v1743
      %1749 = vmatprep.subr.bf16.mxu0 0
      %1750 = vmatpush1.bf16.msra.mxu0 %v1744
      %1751 = vmatprep.subr.bf16.mxu0 0
      %1752 = vmatpush1.bf16.msra.mxu0 0
      %1753 = vmatprep.subr.bf16.mxu0 0
      %1754 = vmatpush1.bf16.msra.mxu0 0
      %1755 = vmatprep.subr.bf16.mxu0 0
      %1756 = vmatpush1.bf16.msra.mxu0 0
      %1757 = vmatprep.subr.bf16.mxu0 0
      %1758 = vmatpush1.bf16.msra.mxu0 0
      %1759 = vmatprep.subr.bf16.mxu0 0
      %1760 = vmatpush1.bf16.msra.mxu0 0
      %1761 = vmatprep.subr.bf16.mxu0 0
      %1762 = vmatpush1.bf16.msra.mxu0 0
      %1763 = vmatprep.subr.bf16.mxu0 0
      %1764 = vmatpush1.bf16.msra.mxu0 0
      %1765 = vmatprep.subr.bf16.mxu0 0
      %1766 = vmatpush1.bf16.msra.mxu0 0
      %1767 = vmatprep.subr.bf16.mxu0 0
      %1768 = vmatpush1.bf16.msra.mxu0 0
      %1769 = vmatprep.subr.bf16.mxu0 0
      %1770 = vmatpush1.bf16.msra.mxu0 0
      %1771 = vmatprep.subr.bf16.mxu0 0
      %1772 = vmatpush1.bf16.msra.mxu0 0
      %1773 = vmatprep.subr.bf16.mxu0 0
      %1774 = vmatpush1.bf16.msra.mxu0 0
      %1775 = vmatprep.subr.bf16.mxu0 0
      %1776 = vmatpush1.bf16.msra.mxu0 0
      %1777 = vmatprep.subr.bf16.mxu0 0
      %1778 = vmatpush1.bf16.msra.mxu0 0
      %1779 = vmatprep.mubr.bf16.mxu0 0
      %1780 = vmatmul.mubr.bf16.gmra.mrb[0].mxu0 %v914
      %v1781 = vpop.f32.mrb[0].mxu0
      %v1782 = vadd.f32 %v1733, %v1781
      %v1783 = vpop.f32.mrb[0].mxu0
      %v1784 = vpop.f32.mrb[0].mxu0
      %v1785 = vpop.f32.mrb[0].mxu0
      %1786 = vdwg.mxu0
      %v1787 = vpack.c.bf16 %v1652, %v1652
      %v1788 = vpack.c.bf16 %v1717, %v1717
      %v1790 = vsel %vm1084, %v1787, 0
      %v1793 = vsel %vm1084, %v1788, 0
      %1795 = vmatprep.subr.bf16.mxu0 0
      %1796 = vmatpush1.bf16.xpose.msra.mxu0 %v1793
      %1797 = vmatprep.subr.bf16.mxu0 0
      %1798 = vmatpush1.bf16.xpose.msra.mxu0 0
      %1799 = vmatprep.subr.bf16.mxu0 0
      %1800 = vmatpush1.bf16.xpose.msra.mxu0 0
      %1801 = vmatprep.subr.bf16.mxu0 0
      %1802 = vmatpush1.bf16.xpose.msra.mxu0 0
      %1803 = vmatprep.subr.bf16.mxu0 0
      %1804 = vmatpush1.bf16.xpose.msra.mxu0 0
      %1805 = vmatprep.subr.bf16.mxu0 0
      %1806 = vmatpush1.bf16.xpose.msra.mxu0 0
      %1807 = vmatprep.subr.bf16.mxu0 0
      %1808 = vmatpush1.bf16.xpose.msra.mxu0 0
      %1809 = vmatprep.subr.bf16.mxu0 0
      %1810 = vmatpush1.bf16.xpose.msra.mxu0 0
      %1811 = vmatprep.subr.bf16.mxu0 0
      %1812 = vmatpush1.bf16.xpose.msra.mxu0 0
      %1813 = vmatprep.subr.bf16.mxu0 0
      %1814 = vmatpush1.bf16.xpose.msra.mxu0 0
      %1815 = vmatprep.subr.bf16.mxu0 0
      %1816 = vmatpush1.bf16.xpose.msra.mxu0 0
      %1817 = vmatprep.subr.bf16.mxu0 0
      %1818 = vmatpush1.bf16.xpose.msra.mxu0 0
      %1819 = vmatprep.subr.bf16.mxu0 0
      %1820 = vmatpush1.bf16.xpose.msra.mxu0 0
      %1821 = vmatprep.subr.bf16.mxu0 0
      %1822 = vmatpush1.bf16.xpose.msra.mxu0 0
      %1823 = vmatprep.subr.bf16.mxu0 0
      %1824 = vmatpush1.bf16.xpose.msra.mxu0 0
      %1825 = vmatprep.subr.bf16.mxu0 0
      %1826 = vmatpush1.bf16.xpose.msra.mxu0 0
      %1827 = vmatprep.mubr.bf16.mxu0 0
      %1828 = vmatmul.mubr.bf16.gmra.mrb[0].mxu0 %v1790
      %v1829 = vpop.f32.mrb[0].mxu0
      %v1830 = vadd.f32 0.0, %v1829
      %v1831 = vpop.f32.mrb[0].mxu0
      %v1832 = vpop.f32.mrb[0].mxu0
      %v1833 = vpop.f32.mrb[0].mxu0
      %1834 = vdwg.mxu0
      %v1835 = vmul.f32 %v1830, 0.35355338
      %v1836 = vsel %vm1084, %v1835, -inf
      %1837 = vmax.xlane.f32.xlu0 %v1836
      %v1838 = vpop.xlane.xlu0 %1837
      %v1839 = vsub.f32 %v1835, %v1838
      %v1840 = vmul.f32 %v1839, 1.442695
      %v1841 = vpow.pop %v1840
      %v1842 = vsel %vm1084, %v1841, 0.0
      %1843 = vadd.xlane.f32.xlu0 %v1842
      %v1844 = vpop.xlane.xlu0 %1843
      %v1845 = vrcp.pop %v1844
      %v1846 = vmul.f32 %v1841, %v1845
      %v1847 = vpack.c.bf16 %v1846, %v1846
      %v1848 = vpack.c.bf16 %v1782, %v1782
      %v1850 = vsel %vm1084, %v1847, 0
      %v1853 = vsel %vm1148, %v1848, 0
      %1855 = vmatprep.subr.bf16.mxu0 0
      %1856 = vmatpush1.bf16.msra.mxu0 %v1853
      %1857 = vmatprep.subr.bf16.mxu0 0
      %1858 = vmatpush1.bf16.msra.mxu0 0
      %1859 = vmatprep.subr.bf16.mxu0 0
      %1860 = vmatpush1.bf16.msra.mxu0 0
      %1861 = vmatprep.subr.bf16.mxu0 0
      %1862 = vmatpush1.bf16.msra.mxu0 0
      %1863 = vmatprep.subr.bf16.mxu0 0
      %1864 = vmatpush1.bf16.msra.mxu0 0
      %1865 = vmatprep.subr.bf16.mxu0 0
      %1866 = vmatpush1.bf16.msra.mxu0 0
      %1867 = vmatprep.subr.bf16.mxu0 0
      %1868 = vmatpush1.bf16.msra.mxu0 0
      %1869 = vmatprep.subr.bf16.mxu0 0
      %1870 = vmatpush1.bf16.msra.mxu0 0
      %1871 = vmatprep.subr.bf16.mxu0 0
      %1872 = vmatpush1.bf16.msra.mxu0 0
      %1873 = vmatprep.subr.bf16.mxu0 0
      %1874 = vmatpush1.bf16.msra.mxu0 0
      %1875 = vmatprep.subr.bf16.mxu0 0
      %1876 = vmatpush1.bf16.msra.mxu0 0
      %1877 = vmatprep.subr.bf16.mxu0 0
      %1878 = vmatpush1.bf16.msra.mxu0 0
      %1879 = vmatprep.subr.bf16.mxu0 0
      %1880 = vmatpush1.bf16.msra.mxu0 0
      %1881 = vmatprep.subr.bf16.mxu0 0
      %1882 = vmatpush1.bf16.msra.mxu0 0
      %1883 = vmatprep.subr.bf16.mxu0 0
      %1884 = vmatpush1.bf16.msra.mxu0 0
      %1885 = vmatprep.subr.bf16.mxu0 0
      %1886 = vmatpush1.bf16.msra.mxu0 0
      %1887 = vmatprep.mubr.bf16.mxu0 0
      %1888 = vmatmul.mubr.bf16.gmra.mrb[0].mxu0 %v1850
      %v1889 = vpop.f32.mrb[0].mxu0
      %v1890 = vadd.f32 0.0, %v1889
      %v1891 = vpop.f32.mrb[0].mxu0
      %v1892 = vpop.f32.mrb[0].mxu0
      %v1893 = vpop.f32.mrb[0].mxu0
      %1894 = vdwg.mxu0
      %v1895 = vpack.c.bf16 %v1890, %v1890
      %s1896 = scalar_lea.vmem %s843, 8
      %v1897 = vld [vmem:[%s1896] sm:$0xf]
      %v1899 = vsel %vm1084, %v1895, 0
      %v1902 = vsel %vm1148, %v1897, 0
      %1904 = vmatprep.subr.bf16.mxu0 0
      %1905 = vmatpush1.bf16.msra.mxu0 %v1902
      %1906 = vmatprep.subr.bf16.mxu0 0
      %1907 = vmatpush1.bf16.msra.mxu0 0
      %1908 = vmatprep.subr.bf16.mxu0 0
      %1909 = vmatpush1.bf16.msra.mxu0 0
      %1910 = vmatprep.subr.bf16.mxu0 0
      %1911 = vmatpush1.bf16.msra.mxu0 0
      %1912 = vmatprep.subr.bf16.mxu0 0
      %1913 = vmatpush1.bf16.msra.mxu0 0
      %1914 = vmatprep.subr.bf16.mxu0 0
      %1915 = vmatpush1.bf16.msra.mxu0 0
      %1916 = vmatprep.subr.bf16.mxu0 0
      %1917 = vmatpush1.bf16.msra.mxu0 0
      %1918 = vmatprep.subr.bf16.mxu0 0
      %1919 = vmatpush1.bf16.msra.mxu0 0
      %1920 = vmatprep.subr.bf16.mxu0 0
      %1921 = vmatpush1.bf16.msra.mxu0 0
      %1922 = vmatprep.subr.bf16.mxu0 0
      %1923 = vmatpush1.bf16.msra.mxu0 0
      %1924 = vmatprep.subr.bf16.mxu0 0
      %1925 = vmatpush1.bf16.msra.mxu0 0
      %1926 = vmatprep.subr.bf16.mxu0 0
      %1927 = vmatpush1.bf16.msra.mxu0 0
      %1928 = vmatprep.subr.bf16.mxu0 0
      %1929 = vmatpush1.bf16.msra.mxu0 0
      %1930 = vmatprep.subr.bf16.mxu0 0
      %1931 = vmatpush1.bf16.msra.mxu0 0
      %1932 = vmatprep.subr.bf16.mxu0 0
      %1933 = vmatpush1.bf16.msra.mxu0 0
      %1934 = vmatprep.subr.bf16.mxu0 0
      %1935 = vmatpush1.bf16.msra.mxu0 0
      %1936 = vmatprep.mubr.bf16.mxu0 0
      %1937 = vmatmul.mubr.bf16.gmra.mrb[0].mxu0 %v1899
      %v1938 = vpop.f32.mrb[0].mxu0
      %v1939 = vadd.f32 0.0, %v1938
      %v1940 = vpop.f32.mrb[0].mxu0
      %v1941 = vpop.f32.mrb[0].mxu0
      %v1942 = vpop.f32.mrb[0].mxu0
      %1943 = vdwg.mxu0
      %v1944 = vadd.f32 %v1587, %v1939
      %s1945 = scalar_lea.vmem %s816, 48
      %v1946 = vld [vmem:[%s1945] sm:$0xf]
      %v1947 = vld [vmem:[%s1945 + $0x4] sm:$0xf]
      %v1948 = vld [vmem:[%s1945 + $0x8] sm:$0xf]
      %v1949 = vld [vmem:[%s1945 + $0xc] sm:$0xf]
      %s1950 = scalar_lea.vmem %s830, 3
      %v1951 = vld [vmem:[%s1950] sm:$0x1]
      %v1953 = vlaneseq
      %v1954 = vshrl.u32 %v1953, 7
      %v1955 = vsub.s32 0, %v1954
      %v1956 = vrot.slane %v1951, %v1955
      %v1962 = vunpack.c.l.b16 %v1946
      %v1963 = vunpack.c.l.b16 %v1947
      %v1964 = vunpack.c.l.b16 %v1948
      %v1965 = vunpack.c.l.b16 %v1949
      %v1966 = vpack.c.b16 %v1963, %v1962
      %v1967 = vpack.c.b16 %v1965, %v1964
      %1970 = vmatprep.subr.bf16.mxu0 0
      %1971 = vmatpush1.bf16.msra.mxu0 %v1966
      %1972 = vmatprep.subr.bf16.mxu0 0
      %1973 = vmatpush1.bf16.msra.mxu0 %v1967
      %1974 = vmatprep.subr.bf16.mxu0 0
      %1975 = vmatpush1.bf16.msra.mxu0 0
      %1976 = vmatprep.subr.bf16.mxu0 0
      %1977 = vmatpush1.bf16.msra.mxu0 0
      %1978 = vmatprep.subr.bf16.mxu0 0
      %1979 = vmatpush1.bf16.msra.mxu0 0
      %1980 = vmatprep.subr.bf16.mxu0 0
      %1981 = vmatpush1.bf16.msra.mxu0 0
      %1982 = vmatprep.subr.bf16.mxu0 0
      %1983 = vmatpush1.bf16.msra.mxu0 0
      %1984 = vmatprep.subr.bf16.mxu0 0
      %1985 = vmatpush1.bf16.msra.mxu0 0
      %1986 = vmatprep.subr.bf16.mxu0 0
      %1987 = vmatpush1.bf16.msra.mxu0 0
      %1988 = vmatprep.subr.bf16.mxu0 0
      %1989 = vmatpush1.bf16.msra.mxu0 0
      %1990 = vmatprep.subr.bf16.mxu0 0
      %1991 = vmatpush1.bf16.msra.mxu0 0
      %1992 = vmatprep.subr.bf16.mxu0 0
      %1993 = vmatpush1.bf16.msra.mxu0 0
      %1994 = vmatprep.subr.bf16.mxu0 0
      %1995 = vmatpush1.bf16.msra.mxu0 0
      %1996 = vmatprep.subr.bf16.mxu0 0
      %1997 = vmatpush1.bf16.msra.mxu0 0
      %1998 = vmatprep.subr.bf16.mxu0 0
      %1999 = vmatpush1.bf16.msra.mxu0 0
      %2000 = vmatprep.subr.bf16.mxu0 0
      %2001 = vmatpush1.bf16.msra.mxu0 0
      %2002 = vmatprep.mubr.bf16.mxu0 0
      %2003 = vmatmul.mubr.bf16.gmra.mrb[0].mxu0 %v914
      %v2004 = vpop.f32.mrb[0].mxu0
      %v2005 = vadd.f32 %v1956, %v2004
      %v2006 = vpop.f32.mrb[0].mxu0
      %v2007 = vpop.f32.mrb[0].mxu0
      %v2008 = vpop.f32.mrb[0].mxu0
      %2009 = vdwg.mxu0
      %s2010 = scalar_lea.vmem %s821, 48
      %v2011 = vld [vmem:[%s2010] sm:$0xf]
      %v2012 = vld [vmem:[%s2010 + $0x4] sm:$0xf]
      %v2013 = vld [vmem:[%s2010 + $0x8] sm:$0xf]
      %v2014 = vld [vmem:[%s2010 + $0xc] sm:$0xf]
      %s2015 = scalar_lea.vmem %s834, 3
      %v2016 = vld [vmem:[%s2015] sm:$0x1]
      %v2018 = vlaneseq
      %v2019 = vshrl.u32 %v2018, 7
      %v2020 = vsub.s32 0, %v2019
      %v2021 = vrot.slane %v2016, %v2020
      %v2027 = vunpack.c.l.b16 %v2011
      %v2028 = vunpack.c.l.b16 %v2012
      %v2029 = vunpack.c.l.b16 %v2013
      %v2030 = vunpack.c.l.b16 %v2014
      %v2031 = vpack.c.b16 %v2028, %v2027
      %v2032 = vpack.c.b16 %v2030, %v2029
      %2035 = vmatprep.subr.bf16.mxu0 0
      %2036 = vmatpush1.bf16.msra.mxu0 %v2031
      %2037 = vmatprep.subr.bf16.mxu0 0
      %2038 = vmatpush1.bf16.msra.mxu0 %v2032
      %2039 = vmatprep.subr.bf16.mxu0 0
      %2040 = vmatpush1.bf16.msra.mxu0 0
      %2041 = vmatprep.subr.bf16.mxu0 0
      %2042 = vmatpush1.bf16.msra.mxu0 0
      %2043 = vmatprep.subr.bf16.mxu0 0
      %2044 = vmatpush1.bf16.msra.mxu0 0
      %2045 = vmatprep.subr.bf16.mxu0 0
      %2046 = vmatpush1.bf16.msra.mxu0 0
      %2047 = vmatprep.subr.bf16.mxu0 0
      %2048 = vmatpush1.bf16.msra.mxu0 0
      %2049 = vmatprep.subr.bf16.mxu0 0
      %2050 = vmatpush1.bf16.msra.mxu0 0
      %2051 = vmatprep.subr.bf16.mxu0 0
      %2052 = vmatpush1.bf16.msra.mxu0 0
      %2053 = vmatprep.subr.bf16.mxu0 0
      %2054 = vmatpush1.bf16.msra.mxu0 0
      %2055 = vmatprep.subr.bf16.mxu0 0
      %2056 = vmatpush1.bf16.msra.mxu0 0
      %2057 = vmatprep.subr.bf16.mxu0 0
      %2058 = vmatpush1.bf16.msra.mxu0 0
      %2059 = vmatprep.subr.bf16.mxu0 0
      %2060 = vmatpush1.bf16.msra.mxu0 0
      %2061 = vmatprep.subr.bf16.mxu0 0
      %2062 = vmatpush1.bf16.msra.mxu0 0
      %2063 = vmatprep.subr.bf16.mxu0 0
      %2064 = vmatpush1.bf16.msra.mxu0 0
      %2065 = vmatprep.subr.bf16.mxu0 0
      %2066 = vmatpush1.bf16.msra.mxu0 0
      %2067 = vmatprep.mubr.bf16.mxu0 0
      %2068 = vmatmul.mubr.bf16.gmra.mrb[0].mxu0 %v914
      %v2069 = vpop.f32.mrb[0].mxu0
      %v2070 = vadd.f32 %v2021, %v2069
      %v2071 = vpop.f32.mrb[0].mxu0
      %v2072 = vpop.f32.mrb[0].mxu0
      %v2073 = vpop.f32.mrb[0].mxu0
      %2074 = vdwg.mxu0
      %s2075 = scalar_lea.vmem %s826, 48
      %v2076 = vld [vmem:[%s2075] sm:$0xf]
      %v2077 = vld [vmem:[%s2075 + $0x4] sm:$0xf]
      %v2078 = vld [vmem:[%s2075 + $0x8] sm:$0xf]
      %v2079 = vld [vmem:[%s2075 + $0xc] sm:$0xf]
      %s2080 = scalar_lea.vmem %s838, 3
      %v2081 = vld [vmem:[%s2080] sm:$0x1]
      %v2083 = vlaneseq
      %v2084 = vshrl.u32 %v2083, 7
      %v2085 = vsub.s32 0, %v2084
      %v2086 = vrot.slane %v2081, %v2085
      %v2092 = vunpack.c.l.b16 %v2076
      %v2093 = vunpack.c.l.b16 %v2077
      %v2094 = vunpack.c.l.b16 %v2078
      %v2095 = vunpack.c.l.b16 %v2079
      %v2096 = vpack.c.b16 %v2093, %v2092
      %v2097 = vpack.c.b16 %v2095, %v2094
      %2100 = vmatprep.subr.bf16.mxu0 0
      %2101 = vmatpush1.bf16.msra.mxu0 %v2096
      %2102 = vmatprep.subr.bf16.mxu0 0
      %2103 = vmatpush1.bf16.msra.mxu0 %v2097
      %2104 = vmatprep.subr.bf16.mxu0 0
      %2105 = vmatpush1.bf16.msra.mxu0 0
      %2106 = vmatprep.subr.bf16.mxu0 0
      %2107 = vmatpush1.bf16.msra.mxu0 0
      %2108 = vmatprep.subr.bf16.mxu0 0
      %2109 = vmatpush1.bf16.msra.mxu0 0
      %2110 = vmatprep.subr.bf16.mxu0 0
      %2111 = vmatpush1.bf16.msra.mxu0 0
      %2112 = vmatprep.subr.bf16.mxu0 0
      %2113 = vmatpush1.bf16.msra.mxu0 0
      %2114 = vmatprep.subr.bf16.mxu0 0
      %2115 = vmatpush1.bf16.msra.mxu0 0
      %2116 = vmatprep.subr.bf16.mxu0 0
      %2117 = vmatpush1.bf16.msra.mxu0 0
      %2118 = vmatprep.subr.bf16.mxu0 0
      %2119 = vmatpush1.bf16.msra.mxu0 0
      %2120 = vmatprep.subr.bf16.mxu0 0
      %2121 = vmatpush1.bf16.msra.mxu0 0
      %2122 = vmatprep.subr.bf16.mxu0 0
      %2123 = vmatpush1.bf16.msra.mxu0 0
      %2124 = vmatprep.subr.bf16.mxu0 0
      %2125 = vmatpush1.bf16.msra.mxu0 0
      %2126 = vmatprep.subr.bf16.mxu0 0
      %2127 = vmatpush1.bf16.msra.mxu0 0
      %2128 = vmatprep.subr.bf16.mxu0 0
      %2129 = vmatpush1.bf16.msra.mxu0 0
      %2130 = vmatprep.subr.bf16.mxu0 0
      %2131 = vmatpush1.bf16.msra.mxu0 0
      %2132 = vmatprep.mubr.bf16.mxu0 0
      %2133 = vmatmul.mubr.bf16.gmra.mrb[0].mxu0 %v914
      %v2134 = vpop.f32.mrb[0].mxu0
      %v2135 = vadd.f32 %v2086, %v2134
      %v2136 = vpop.f32.mrb[0].mxu0
      %v2137 = vpop.f32.mrb[0].mxu0
      %v2138 = vpop.f32.mrb[0].mxu0
      %2139 = vdwg.mxu0
      %v2140 = vpack.c.bf16 %v2005, %v2005
      %v2141 = vpack.c.bf16 %v2070, %v2070
      %v2143 = vsel %vm1084, %v2140, 0
      %v2146 = vsel %vm1084, %v2141, 0
      %2148 = vmatprep.subr.bf16.mxu0 0
      %2149 = vmatpush1.bf16.xpose.msra.mxu0 %v2146
      %2150 = vmatprep.subr.bf16.mxu0 0
      %2151 = vmatpush1.bf16.xpose.msra.mxu0 0
      %2152 = vmatprep.subr.bf16.mxu0 0
      %2153 = vmatpush1.bf16.xpose.msra.mxu0 0
      %2154 = vmatprep.subr.bf16.mxu0 0
      %2155 = vmatpush1.bf16.xpose.msra.mxu0 0
      %2156 = vmatprep.subr.bf16.mxu0 0
      %2157 = vmatpush1.bf16.xpose.msra.mxu0 0
      %2158 = vmatprep.subr.bf16.mxu0 0
      %2159 = vmatpush1.bf16.xpose.msra.mxu0 0
      %2160 = vmatprep.subr.bf16.mxu0 0
      %2161 = vmatpush1.bf16.xpose.msra.mxu0 0
      %2162 = vmatprep.subr.bf16.mxu0 0
      %2163 = vmatpush1.bf16.xpose.msra.mxu0 0
      %2164 = vmatprep.subr.bf16.mxu0 0
      %2165 = vmatpush1.bf16.xpose.msra.mxu0 0
      %2166 = vmatprep.subr.bf16.mxu0 0
      %2167 = vmatpush1.bf16.xpose.msra.mxu0 0
      %2168 = vmatprep.subr.bf16.mxu0 0
      %2169 = vmatpush1.bf16.xpose.msra.mxu0 0
      %2170 = vmatprep.subr.bf16.mxu0 0
      %2171 = vmatpush1.bf16.xpose.msra.mxu0 0
      %2172 = vmatprep.subr.bf16.mxu0 0
      %2173 = vmatpush1.bf16.xpose.msra.mxu0 0
      %2174 = vmatprep.subr.bf16.mxu0 0
      %2175 = vmatpush1.bf16.xpose.msra.mxu0 0
      %2176 = vmatprep.subr.bf16.mxu0 0
      %2177 = vmatpush1.bf16.xpose.msra.mxu0 0
      %2178 = vmatprep.subr.bf16.mxu0 0
      %2179 = vmatpush1.bf16.xpose.msra.mxu0 0
      %2180 = vmatprep.mubr.bf16.mxu0 0
      %2181 = vmatmul.mubr.bf16.gmra.mrb[0].mxu0 %v2143
      %v2182 = vpop.f32.mrb[0].mxu0
      %v2183 = vadd.f32 0.0, %v2182
      %v2184 = vpop.f32.mrb[0].mxu0
      %v2185 = vpop.f32.mrb[0].mxu0
      %v2186 = vpop.f32.mrb[0].mxu0
      %2187 = vdwg.mxu0
      %v2188 = vmul.f32 %v2183, 0.35355338
      %v2189 = vsel %vm1084, %v2188, -inf
      %2190 = vmax.xlane.f32.xlu0 %v2189
      %v2191 = vpop.xlane.xlu0 %2190
      %v2192 = vsub.f32 %v2188, %v2191
      %v2193 = vmul.f32 %v2192, 1.442695
      %v2194 = vpow.pop %v2193
      %v2195 = vsel %vm1084, %v2194, 0.0
      %2196 = vadd.xlane.f32.xlu0 %v2195
      %v2197 = vpop.xlane.xlu0 %2196
      %v2198 = vrcp.pop %v2197
      %v2199 = vmul.f32 %v2194, %v2198
      %v2200 = vpack.c.bf16 %v2199, %v2199
      %v2201 = vpack.c.bf16 %v2135, %v2135
      %v2203 = vsel %vm1084, %v2200, 0
      %v2206 = vsel %vm1148, %v2201, 0
      %2208 = vmatprep.subr.bf16.mxu0 0
      %2209 = vmatpush1.bf16.msra.mxu0 %v2206
      %2210 = vmatprep.subr.bf16.mxu0 0
      %2211 = vmatpush1.bf16.msra.mxu0 0
      %2212 = vmatprep.subr.bf16.mxu0 0
      %2213 = vmatpush1.bf16.msra.mxu0 0
      %2214 = vmatprep.subr.bf16.mxu0 0
      %2215 = vmatpush1.bf16.msra.mxu0 0
      %2216 = vmatprep.subr.bf16.mxu0 0
      %2217 = vmatpush1.bf16.msra.mxu0 0
      %2218 = vmatprep.subr.bf16.mxu0 0
      %2219 = vmatpush1.bf16.msra.mxu0 0
      %2220 = vmatprep.subr.bf16.mxu0 0
      %2221 = vmatpush1.bf16.msra.mxu0 0
      %2222 = vmatprep.subr.bf16.mxu0 0
      %2223 = vmatpush1.bf16.msra.mxu0 0
      %2224 = vmatprep.subr.bf16.mxu0 0
      %2225 = vmatpush1.bf16.msra.mxu0 0
      %2226 = vmatprep.subr.bf16.mxu0 0
      %2227 = vmatpush1.bf16.msra.mxu0 0
      %2228 = vmatprep.subr.bf16.mxu0 0
      %2229 = vmatpush1.bf16.msra.mxu0 0
      %2230 = vmatprep.subr.bf16.mxu0 0
      %2231 = vmatpush1.bf16.msra.mxu0 0
      %2232 = vmatprep.subr.bf16.mxu0 0
      %2233 = vmatpush1.bf16.msra.mxu0 0
      %2234 = vmatprep.subr.bf16.mxu0 0
      %2235 = vmatpush1.bf16.msra.mxu0 0
      %2236 = vmatprep.subr.bf16.mxu0 0
      %2237 = vmatpush1.bf16.msra.mxu0 0
      %2238 = vmatprep.subr.bf16.mxu0 0
      %2239 = vmatpush1.bf16.msra.mxu0 0
      %2240 = vmatprep.mubr.bf16.mxu0 0
      %2241 = vmatmul.mubr.bf16.gmra.mrb[0].mxu0 %v2203
      %v2242 = vpop.f32.mrb[0].mxu0
      %v2243 = vadd.f32 0.0, %v2242
      %v2244 = vpop.f32.mrb[0].mxu0
      %v2245 = vpop.f32.mrb[0].mxu0
      %v2246 = vpop.f32.mrb[0].mxu0
      %2247 = vdwg.mxu0
      %v2248 = vpack.c.bf16 %v2243, %v2243
      %s2249 = scalar_lea.vmem %s843, 12
      %v2250 = vld [vmem:[%s2249] sm:$0xf]
      %v2252 = vsel %vm1084, %v2248, 0
      %v2255 = vsel %vm1148, %v2250, 0
      %2257 = vmatprep.subr.bf16.mxu0 0
      %2258 = vmatpush1.bf16.msra.mxu0 %v2255
      %2259 = vmatprep.subr.bf16.mxu0 0
      %2260 = vmatpush1.bf16.msra.mxu0 0
      %2261 = vmatprep.subr.bf16.mxu0 0
      %2262 = vmatpush1.bf16.msra.mxu0 0
      %2263 = vmatprep.subr.bf16.mxu0 0
      %2264 = vmatpush1.bf16.msra.mxu0 0
      %2265 = vmatprep.subr.bf16.mxu0 0
      %2266 = vmatpush1.bf16.msra.mxu0 0
      %2267 = vmatprep.subr.bf16.mxu0 0
      %2268 = vmatpush1.bf16.msra.mxu0 0
      %2269 = vmatprep.subr.bf16.mxu0 0
      %2270 = vmatpush1.bf16.msra.mxu0 0
      %2271 = vmatprep.subr.bf16.mxu0 0
      %2272 = vmatpush1.bf16.msra.mxu0 0
      %2273 = vmatprep.subr.bf16.mxu0 0
      %2274 = vmatpush1.bf16.msra.mxu0 0
      %2275 = vmatprep.subr.bf16.mxu0 0
      %2276 = vmatpush1.bf16.msra.mxu0 0
      %2277 = vmatprep.subr.bf16.mxu0 0
      %2278 = vmatpush1.bf16.msra.mxu0 0
      %2279 = vmatprep.subr.bf16.mxu0 0
      %2280 = vmatpush1.bf16.msra.mxu0 0
      %2281 = vmatprep.subr.bf16.mxu0 0
      %2282 = vmatpush1.bf16.msra.mxu0 0
      %2283 = vmatprep.subr.bf16.mxu0 0
      %2284 = vmatpush1.bf16.msra.mxu0 0
      %2285 = vmatprep.subr.bf16.mxu0 0
      %2286 = vmatpush1.bf16.msra.mxu0 0
      %2287 = vmatprep.subr.bf16.mxu0 0
      %2288 = vmatpush1.bf16.msra.mxu0 0
      %2289 = vmatprep.mubr.bf16.mxu0 0
      %2290 = vmatmul.mubr.bf16.gmra.mrb[0].mxu0 %v2252
      %v2291 = vpop.f32.mrb[0].mxu0
      %v2292 = vadd.f32 0.0, %v2291
      %v2293 = vpop.f32.mrb[0].mxu0
      %v2294 = vpop.f32.mrb[0].mxu0
      %v2295 = vpop.f32.mrb[0].mxu0
      %2296 = vdwg.mxu0
      %v2297 = vadd.f32 %v1944, %v2292
      %v2298 = vld [vmem:[%s846] sm:$0x1]
      %v2300 = vlaneseq
      %v2301 = vshrl.u32 %v2300, 7
      %v2302 = vsub.s32 0, %v2301
      %v2303 = vrot.slane %v2298, %v2302
      %v2305 = vadd.f32 %v2297, %v2303
      %v2306 = vadd.f32 %v887, %v2305
      %v2307 = vld [vmem:[%s849] sm:$0x1]
      %v2308 = vld [vmem:[%s852] sm:$0x1]
      %v2309 = vsel %vm912, %v2306, 0.0
      %2310 = vadd.xlane.f32.xlu0 %v2309
      %v2311 = vpop.xlane.xlu0 %2310
      %v2312 = vrcp.pop 32.0
      %v2313 = vmul.f32 %v2311, %v2312
      %v2314 = vsub.f32 %v2306, %v2313
      %v2315 = vmul.f32 %v2314, %v2314
      %v2316 = vsel %vm912, %v2315, 0.0
      %2317 = vadd.xlane.f32.xlu0 %v2316
      %v2318 = vpop.xlane.xlu0 %2317
      %v2319 = vmul.f32 %v2318, %v2312
      %v2320 = vadd.f32 %v2319, 1e-05
      %v2321 = vrsqrt.pop %v2320
      %v2322 = vmul.f32 %v2314, %v2321
      %v2324 = vlaneseq
      %v2325 = vshrl.u32 %v2324, 7
      %v2326 = vsub.s32 0, %v2325
      %v2327 = vrot.slane %v2307, %v2326
      %v2329 = vmul.f32 %v2322, %v2327
      %v2331 = vlaneseq
      %v2332 = vshrl.u32 %v2331, 7
      %v2333 = vsub.s32 0, %v2332
      %v2334 = vrot.slane %v2308, %v2333
      %v2336 = vadd.f32 %v2329, %v2334
      %v2337 = vpack.c.bf16 %v2336, %v2336
      %v2338 = vld [vmem:[%s857] sm:$0xf]
      %v2339 = vld [vmem:[%s857 + $0x4] sm:$0xf]
      %v2340 = vld [vmem:[%s857 + $0x8] sm:$0xf]
      %v2341 = vld [vmem:[%s857 + $0xc] sm:$0xf]
      %v2342 = vld [vmem:[%s860] sm:$0x1]
      %v2344 = vlaneseq
      %v2345 = vshrl.u32 %v2344, 7
      %v2346 = vsub.s32 0, %v2345
      %v2347 = vrot.slane %v2342, %v2346
      %v2353 = vunpack.c.l.b16 %v2338
      %v2354 = vunpack.c.l.b16 %v2339
      %v2355 = vunpack.c.l.b16 %v2340
      %v2356 = vunpack.c.l.b16 %v2341
      %v2357 = vpack.c.b16 %v2354, %v2353
      %v2358 = vpack.c.b16 %v2356, %v2355
      %v2362 = vsel %vm912, %v2337, 0
      %2364 = vmatprep.subr.bf16.mxu0 0
      %2365 = vmatpush1.bf16.msra.mxu0 %v2357
      %2366 = vmatprep.subr.bf16.mxu0 0
      %2367 = vmatpush1.bf16.msra.mxu0 %v2358
      %2368 = vmatprep.subr.bf16.mxu0 0
      %2369 = vmatpush1.bf16.msra.mxu0 0
      %2370 = vmatprep.subr.bf16.mxu0 0
      %2371 = vmatpush1.bf16.msra.mxu0 0
      %2372 = vmatprep.subr.bf16.mxu0 0
      %2373 = vmatpush1.bf16.msra.mxu0 0
      %2374 = vmatprep.subr.bf16.mxu0 0
      %2375 = vmatpush1.bf16.msra.mxu0 0
      %2376 = vmatprep.subr.bf16.mxu0 0
      %2377 = vmatpush1.bf16.msra.mxu0 0
      %2378 = vmatprep.subr.bf16.mxu0 0
      %2379 = vmatpush1.bf16.msra.mxu0 0
      %2380 = vmatprep.subr.bf16.mxu0 0
      %2381 = vmatpush1.bf16.msra.mxu0 0
      %2382 = vmatprep.subr.bf16.mxu0 0
      %2383 = vmatpush1.bf16.msra.mxu0 0
      %2384 = vmatprep.subr.bf16.mxu0 0
      %2385 = vmatpush1.bf16.msra.mxu0 0
      %2386 = vmatprep.subr.bf16.mxu0 0
      %2387 = vmatpush1.bf16.msra.mxu0 0
      %2388 = vmatprep.subr.bf16.mxu0 0
      %2389 = vmatpush1.bf16.msra.mxu0 0
      %2390 = vmatprep.subr.bf16.mxu0 0
      %2391 = vmatpush1.bf16.msra.mxu0 0
      %2392 = vmatprep.subr.bf16.mxu0 0
      %2393 = vmatpush1.bf16.msra.mxu0 0
      %2394 = vmatprep.subr.bf16.mxu0 0
      %2395 = vmatpush1.bf16.msra.mxu0 0
      %2396 = vmatprep.mubr.bf16.mxu0 0
      %2397 = vmatmul.mubr.bf16.gmra.mrb[0].mxu0 %v2362
      %v2398 = vpop.f32.mrb[0].mxu0
      %v2399 = vadd.f32 %v2347, %v2398
      %v2400 = vpop.f32.mrb[0].mxu0
      %v2401 = vpop.f32.mrb[0].mxu0
      %v2402 = vpop.f32.mrb[0].mxu0
      %2403 = vdwg.mxu0
      %v2404 = vmax.f32 %v2399, 0.0
      %v2405 = vpack.c.bf16 %v2404, %v2404
      %v2406 = vld [vmem:[%s865] sm:$0xf]
      %v2407 = vld [vmem:[%s865 + $0x4] sm:$0xf]
      %v2408 = vld [vmem:[%s865 + $0x8] sm:$0xf]
      %v2409 = vld [vmem:[%s865 + $0xc] sm:$0xf]
      %v2410 = vld [vmem:[%s865 + $0x10] sm:$0xf]
      %v2411 = vld [vmem:[%s865 + $0x14] sm:$0xf]
      %v2412 = vld [vmem:[%s865 + $0x18] sm:$0xf]
      %v2413 = vld [vmem:[%s865 + $0x1c] sm:$0xf]
      %v2414 = vld [vmem:[%s868] sm:$0x1]
      %v2416 = vlaneseq
      %v2417 = vshrl.u32 %v2416, 7
      %v2418 = vsub.s32 0, %v2417
      %v2419 = vrot.slane %v2414, %v2418
      %v2429 = vunpack.c.l.b16 %v2406
      %v2430 = vunpack.c.l.b16 %v2407
      %v2431 = vunpack.c.l.b16 %v2408
      %v2432 = vunpack.c.l.b16 %v2409
      %v2433 = vunpack.c.l.b16 %v2410
      %v2434 = vunpack.c.l.b16 %v2411
      %v2435 = vunpack.c.l.b16 %v2412
      %v2436 = vunpack.c.l.b16 %v2413
      %v2437 = vpack.c.b16 %v2430, %v2429
      %v2438 = vpack.c.b16 %v2432, %v2431
      %v2439 = vpack.c.b16 %v2434, %v2433
      %v2440 = vpack.c.b16 %v2436, %v2435
      %vm2445 = vcmask 523264
      %v2447 = vsel %vm2445, %v2405, 0
      %2449 = vmatprep.subr.bf16.mxu0 0
      %2450 = vmatpush1.bf16.msra.mxu0 %v2437
      %2451 = vmatprep.subr.bf16.mxu0 0
      %2452 = vmatpush1.bf16.msra.mxu0 %v2438
      %2453 = vmatprep.subr.bf16.mxu0 0
      %2454 = vmatpush1.bf16.msra.mxu0 %v2439
      %2455 = vmatprep.subr.bf16.mxu0 0
      %2456 = vmatpush1.bf16.msra.mxu0 %v2440
      %2457 = vmatprep.subr.bf16.mxu0 0
      %2458 = vmatpush1.bf16.msra.mxu0 0
      %2459 = vmatprep.subr.bf16.mxu0 0
      %2460 = vmatpush1.bf16.msra.mxu0 0
      %2461 = vmatprep.subr.bf16.mxu0 0
      %2462 = vmatpush1.bf16.msra.mxu0 0
      %2463 = vmatprep.subr.bf16.mxu0 0
      %2464 = vmatpush1.bf16.msra.mxu0 0
      %2465 = vmatprep.subr.bf16.mxu0 0
      %2466 = vmatpush1.bf16.msra.mxu0 0
      %2467 = vmatprep.subr.bf16.mxu0 0
      %2468 = vmatpush1.bf16.msra.mxu0 0
      %2469 = vmatprep.subr.bf16.mxu0 0
      %2470 = vmatpush1.bf16.msra.mxu0 0
      %2471 = vmatprep.subr.bf16.mxu0 0
      %2472 = vmatpush1.bf16.msra.mxu0 0
      %2473 = vmatprep.subr.bf16.mxu0 0
      %2474 = vmatpush1.bf16.msra.mxu0 0
      %2475 = vmatprep.subr.bf16.mxu0 0
      %2476 = vmatpush1.bf16.msra.mxu0 0
      %2477 = vmatprep.subr.bf16.mxu0 0
      %2478 = vmatpush1.bf16.msra.mxu0 0
      %2479 = vmatprep.subr.bf16.mxu0 0
      %2480 = vmatpush1.bf16.msra.mxu0 0
      %2481 = vmatprep.mubr.bf16.mxu0 0
      %2482 = vmatmul.mubr.bf16.gmra.mrb[0].mxu0 %v2447
      %v2483 = vpop.f32.mrb[0].mxu0
      %v2484 = vadd.f32 %v2419, %v2483
      %v2485 = vpop.f32.mrb[0].mxu0
      %v2486 = vpop.f32.mrb[0].mxu0
      %v2487 = vpop.f32.mrb[0].mxu0
      %2488 = vdwg.mxu0
      %v2489 = vadd.f32 %v2336, %v2484
      %v2490 = vld [vmem:[%s871] sm:$0x1]
      %v2491 = vld [vmem:[%s874] sm:$0x1]
      %v2492 = vsel %vm912, %v2489, 0.0
      %2493 = vadd.xlane.f32.xlu0 %v2492
      %v2494 = vpop.xlane.xlu0 %2493
      %v2495 = vmul.f32 %v2494, %v2312
      %v2496 = vsub.f32 %v2489, %v2495
      %v2497 = vmul.f32 %v2496, %v2496
      %v2498 = vsel %vm912, %v2497, 0.0
      %2499 = vadd.xlane.f32.xlu0 %v2498
      %v2500 = vpop.xlane.xlu0 %2499
      %v2501 = vmul.f32 %v2500, %v2312
      %v2502 = vadd.f32 %v2501, 1e-05
      %v2503 = vrsqrt.pop %v2502
      %v2504 = vmul.f32 %v2496, %v2503
      %v2506 = vlaneseq
      %v2507 = vshrl.u32 %v2506, 7
      %v2508 = vsub.s32 0, %v2507
      %v2509 = vrot.slane %v2490, %v2508
      %v2511 = vmul.f32 %v2504, %v2509
      %v2513 = vlaneseq
      %v2514 = vshrl.u32 %v2513, 7
      %v2515 = vsub.s32 0, %v2514
      %v2516 = vrot.slane %v2491, %v2515
      %v2518 = vadd.f32 %v2511, %v2516
      %2519 = vst.msk [vmem:[#allocation2] sm:$0xff] %vm912, %v2518
      %p2520 = scmp.eq.s32.totalorder %s35, 1
      // Predicated region
      $region101: #{transformer_translation_forward.3} parent=95 // pred_check
        %p2521 = pneg %p2520
      $region102: #{transformer_translation_forward.3} parent=95 // pred_check_branch
        %2523 = sbr.rel (%p2521) target = $region104
      $region103: #{transformer_translation_forward.3} parent=95 // pred_region
        %v2524 = vld [vmem:[%s17] sm:$0x1]
        %v2525 = vld [vmem:[%s18] sm:$0x1]
        %v2526 = vsel %vm912, %v2518, 0.0
        %2527 = vadd.xlane.f32.xlu0 %v2526
        %v2528 = vpop.xlane.xlu0 %2527
        %v2529 = vmul.f32 %v2528, %v2312
        %v2530 = vsub.f32 %v2518, %v2529
        %v2531 = vmul.f32 %v2530, %v2530
        %v2532 = vsel %vm912, %v2531, 0.0
        %2533 = vadd.xlane.f32.xlu0 %v2532
        %v2534 = vpop.xlane.xlu0 %2533
        %v2535 = vmul.f32 %v2534, %v2312
        %v2536 = vadd.f32 %v2535, 1e-05
        %v2537 = vrsqrt.pop %v2536
        %v2538 = vmul.f32 %v2530, %v2537
        %v2540 = vlaneseq
        %v2541 = vshrl.u32 %v2540, 7
        %v2542 = vsub.s32 0, %v2541
        %v2543 = vrot.slane %v2524, %v2542
        %v2545 = vmul.f32 %v2538, %v2543
        %v2547 = vlaneseq
        %v2548 = vshrl.u32 %v2547, 7
        %v2549 = vsub.s32 0, %v2548
        %v2550 = vrot.slane %v2525, %v2549
        %v2552 = vadd.f32 %v2545, %v2550
        %2553 = vst.msk [vmem:[%s878] sm:$0xff] %vm912, %v2552
      $region104: #{transformer_translation_forward.3} parent=95 // pred_fallthru
        _
      %p2554 = scmp.lt.s32.totalorder %s34, 1
      %s2555 = scalar_select %p2554, %s34, 1
      %s2556 = smul.addr %s2555, 8
      %s2557 = scalar_lea.vmem %s19, %s2556
      // Predicated region
      $region105: #{transformer_translation_forward.3} parent=95 // pred_check
        %p2558 = pneg %p544
      $region106: #{transformer_translation_forward.3} parent=95 // pred_check_branch
        %2560 = sbr.rel (%p2558) target = $region108
      $region107: #{transformer_translation_forward.3} parent=95 // pred_region
        _
      $region108: #{transformer_translation_forward.3} parent=95 // pred_fallthru
        _
    $region96: #{transformer_translation_forward.3} parent=5 // pred_fallthru
      _
    %p2561 = scmp.le.s32.totalorder 2, %s25
    // Predicated region
    $region109: #{transformer_translation_forward.3} parent=5 // pred_check
      %p2562 = pneg %p2561
    $region110: #{transformer_translation_forward.3} parent=5 // pred_check_branch
      %2564 = sbr.rel (%p2562) target = $region112
    $region111: #{transformer_translation_forward.3} parent=5 // pred_region
      %s2565 = ssub.s32 %s25, 2
      // Predicated region
      $region113: #{transformer_translation_forward.3} parent=111 // pred_check
        %p2566 = pneg %p550
      $region114: #{transformer_translation_forward.3} parent=111 // pred_check_branch
        %2568 = sbr.rel (%p2566) target = $region116
      $region115: #{transformer_translation_forward.3} parent=111 // pred_region
        %p2569 = scmp.lt.s32.totalorder %s36, 1
        %s2570 = scalar_select %p2569, %s36, 1
        %s2571 = smul.addr %s2570, 8
        %s2572 = scalar_lea.vmem %s19, %s2571
      $region116: #{transformer_translation_forward.3} parent=111 // pred_fallthru
        _
    $region112: #{transformer_translation_forward.3} parent=5 // pred_fallthru
      _
  $region6: #{transformer_translation_forward.3} parent=0 // loop_footer
    %s29 = sadd.s32 1, %s25
  $region7: #{transformer_translation_forward.3} parent=0 // loop_footer_branch
    %24 = sbr.rel target = $region3
  $region8: #{transformer_translation_forward.3} parent=0 // loop_exit
    _

// kernel: transformer_translation_forward.4
$region0: #{transformer_translation_forward.4}
  #allocation0 [shape = 'u32[]', space=smem, size = 0x4, offset = 0x4, fixed_abs, tag = 'smem constant byte address 0x4 - core index']
  #allocation1 [shape = 'u32[144,128]{1,0:T(1,128)}', space=vmem, size = 0x12000, scoped, tag = 'internal scratch']
  #allocation2 [shape = 'f32[8,32]{1,0:T(8,128)}', space=vmem, size = 0x1000, scoped, tag = 'scratch operand']
  %s0 = inlined_call_operand.vmem [shape: f32[2,8,32], index: 0, kind: input, shape index: {}]
  %s1 = inlined_call_operand.vmem [shape: f32[2,8,32], index: 1, kind: input, shape index: {}]
  %s2 = inlined_call_operand.vmem [shape: bf16[2,4,32,8], index: 2, kind: input, shape index: {}]
  %s3 = inlined_call_operand.vmem [shape: bf16[2,4,32,8], index: 3, kind: input, shape index: {}]
  %s4 = inlined_call_operand.vmem [shape: bf16[2,4,32,8], index: 4, kind: input, shape index: {}]
  %s5 = inlined_call_operand.vmem [shape: f32[2,4,1,8], index: 5, kind: input, shape index: {}]
  %s6 = inlined_call_operand.vmem [shape: f32[2,4,1,8], index: 6, kind: input, shape index: {}]
  %s7 = inlined_call_operand.vmem [shape: f32[2,4,1,8], index: 7, kind: input, shape index: {}]
  %s8 = inlined_call_operand.vmem [shape: bf16[2,4,8,32], index: 8, kind: input, shape index: {}]
  %s9 = inlined_call_operand.vmem [shape: f32[2,1,32], index: 9, kind: input, shape index: {}]
  %s10 = inlined_call_operand.vmem [shape: f32[2,1,32], index: 10, kind: input, shape index: {}]
  %s11 = inlined_call_operand.vmem [shape: f32[2,1,32], index: 11, kind: input, shape index: {}]
  %s12 = inlined_call_operand.vmem [shape: bf16[2,4,32,8], index: 12, kind: input, shape index: {}]
  %s13 = inlined_call_operand.vmem [shape: bf16[2,4,32,8], index: 13, kind: input, shape index: {}]
  %s14 = inlined_call_operand.vmem [shape: bf16[2,4,32,8], index: 14, kind: input, shape index: {}]
  %s15 = inlined_call_operand.vmem [shape: f32[2,4,1,8], index: 15, kind: input, shape index: {}]
  %s16 = inlined_call_operand.vmem [shape: f32[2,4,1,8], index: 16, kind: input, shape index: {}]
  %s17 = inlined_call_operand.vmem [shape: f32[2,4,1,8], index: 17, kind: input, shape index: {}]
  %s18 = inlined_call_operand.vmem [shape: bf16[2,4,8,32], index: 18, kind: input, shape index: {}]
  %s19 = inlined_call_operand.vmem [shape: f32[2,1,32], index: 19, kind: input, shape index: {}]
  %s20 = inlined_call_operand.vmem [shape: f32[2,1,32], index: 20, kind: input, shape index: {}]
  %s21 = inlined_call_operand.vmem [shape: f32[2,1,32], index: 21, kind: input, shape index: {}]
  %s22 = inlined_call_operand.vmem [shape: bf16[2,32,64], index: 22, kind: input, shape index: {}]
  %s23 = inlined_call_operand.vmem [shape: f32[2,1,64], index: 23, kind: input, shape index: {}]
  %s24 = inlined_call_operand.vmem [shape: bf16[2,64,32], index: 24, kind: input, shape index: {}]
  %s25 = inlined_call_operand.vmem [shape: f32[2,1,32], index: 25, kind: input, shape index: {}]
  %s26 = inlined_call_operand.vmem [shape: f32[2,1,32], index: 26, kind: input, shape index: {}]
  %s27 = inlined_call_operand.vmem [shape: f32[2,1,32], index: 27, kind: input, shape index: {}]
  %s28 = inlined_call_operand.vmem [shape: f32[2,8,32], index: 28, kind: output, shape index: {}]
  %s29 = sld [smem:[#allocation0]]
  $region149: #{transformer_translation_forward.4} parent=0
    _
  %s31 = ssub.s32 1, %s29
  %s32 = scalar_select 0, %s31, %s29
  loop: start=0, step=1, limit=6
  $region2: #{transformer_translation_forward.4} parent=0 // loop_pre_header
    _
  $region3: #{transformer_translation_forward.4} parent=0 // loop_header
    %s34 = sphi 0, %s38
    %p35 = scmp.ge.s32.totalorder %s34, 6
    %s41 = sphi 0, %s53
    %s42 = sphi 0, %s49
    %s43 = sphi 0, %s41
    %s44 = sphi 0, %s42
    %s45 = sphi 0, %s43
    %s46 = sphi 0, %s44
    %s56 = sphi 0, %s58
    %s59 = sphi 0, %s56
    %s60 = sphi 0, %s59
    %s76 = sphi 0, %s60
    %s82 = sphi 0, %s84
    %s85 = sphi 0, %s82
    %s86 = sphi 0, %s85
    %s102 = sphi 0, %s86
    %s108 = sphi 0, %s110
    %s111 = sphi 0, %s108
    %s112 = sphi 0, %s111
    %s128 = sphi 0, %s112
    %s134 = sphi 0, %s136
    %s137 = sphi 0, %s134
    %s138 = sphi 0, %s137
    %s154 = sphi 0, %s138
    %s160 = sphi 0, %s162
    %s163 = sphi 0, %s160
    %s164 = sphi 0, %s163
    %s180 = sphi 0, %s164
    %s186 = sphi 0, %s188
    %s189 = sphi 0, %s186
    %s190 = sphi 0, %s189
    %s206 = sphi 0, %s190
    %s212 = sphi 0, %s214
    %s215 = sphi 0, %s212
    %s216 = sphi 0, %s215
    %s232 = sphi 0, %s216
    %s238 = sphi 0, %s240
    %s241 = sphi 0, %s238
    %s242 = sphi 0, %s241
    %s258 = sphi 0, %s242
    %s264 = sphi 0, %s266
    %s267 = sphi 0, %s264
    %s268 = sphi 0, %s267
    %s284 = sphi 0, %s268
    %s290 = sphi 0, %s292
    %s293 = sphi 0, %s290
    %s294 = sphi 0, %s293
    %s310 = sphi 0, %s294
    %s316 = sphi 0, %s318
    %s319 = sphi 0, %s316
    %s320 = sphi 0, %s319
    %s336 = sphi 0, %s320
    %s342 = sphi 0, %s344
    %s345 = sphi 0, %s342
    %s346 = sphi 0, %s345
    %s362 = sphi 0, %s346
    %s368 = sphi 0, %s370
    %s371 = sphi 0, %s368
    %s372 = sphi 0, %s371
    %s388 = sphi 0, %s372
    %s394 = sphi 0, %s396
    %s397 = sphi 0, %s394
    %s398 = sphi 0, %s397
    %s414 = sphi 0, %s398
    %s420 = sphi 0, %s422
    %s423 = sphi 0, %s420
    %s424 = sphi 0, %s423
    %s440 = sphi 0, %s424
    %s446 = sphi 0, %s448
    %s449 = sphi 0, %s446
    %s450 = sphi 0, %s449
    %s466 = sphi 0, %s450
    %s472 = sphi 0, %s474
    %s475 = sphi 0, %s472
    %s476 = sphi 0, %s475
    %s492 = sphi 0, %s476
    %s498 = sphi 0, %s500
    %s501 = sphi 0, %s498
    %s502 = sphi 0, %s501
    %s518 = sphi 0, %s502
    %s524 = sphi 0, %s526
    %s527 = sphi 0, %s524
    %s528 = sphi 0, %s527
    %s544 = sphi 0, %s528
    %s550 = sphi 0, %s552
    %s553 = sphi 0, %s550
    %s554 = sphi 0, %s553
    %s570 = sphi 0, %s554
    %s576 = sphi 0, %s578
    %s579 = sphi 0, %s576
    %s580 = sphi 0, %s579
    %s596 = sphi 0, %s580
    %s602 = sphi 0, %s604
    %s605 = sphi 0, %s602
    %s606 = sphi 0, %s605
    %s622 = sphi 0, %s606
    %s628 = sphi 0, %s630
    %s631 = sphi 0, %s628
    %s632 = sphi 0, %s631
    %s648 = sphi 0, %s632
    %s654 = sphi 0, %s656
    %s657 = sphi 0, %s654
    %s658 = sphi 0, %s657
    %s674 = sphi 0, %s658
    %s680 = sphi 0, %s682
    %s683 = sphi 0, %s680
    %s684 = sphi 0, %s683
    %s700 = sphi 0, %s684
    %s706 = sphi 0, %s708
    %s709 = sphi 0, %s706
    %s710 = sphi 0, %s709
    %s726 = sphi 0, %s710
    %s732 = sphi 0, %s734
    %s735 = sphi 0, %s732
    %s736 = sphi 0, %s735
    %s752 = sphi 0, %s736
    %s758 = sphi 0, %s760
    %s761 = sphi 0, %s758
    %s762 = sphi 0, %s761
    %s778 = sphi 0, %s762
    %s784 = sphi 0, %s786
    %s787 = sphi 0, %s784
    %s788 = sphi 0, %s787
    %s804 = sphi 0, %s788
  $region4: #{transformer_translation_forward.4} parent=0 // loop_header_branch
    %37 = sbr.rel (%p35) target = $region8
  $region5: #{transformer_translation_forward.4} parent=0 // loop_body
    %s39 = ssub.s32 %s34, 1
    %s40 = ssub.s32 %s34, 2
    %s47 = sadd.s32 1, %s42
    %p48 = scmp.ge.s32.totalorder %s47, 2
    %s49 = scalar_select %p48, 0, %s47
    %s50 = sadd.s32 1, %s41
    %s51 = scalar_select %p48, %s50, %s41
    %p52 = scmp.ge.s32.totalorder %s51, 2
    %s53 = scalar_select %p52, 0, %s51
    %s54 = ssub.s32 %s41, %s53
    %p55 = scmp.eq.s32.totalorder %s54, 0
    %s57 = sadd.s32 %s56, 1
    %s58 = scalar_select %p55, %s56, %s57
    %p61 = pneg %p55
    %p62 = scmp.eq.s32.totalorder %s34, 3
    %p63 = por %p61, %p62
    %p64 = scmp.ne.s32.totalorder %s56, %s59
    %p65 = scmp.eq.s32.totalorder %s34, 0
    %p66 = por %p64, %p65
    %p67 = scmp.ne.s32.totalorder %s56, %s59
    %p68 = scmp.eq.s32.totalorder %s39, 3
    %p69 = por %p67, %p68
    %p70 = scmp.ne.s32.totalorder %s59, %s60
    %p71 = scmp.eq.s32.totalorder %s39, 0
    %p72 = por %p70, %p71
    %p73 = scmp.ne.s32.totalorder %s59, %s60
    %p74 = scmp.eq.s32.totalorder %s40, 3
    %p75 = por %p73, %p74
    %p77 = scmp.ne.s32.totalorder %s60, %s76
    %p78 = scmp.eq.s32.totalorder %s40, 0
    %p79 = por %p77, %p78
    %s80 = ssub.s32 %s41, %s53
    %p81 = scmp.eq.s32.totalorder %s80, 0
    %s83 = sadd.s32 %s82, 1
    %s84 = scalar_select %p81, %s82, %s83
    %p87 = pneg %p81
    %p88 = scmp.eq.s32.totalorder %s34, 3
    %p89 = por %p87, %p88
    %p90 = scmp.ne.s32.totalorder %s82, %s85
    %p91 = scmp.eq.s32.totalorder %s34, 0
    %p92 = por %p90, %p91
    %p93 = scmp.ne.s32.totalorder %s82, %s85
    %p94 = scmp.eq.s32.totalorder %s39, 3
    %p95 = por %p93, %p94
    %p96 = scmp.ne.s32.totalorder %s85, %s86
    %p97 = scmp.eq.s32.totalorder %s39, 0
    %p98 = por %p96, %p97
    %p99 = scmp.ne.s32.totalorder %s85, %s86
    %p100 = scmp.eq.s32.totalorder %s40, 3
    %p101 = por %p99, %p100
    %p103 = scmp.ne.s32.totalorder %s86, %s102
    %p104 = scmp.eq.s32.totalorder %s40, 0
    %p105 = por %p103, %p104
    %s106 = ssub.s32 %s42, %s49
    %p107 = scmp.eq.s32.totalorder %s106, 0
    %s109 = sadd.s32 %s108, 1
    %s110 = scalar_select %p107, %s108, %s109
    %p113 = pneg %p107
    %p114 = scmp.eq.s32.totalorder %s34, 3
    %p115 = por %p113, %p114
    %p116 = scmp.ne.s32.totalorder %s108, %s111
    %p117 = scmp.eq.s32.totalorder %s34, 0
    %p118 = por %p116, %p117
    %p119 = scmp.ne.s32.totalorder %s108, %s111
    %p120 = scmp.eq.s32.totalorder %s39, 3
    %p121 = por %p119, %p120
    %p122 = scmp.ne.s32.totalorder %s111, %s112
    %p123 = scmp.eq.s32.totalorder %s39, 0
    %p124 = por %p122, %p123
    %p125 = scmp.ne.s32.totalorder %s111, %s112
    %p126 = scmp.eq.s32.totalorder %s40, 3
    %p127 = por %p125, %p126
    %p129 = scmp.ne.s32.totalorder %s112, %s128
    %p130 = scmp.eq.s32.totalorder %s40, 0
    %p131 = por %p129, %p130
    %s132 = ssub.s32 %s42, %s49
    %p133 = scmp.eq.s32.totalorder %s132, 0
    %s135 = sadd.s32 %s134, 1
    %s136 = scalar_select %p133, %s134, %s135
    %p139 = pneg %p133
    %p140 = scmp.eq.s32.totalorder %s34, 3
    %p141 = por %p139, %p140
    %p142 = scmp.ne.s32.totalorder %s134, %s137
    %p143 = scmp.eq.s32.totalorder %s34, 0
    %p144 = por %p142, %p143
    %p145 = scmp.ne.s32.totalorder %s134, %s137
    %p146 = scmp.eq.s32.totalorder %s39, 3
    %p147 = por %p145, %p146
    %p148 = scmp.ne.s32.totalorder %s137, %s138
    %p149 = scmp.eq.s32.totalorder %s39, 0
    %p150 = por %p148, %p149
    %p151 = scmp.ne.s32.totalorder %s137, %s138
    %p152 = scmp.eq.s32.totalorder %s40, 3
    %p153 = por %p151, %p152
    %p155 = scmp.ne.s32.totalorder %s138, %s154
    %p156 = scmp.eq.s32.totalorder %s40, 0
    %p157 = por %p155, %p156
    %s158 = ssub.s32 %s42, %s49
    %p159 = scmp.eq.s32.totalorder %s158, 0
    %s161 = sadd.s32 %s160, 1
    %s162 = scalar_select %p159, %s160, %s161
    %p165 = pneg %p159
    %p166 = scmp.eq.s32.totalorder %s34, 3
    %p167 = por %p165, %p166
    %p168 = scmp.ne.s32.totalorder %s160, %s163
    %p169 = scmp.eq.s32.totalorder %s34, 0
    %p170 = por %p168, %p169
    %p171 = scmp.ne.s32.totalorder %s160, %s163
    %p172 = scmp.eq.s32.totalorder %s39, 3
    %p173 = por %p171, %p172
    %p174 = scmp.ne.s32.totalorder %s163, %s164
    %p175 = scmp.eq.s32.totalorder %s39, 0
    %p176 = por %p174, %p175
    %p177 = scmp.ne.s32.totalorder %s163, %s164
    %p178 = scmp.eq.s32.totalorder %s40, 3
    %p179 = por %p177, %p178
    %p181 = scmp.ne.s32.totalorder %s164, %s180
    %p182 = scmp.eq.s32.totalorder %s40, 0
    %p183 = por %p181, %p182
    %s184 = ssub.s32 %s42, %s49
    %p185 = scmp.eq.s32.totalorder %s184, 0
    %s187 = sadd.s32 %s186, 1
    %s188 = scalar_select %p185, %s186, %s187
    %p191 = pneg %p185
    %p192 = scmp.eq.s32.totalorder %s34, 3
    %p193 = por %p191, %p192
    %p194 = scmp.ne.s32.totalorder %s186, %s189
    %p195 = scmp.eq.s32.totalorder %s34, 0
    %p196 = por %p194, %p195
    %p197 = scmp.ne.s32.totalorder %s186, %s189
    %p198 = scmp.eq.s32.totalorder %s39, 3
    %p199 = por %p197, %p198
    %p200 = scmp.ne.s32.totalorder %s189, %s190
    %p201 = scmp.eq.s32.totalorder %s39, 0
    %p202 = por %p200, %p201
    %p203 = scmp.ne.s32.totalorder %s189, %s190
    %p204 = scmp.eq.s32.totalorder %s40, 3
    %p205 = por %p203, %p204
    %p207 = scmp.ne.s32.totalorder %s190, %s206
    %p208 = scmp.eq.s32.totalorder %s40, 0
    %p209 = por %p207, %p208
    %s210 = ssub.s32 %s42, %s49
    %p211 = scmp.eq.s32.totalorder %s210, 0
    %s213 = sadd.s32 %s212, 1
    %s214 = scalar_select %p211, %s212, %s213
    %p217 = pneg %p211
    %p218 = scmp.eq.s32.totalorder %s34, 3
    %p219 = por %p217, %p218
    %p220 = scmp.ne.s32.totalorder %s212, %s215
    %p221 = scmp.eq.s32.totalorder %s34, 0
    %p222 = por %p220, %p221
    %p223 = scmp.ne.s32.totalorder %s212, %s215
    %p224 = scmp.eq.s32.totalorder %s39, 3
    %p225 = por %p223, %p224
    %p226 = scmp.ne.s32.totalorder %s215, %s216
    %p227 = scmp.eq.s32.totalorder %s39, 0
    %p228 = por %p226, %p227
    %p229 = scmp.ne.s32.totalorder %s215, %s216
    %p230 = scmp.eq.s32.totalorder %s40, 3
    %p231 = por %p229, %p230
    %p233 = scmp.ne.s32.totalorder %s216, %s232
    %p234 = scmp.eq.s32.totalorder %s40, 0
    %p235 = por %p233, %p234
    %s236 = ssub.s32 %s42, %s49
    %p237 = scmp.eq.s32.totalorder %s236, 0
    %s239 = sadd.s32 %s238, 1
    %s240 = scalar_select %p237, %s238, %s239
    %p243 = pneg %p237
    %p244 = scmp.eq.s32.totalorder %s34, 3
    %p245 = por %p243, %p244
    %p246 = scmp.ne.s32.totalorder %s238, %s241
    %p247 = scmp.eq.s32.totalorder %s34, 0
    %p248 = por %p246, %p247
    %p249 = scmp.ne.s32.totalorder %s238, %s241
    %p250 = scmp.eq.s32.totalorder %s39, 3
    %p251 = por %p249, %p250
    %p252 = scmp.ne.s32.totalorder %s241, %s242
    %p253 = scmp.eq.s32.totalorder %s39, 0
    %p254 = por %p252, %p253
    %p255 = scmp.ne.s32.totalorder %s241, %s242
    %p256 = scmp.eq.s32.totalorder %s40, 3
    %p257 = por %p255, %p256
    %p259 = scmp.ne.s32.totalorder %s242, %s258
    %p260 = scmp.eq.s32.totalorder %s40, 0
    %p261 = por %p259, %p260
    %s262 = ssub.s32 %s42, %s49
    %p263 = scmp.eq.s32.totalorder %s262, 0
    %s265 = sadd.s32 %s264, 1
    %s266 = scalar_select %p263, %s264, %s265
    %p269 = pneg %p263
    %p270 = scmp.eq.s32.totalorder %s34, 3
    %p271 = por %p269, %p270
    %p272 = scmp.ne.s32.totalorder %s264, %s267
    %p273 = scmp.eq.s32.totalorder %s34, 0
    %p274 = por %p272, %p273
    %p275 = scmp.ne.s32.totalorder %s264, %s267
    %p276 = scmp.eq.s32.totalorder %s39, 3
    %p277 = por %p275, %p276
    %p278 = scmp.ne.s32.totalorder %s267, %s268
    %p279 = scmp.eq.s32.totalorder %s39, 0
    %p280 = por %p278, %p279
    %p281 = scmp.ne.s32.totalorder %s267, %s268
    %p282 = scmp.eq.s32.totalorder %s40, 3
    %p283 = por %p281, %p282
    %p285 = scmp.ne.s32.totalorder %s268, %s284
    %p286 = scmp.eq.s32.totalorder %s40, 0
    %p287 = por %p285, %p286
    %s288 = ssub.s32 %s42, %s49
    %p289 = scmp.eq.s32.totalorder %s288, 0
    %s291 = sadd.s32 %s290, 1
    %s292 = scalar_select %p289, %s290, %s291
    %p295 = pneg %p289
    %p296 = scmp.eq.s32.totalorder %s34, 3
    %p297 = por %p295, %p296
    %p298 = scmp.ne.s32.totalorder %s290, %s293
    %p299 = scmp.eq.s32.totalorder %s34, 0
    %p300 = por %p298, %p299
    %p301 = scmp.ne.s32.totalorder %s290, %s293
    %p302 = scmp.eq.s32.totalorder %s39, 3
    %p303 = por %p301, %p302
    %p304 = scmp.ne.s32.totalorder %s293, %s294
    %p305 = scmp.eq.s32.totalorder %s39, 0
    %p306 = por %p304, %p305
    %p307 = scmp.ne.s32.totalorder %s293, %s294
    %p308 = scmp.eq.s32.totalorder %s40, 3
    %p309 = por %p307, %p308
    %p311 = scmp.ne.s32.totalorder %s294, %s310
    %p312 = scmp.eq.s32.totalorder %s40, 0
    %p313 = por %p311, %p312
    %s314 = ssub.s32 %s42, %s49
    %p315 = scmp.eq.s32.totalorder %s314, 0
    %s317 = sadd.s32 %s316, 1
    %s318 = scalar_select %p315, %s316, %s317
    %p321 = pneg %p315
    %p322 = scmp.eq.s32.totalorder %s34, 3
    %p323 = por %p321, %p322
    %p324 = scmp.ne.s32.totalorder %s316, %s319
    %p325 = scmp.eq.s32.totalorder %s34, 0
    %p326 = por %p324, %p325
    %p327 = scmp.ne.s32.totalorder %s316, %s319
    %p328 = scmp.eq.s32.totalorder %s39, 3
    %p329 = por %p327, %p328
    %p330 = scmp.ne.s32.totalorder %s319, %s320
    %p331 = scmp.eq.s32.totalorder %s39, 0
    %p332 = por %p330, %p331
    %p333 = scmp.ne.s32.totalorder %s319, %s320
    %p334 = scmp.eq.s32.totalorder %s40, 3
    %p335 = por %p333, %p334
    %p337 = scmp.ne.s32.totalorder %s320, %s336
    %p338 = scmp.eq.s32.totalorder %s40, 0
    %p339 = por %p337, %p338
    %s340 = ssub.s32 %s42, %s49
    %p341 = scmp.eq.s32.totalorder %s340, 0
    %s343 = sadd.s32 %s342, 1
    %s344 = scalar_select %p341, %s342, %s343
    %p347 = pneg %p341
    %p348 = scmp.eq.s32.totalorder %s34, 3
    %p349 = por %p347, %p348
    %p350 = scmp.ne.s32.totalorder %s342, %s345
    %p351 = scmp.eq.s32.totalorder %s34, 0
    %p352 = por %p350, %p351
    %p353 = scmp.ne.s32.totalorder %s342, %s345
    %p354 = scmp.eq.s32.totalorder %s39, 3
    %p355 = por %p353, %p354
    %p356 = scmp.ne.s32.totalorder %s345, %s346
    %p357 = scmp.eq.s32.totalorder %s39, 0
    %p358 = por %p356, %p357
    %p359 = scmp.ne.s32.totalorder %s345, %s346
    %p360 = scmp.eq.s32.totalorder %s40, 3
    %p361 = por %p359, %p360
    %p363 = scmp.ne.s32.totalorder %s346, %s362
    %p364 = scmp.eq.s32.totalorder %s40, 0
    %p365 = por %p363, %p364
    %s366 = ssub.s32 %s42, %s49
    %p367 = scmp.eq.s32.totalorder %s366, 0
    %s369 = sadd.s32 %s368, 1
    %s370 = scalar_select %p367, %s368, %s369
    %p373 = pneg %p367
    %p374 = scmp.eq.s32.totalorder %s34, 3
    %p375 = por %p373, %p374
    %p376 = scmp.ne.s32.totalorder %s368, %s371
    %p377 = scmp.eq.s32.totalorder %s34, 0
    %p378 = por %p376, %p377
    %p379 = scmp.ne.s32.totalorder %s368, %s371
    %p380 = scmp.eq.s32.totalorder %s39, 3
    %p381 = por %p379, %p380
    %p382 = scmp.ne.s32.totalorder %s371, %s372
    %p383 = scmp.eq.s32.totalorder %s39, 0
    %p384 = por %p382, %p383
    %p385 = scmp.ne.s32.totalorder %s371, %s372
    %p386 = scmp.eq.s32.totalorder %s40, 3
    %p387 = por %p385, %p386
    %p389 = scmp.ne.s32.totalorder %s372, %s388
    %p390 = scmp.eq.s32.totalorder %s40, 0
    %p391 = por %p389, %p390
    %s392 = ssub.s32 %s42, %s49
    %p393 = scmp.eq.s32.totalorder %s392, 0
    %s395 = sadd.s32 %s394, 1
    %s396 = scalar_select %p393, %s394, %s395
    %p399 = pneg %p393
    %p400 = scmp.eq.s32.totalorder %s34, 3
    %p401 = por %p399, %p400
    %p402 = scmp.ne.s32.totalorder %s394, %s397
    %p403 = scmp.eq.s32.totalorder %s34, 0
    %p404 = por %p402, %p403
    %p405 = scmp.ne.s32.totalorder %s394, %s397
    %p406 = scmp.eq.s32.totalorder %s39, 3
    %p407 = por %p405, %p406
    %p408 = scmp.ne.s32.totalorder %s397, %s398
    %p409 = scmp.eq.s32.totalorder %s39, 0
    %p410 = por %p408, %p409
    %p411 = scmp.ne.s32.totalorder %s397, %s398
    %p412 = scmp.eq.s32.totalorder %s40, 3
    %p413 = por %p411, %p412
    %p415 = scmp.ne.s32.totalorder %s398, %s414
    %p416 = scmp.eq.s32.totalorder %s40, 0
    %p417 = por %p415, %p416
    %s418 = ssub.s32 %s42, %s49
    %p419 = scmp.eq.s32.totalorder %s418, 0
    %s421 = sadd.s32 %s420, 1
    %s422 = scalar_select %p419, %s420, %s421
    %p425 = pneg %p419
    %p426 = scmp.eq.s32.totalorder %s34, 3
    %p427 = por %p425, %p426
    %p428 = scmp.ne.s32.totalorder %s420, %s423
    %p429 = scmp.eq.s32.totalorder %s34, 0
    %p430 = por %p428, %p429
    %p431 = scmp.ne.s32.totalorder %s420, %s423
    %p432 = scmp.eq.s32.totalorder %s39, 3
    %p433 = por %p431, %p432
    %p434 = scmp.ne.s32.totalorder %s423, %s424
    %p435 = scmp.eq.s32.totalorder %s39, 0
    %p436 = por %p434, %p435
    %p437 = scmp.ne.s32.totalorder %s423, %s424
    %p438 = scmp.eq.s32.totalorder %s40, 3
    %p439 = por %p437, %p438
    %p441 = scmp.ne.s32.totalorder %s424, %s440
    %p442 = scmp.eq.s32.totalorder %s40, 0
    %p443 = por %p441, %p442
    %s444 = ssub.s32 %s42, %s49
    %p445 = scmp.eq.s32.totalorder %s444, 0
    %s447 = sadd.s32 %s446, 1
    %s448 = scalar_select %p445, %s446, %s447
    %p451 = pneg %p445
    %p452 = scmp.eq.s32.totalorder %s34, 3
    %p453 = por %p451, %p452
    %p454 = scmp.ne.s32.totalorder %s446, %s449
    %p455 = scmp.eq.s32.totalorder %s34, 0
    %p456 = por %p454, %p455
    %p457 = scmp.ne.s32.totalorder %s446, %s449
    %p458 = scmp.eq.s32.totalorder %s39, 3
    %p459 = por %p457, %p458
    %p460 = scmp.ne.s32.totalorder %s449, %s450
    %p461 = scmp.eq.s32.totalorder %s39, 0
    %p462 = por %p460, %p461
    %p463 = scmp.ne.s32.totalorder %s449, %s450
    %p464 = scmp.eq.s32.totalorder %s40, 3
    %p465 = por %p463, %p464
    %p467 = scmp.ne.s32.totalorder %s450, %s466
    %p468 = scmp.eq.s32.totalorder %s40, 0
    %p469 = por %p467, %p468
    %s470 = ssub.s32 %s42, %s49
    %p471 = scmp.eq.s32.totalorder %s470, 0
    %s473 = sadd.s32 %s472, 1
    %s474 = scalar_select %p471, %s472, %s473
    %p477 = pneg %p471
    %p478 = scmp.eq.s32.totalorder %s34, 3
    %p479 = por %p477, %p478
    %p480 = scmp.ne.s32.totalorder %s472, %s475
    %p481 = scmp.eq.s32.totalorder %s34, 0
    %p482 = por %p480, %p481
    %p483 = scmp.ne.s32.totalorder %s472, %s475
    %p484 = scmp.eq.s32.totalorder %s39, 3
    %p485 = por %p483, %p484
    %p486 = scmp.ne.s32.totalorder %s475, %s476
    %p487 = scmp.eq.s32.totalorder %s39, 0
    %p488 = por %p486, %p487
    %p489 = scmp.ne.s32.totalorder %s475, %s476
    %p490 = scmp.eq.s32.totalorder %s40, 3
    %p491 = por %p489, %p490
    %p493 = scmp.ne.s32.totalorder %s476, %s492
    %p494 = scmp.eq.s32.totalorder %s40, 0
    %p495 = por %p493, %p494
    %s496 = ssub.s32 %s42, %s49
    %p497 = scmp.eq.s32.totalorder %s496, 0
    %s499 = sadd.s32 %s498, 1
    %s500 = scalar_select %p497, %s498, %s499
    %p503 = pneg %p497
    %p504 = scmp.eq.s32.totalorder %s34, 3
    %p505 = por %p503, %p504
    %p506 = scmp.ne.s32.totalorder %s498, %s501
    %p507 = scmp.eq.s32.totalorder %s34, 0
    %p508 = por %p506, %p507
    %p509 = scmp.ne.s32.totalorder %s498, %s501
    %p510 = scmp.eq.s32.totalorder %s39, 3
    %p511 = por %p509, %p510
    %p512 = scmp.ne.s32.totalorder %s501, %s502
    %p513 = scmp.eq.s32.totalorder %s39, 0
    %p514 = por %p512, %p513
    %p515 = scmp.ne.s32.totalorder %s501, %s502
    %p516 = scmp.eq.s32.totalorder %s40, 3
    %p517 = por %p515, %p516
    %p519 = scmp.ne.s32.totalorder %s502, %s518
    %p520 = scmp.eq.s32.totalorder %s40, 0
    %p521 = por %p519, %p520
    %s522 = ssub.s32 %s42, %s49
    %p523 = scmp.eq.s32.totalorder %s522, 0
    %s525 = sadd.s32 %s524, 1
    %s526 = scalar_select %p523, %s524, %s525
    %p529 = pneg %p523
    %p530 = scmp.eq.s32.totalorder %s34, 3
    %p531 = por %p529, %p530
    %p532 = scmp.ne.s32.totalorder %s524, %s527
    %p533 = scmp.eq.s32.totalorder %s34, 0
    %p534 = por %p532, %p533
    %p535 = scmp.ne.s32.totalorder %s524, %s527
    %p536 = scmp.eq.s32.totalorder %s39, 3
    %p537 = por %p535, %p536
    %p538 = scmp.ne.s32.totalorder %s527, %s528
    %p539 = scmp.eq.s32.totalorder %s39, 0
    %p540 = por %p538, %p539
    %p541 = scmp.ne.s32.totalorder %s527, %s528
    %p542 = scmp.eq.s32.totalorder %s40, 3
    %p543 = por %p541, %p542
    %p545 = scmp.ne.s32.totalorder %s528, %s544
    %p546 = scmp.eq.s32.totalorder %s40, 0
    %p547 = por %p545, %p546
    %s548 = ssub.s32 %s42, %s49
    %p549 = scmp.eq.s32.totalorder %s548, 0
    %s551 = sadd.s32 %s550, 1
    %s552 = scalar_select %p549, %s550, %s551
    %p555 = pneg %p549
    %p556 = scmp.eq.s32.totalorder %s34, 3
    %p557 = por %p555, %p556
    %p558 = scmp.ne.s32.totalorder %s550, %s553
    %p559 = scmp.eq.s32.totalorder %s34, 0
    %p560 = por %p558, %p559
    %p561 = scmp.ne.s32.totalorder %s550, %s553
    %p562 = scmp.eq.s32.totalorder %s39, 3
    %p563 = por %p561, %p562
    %p564 = scmp.ne.s32.totalorder %s553, %s554
    %p565 = scmp.eq.s32.totalorder %s39, 0
    %p566 = por %p564, %p565
    %p567 = scmp.ne.s32.totalorder %s553, %s554
    %p568 = scmp.eq.s32.totalorder %s40, 3
    %p569 = por %p567, %p568
    %p571 = scmp.ne.s32.totalorder %s554, %s570
    %p572 = scmp.eq.s32.totalorder %s40, 0
    %p573 = por %p571, %p572
    %s574 = ssub.s32 %s42, %s49
    %p575 = scmp.eq.s32.totalorder %s574, 0
    %s577 = sadd.s32 %s576, 1
    %s578 = scalar_select %p575, %s576, %s577
    %p581 = pneg %p575
    %p582 = scmp.eq.s32.totalorder %s34, 3
    %p583 = por %p581, %p582
    %p584 = scmp.ne.s32.totalorder %s576, %s579
    %p585 = scmp.eq.s32.totalorder %s34, 0
    %p586 = por %p584, %p585
    %p587 = scmp.ne.s32.totalorder %s576, %s579
    %p588 = scmp.eq.s32.totalorder %s39, 3
    %p589 = por %p587, %p588
    %p590 = scmp.ne.s32.totalorder %s579, %s580
    %p591 = scmp.eq.s32.totalorder %s39, 0
    %p592 = por %p590, %p591
    %p593 = scmp.ne.s32.totalorder %s579, %s580
    %p594 = scmp.eq.s32.totalorder %s40, 3
    %p595 = por %p593, %p594
    %p597 = scmp.ne.s32.totalorder %s580, %s596
    %p598 = scmp.eq.s32.totalorder %s40, 0
    %p599 = por %p597, %p598
    %s600 = ssub.s32 %s42, %s49
    %p601 = scmp.eq.s32.totalorder %s600, 0
    %s603 = sadd.s32 %s602, 1
    %s604 = scalar_select %p601, %s602, %s603
    %p607 = pneg %p601
    %p608 = scmp.eq.s32.totalorder %s34, 3
    %p609 = por %p607, %p608
    %p610 = scmp.ne.s32.totalorder %s602, %s605
    %p611 = scmp.eq.s32.totalorder %s34, 0
    %p612 = por %p610, %p611
    %p613 = scmp.ne.s32.totalorder %s602, %s605
    %p614 = scmp.eq.s32.totalorder %s39, 3
    %p615 = por %p613, %p614
    %p616 = scmp.ne.s32.totalorder %s605, %s606
    %p617 = scmp.eq.s32.totalorder %s39, 0
    %p618 = por %p616, %p617
    %p619 = scmp.ne.s32.totalorder %s605, %s606
    %p620 = scmp.eq.s32.totalorder %s40, 3
    %p621 = por %p619, %p620
    %p623 = scmp.ne.s32.totalorder %s606, %s622
    %p624 = scmp.eq.s32.totalorder %s40, 0
    %p625 = por %p623, %p624
    %s626 = ssub.s32 %s42, %s49
    %p627 = scmp.eq.s32.totalorder %s626, 0
    %s629 = sadd.s32 %s628, 1
    %s630 = scalar_select %p627, %s628, %s629
    %p633 = pneg %p627
    %p634 = scmp.eq.s32.totalorder %s34, 3
    %p635 = por %p633, %p634
    %p636 = scmp.ne.s32.totalorder %s628, %s631
    %p637 = scmp.eq.s32.totalorder %s34, 0
    %p638 = por %p636, %p637
    %p639 = scmp.ne.s32.totalorder %s628, %s631
    %p640 = scmp.eq.s32.totalorder %s39, 3
    %p641 = por %p639, %p640
    %p642 = scmp.ne.s32.totalorder %s631, %s632
    %p643 = scmp.eq.s32.totalorder %s39, 0
    %p644 = por %p642, %p643
    %p645 = scmp.ne.s32.totalorder %s631, %s632
    %p646 = scmp.eq.s32.totalorder %s40, 3
    %p647 = por %p645, %p646
    %p649 = scmp.ne.s32.totalorder %s632, %s648
    %p650 = scmp.eq.s32.totalorder %s40, 0
    %p651 = por %p649, %p650
    %s652 = ssub.s32 %s42, %s49
    %p653 = scmp.eq.s32.totalorder %s652, 0
    %s655 = sadd.s32 %s654, 1
    %s656 = scalar_select %p653, %s654, %s655
    %p659 = pneg %p653
    %p660 = scmp.eq.s32.totalorder %s34, 3
    %p661 = por %p659, %p660
    %p662 = scmp.ne.s32.totalorder %s654, %s657
    %p663 = scmp.eq.s32.totalorder %s34, 0
    %p664 = por %p662, %p663
    %p665 = scmp.ne.s32.totalorder %s654, %s657
    %p666 = scmp.eq.s32.totalorder %s39, 3
    %p667 = por %p665, %p666
    %p668 = scmp.ne.s32.totalorder %s657, %s658
    %p669 = scmp.eq.s32.totalorder %s39, 0
    %p670 = por %p668, %p669
    %p671 = scmp.ne.s32.totalorder %s657, %s658
    %p672 = scmp.eq.s32.totalorder %s40, 3
    %p673 = por %p671, %p672
    %p675 = scmp.ne.s32.totalorder %s658, %s674
    %p676 = scmp.eq.s32.totalorder %s40, 0
    %p677 = por %p675, %p676
    %s678 = ssub.s32 %s42, %s49
    %p679 = scmp.eq.s32.totalorder %s678, 0
    %s681 = sadd.s32 %s680, 1
    %s682 = scalar_select %p679, %s680, %s681
    %p685 = pneg %p679
    %p686 = scmp.eq.s32.totalorder %s34, 3
    %p687 = por %p685, %p686
    %p688 = scmp.ne.s32.totalorder %s680, %s683
    %p689 = scmp.eq.s32.totalorder %s34, 0
    %p690 = por %p688, %p689
    %p691 = scmp.ne.s32.totalorder %s680, %s683
    %p692 = scmp.eq.s32.totalorder %s39, 3
    %p693 = por %p691, %p692
    %p694 = scmp.ne.s32.totalorder %s683, %s684
    %p695 = scmp.eq.s32.totalorder %s39, 0
    %p696 = por %p694, %p695
    %p697 = scmp.ne.s32.totalorder %s683, %s684
    %p698 = scmp.eq.s32.totalorder %s40, 3
    %p699 = por %p697, %p698
    %p701 = scmp.ne.s32.totalorder %s684, %s700
    %p702 = scmp.eq.s32.totalorder %s40, 0
    %p703 = por %p701, %p702
    %s704 = ssub.s32 %s42, %s49
    %p705 = scmp.eq.s32.totalorder %s704, 0
    %s707 = sadd.s32 %s706, 1
    %s708 = scalar_select %p705, %s706, %s707
    %p711 = pneg %p705
    %p712 = scmp.eq.s32.totalorder %s34, 3
    %p713 = por %p711, %p712
    %p714 = scmp.ne.s32.totalorder %s706, %s709
    %p715 = scmp.eq.s32.totalorder %s34, 0
    %p716 = por %p714, %p715
    %p717 = scmp.ne.s32.totalorder %s706, %s709
    %p718 = scmp.eq.s32.totalorder %s39, 3
    %p719 = por %p717, %p718
    %p720 = scmp.ne.s32.totalorder %s709, %s710
    %p721 = scmp.eq.s32.totalorder %s39, 0
    %p722 = por %p720, %p721
    %p723 = scmp.ne.s32.totalorder %s709, %s710
    %p724 = scmp.eq.s32.totalorder %s40, 3
    %p725 = por %p723, %p724
    %p727 = scmp.ne.s32.totalorder %s710, %s726
    %p728 = scmp.eq.s32.totalorder %s40, 0
    %p729 = por %p727, %p728
    %s730 = ssub.s32 %s42, %s49
    %p731 = scmp.eq.s32.totalorder %s730, 0
    %s733 = sadd.s32 %s732, 1
    %s734 = scalar_select %p731, %s732, %s733
    %p737 = pneg %p731
    %p738 = scmp.eq.s32.totalorder %s34, 3
    %p739 = por %p737, %p738
    %p740 = scmp.ne.s32.totalorder %s732, %s735
    %p741 = scmp.eq.s32.totalorder %s34, 0
    %p742 = por %p740, %p741
    %p743 = scmp.ne.s32.totalorder %s732, %s735
    %p744 = scmp.eq.s32.totalorder %s39, 3
    %p745 = por %p743, %p744
    %p746 = scmp.ne.s32.totalorder %s735, %s736
    %p747 = scmp.eq.s32.totalorder %s39, 0
    %p748 = por %p746, %p747
    %p749 = scmp.ne.s32.totalorder %s735, %s736
    %p750 = scmp.eq.s32.totalorder %s40, 3
    %p751 = por %p749, %p750
    %p753 = scmp.ne.s32.totalorder %s736, %s752
    %p754 = scmp.eq.s32.totalorder %s40, 0
    %p755 = por %p753, %p754
    %s756 = ssub.s32 %s42, %s49
    %p757 = scmp.eq.s32.totalorder %s756, 0
    %s759 = sadd.s32 %s758, 1
    %s760 = scalar_select %p757, %s758, %s759
    %p763 = pneg %p757
    %p764 = scmp.eq.s32.totalorder %s34, 3
    %p765 = por %p763, %p764
    %p766 = scmp.ne.s32.totalorder %s758, %s761
    %p767 = scmp.eq.s32.totalorder %s34, 0
    %p768 = por %p766, %p767
    %p769 = scmp.ne.s32.totalorder %s758, %s761
    %p770 = scmp.eq.s32.totalorder %s39, 3
    %p771 = por %p769, %p770
    %p772 = scmp.ne.s32.totalorder %s761, %s762
    %p773 = scmp.eq.s32.totalorder %s39, 0
    %p774 = por %p772, %p773
    %p775 = scmp.ne.s32.totalorder %s761, %s762
    %p776 = scmp.eq.s32.totalorder %s40, 3
    %p777 = por %p775, %p776
    %p779 = scmp.ne.s32.totalorder %s762, %s778
    %p780 = scmp.eq.s32.totalorder %s40, 0
    %p781 = por %p779, %p780
    %s782 = ssub.s32 %s41, %s53
    %p783 = scmp.eq.s32.totalorder %s782, 0
    %s785 = sadd.s32 %s784, 1
    %s786 = scalar_select %p783, %s784, %s785
    %p789 = pneg %p783
    %p790 = scmp.eq.s32.totalorder %s34, 3
    %p791 = por %p789, %p790
    %p792 = scmp.ne.s32.totalorder %s784, %s787
    %p793 = scmp.eq.s32.totalorder %s34, 0
    %p794 = por %p792, %p793
    %p795 = scmp.ne.s32.totalorder %s784, %s787
    %p796 = scmp.eq.s32.totalorder %s39, 3
    %p797 = por %p795, %p796
    %p798 = scmp.ne.s32.totalorder %s787, %s788
    %p799 = scmp.eq.s32.totalorder %s39, 0
    %p800 = por %p798, %p799
    %p801 = scmp.ne.s32.totalorder %s787, %s788
    %p802 = scmp.eq.s32.totalorder %s40, 3
    %p803 = por %p801, %p802
    %p805 = scmp.ne.s32.totalorder %s788, %s804
    %p806 = scmp.eq.s32.totalorder %s40, 0
    %p807 = por %p805, %p806
    %p808 = scmp.le.s32.totalorder 1, %s34
    %p809 = scmp.lt.s32.totalorder %s34, 5
    %p810 = pnand %p808, %p809
    %p811 = pneg %p810
    // Predicated region
    $region9: #{transformer_translation_forward.4} parent=5 // pred_check
      _
    $region10: #{transformer_translation_forward.4} parent=5 // pred_check_branch
      %813 = sbr.rel (%p810) target = $region12
    $region11: #{transformer_translation_forward.4} parent=5 // pred_region
      %s814 = ssub.s32 %s34, 1
    $region12: #{transformer_translation_forward.4} parent=5 // pred_fallthru
      _
    %p815 = scmp.lt.s32.totalorder %s34, 4
    // Predicated region
    $region13: #{transformer_translation_forward.4} parent=5 // pred_check
      %p816 = pneg %p815
    $region14: #{transformer_translation_forward.4} parent=5 // pred_check_branch
      %818 = sbr.rel (%p816) target = $region16
    $region15: #{transformer_translation_forward.4} parent=5 // pred_region
      // Predicated region
      $region17: #{transformer_translation_forward.4} parent=15 // pred_check
        %p819 = pneg %p66
      $region18: #{transformer_translation_forward.4} parent=15 // pred_check_branch
        %821 = sbr.rel (%p819) target = $region20
      $region19: #{transformer_translation_forward.4} parent=15 // pred_region
        %p822 = scmp.lt.s32.totalorder %s41, 1
        %s823 = scalar_select %p822, %s41, 1
        %s824 = smul.addr %s823, 8
        %s825 = scalar_lea.vmem %s0, %s824
      $region20: #{transformer_translation_forward.4} parent=15 // pred_fallthru
        _
      // Predicated region
      $region21: #{transformer_translation_forward.4} parent=15 // pred_check
        %p826 = pneg %p92
      $region22: #{transformer_translation_forward.4} parent=15 // pred_check_branch
        %828 = sbr.rel (%p826) target = $region24
      $region23: #{transformer_translation_forward.4} parent=15 // pred_region
        %p829 = scmp.lt.s32.totalorder %s41, 1
        %s830 = scalar_select %p829, %s41, 1
        %s831 = smul.addr %s830, 8
        %s832 = scalar_lea.vmem %s1, %s831
      $region24: #{transformer_translation_forward.4} parent=15 // pred_fallthru
        _
      // Predicated region
      $region25: #{transformer_translation_forward.4} parent=15 // pred_check
        %p833 = pneg %p118
      $region26: #{transformer_translation_forward.4} parent=15 // pred_check_branch
        %835 = sbr.rel (%p833) target = $region28
      $region27: #{transformer_translation_forward.4} parent=15 // pred_region
        %p836 = scmp.lt.s32.totalorder %s42, 1
        %s837 = scalar_select %p836, %s42, 1
        %s838 = smul.addr %s837, 16
        %s839 = smul.addr %s838, 4
        %s840 = scalar_lea.vmem %s2, %s839
      $region28: #{transformer_translation_forward.4} parent=15 // pred_fallthru
        _
      // Predicated region
      $region29: #{transformer_translation_forward.4} parent=15 // pred_check
        %p841 = pneg %p144
      $region30: #{transformer_translation_forward.4} parent=15 // pred_check_branch
        %843 = sbr.rel (%p841) target = $region32
      $region31: #{transformer_translation_forward.4} parent=15 // pred_region
        %p844 = scmp.lt.s32.totalorder %s42, 1
        %s845 = scalar_select %p844, %s42, 1
        %s846 = smul.addr %s845, 16
        %s847 = smul.addr %s846, 4
        %s848 = scalar_lea.vmem %s3, %s847
      $region32: #{transformer_translation_forward.4} parent=15 // pred_fallthru
        _
      // Predicated region
      $region33: #{transformer_translation_forward.4} parent=15 // pred_check
        %p849 = pneg %p170
      $region34: #{transformer_translation_forward.4} parent=15 // pred_check_branch
        %851 = sbr.rel (%p849) target = $region36
      $region35: #{transformer_translation_forward.4} parent=15 // pred_region
        %p852 = scmp.lt.s32.totalorder %s42, 1
        %s853 = scalar_select %p852, %s42, 1
        %s854 = smul.addr %s853, 16
        %s855 = smul.addr %s854, 4
        %s856 = scalar_lea.vmem %s4, %s855
      $region36: #{transformer_translation_forward.4} parent=15 // pred_fallthru
        _
      // Predicated region
      $region37: #{transformer_translation_forward.4} parent=15 // pred_check
        %p857 = pneg %p196
      $region38: #{transformer_translation_forward.4} parent=15 // pred_check_branch
        %859 = sbr.rel (%p857) target = $region40
      $region39: #{transformer_translation_forward.4} parent=15 // pred_region
        %p860 = scmp.lt.s32.totalorder %s42, 1
        %s861 = scalar_select %p860, %s42, 1
        %s862 = smul.addr %s861, 4
        %s863 = scalar_lea.vmem %s5, %s862
      $region40: #{transformer_translation_forward.4} parent=15 // pred_fallthru
        _
      // Predicated region
      $region41: #{transformer_translation_forward.4} parent=15 // pred_check
        %p864 = pneg %p222
      $region42: #{transformer_translation_forward.4} parent=15 // pred_check_branch
        %866 = sbr.rel (%p864) target = $region44
      $region43: #{transformer_translation_forward.4} parent=15 // pred_region
        %p867 = scmp.lt.s32.totalorder %s42, 1
        %s868 = scalar_select %p867, %s42, 1
        %s869 = smul.addr %s868, 4
        %s870 = scalar_lea.vmem %s6, %s869
      $region44: #{transformer_translation_forward.4} parent=15 // pred_fallthru
        _
      // Predicated region
      $region45: #{transformer_translation_forward.4} parent=15 // pred_check
        %p871 = pneg %p248
      $region46: #{transformer_translation_forward.4} parent=15 // pred_check_branch
        %873 = sbr.rel (%p871) target = $region48
      $region47: #{transformer_translation_forward.4} parent=15 // pred_region
        %p874 = scmp.lt.s32.totalorder %s42, 1
        %s875 = scalar_select %p874, %s42, 1
        %s876 = smul.addr %s875, 4
        %s877 = scalar_lea.vmem %s7, %s876
      $region48: #{transformer_translation_forward.4} parent=15 // pred_fallthru
        _
      // Predicated region
      $region49: #{transformer_translation_forward.4} parent=15 // pred_check
        %p878 = pneg %p274
      $region50: #{transformer_translation_forward.4} parent=15 // pred_check_branch
        %880 = sbr.rel (%p878) target = $region52
      $region51: #{transformer_translation_forward.4} parent=15 // pred_region
        %p881 = scmp.lt.s32.totalorder %s42, 1
        %s882 = scalar_select %p881, %s42, 1
        %s883 = smul.addr %s882, 4
        %s884 = smul.addr %s883, 4
        %s885 = scalar_lea.vmem %s8, %s884
      $region52: #{transformer_translation_forward.4} parent=15 // pred_fallthru
        _
      // Predicated region
      $region53: #{transformer_translation_forward.4} parent=15 // pred_check
        %p886 = pneg %p300
      $region54: #{transformer_translation_forward.4} parent=15 // pred_check_branch
        %888 = sbr.rel (%p886) target = $region56
      $region55: #{transformer_translation_forward.4} parent=15 // pred_region
        %p889 = scmp.lt.s32.totalorder %s42, 1
        %s890 = scalar_select %p889, %s42, 1
        %s891 = scalar_lea.vmem %s9, %s890
      $region56: #{transformer_translation_forward.4} parent=15 // pred_fallthru
        _
      // Predicated region
      $region57: #{transformer_translation_forward.4} parent=15 // pred_check
        %p892 = pneg %p326
      $region58: #{transformer_translation_forward.4} parent=15 // pred_check_branch
        %894 = sbr.rel (%p892) target = $region60
      $region59: #{transformer_translation_forward.4} parent=15 // pred_region
        %p895 = scmp.lt.s32.totalorder %s42, 1
        %s896 = scalar_select %p895, %s42, 1
        %s897 = scalar_lea.vmem %s10, %s896
      $region60: #{transformer_translation_forward.4} parent=15 // pred_fallthru
        _
      // Predicated region
      $region61: #{transformer_translation_forward.4} parent=15 // pred_check
        %p898 = pneg %p352
      $region62: #{transformer_translation_forward.4} parent=15 // pred_check_branch
        %900 = sbr.rel (%p898) target = $region64
      $region63: #{transformer_translation_forward.4} parent=15 // pred_region
        %p901 = scmp.lt.s32.totalorder %s42, 1
        %s902 = scalar_select %p901, %s42, 1
        %s903 = scalar_lea.vmem %s11, %s902
      $region64: #{transformer_translation_forward.4} parent=15 // pred_fallthru
        _
      // Predicated region
      $region65: #{transformer_translation_forward.4} parent=15 // pred_check
        %p904 = pneg %p378
      $region66: #{transformer_translation_forward.4} parent=15 // pred_check_branch
        %906 = sbr.rel (%p904) target = $region68
      $region67: #{transformer_translation_forward.4} parent=15 // pred_region
        %p907 = scmp.lt.s32.totalorder %s42, 1
        %s908 = scalar_select %p907, %s42, 1
        %s909 = smul.addr %s908, 16
        %s910 = smul.addr %s909, 4
        %s911 = scalar_lea.vmem %s12, %s910
      $region68: #{transformer_translation_forward.4} parent=15 // pred_fallthru
        _
      // Predicated region
      $region69: #{transformer_translation_forward.4} parent=15 // pred_check
        %p912 = pneg %p404
      $region70: #{transformer_translation_forward.4} parent=15 // pred_check_branch
        %914 = sbr.rel (%p912) target = $region72
      $region71: #{transformer_translation_forward.4} parent=15 // pred_region
        %p915 = scmp.lt.s32.totalorder %s42, 1
        %s916 = scalar_select %p915, %s42, 1
        %s917 = smul.addr %s916, 16
        %s918 = smul.addr %s917, 4
        %s919 = scalar_lea.vmem %s13, %s918
      $region72: #{transformer_translation_forward.4} parent=15 // pred_fallthru
        _
      // Predicated region
      $region73: #{transformer_translation_forward.4} parent=15 // pred_check
        %p920 = pneg %p430
      $region74: #{transformer_translation_forward.4} parent=15 // pred_check_branch
        %922 = sbr.rel (%p920) target = $region76
      $region75: #{transformer_translation_forward.4} parent=15 // pred_region
        %p923 = scmp.lt.s32.totalorder %s42, 1
        %s924 = scalar_select %p923, %s42, 1
        %s925 = smul.addr %s924, 16
        %s926 = smul.addr %s925, 4
        %s927 = scalar_lea.vmem %s14, %s926
      $region76: #{transformer_translation_forward.4} parent=15 // pred_fallthru
        _
      // Predicated region
      $region77: #{transformer_translation_forward.4} parent=15 // pred_check
        %p928 = pneg %p456
      $region78: #{transformer_translation_forward.4} parent=15 // pred_check_branch
        %930 = sbr.rel (%p928) target = $region80
      $region79: #{transformer_translation_forward.4} parent=15 // pred_region
        %p931 = scmp.lt.s32.totalorder %s42, 1
        %s932 = scalar_select %p931, %s42, 1
        %s933 = smul.addr %s932, 4
        %s934 = scalar_lea.vmem %s15, %s933
      $region80: #{transformer_translation_forward.4} parent=15 // pred_fallthru
        _
      // Predicated region
      $region81: #{transformer_translation_forward.4} parent=15 // pred_check
        %p935 = pneg %p482
      $region82: #{transformer_translation_forward.4} parent=15 // pred_check_branch
        %937 = sbr.rel (%p935) target = $region84
      $region83: #{transformer_translation_forward.4} parent=15 // pred_region
        %p938 = scmp.lt.s32.totalorder %s42, 1
        %s939 = scalar_select %p938, %s42, 1
        %s940 = smul.addr %s939, 4
        %s941 = scalar_lea.vmem %s16, %s940
      $region84: #{transformer_translation_forward.4} parent=15 // pred_fallthru
        _
      // Predicated region
      $region85: #{transformer_translation_forward.4} parent=15 // pred_check
        %p942 = pneg %p508
      $region86: #{transformer_translation_forward.4} parent=15 // pred_check_branch
        %944 = sbr.rel (%p942) target = $region88
      $region87: #{transformer_translation_forward.4} parent=15 // pred_region
        %p945 = scmp.lt.s32.totalorder %s42, 1
        %s946 = scalar_select %p945, %s42, 1
        %s947 = smul.addr %s946, 4
        %s948 = scalar_lea.vmem %s17, %s947
      $region88: #{transformer_translation_forward.4} parent=15 // pred_fallthru
        _
      // Predicated region
      $region89: #{transformer_translation_forward.4} parent=15 // pred_check
        %p949 = pneg %p534
      $region90: #{transformer_translation_forward.4} parent=15 // pred_check_branch
        %951 = sbr.rel (%p949) target = $region92
      $region91: #{transformer_translation_forward.4} parent=15 // pred_region
        %p952 = scmp.lt.s32.totalorder %s42, 1
        %s953 = scalar_select %p952, %s42, 1
        %s954 = smul.addr %s953, 4
        %s955 = smul.addr %s954, 4
        %s956 = scalar_lea.vmem %s18, %s955
      $region92: #{transformer_translation_forward.4} parent=15 // pred_fallthru
        _
      // Predicated region
      $region93: #{transformer_translation_forward.4} parent=15 // pred_check
        %p957 = pneg %p560
      $region94: #{transformer_translation_forward.4} parent=15 // pred_check_branch
        %959 = sbr.rel (%p957) target = $region96
      $region95: #{transformer_translation_forward.4} parent=15 // pred_region
        %p960 = scmp.lt.s32.totalorder %s42, 1
        %s961 = scalar_select %p960, %s42, 1
        %s962 = scalar_lea.vmem %s19, %s961
      $region96: #{transformer_translation_forward.4} parent=15 // pred_fallthru
        _
      // Predicated region
      $region97: #{transformer_translation_forward.4} parent=15 // pred_check
        %p963 = pneg %p586
      $region98: #{transformer_translation_forward.4} parent=15 // pred_check_branch
        %965 = sbr.rel (%p963) target = $region100
      $region99: #{transformer_translation_forward.4} parent=15 // pred_region
        %p966 = scmp.lt.s32.totalorder %s42, 1
        %s967 = scalar_select %p966, %s42, 1
        %s968 = scalar_lea.vmem %s20, %s967
      $region100: #{transformer_translation_forward.4} parent=15 // pred_fallthru
        _
      // Predicated region
      $region101: #{transformer_translation_forward.4} parent=15 // pred_check
        %p969 = pneg %p612
      $region102: #{transformer_translation_forward.4} parent=15 // pred_check_branch
        %971 = sbr.rel (%p969) target = $region104
      $region103: #{transformer_translation_forward.4} parent=15 // pred_region
        %p972 = scmp.lt.s32.totalorder %s42, 1
        %s973 = scalar_select %p972, %s42, 1
        %s974 = scalar_lea.vmem %s21, %s973
      $region104: #{transformer_translation_forward.4} parent=15 // pred_fallthru
        _
      // Predicated region
      $region105: #{transformer_translation_forward.4} parent=15 // pred_check
        %p975 = pneg %p638
      $region106: #{transformer_translation_forward.4} parent=15 // pred_check_branch
        %977 = sbr.rel (%p975) target = $region108
      $region107: #{transformer_translation_forward.4} parent=15 // pred_region
        %p978 = scmp.lt.s32.totalorder %s42, 1
        %s979 = scalar_select %p978, %s42, 1
        %s980 = smul.addr %s979, 4
        %s981 = smul.addr %s980, 4
        %s982 = scalar_lea.vmem %s22, %s981
      $region108: #{transformer_translation_forward.4} parent=15 // pred_fallthru
        _
      // Predicated region
      $region109: #{transformer_translation_forward.4} parent=15 // pred_check
        %p983 = pneg %p664
      $region110: #{transformer_translation_forward.4} parent=15 // pred_check_branch
        %985 = sbr.rel (%p983) target = $region112
      $region111: #{transformer_translation_forward.4} parent=15 // pred_region
        %p986 = scmp.lt.s32.totalorder %s42, 1
        %s987 = scalar_select %p986, %s42, 1
        %s988 = scalar_lea.vmem %s23, %s987
      $region112: #{transformer_translation_forward.4} parent=15 // pred_fallthru
        _
      // Predicated region
      $region113: #{transformer_translation_forward.4} parent=15 // pred_check
        %p989 = pneg %p690
      $region114: #{transformer_translation_forward.4} parent=15 // pred_check_branch
        %991 = sbr.rel (%p989) target = $region116
      $region115: #{transformer_translation_forward.4} parent=15 // pred_region
        %p992 = scmp.lt.s32.totalorder %s42, 1
        %s993 = scalar_select %p992, %s42, 1
        %s994 = smul.addr %s993, 8
        %s995 = smul.addr %s994, 4
        %s996 = scalar_lea.vmem %s24, %s995
      $region116: #{transformer_translation_forward.4} parent=15 // pred_fallthru
        _
      // Predicated region
      $region117: #{transformer_translation_forward.4} parent=15 // pred_check
        %p997 = pneg %p716
      $region118: #{transformer_translation_forward.4} parent=15 // pred_check_branch
        %999 = sbr.rel (%p997) target = $region120
      $region119: #{transformer_translation_forward.4} parent=15 // pred_region
        %p1000 = scmp.lt.s32.totalorder %s42, 1
        %s1001 = scalar_select %p1000, %s42, 1
        %s1002 = scalar_lea.vmem %s25, %s1001
      $region120: #{transformer_translation_forward.4} parent=15 // pred_fallthru
        _
      // Predicated region
      $region121: #{transformer_translation_forward.4} parent=15 // pred_check
        %p1003 = pneg %p742
      $region122: #{transformer_translation_forward.4} parent=15 // pred_check_branch
        %1005 = sbr.rel (%p1003) target = $region124
      $region123: #{transformer_translation_forward.4} parent=15 // pred_region
        %p1006 = scmp.lt.s32.totalorder %s42, 1
        %s1007 = scalar_select %p1006, %s42, 1
        %s1008 = scalar_lea.vmem %s26, %s1007
      $region124: #{transformer_translation_forward.4} parent=15 // pred_fallthru
        _
      // Predicated region
      $region125: #{transformer_translation_forward.4} parent=15 // pred_check
        %p1009 = pneg %p768
      $region126: #{transformer_translation_forward.4} parent=15 // pred_check_branch
        %1011 = sbr.rel (%p1009) target = $region128
      $region127: #{transformer_translation_forward.4} parent=15 // pred_region
        %p1012 = scmp.lt.s32.totalorder %s42, 1
        %s1013 = scalar_select %p1012, %s42, 1
        %s1014 = scalar_lea.vmem %s27, %s1013
      $region128: #{transformer_translation_forward.4} parent=15 // pred_fallthru
        _
    $region16: #{transformer_translation_forward.4} parent=5 // pred_fallthru
      _
    %p1015 = scmp.le.s32.totalorder 1, %s34
    %p1016 = scmp.lt.s32.totalorder %s34, 5
    %p1017 = pnand %p1015, %p1016
    %p1018 = pneg %p1017
    // Predicated region
    $region129: #{transformer_translation_forward.4} parent=5 // pred_check
      _
    $region130: #{transformer_translation_forward.4} parent=5 // pred_check_branch
      %1020 = sbr.rel (%p1017) target = $region132
    $region131: #{transformer_translation_forward.4} parent=5 // pred_region
      %s1021 = ssub.s32 %s34, 1
      %p1022 = scmp.lt.s32.totalorder %s43, 1
      %s1023 = scalar_select %p1022, %s43, 1
      %s1024 = smul.addr %s1023, 8
      %s1025 = scalar_lea.vmem %s0, %s1024
      %p1026 = pneg %p72
      %p1027 = pneg %p69
      %p1028 = scmp.lt.s32.totalorder %s43, 1
      %s1029 = scalar_select %p1028, %s43, 1
      %s1030 = smul.addr %s1029, 8
      %s1031 = scalar_lea.vmem %s1, %s1030
      %p1032 = pneg %p98
      %p1033 = pneg %p95
      %p1034 = scmp.lt.s32.totalorder %s44, 1
      %s1035 = scalar_select %p1034, %s44, 1
      %s1036 = smul.addr %s1035, 16
      %s1037 = smul.addr %s1036, 4
      %s1038 = scalar_lea.vmem %s2, %s1037
      %p1039 = pneg %p124
      %p1040 = pneg %p121
      %p1041 = scmp.lt.s32.totalorder %s44, 1
      %s1042 = scalar_select %p1041, %s44, 1
      %s1043 = smul.addr %s1042, 16
      %s1044 = smul.addr %s1043, 4
      %s1045 = scalar_lea.vmem %s3, %s1044
      %p1046 = pneg %p150
      %p1047 = pneg %p147
      %p1048 = scmp.lt.s32.totalorder %s44, 1
      %s1049 = scalar_select %p1048, %s44, 1
      %s1050 = smul.addr %s1049, 16
      %s1051 = smul.addr %s1050, 4
      %s1052 = scalar_lea.vmem %s4, %s1051
      %p1053 = pneg %p176
      %p1054 = pneg %p173
      %p1055 = scmp.lt.s32.totalorder %s44, 1
      %s1056 = scalar_select %p1055, %s44, 1
      %s1057 = smul.addr %s1056, 4
      %s1058 = scalar_lea.vmem %s5, %s1057
      %p1059 = pneg %p202
      %p1060 = pneg %p199
      %p1061 = scmp.lt.s32.totalorder %s44, 1
      %s1062 = scalar_select %p1061, %s44, 1
      %s1063 = smul.addr %s1062, 4
      %s1064 = scalar_lea.vmem %s6, %s1063
      %p1065 = pneg %p228
      %p1066 = pneg %p225
      %p1067 = scmp.lt.s32.totalorder %s44, 1
      %s1068 = scalar_select %p1067, %s44, 1
      %s1069 = smul.addr %s1068, 4
      %s1070 = scalar_lea.vmem %s7, %s1069
      %p1071 = pneg %p254
      %p1072 = pneg %p251
      %p1073 = scmp.lt.s32.totalorder %s44, 1
      %s1074 = scalar_select %p1073, %s44, 1
      %s1075 = smul.addr %s1074, 4
      %s1076 = smul.addr %s1075, 4
      %s1077 = scalar_lea.vmem %s8, %s1076
      %p1078 = pneg %p280
      %p1079 = pneg %p277
      %p1080 = scmp.lt.s32.totalorder %s44, 1
      %s1081 = scalar_select %p1080, %s44, 1
      %s1082 = scalar_lea.vmem %s9, %s1081
      %p1083 = pneg %p306
      %p1084 = pneg %p303
      %p1085 = scmp.lt.s32.totalorder %s44, 1
      %s1086 = scalar_select %p1085, %s44, 1
      %s1087 = scalar_lea.vmem %s10, %s1086
      %p1088 = pneg %p332
      %p1089 = pneg %p329
      %p1090 = scmp.lt.s32.totalorder %s44, 1
      %s1091 = scalar_select %p1090, %s44, 1
      %s1092 = scalar_lea.vmem %s11, %s1091
      %p1093 = pneg %p358
      %p1094 = pneg %p355
      %p1095 = scmp.lt.s32.totalorder %s44, 1
      %s1096 = scalar_select %p1095, %s44, 1
      %s1097 = smul.addr %s1096, 16
      %s1098 = smul.addr %s1097, 4
      %s1099 = scalar_lea.vmem %s12, %s1098
      %p1100 = pneg %p384
      %p1101 = pneg %p381
      %p1102 = scmp.lt.s32.totalorder %s44, 1
      %s1103 = scalar_select %p1102, %s44, 1
      %s1104 = smul.addr %s1103, 16
      %s1105 = smul.addr %s1104, 4
      %s1106 = scalar_lea.vmem %s13, %s1105
      %p1107 = pneg %p410
      %p1108 = pneg %p407
      %p1109 = scmp.lt.s32.totalorder %s44, 1
      %s1110 = scalar_select %p1109, %s44, 1
      %s1111 = smul.addr %s1110, 16
      %s1112 = smul.addr %s1111, 4
      %s1113 = scalar_lea.vmem %s14, %s1112
      %p1114 = pneg %p436
      %p1115 = pneg %p433
      %p1116 = scmp.lt.s32.totalorder %s44, 1
      %s1117 = scalar_select %p1116, %s44, 1
      %s1118 = smul.addr %s1117, 4
      %s1119 = scalar_lea.vmem %s15, %s1118
      %p1120 = pneg %p462
      %p1121 = pneg %p459
      %p1122 = scmp.lt.s32.totalorder %s44, 1
      %s1123 = scalar_select %p1122, %s44, 1
      %s1124 = smul.addr %s1123, 4
      %s1125 = scalar_lea.vmem %s16, %s1124
      %p1126 = pneg %p488
      %p1127 = pneg %p485
      %p1128 = scmp.lt.s32.totalorder %s44, 1
      %s1129 = scalar_select %p1128, %s44, 1
      %s1130 = smul.addr %s1129, 4
      %s1131 = scalar_lea.vmem %s17, %s1130
      %p1132 = pneg %p514
      %p1133 = pneg %p511
      %p1134 = scmp.lt.s32.totalorder %s44, 1
      %s1135 = scalar_select %p1134, %s44, 1
      %s1136 = smul.addr %s1135, 4
      %s1137 = smul.addr %s1136, 4
      %s1138 = scalar_lea.vmem %s18, %s1137
      %p1139 = pneg %p540
      %p1140 = pneg %p537
      %p1141 = scmp.lt.s32.totalorder %s44, 1
      %s1142 = scalar_select %p1141, %s44, 1
      %s1143 = scalar_lea.vmem %s19, %s1142
      %p1144 = pneg %p566
      %p1145 = pneg %p563
      %p1146 = scmp.lt.s32.totalorder %s44, 1
      %s1147 = scalar_select %p1146, %s44, 1
      %s1148 = scalar_lea.vmem %s20, %s1147
      %p1149 = pneg %p592
      %p1150 = pneg %p589
      %p1151 = scmp.lt.s32.totalorder %s44, 1
      %s1152 = scalar_select %p1151, %s44, 1
      %s1153 = scalar_lea.vmem %s21, %s1152
      %p1154 = pneg %p618
      %p1155 = pneg %p615
      %p1156 = scmp.lt.s32.totalorder %s44, 1
      %s1157 = scalar_select %p1156, %s44, 1
      %s1158 = smul.addr %s1157, 4
      %s1159 = smul.addr %s1158, 4
      %s1160 = scalar_lea.vmem %s22, %s1159
      %p1161 = pneg %p644
      %p1162 = pneg %p641
      %p1163 = scmp.lt.s32.totalorder %s44, 1
      %s1164 = scalar_select %p1163, %s44, 1
      %s1165 = scalar_lea.vmem %s23, %s1164
      %p1166 = pneg %p670
      %p1167 = pneg %p667
      %p1168 = scmp.lt.s32.totalorder %s44, 1
      %s1169 = scalar_select %p1168, %s44, 1
      %s1170 = smul.addr %s1169, 8
      %s1171 = smul.addr %s1170, 4
      %s1172 = scalar_lea.vmem %s24, %s1171
      %p1173 = pneg %p696
      %p1174 = pneg %p693
      %p1175 = scmp.lt.s32.totalorder %s44, 1
      %s1176 = scalar_select %p1175, %s44, 1
      %s1177 = scalar_lea.vmem %s25, %s1176
      %p1178 = pneg %p722
      %p1179 = pneg %p719
      %p1180 = scmp.lt.s32.totalorder %s44, 1
      %s1181 = scalar_select %p1180, %s44, 1
      %s1182 = scalar_lea.vmem %s26, %s1181
      %p1183 = pneg %p748
      %p1184 = pneg %p745
      %p1185 = scmp.lt.s32.totalorder %s44, 1
      %s1186 = scalar_select %p1185, %s44, 1
      %s1187 = scalar_lea.vmem %s27, %s1186
      %p1188 = pneg %p774
      %p1189 = pneg %p771
      %p1190 = pneg %p800
      %p1191 = pneg %p797
      %p1192 = scmp.lt.s32.totalorder %s43, 1
      %s1193 = scalar_select %p1192, %s43, 1
      %s1194 = smul.addr %s1193, 8
      %s1195 = scalar_lea.vmem %s28, %s1194
      %p1196 = scmp.lt.s32.totalorder %s43, 1
      %s1197 = scalar_select %p1196, %s43, 1
      %s1198 = smul.addr %s1197, 8
      %s1199 = scalar_lea.vmem %s0, %s1198
      %p1200 = scmp.lt.s32.totalorder %s43, 1
      %s1201 = scalar_select %p1200, %s43, 1
      %s1202 = smul.addr %s1201, 8
      %s1203 = scalar_lea.vmem %s1, %s1202
      %p1204 = scmp.lt.s32.totalorder %s44, 1
      %s1205 = scalar_select %p1204, %s44, 1
      %s1206 = smul.addr %s1205, 16
      %s1207 = smul.addr %s1206, 4
      %s1208 = scalar_lea.vmem %s2, %s1207
      %p1209 = scmp.lt.s32.totalorder %s44, 1
      %s1210 = scalar_select %p1209, %s44, 1
      %s1211 = smul.addr %s1210, 16
      %s1212 = smul.addr %s1211, 4
      %s1213 = scalar_lea.vmem %s3, %s1212
      %p1214 = scmp.lt.s32.totalorder %s44, 1
      %s1215 = scalar_select %p1214, %s44, 1
      %s1216 = smul.addr %s1215, 16
      %s1217 = smul.addr %s1216, 4
      %s1218 = scalar_lea.vmem %s4, %s1217
      %p1219 = scmp.lt.s32.totalorder %s44, 1
      %s1220 = scalar_select %p1219, %s44, 1
      %s1221 = smul.addr %s1220, 4
      %s1222 = scalar_lea.vmem %s5, %s1221
      %p1223 = scmp.lt.s32.totalorder %s44, 1
      %s1224 = scalar_select %p1223, %s44, 1
      %s1225 = smul.addr %s1224, 4
      %s1226 = scalar_lea.vmem %s6, %s1225
      %p1227 = scmp.lt.s32.totalorder %s44, 1
      %s1228 = scalar_select %p1227, %s44, 1
      %s1229 = smul.addr %s1228, 4
      %s1230 = scalar_lea.vmem %s7, %s1229
      %p1231 = scmp.lt.s32.totalorder %s44, 1
      %s1232 = scalar_select %p1231, %s44, 1
      %s1233 = smul.addr %s1232, 4
      %s1234 = smul.addr %s1233, 4
      %s1235 = scalar_lea.vmem %s8, %s1234
      %p1236 = scmp.lt.s32.totalorder %s44, 1
      %s1237 = scalar_select %p1236, %s44, 1
      %s1238 = scalar_lea.vmem %s9, %s1237
      %p1239 = scmp.lt.s32.totalorder %s44, 1
      %s1240 = scalar_select %p1239, %s44, 1
      %s1241 = scalar_lea.vmem %s10, %s1240
      %p1242 = scmp.lt.s32.totalorder %s44, 1
      %s1243 = scalar_select %p1242, %s44, 1
      %s1244 = scalar_lea.vmem %s11, %s1243
      %p1245 = scmp.lt.s32.totalorder %s44, 1
      %s1246 = scalar_select %p1245, %s44, 1
      %s1247 = smul.addr %s1246, 16
      %s1248 = smul.addr %s1247, 4
      %s1249 = scalar_lea.vmem %s12, %s1248
      %p1250 = scmp.lt.s32.totalorder %s44, 1
      %s1251 = scalar_select %p1250, %s44, 1
      %s1252 = smul.addr %s1251, 16
      %s1253 = smul.addr %s1252, 4
      %s1254 = scalar_lea.vmem %s13, %s1253
      %p1255 = scmp.lt.s32.totalorder %s44, 1
      %s1256 = scalar_select %p1255, %s44, 1
      %s1257 = smul.addr %s1256, 16
      %s1258 = smul.addr %s1257, 4
      %s1259 = scalar_lea.vmem %s14, %s1258
      %p1260 = scmp.lt.s32.totalorder %s44, 1
      %s1261 = scalar_select %p1260, %s44, 1
      %s1262 = smul.addr %s1261, 4
      %s1263 = scalar_lea.vmem %s15, %s1262
      %p1264 = scmp.lt.s32.totalorder %s44, 1
      %s1265 = scalar_select %p1264, %s44, 1
      %s1266 = smul.addr %s1265, 4
      %s1267 = scalar_lea.vmem %s16, %s1266
      %p1268 = scmp.lt.s32.totalorder %s44, 1
      %s1269 = scalar_select %p1268, %s44, 1
      %s1270 = smul.addr %s1269, 4
      %s1271 = scalar_lea.vmem %s17, %s1270
      %p1272 = scmp.lt.s32.totalorder %s44, 1
      %s1273 = scalar_select %p1272, %s44, 1
      %s1274 = smul.addr %s1273, 4
      %s1275 = smul.addr %s1274, 4
      %s1276 = scalar_lea.vmem %s18, %s1275
      %p1277 = scmp.lt.s32.totalorder %s44, 1
      %s1278 = scalar_select %p1277, %s44, 1
      %s1279 = scalar_lea.vmem %s19, %s1278
      %p1280 = scmp.lt.s32.totalorder %s44, 1
      %s1281 = scalar_select %p1280, %s44, 1
      %s1282 = scalar_lea.vmem %s20, %s1281
      %p1283 = scmp.lt.s32.totalorder %s44, 1
      %s1284 = scalar_select %p1283, %s44, 1
      %s1285 = scalar_lea.vmem %s21, %s1284
      %p1286 = scmp.lt.s32.totalorder %s44, 1
      %s1287 = scalar_select %p1286, %s44, 1
      %s1288 = smul.addr %s1287, 4
      %s1289 = smul.addr %s1288, 4
      %s1290 = scalar_lea.vmem %s22, %s1289
      %p1291 = scmp.lt.s32.totalorder %s44, 1
      %s1292 = scalar_select %p1291, %s44, 1
      %s1293 = scalar_lea.vmem %s23, %s1292
      %p1294 = scmp.lt.s32.totalorder %s44, 1
      %s1295 = scalar_select %p1294, %s44, 1
      %s1296 = smul.addr %s1295, 8
      %s1297 = smul.addr %s1296, 4
      %s1298 = scalar_lea.vmem %s24, %s1297
      %p1299 = scmp.lt.s32.totalorder %s44, 1
      %s1300 = scalar_select %p1299, %s44, 1
      %s1301 = scalar_lea.vmem %s25, %s1300
      %p1302 = scmp.lt.s32.totalorder %s44, 1
      %s1303 = scalar_select %p1302, %s44, 1
      %s1304 = scalar_lea.vmem %s26, %s1303
      %p1305 = scmp.lt.s32.totalorder %s44, 1
      %s1306 = scalar_select %p1305, %s44, 1
      %s1307 = scalar_lea.vmem %s27, %s1306
      %p1308 = scmp.lt.s32.totalorder %s43, 1
      %s1309 = scalar_select %p1308, %s43, 1
      %s1310 = smul.addr %s1309, 8
      %s1311 = scalar_lea.vmem %s28, %s1310
      %p1313 = scmp.eq.s32.totalorder %s44, 0
      // Predicated region
      $region133: #{transformer_translation_forward.4} parent=131 // pred_check
        %p1314 = pneg %p1313
      $region134: #{transformer_translation_forward.4} parent=131 // pred_check_branch
        %1316 = sbr.rel (%p1314) target = $region136
      $region135: #{transformer_translation_forward.4} parent=131 // pred_region
        %v1317 = vld [vmem:[%s1199] sm:$0xff]
        %vm1318 = vcmask 261120
        %1319 = vst.msk [vmem:[#allocation2] sm:$0xff] %vm1318, %v1317
      $region136: #{transformer_translation_forward.4} parent=131 // pred_fallthru
        _
      %v1320 = vld [vmem:[#allocation2] sm:$0xff]
      %v1321 = vld [vmem:[%s1203] sm:$0xff]
      %v1322 = vpack.c.bf16 %v1320, %v1320
      %v1323 = vld [vmem:[%s1208] sm:$0xf]
      %v1324 = vld [vmem:[%s1208 + $0x4] sm:$0xf]
      %v1325 = vld [vmem:[%s1208 + $0x8] sm:$0xf]
      %v1326 = vld [vmem:[%s1208 + $0xc] sm:$0xf]
      %v1327 = vld [vmem:[%s1222] sm:$0x1]
      %v1329 = vlaneseq
      %v1330 = vshrl.u32 %v1329, 7
      %v1331 = vsub.s32 0, %v1330
      %v1332 = vrot.slane %v1327, %v1331
      %v1338 = vunpack.c.l.b16 %v1323
      %v1339 = vunpack.c.l.b16 %v1324
      %v1340 = vunpack.c.l.b16 %v1325
      %v1341 = vunpack.c.l.b16 %v1326
      %v1342 = vpack.c.b16 %v1339, %v1338
      %v1343 = vpack.c.b16 %v1341, %v1340
      %vm1346 = vcmask 261120
      %v1348 = vsel %vm1346, %v1322, 0
      %1350 = vmatprep.subr.bf16.mxu0 0
      %1351 = vmatpush1.bf16.msra.mxu0 %v1342
      %1352 = vmatprep.subr.bf16.mxu0 0
      %1353 = vmatpush1.bf16.msra.mxu0 %v1343
      %1354 = vmatprep.subr.bf16.mxu0 0
      %1355 = vmatpush1.bf16.msra.mxu0 0
      %1356 = vmatprep.subr.bf16.mxu0 0
      %1357 = vmatpush1.bf16.msra.mxu0 0
      %1358 = vmatprep.subr.bf16.mxu0 0
      %1359 = vmatpush1.bf16.msra.mxu0 0
      %1360 = vmatprep.subr.bf16.mxu0 0
      %1361 = vmatpush1.bf16.msra.mxu0 0
      %1362 = vmatprep.subr.bf16.mxu0 0
      %1363 = vmatpush1.bf16.msra.mxu0 0
      %1364 = vmatprep.subr.bf16.mxu0 0
      %1365 = vmatpush1.bf16.msra.mxu0 0
      %1366 = vmatprep.subr.bf16.mxu0 0
      %1367 = vmatpush1.bf16.msra.mxu0 0
      %1368 = vmatprep.subr.bf16.mxu0 0
      %1369 = vmatpush1.bf16.msra.mxu0 0
      %1370 = vmatprep.subr.bf16.mxu0 0
      %1371 = vmatpush1.bf16.msra.mxu0 0
      %1372 = vmatprep.subr.bf16.mxu0 0
      %1373 = vmatpush1.bf16.msra.mxu0 0
      %1374 = vmatprep.subr.bf16.mxu0 0
      %1375 = vmatpush1.bf16.msra.mxu0 0
      %1376 = vmatprep.subr.bf16.mxu0 0
      %1377 = vmatpush1.bf16.msra.mxu0 0
      %1378 = vmatprep.subr.bf16.mxu0 0
      %1379 = vmatpush1.bf16.msra.mxu0 0
      %1380 = vmatprep.subr.bf16.mxu0 0
      %1381 = vmatpush1.bf16.msra.mxu0 0
      %1382 = vmatprep.mubr.bf16.mxu0 0
      %1383 = vmatmul.mubr.bf16.gmra.mrb[0].mxu0 %v1348
      %v1384 = vpop.f32.mrb[0].mxu0
      %v1385 = vadd.f32 %v1332, %v1384
      %v1386 = vpop.f32.mrb[0].mxu0
      %v1387 = vpop.f32.mrb[0].mxu0
      %v1388 = vpop.f32.mrb[0].mxu0
      %1389 = vdwg.mxu0
      %v1390 = vld [vmem:[%s1213] sm:$0xf]
      %v1391 = vld [vmem:[%s1213 + $0x4] sm:$0xf]
      %v1392 = vld [vmem:[%s1213 + $0x8] sm:$0xf]
      %v1393 = vld [vmem:[%s1213 + $0xc] sm:$0xf]
      %v1394 = vld [vmem:[%s1226] sm:$0x1]
      %v1396 = vlaneseq
      %v1397 = vshrl.u32 %v1396, 7
      %v1398 = vsub.s32 0, %v1397
      %v1399 = vrot.slane %v1394, %v1398
      %v1405 = vunpack.c.l.b16 %v1390
      %v1406 = vunpack.c.l.b16 %v1391
      %v1407 = vunpack.c.l.b16 %v1392
      %v1408 = vunpack.c.l.b16 %v1393
      %v1409 = vpack.c.b16 %v1406, %v1405
      %v1410 = vpack.c.b16 %v1408, %v1407
      %1413 = vmatprep.subr.bf16.mxu0 0
      %1414 = vmatpush1.bf16.msra.mxu0 %v1409
      %1415 = vmatprep.subr.bf16.mxu0 0
      %1416 = vmatpush1.bf16.msra.mxu0 %v1410
      %1417 = vmatprep.subr.bf16.mxu0 0
      %1418 = vmatpush1.bf16.msra.mxu0 0
      %1419 = vmatprep.subr.bf16.mxu0 0
      %1420 = vmatpush1.bf16.msra.mxu0 0
      %1421 = vmatprep.subr.bf16.mxu0 0
      %1422 = vmatpush1.bf16.msra.mxu0 0
      %1423 = vmatprep.subr.bf16.mxu0 0
      %1424 = vmatpush1.bf16.msra.mxu0 0
      %1425 = vmatprep.subr.bf16.mxu0 0
      %1426 = vmatpush1.bf16.msra.mxu0 0
      %1427 = vmatprep.subr.bf16.mxu0 0
      %1428 = vmatpush1.bf16.msra.mxu0 0
      %1429 = vmatprep.subr.bf16.mxu0 0
      %1430 = vmatpush1.bf16.msra.mxu0 0
      %1431 = vmatprep.subr.bf16.mxu0 0
      %1432 = vmatpush1.bf16.msra.mxu0 0
      %1433 = vmatprep.subr.bf16.mxu0 0
      %1434 = vmatpush1.bf16.msra.mxu0 0
      %1435 = vmatprep.subr.bf16.mxu0 0
      %1436 = vmatpush1.bf16.msra.mxu0 0
      %1437 = vmatprep.subr.bf16.mxu0 0
      %1438 = vmatpush1.bf16.msra.mxu0 0
      %1439 = vmatprep.subr.bf16.mxu0 0
      %1440 = vmatpush1.bf16.msra.mxu0 0
      %1441 = vmatprep.subr.bf16.mxu0 0
      %1442 = vmatpush1.bf16.msra.mxu0 0
      %1443 = vmatprep.subr.bf16.mxu0 0
      %1444 = vmatpush1.bf16.msra.mxu0 0
      %1445 = vmatprep.mubr.bf16.mxu0 0
      %1446 = vmatmul.mubr.bf16.gmra.mrb[0].mxu0 %v1348
      %v1447 = vpop.f32.mrb[0].mxu0
      %v1448 = vadd.f32 %v1399, %v1447
      %v1449 = vpop.f32.mrb[0].mxu0
      %v1450 = vpop.f32.mrb[0].mxu0
      %v1451 = vpop.f32.mrb[0].mxu0
      %1452 = vdwg.mxu0
      %v1453 = vld [vmem:[%s1218] sm:$0xf]
      %v1454 = vld [vmem:[%s1218 + $0x4] sm:$0xf]
      %v1455 = vld [vmem:[%s1218 + $0x8] sm:$0xf]
      %v1456 = vld [vmem:[%s1218 + $0xc] sm:$0xf]
      %v1457 = vld [vmem:[%s1230] sm:$0x1]
      %v1459 = vlaneseq
      %v1460 = vshrl.u32 %v1459, 7
      %v1461 = vsub.s32 0, %v1460
      %v1462 = vrot.slane %v1457, %v1461
      %v1468 = vunpack.c.l.b16 %v1453
      %v1469 = vunpack.c.l.b16 %v1454
      %v1470 = vunpack.c.l.b16 %v1455
      %v1471 = vunpack.c.l.b16 %v1456
      %v1472 = vpack.c.b16 %v1469, %v1468
      %v1473 = vpack.c.b16 %v1471, %v1470
      %1476 = vmatprep.subr.bf16.mxu0 0
      %1477 = vmatpush1.bf16.msra.mxu0 %v1472
      %1478 = vmatprep.subr.bf16.mxu0 0
      %1479 = vmatpush1.bf16.msra.mxu0 %v1473
      %1480 = vmatprep.subr.bf16.mxu0 0
      %1481 = vmatpush1.bf16.msra.mxu0 0
      %1482 = vmatprep.subr.bf16.mxu0 0
      %1483 = vmatpush1.bf16.msra.mxu0 0
      %1484 = vmatprep.subr.bf16.mxu0 0
      %1485 = vmatpush1.bf16.msra.mxu0 0
      %1486 = vmatprep.subr.bf16.mxu0 0
      %1487 = vmatpush1.bf16.msra.mxu0 0
      %1488 = vmatprep.subr.bf16.mxu0 0
      %1489 = vmatpush1.bf16.msra.mxu0 0
      %1490 = vmatprep.subr.bf16.mxu0 0
      %1491 = vmatpush1.bf16.msra.mxu0 0
      %1492 = vmatprep.subr.bf16.mxu0 0
      %1493 = vmatpush1.bf16.msra.mxu0 0
      %1494 = vmatprep.subr.bf16.mxu0 0
      %1495 = vmatpush1.bf16.msra.mxu0 0
      %1496 = vmatprep.subr.bf16.mxu0 0
      %1497 = vmatpush1.bf16.msra.mxu0 0
      %1498 = vmatprep.subr.bf16.mxu0 0
      %1499 = vmatpush1.bf16.msra.mxu0 0
      %1500 = vmatprep.subr.bf16.mxu0 0
      %1501 = vmatpush1.bf16.msra.mxu0 0
      %1502 = vmatprep.subr.bf16.mxu0 0
      %1503 = vmatpush1.bf16.msra.mxu0 0
      %1504 = vmatprep.subr.bf16.mxu0 0
      %1505 = vmatpush1.bf16.msra.mxu0 0
      %1506 = vmatprep.subr.bf16.mxu0 0
      %1507 = vmatpush1.bf16.msra.mxu0 0
      %1508 = vmatprep.mubr.bf16.mxu0 0
      %1509 = vmatmul.mubr.bf16.gmra.mrb[0].mxu0 %v1348
      %v1510 = vpop.f32.mrb[0].mxu0
      %v1511 = vadd.f32 %v1462, %v1510
      %v1512 = vpop.f32.mrb[0].mxu0
      %v1513 = vpop.f32.mrb[0].mxu0
      %v1514 = vpop.f32.mrb[0].mxu0
      %1515 = vdwg.mxu0
      %v1516 = vpack.c.bf16 %v1385, %v1385
      %v1517 = vpack.c.bf16 %v1448, %v1448
      %vm1518 = vcmask 64512
      %v1520 = vsel %vm1518, %v1516, 0
      %v1523 = vsel %vm1518, %v1517, 0
      %1525 = vmatprep.subr.bf16.mxu0 0
      %1526 = vmatpush1.bf16.xpose.msra.mxu0 %v1523
      %1527 = vmatprep.subr.bf16.mxu0 0
      %1528 = vmatpush1.bf16.xpose.msra.mxu0 0
      %1529 = vmatprep.subr.bf16.mxu0 0
      %1530 = vmatpush1.bf16.xpose.msra.mxu0 0
      %1531 = vmatprep.subr.bf16.mxu0 0
      %1532 = vmatpush1.bf16.xpose.msra.mxu0 0
      %1533 = vmatprep.subr.bf16.mxu0 0
      %1534 = vmatpush1.bf16.xpose.msra.mxu0 0
      %1535 = vmatprep.subr.bf16.mxu0 0
      %1536 = vmatpush1.bf16.xpose.msra.mxu0 0
      %1537 = vmatprep.subr.bf16.mxu0 0
      %1538 = vmatpush1.bf16.xpose.msra.mxu0 0
      %1539 = vmatprep.subr.bf16.mxu0 0
      %1540 = vmatpush1.bf16.xpose.msra.mxu0 0
      %1541 = vmatprep.subr.bf16.mxu0 0
      %1542 = vmatpush1.bf16.xpose.msra.mxu0 0
      %1543 = vmatprep.subr.bf16.mxu0 0
      %1544 = vmatpush1.bf16.xpose.msra.mxu0 0
      %1545 = vmatprep.subr.bf16.mxu0 0
      %1546 = vmatpush1.bf16.xpose.msra.mxu0 0
      %1547 = vmatprep.subr.bf16.mxu0 0
      %1548 = vmatpush1.bf16.xpose.msra.mxu0 0
      %1549 = vmatprep.subr.bf16.mxu0 0
      %1550 = vmatpush1.bf16.xpose.msra.mxu0 0
      %1551 = vmatprep.subr.bf16.mxu0 0
      %1552 = vmatpush1.bf16.xpose.msra.mxu0 0
      %1553 = vmatprep.subr.bf16.mxu0 0
      %1554 = vmatpush1.bf16.xpose.msra.mxu0 0
      %1555 = vmatprep.subr.bf16.mxu0 0
      %1556 = vmatpush1.bf16.xpose.msra.mxu0 0
      %1557 = vmatprep.mubr.bf16.mxu0 0
      %1558 = vmatmul.mubr.bf16.gmra.mrb[0].mxu0 %v1520
      %v1559 = vpop.f32.mrb[0].mxu0
      %v1560 = vadd.f32 0.0, %v1559
      %v1561 = vpop.f32.mrb[0].mxu0
      %v1562 = vpop.f32.mrb[0].mxu0
      %v1563 = vpop.f32.mrb[0].mxu0
      %1564 = vdwg.mxu0
      %v1565 = vmul.f32 %v1560, 0.35355338
      %v1566 = vsel %vm1518, %v1565, -inf
      %1567 = vmax.xlane.f32.xlu0 %v1566
      %v1568 = vpop.xlane.xlu0 %1567
      %v1569 = vsub.f32 %v1565, %v1568
      %v1570 = vmul.f32 %v1569, 1.442695
      %v1571 = vpow.pop %v1570
      %v1572 = vsel %vm1518, %v1571, 0.0
      %1573 = vadd.xlane.f32.xlu0 %v1572
      %v1574 = vpop.xlane.xlu0 %1573
      %v1575 = vrcp.pop %v1574
      %v1576 = vmul.f32 %v1571, %v1575
      %v1577 = vpack.c.bf16 %v1576, %v1576
      %v1578 = vpack.c.bf16 %v1511, %v1511
      %v1580 = vsel %vm1518, %v1577, 0
      %vm1582 = vcmask 1043456
      %v1584 = vsel %vm1582, %v1578, 0
      %1586 = vmatprep.subr.bf16.mxu0 0
      %1587 = vmatpush1.bf16.msra.mxu0 %v1584
      %1588 = vmatprep.subr.bf16.mxu0 0
      %1589 = vmatpush1.bf16.msra.mxu0 0
      %1590 = vmatprep.subr.bf16.mxu0 0
      %1591 = vmatpush1.bf16.msra.mxu0 0
      %1592 = vmatprep.subr.bf16.mxu0 0
      %1593 = vmatpush1.bf16.msra.mxu0 0
      %1594 = vmatprep.subr.bf16.mxu0 0
      %1595 = vmatpush1.bf16.msra.mxu0 0
      %1596 = vmatprep.subr.bf16.mxu0 0
      %1597 = vmatpush1.bf16.msra.mxu0 0
      %1598 = vmatprep.subr.bf16.mxu0 0
      %1599 = vmatpush1.bf16.msra.mxu0 0
      %1600 = vmatprep.subr.bf16.mxu0 0
      %1601 = vmatpush1.bf16.msra.mxu0 0
      %1602 = vmatprep.subr.bf16.mxu0 0
      %1603 = vmatpush1.bf16.msra.mxu0 0
      %1604 = vmatprep.subr.bf16.mxu0 0
      %1605 = vmatpush1.bf16.msra.mxu0 0
      %1606 = vmatprep.subr.bf16.mxu0 0
      %1607 = vmatpush1.bf16.msra.mxu0 0
      %1608 = vmatprep.subr.bf16.mxu0 0
      %1609 = vmatpush1.bf16.msra.mxu0 0
      %1610 = vmatprep.subr.bf16.mxu0 0
      %1611 = vmatpush1.bf16.msra.mxu0 0
      %1612 = vmatprep.subr.bf16.mxu0 0
      %1613 = vmatpush1.bf16.msra.mxu0 0
      %1614 = vmatprep.subr.bf16.mxu0 0
      %1615 = vmatpush1.bf16.msra.mxu0 0
      %1616 = vmatprep.subr.bf16.mxu0 0
      %1617 = vmatpush1.bf16.msra.mxu0 0
      %1618 = vmatprep.mubr.bf16.mxu0 0
      %1619 = vmatmul.mubr.bf16.gmra.mrb[0].mxu0 %v1580
      %v1620 = vpop.f32.mrb[0].mxu0
      %v1621 = vadd.f32 0.0, %v1620
      %v1622 = vpop.f32.mrb[0].mxu0
      %v1623 = vpop.f32.mrb[0].mxu0
      %v1624 = vpop.f32.mrb[0].mxu0
      %1625 = vdwg.mxu0
      %v1626 = vpack.c.bf16 %v1621, %v1621
      %v1627 = vld [vmem:[%s1235] sm:$0xf]
      %s1628 = scalar_lea.vmem %s1208, 16
      %v1629 = vld [vmem:[%s1628] sm:$0xf]
      %v1630 = vld [vmem:[%s1628 + $0x4] sm:$0xf]
      %v1631 = vld [vmem:[%s1628 + $0x8] sm:$0xf]
      %v1632 = vld [vmem:[%s1628 + $0xc] sm:$0xf]
      %s1633 = scalar_lea.vmem %s1222, 1
      %v1634 = vld [vmem:[%s1633] sm:$0x1]
      %v1636 = vlaneseq
      %v1637 = vshrl.u32 %v1636, 7
      %v1638 = vsub.s32 0, %v1637
      %v1639 = vrot.slane %v1634, %v1638
      %v1645 = vunpack.c.l.b16 %v1629
      %v1646 = vunpack.c.l.b16 %v1630
      %v1647 = vunpack.c.l.b16 %v1631
      %v1648 = vunpack.c.l.b16 %v1632
      %v1649 = vpack.c.b16 %v1646, %v1645
      %v1650 = vpack.c.b16 %v1648, %v1647
      %1653 = vmatprep.subr.bf16.mxu0 0
      %1654 = vmatpush1.bf16.msra.mxu0 %v1649
      %1655 = vmatprep.subr.bf16.mxu0 0
      %1656 = vmatpush1.bf16.msra.mxu0 %v1650
      %1657 = vmatprep.subr.bf16.mxu0 0
      %1658 = vmatpush1.bf16.msra.mxu0 0
      %1659 = vmatprep.subr.bf16.mxu0 0
      %1660 = vmatpush1.bf16.msra.mxu0 0
      %1661 = vmatprep.subr.bf16.mxu0 0
      %1662 = vmatpush1.bf16.msra.mxu0 0
      %1663 = vmatprep.subr.bf16.mxu0 0
      %1664 = vmatpush1.bf16.msra.mxu0 0
      %1665 = vmatprep.subr.bf16.mxu0 0
      %1666 = vmatpush1.bf16.msra.mxu0 0
      %1667 = vmatprep.subr.bf16.mxu0 0
      %1668 = vmatpush1.bf16.msra.mxu0 0
      %1669 = vmatprep.subr.bf16.mxu0 0
      %1670 = vmatpush1.bf16.msra.mxu0 0
      %1671 = vmatprep.subr.bf16.mxu0 0
      %1672 = vmatpush1.bf16.msra.mxu0 0
      %1673 = vmatprep.subr.bf16.mxu0 0
      %1674 = vmatpush1.bf16.msra.mxu0 0
      %1675 = vmatprep.subr.bf16.mxu0 0
      %1676 = vmatpush1.bf16.msra.mxu0 0
      %1677 = vmatprep.subr.bf16.mxu0 0
      %1678 = vmatpush1.bf16.msra.mxu0 0
      %1679 = vmatprep.subr.bf16.mxu0 0
      %1680 = vmatpush1.bf16.msra.mxu0 0
      %1681 = vmatprep.subr.bf16.mxu0 0
      %1682 = vmatpush1.bf16.msra.mxu0 0
      %1683 = vmatprep.subr.bf16.mxu0 0
      %1684 = vmatpush1.bf16.msra.mxu0 0
      %1685 = vmatprep.mubr.bf16.mxu0 0
      %1686 = vmatmul.mubr.bf16.gmra.mrb[0].mxu0 %v1348
      %v1687 = vpop.f32.mrb[0].mxu0
      %v1688 = vadd.f32 %v1639, %v1687
      %v1689 = vpop.f32.mrb[0].mxu0
      %v1690 = vpop.f32.mrb[0].mxu0
      %v1691 = vpop.f32.mrb[0].mxu0
      %1692 = vdwg.mxu0
      %s1693 = scalar_lea.vmem %s1213, 16
      %v1694 = vld [vmem:[%s1693] sm:$0xf]
      %v1695 = vld [vmem:[%s1693 + $0x4] sm:$0xf]
      %v1696 = vld [vmem:[%s1693 + $0x8] sm:$0xf]
      %v1697 = vld [vmem:[%s1693 + $0xc] sm:$0xf]
      %s1698 = scalar_lea.vmem %s1226, 1
      %v1699 = vld [vmem:[%s1698] sm:$0x1]
      %v1701 = vlaneseq
      %v1702 = vshrl.u32 %v1701, 7
      %v1703 = vsub.s32 0, %v1702
      %v1704 = vrot.slane %v1699, %v1703
      %v1710 = vunpack.c.l.b16 %v1694
      %v1711 = vunpack.c.l.b16 %v1695
      %v1712 = vunpack.c.l.b16 %v1696
      %v1713 = vunpack.c.l.b16 %v1697
      %v1714 = vpack.c.b16 %v1711, %v1710
      %v1715 = vpack.c.b16 %v1713, %v1712
      %1718 = vmatprep.subr.bf16.mxu0 0
      %1719 = vmatpush1.bf16.msra.mxu0 %v1714
      %1720 = vmatprep.subr.bf16.mxu0 0
      %1721 = vmatpush1.bf16.msra.mxu0 %v1715
      %1722 = vmatprep.subr.bf16.mxu0 0
      %1723 = vmatpush1.bf16.msra.mxu0 0
      %1724 = vmatprep.subr.bf16.mxu0 0
      %1725 = vmatpush1.bf16.msra.mxu0 0
      %1726 = vmatprep.subr.bf16.mxu0 0
      %1727 = vmatpush1.bf16.msra.mxu0 0
      %1728 = vmatprep.subr.bf16.mxu0 0
      %1729 = vmatpush1.bf16.msra.mxu0 0
      %1730 = vmatprep.subr.bf16.mxu0 0
      %1731 = vmatpush1.bf16.msra.mxu0 0
      %1732 = vmatprep.subr.bf16.mxu0 0
      %1733 = vmatpush1.bf16.msra.mxu0 0
      %1734 = vmatprep.subr.bf16.mxu0 0
      %1735 = vmatpush1.bf16.msra.mxu0 0
      %1736 = vmatprep.subr.bf16.mxu0 0
      %1737 = vmatpush1.bf16.msra.mxu0 0
      %1738 = vmatprep.subr.bf16.mxu0 0
      %1739 = vmatpush1.bf16.msra.mxu0 0
      %1740 = vmatprep.subr.bf16.mxu0 0
      %1741 = vmatpush1.bf16.msra.mxu0 0
      %1742 = vmatprep.subr.bf16.mxu0 0
      %1743 = vmatpush1.bf16.msra.mxu0 0
      %1744 = vmatprep.subr.bf16.mxu0 0
      %1745 = vmatpush1.bf16.msra.mxu0 0
      %1746 = vmatprep.subr.bf16.mxu0 0
      %1747 = vmatpush1.bf16.msra.mxu0 0
      %1748 = vmatprep.subr.bf16.mxu0 0
      %1749 = vmatpush1.bf16.msra.mxu0 0
      %1750 = vmatprep.mubr.bf16.mxu0 0
      %1751 = vmatmul.mubr.bf16.gmra.mrb[0].mxu0 %v1348
      %v1752 = vpop.f32.mrb[0].mxu0
      %v1753 = vadd.f32 %v1704, %v1752
      %v1754 = vpop.f32.mrb[0].mxu0
      %v1755 = vpop.f32.mrb[0].mxu0
      %v1756 = vpop.f32.mrb[0].mxu0
      %1757 = vdwg.mxu0
      %s1758 = scalar_lea.vmem %s1218, 16
      %v1759 = vld [vmem:[%s1758] sm:$0xf]
      %v1760 = vld [vmem:[%s1758 + $0x4] sm:$0xf]
      %v1761 = vld [vmem:[%s1758 + $0x8] sm:$0xf]
      %v1762 = vld [vmem:[%s1758 + $0xc] sm:$0xf]
      %s1763 = scalar_lea.vmem %s1230, 1
      %v1764 = vld [vmem:[%s1763] sm:$0x1]
      %v1766 = vlaneseq
      %v1767 = vshrl.u32 %v1766, 7
      %v1768 = vsub.s32 0, %v1767
      %v1769 = vrot.slane %v1764, %v1768
      %v1775 = vunpack.c.l.b16 %v1759
      %v1776 = vunpack.c.l.b16 %v1760
      %v1777 = vunpack.c.l.b16 %v1761
      %v1778 = vunpack.c.l.b16 %v1762
      %v1779 = vpack.c.b16 %v1776, %v1775
      %v1780 = vpack.c.b16 %v1778, %v1777
      %1783 = vmatprep.subr.bf16.mxu0 0
      %1784 = vmatpush1.bf16.msra.mxu0 %v1779
      %1785 = vmatprep.subr.bf16.mxu0 0
      %1786 = vmatpush1.bf16.msra.mxu0 %v1780
      %1787 = vmatprep.subr.bf16.mxu0 0
      %1788 = vmatpush1.bf16.msra.mxu0 0
      %1789 = vmatprep.subr.bf16.mxu0 0
      %1790 = vmatpush1.bf16.msra.mxu0 0
      %1791 = vmatprep.subr.bf16.mxu0 0
      %1792 = vmatpush1.bf16.msra.mxu0 0
      %1793 = vmatprep.subr.bf16.mxu0 0
      %1794 = vmatpush1.bf16.msra.mxu0 0
      %1795 = vmatprep.subr.bf16.mxu0 0
      %1796 = vmatpush1.bf16.msra.mxu0 0
      %1797 = vmatprep.subr.bf16.mxu0 0
      %1798 = vmatpush1.bf16.msra.mxu0 0
      %1799 = vmatprep.subr.bf16.mxu0 0
      %1800 = vmatpush1.bf16.msra.mxu0 0
      %1801 = vmatprep.subr.bf16.mxu0 0
      %1802 = vmatpush1.bf16.msra.mxu0 0
      %1803 = vmatprep.subr.bf16.mxu0 0
      %1804 = vmatpush1.bf16.msra.mxu0 0
      %1805 = vmatprep.subr.bf16.mxu0 0
      %1806 = vmatpush1.bf16.msra.mxu0 0
      %1807 = vmatprep.subr.bf16.mxu0 0
      %1808 = vmatpush1.bf16.msra.mxu0 0
      %1809 = vmatprep.subr.bf16.mxu0 0
      %1810 = vmatpush1.bf16.msra.mxu0 0
      %1811 = vmatprep.subr.bf16.mxu0 0
      %1812 = vmatpush1.bf16.msra.mxu0 0
      %1813 = vmatprep.subr.bf16.mxu0 0
      %1814 = vmatpush1.bf16.msra.mxu0 0
      %1815 = vmatprep.mubr.bf16.mxu0 0
      %1816 = vmatmul.mubr.bf16.gmra.mrb[0].mxu0 %v1348
      %v1817 = vpop.f32.mrb[0].mxu0
      %v1818 = vadd.f32 %v1769, %v1817
      %v1819 = vpop.f32.mrb[0].mxu0
      %v1820 = vpop.f32.mrb[0].mxu0
      %v1821 = vpop.f32.mrb[0].mxu0
      %1822 = vdwg.mxu0
      %v1823 = vpack.c.bf16 %v1688, %v1688
      %v1824 = vpack.c.bf16 %v1753, %v1753
      %v1826 = vsel %vm1518, %v1823, 0
      %v1829 = vsel %vm1518, %v1824, 0
      %1831 = vmatprep.subr.bf16.mxu0 0
      %1832 = vmatpush1.bf16.xpose.msra.mxu0 %v1829
      %1833 = vmatprep.subr.bf16.mxu0 0
      %1834 = vmatpush1.bf16.xpose.msra.mxu0 0
      %1835 = vmatprep.subr.bf16.mxu0 0
      %1836 = vmatpush1.bf16.xpose.msra.mxu0 0
      %1837 = vmatprep.subr.bf16.mxu0 0
      %1838 = vmatpush1.bf16.xpose.msra.mxu0 0
      %1839 = vmatprep.subr.bf16.mxu0 0
      %1840 = vmatpush1.bf16.xpose.msra.mxu0 0
      %1841 = vmatprep.subr.bf16.mxu0 0
      %1842 = vmatpush1.bf16.xpose.msra.mxu0 0
      %1843 = vmatprep.subr.bf16.mxu0 0
      %1844 = vmatpush1.bf16.xpose.msra.mxu0 0
      %1845 = vmatprep.subr.bf16.mxu0 0
      %1846 = vmatpush1.bf16.xpose.msra.mxu0 0
      %1847 = vmatprep.subr.bf16.mxu0 0
      %1848 = vmatpush1.bf16.xpose.msra.mxu0 0
      %1849 = vmatprep.subr.bf16.mxu0 0
      %1850 = vmatpush1.bf16.xpose.msra.mxu0 0
      %1851 = vmatprep.subr.bf16.mxu0 0
      %1852 = vmatpush1.bf16.xpose.msra.mxu0 0
      %1853 = vmatprep.subr.bf16.mxu0 0
      %1854 = vmatpush1.bf16.xpose.msra.mxu0 0
      %1855 = vmatprep.subr.bf16.mxu0 0
      %1856 = vmatpush1.bf16.xpose.msra.mxu0 0
      %1857 = vmatprep.subr.bf16.mxu0 0
      %1858 = vmatpush1.bf16.xpose.msra.mxu0 0
      %1859 = vmatprep.subr.bf16.mxu0 0
      %1860 = vmatpush1.bf16.xpose.msra.mxu0 0
      %1861 = vmatprep.subr.bf16.mxu0 0
      %1862 = vmatpush1.bf16.xpose.msra.mxu0 0
      %1863 = vmatprep.mubr.bf16.mxu0 0
      %1864 = vmatmul.mubr.bf16.gmra.mrb[0].mxu0 %v1826
      %v1865 = vpop.f32.mrb[0].mxu0
      %v1866 = vadd.f32 0.0, %v1865
      %v1867 = vpop.f32.mrb[0].mxu0
      %v1868 = vpop.f32.mrb[0].mxu0
      %v1869 = vpop.f32.mrb[0].mxu0
      %1870 = vdwg.mxu0
      %v1871 = vmul.f32 %v1866, 0.35355338
      %v1872 = vsel %vm1518, %v1871, -inf
      %1873 = vmax.xlane.f32.xlu0 %v1872
      %v1874 = vpop.xlane.xlu0 %1873
      %v1875 = vsub.f32 %v1871, %v1874
      %v1876 = vmul.f32 %v1875, 1.442695
      %v1877 = vpow.pop %v1876
      %v1878 = vsel %vm1518, %v1877, 0.0
      %1879 = vadd.xlane.f32.xlu0 %v1878
      %v1880 = vpop.xlane.xlu0 %1879
      %v1881 = vrcp.pop %v1880
      %v1882 = vmul.f32 %v1877, %v1881
      %v1883 = vpack.c.bf16 %v1882, %v1882
      %v1884 = vpack.c.bf16 %v1818, %v1818
      %v1886 = vsel %vm1518, %v1883, 0
      %v1889 = vsel %vm1582, %v1884, 0
      %1891 = vmatprep.subr.bf16.mxu0 0
      %1892 = vmatpush1.bf16.msra.mxu0 %v1889
      %1893 = vmatprep.subr.bf16.mxu0 0
      %1894 = vmatpush1.bf16.msra.mxu0 0
      %1895 = vmatprep.subr.bf16.mxu0 0
      %1896 = vmatpush1.bf16.msra.mxu0 0
      %1897 = vmatprep.subr.bf16.mxu0 0
      %1898 = vmatpush1.bf16.msra.mxu0 0
      %1899 = vmatprep.subr.bf16.mxu0 0
      %1900 = vmatpush1.bf16.msra.mxu0 0
      %1901 = vmatprep.subr.bf16.mxu0 0
      %1902 = vmatpush1.bf16.msra.mxu0 0
      %1903 = vmatprep.subr.bf16.mxu0 0
      %1904 = vmatpush1.bf16.msra.mxu0 0
      %1905 = vmatprep.subr.bf16.mxu0 0
      %1906 = vmatpush1.bf16.msra.mxu0 0
      %1907 = vmatprep.subr.bf16.mxu0 0
      %1908 = vmatpush1.bf16.msra.mxu0 0
      %1909 = vmatprep.subr.bf16.mxu0 0
      %1910 = vmatpush1.bf16.msra.mxu0 0
      %1911 = vmatprep.subr.bf16.mxu0 0
      %1912 = vmatpush1.bf16.msra.mxu0 0
      %1913 = vmatprep.subr.bf16.mxu0 0
      %1914 = vmatpush1.bf16.msra.mxu0 0
      %1915 = vmatprep.subr.bf16.mxu0 0
      %1916 = vmatpush1.bf16.msra.mxu0 0
      %1917 = vmatprep.subr.bf16.mxu0 0
      %1918 = vmatpush1.bf16.msra.mxu0 0
      %1919 = vmatprep.subr.bf16.mxu0 0
      %1920 = vmatpush1.bf16.msra.mxu0 0
      %1921 = vmatprep.subr.bf16.mxu0 0
      %1922 = vmatpush1.bf16.msra.mxu0 0
      %1923 = vmatprep.mubr.bf16.mxu0 0
      %1924 = vmatmul.mubr.bf16.gmra.mrb[0].mxu0 %v1886
      %v1925 = vpop.f32.mrb[0].mxu0
      %v1926 = vadd.f32 0.0, %v1925
      %v1927 = vpop.f32.mrb[0].mxu0
      %v1928 = vpop.f32.mrb[0].mxu0
      %v1929 = vpop.f32.mrb[0].mxu0
      %1930 = vdwg.mxu0
      %v1931 = vpack.c.bf16 %v1926, %v1926
      %s1932 = scalar_lea.vmem %s1235, 4
      %v1933 = vld [vmem:[%s1932] sm:$0xf]
      %v1935 = vsel %vm1518, %v1931, 0
      %v1938 = vsel %vm1582, %v1933, 0
      %1940 = vmatprep.subr.bf16.mxu0 0
      %1941 = vmatpush1.bf16.msra.mxu0 %v1938
      %1942 = vmatprep.subr.bf16.mxu0 0
      %1943 = vmatpush1.bf16.msra.mxu0 0
      %1944 = vmatprep.subr.bf16.mxu0 0
      %1945 = vmatpush1.bf16.msra.mxu0 0
      %1946 = vmatprep.subr.bf16.mxu0 0
      %1947 = vmatpush1.bf16.msra.mxu0 0
      %1948 = vmatprep.subr.bf16.mxu0 0
      %1949 = vmatpush1.bf16.msra.mxu0 0
      %1950 = vmatprep.subr.bf16.mxu0 0
      %1951 = vmatpush1.bf16.msra.mxu0 0
      %1952 = vmatprep.subr.bf16.mxu0 0
      %1953 = vmatpush1.bf16.msra.mxu0 0
      %1954 = vmatprep.subr.bf16.mxu0 0
      %1955 = vmatpush1.bf16.msra.mxu0 0
      %1956 = vmatprep.subr.bf16.mxu0 0
      %1957 = vmatpush1.bf16.msra.mxu0 0
      %1958 = vmatprep.subr.bf16.mxu0 0
      %1959 = vmatpush1.bf16.msra.mxu0 0
      %1960 = vmatprep.subr.bf16.mxu0 0
      %1961 = vmatpush1.bf16.msra.mxu0 0
      %1962 = vmatprep.subr.bf16.mxu0 0
      %1963 = vmatpush1.bf16.msra.mxu0 0
      %1964 = vmatprep.subr.bf16.mxu0 0
      %1965 = vmatpush1.bf16.msra.mxu0 0
      %1966 = vmatprep.subr.bf16.mxu0 0
      %1967 = vmatpush1.bf16.msra.mxu0 0
      %1968 = vmatprep.subr.bf16.mxu0 0
      %1969 = vmatpush1.bf16.msra.mxu0 0
      %1970 = vmatprep.subr.bf16.mxu0 0
      %1971 = vmatpush1.bf16.msra.mxu0 0
      %1972 = vmatprep.mubr.bf16.mxu0 0
      %1973 = vmatmul.mubr.bf16.gmra.mrb[0].mxu0 %v1935
      %v1974 = vpop.f32.mrb[0].mxu0
      %v1975 = vadd.f32 0.0, %v1974
      %v1976 = vpop.f32.mrb[0].mxu0
      %v1977 = vpop.f32.mrb[0].mxu0
      %v1978 = vpop.f32.mrb[0].mxu0
      %1979 = vdwg.mxu0
      %v1981 = vsel %vm1518, %v1626, 0
      %v1984 = vsel %vm1582, %v1627, 0
      %1986 = vmatprep.subr.bf16.mxu0 0
      %1987 = vmatpush1.bf16.msra.mxu0 %v1984
      %1988 = vmatprep.subr.bf16.mxu0 0
      %1989 = vmatpush1.bf16.msra.mxu0 0
      %1990 = vmatprep.subr.bf16.mxu0 0
      %1991 = vmatpush1.bf16.msra.mxu0 0
      %1992 = vmatprep.subr.bf16.mxu0 0
      %1993 = vmatpush1.bf16.msra.mxu0 0
      %1994 = vmatprep.subr.bf16.mxu0 0
      %1995 = vmatpush1.bf16.msra.mxu0 0
      %1996 = vmatprep.subr.bf16.mxu0 0
      %1997 = vmatpush1.bf16.msra.mxu0 0
      %1998 = vmatprep.subr.bf16.mxu0 0
      %1999 = vmatpush1.bf16.msra.mxu0 0
      %2000 = vmatprep.subr.bf16.mxu0 0
      %2001 = vmatpush1.bf16.msra.mxu0 0
      %2002 = vmatprep.subr.bf16.mxu0 0
      %2003 = vmatpush1.bf16.msra.mxu0 0
      %2004 = vmatprep.subr.bf16.mxu0 0
      %2005 = vmatpush1.bf16.msra.mxu0 0
      %2006 = vmatprep.subr.bf16.mxu0 0
      %2007 = vmatpush1.bf16.msra.mxu0 0
      %2008 = vmatprep.subr.bf16.mxu0 0
      %2009 = vmatpush1.bf16.msra.mxu0 0
      %2010 = vmatprep.subr.bf16.mxu0 0
      %2011 = vmatpush1.bf16.msra.mxu0 0
      %2012 = vmatprep.subr.bf16.mxu0 0
      %2013 = vmatpush1.bf16.msra.mxu0 0
      %2014 = vmatprep.subr.bf16.mxu0 0
      %2015 = vmatpush1.bf16.msra.mxu0 0
      %2016 = vmatprep.subr.bf16.mxu0 0
      %2017 = vmatpush1.bf16.msra.mxu0 0
      %2018 = vmatprep.mubr.bf16.mxu0 0
      %2019 = vmatmul.mubr.bf16.gmra.mrb[0].mxu0 %v1981
      %v2020 = vpop.f32.mrb[0].mxu0
      %v2021 = vadd.f32 %v1975, %v2020
      %v2022 = vpop.f32.mrb[0].mxu0
      %v2023 = vpop.f32.mrb[0].mxu0
      %v2024 = vpop.f32.mrb[0].mxu0
      %2025 = vdwg.mxu0
      %s2026 = scalar_lea.vmem %s1208, 32
      %v2027 = vld [vmem:[%s2026] sm:$0xf]
      %v2028 = vld [vmem:[%s2026 + $0x4] sm:$0xf]
      %v2029 = vld [vmem:[%s2026 + $0x8] sm:$0xf]
      %v2030 = vld [vmem:[%s2026 + $0xc] sm:$0xf]
      %s2031 = scalar_lea.vmem %s1222, 2
      %v2032 = vld [vmem:[%s2031] sm:$0x1]
      %v2034 = vlaneseq
      %v2035 = vshrl.u32 %v2034, 7
      %v2036 = vsub.s32 0, %v2035
      %v2037 = vrot.slane %v2032, %v2036
      %v2043 = vunpack.c.l.b16 %v2027
      %v2044 = vunpack.c.l.b16 %v2028
      %v2045 = vunpack.c.l.b16 %v2029
      %v2046 = vunpack.c.l.b16 %v2030
      %v2047 = vpack.c.b16 %v2044, %v2043
      %v2048 = vpack.c.b16 %v2046, %v2045
      %2051 = vmatprep.subr.bf16.mxu0 0
      %2052 = vmatpush1.bf16.msra.mxu0 %v2047
      %2053 = vmatprep.subr.bf16.mxu0 0
      %2054 = vmatpush1.bf16.msra.mxu0 %v2048
      %2055 = vmatprep.subr.bf16.mxu0 0
      %2056 = vmatpush1.bf16.msra.mxu0 0
      %2057 = vmatprep.subr.bf16.mxu0 0
      %2058 = vmatpush1.bf16.msra.mxu0 0
      %2059 = vmatprep.subr.bf16.mxu0 0
      %2060 = vmatpush1.bf16.msra.mxu0 0
      %2061 = vmatprep.subr.bf16.mxu0 0
      %2062 = vmatpush1.bf16.msra.mxu0 0
      %2063 = vmatprep.subr.bf16.mxu0 0
      %2064 = vmatpush1.bf16.msra.mxu0 0
      %2065 = vmatprep.subr.bf16.mxu0 0
      %2066 = vmatpush1.bf16.msra.mxu0 0
      %2067 = vmatprep.subr.bf16.mxu0 0
      %2068 = vmatpush1.bf16.msra.mxu0 0
      %2069 = vmatprep.subr.bf16.mxu0 0
      %2070 = vmatpush1.bf16.msra.mxu0 0
      %2071 = vmatprep.subr.bf16.mxu0 0
      %2072 = vmatpush1.bf16.msra.mxu0 0
      %2073 = vmatprep.subr.bf16.mxu0 0
      %2074 = vmatpush1.bf16.msra.mxu0 0
      %2075 = vmatprep.subr.bf16.mxu0 0
      %2076 = vmatpush1.bf16.msra.mxu0 0
      %2077 = vmatprep.subr.bf16.mxu0 0
      %2078 = vmatpush1.bf16.msra.mxu0 0
      %2079 = vmatprep.subr.bf16.mxu0 0
      %2080 = vmatpush1.bf16.msra.mxu0 0
      %2081 = vmatprep.subr.bf16.mxu0 0
      %2082 = vmatpush1.bf16.msra.mxu0 0
      %2083 = vmatprep.mubr.bf16.mxu0 0
      %2084 = vmatmul.mubr.bf16.gmra.mrb[0].mxu0 %v1348
      %v2085 = vpop.f32.mrb[0].mxu0
      %v2086 = vadd.f32 %v2037, %v2085
      %v2087 = vpop.f32.mrb[0].mxu0
      %v2088 = vpop.f32.mrb[0].mxu0
      %v2089 = vpop.f32.mrb[0].mxu0
      %2090 = vdwg.mxu0
      %s2091 = scalar_lea.vmem %s1213, 32
      %v2092 = vld [vmem:[%s2091] sm:$0xf]
      %v2093 = vld [vmem:[%s2091 + $0x4] sm:$0xf]
      %v2094 = vld [vmem:[%s2091 + $0x8] sm:$0xf]
      %v2095 = vld [vmem:[%s2091 + $0xc] sm:$0xf]
      %s2096 = scalar_lea.vmem %s1226, 2
      %v2097 = vld [vmem:[%s2096] sm:$0x1]
      %v2099 = vlaneseq
      %v2100 = vshrl.u32 %v2099, 7
      %v2101 = vsub.s32 0, %v2100
      %v2102 = vrot.slane %v2097, %v2101
      %v2108 = vunpack.c.l.b16 %v2092
      %v2109 = vunpack.c.l.b16 %v2093
      %v2110 = vunpack.c.l.b16 %v2094
      %v2111 = vunpack.c.l.b16 %v2095
      %v2112 = vpack.c.b16 %v2109, %v2108
      %v2113 = vpack.c.b16 %v2111, %v2110
      %2116 = vmatprep.subr.bf16.mxu0 0
      %2117 = vmatpush1.bf16.msra.mxu0 %v2112
      %2118 = vmatprep.subr.bf16.mxu0 0
      %2119 = vmatpush1.bf16.msra.mxu0 %v2113
      %2120 = vmatprep.subr.bf16.mxu0 0
      %2121 = vmatpush1.bf16.msra.mxu0 0
      %2122 = vmatprep.subr.bf16.mxu0 0
      %2123 = vmatpush1.bf16.msra.mxu0 0
      %2124 = vmatprep.subr.bf16.mxu0 0
      %2125 = vmatpush1.bf16.msra.mxu0 0
      %2126 = vmatprep.subr.bf16.mxu0 0
      %2127 = vmatpush1.bf16.msra.mxu0 0
      %2128 = vmatprep.subr.bf16.mxu0 0
      %2129 = vmatpush1.bf16.msra.mxu0 0
      %2130 = vmatprep.subr.bf16.mxu0 0
      %2131 = vmatpush1.bf16.msra.mxu0 0
      %2132 = vmatprep.subr.bf16.mxu0 0
      %2133 = vmatpush1.bf16.msra.mxu0 0
      %2134 = vmatprep.subr.bf16.mxu0 0
      %2135 = vmatpush1.bf16.msra.mxu0 0
      %2136 = vmatprep.subr.bf16.mxu0 0
      %2137 = vmatpush1.bf16.msra.mxu0 0
      %2138 = vmatprep.subr.bf16.mxu0 0
      %2139 = vmatpush1.bf16.msra.mxu0 0
      %2140 = vmatprep.subr.bf16.mxu0 0
      %2141 = vmatpush1.bf16.msra.mxu0 0
      %2142 = vmatprep.subr.bf16.mxu0 0
      %2143 = vmatpush1.bf16.msra.mxu0 0
      %2144 = vmatprep.subr.bf16.mxu0 0
      %2145 = vmatpush1.bf16.msra.mxu0 0
      %2146 = vmatprep.subr.bf16.mxu0 0
      %2147 = vmatpush1.bf16.msra.mxu0 0
      %2148 = vmatprep.mubr.bf16.mxu0 0
      %2149 = vmatmul.mubr.bf16.gmra.mrb[0].mxu0 %v1348
      %v2150 = vpop.f32.mrb[0].mxu0
      %v2151 = vadd.f32 %v2102, %v2150
      %v2152 = vpop.f32.mrb[0].mxu0
      %v2153 = vpop.f32.mrb[0].mxu0
      %v2154 = vpop.f32.mrb[0].mxu0
      %2155 = vdwg.mxu0
      %s2156 = scalar_lea.vmem %s1218, 32
      %v2157 = vld [vmem:[%s2156] sm:$0xf]
      %v2158 = vld [vmem:[%s2156 + $0x4] sm:$0xf]
      %v2159 = vld [vmem:[%s2156 + $0x8] sm:$0xf]
      %v2160 = vld [vmem:[%s2156 + $0xc] sm:$0xf]
      %s2161 = scalar_lea.vmem %s1230, 2
      %v2162 = vld [vmem:[%s2161] sm:$0x1]
      %v2164 = vlaneseq
      %v2165 = vshrl.u32 %v2164, 7
      %v2166 = vsub.s32 0, %v2165
      %v2167 = vrot.slane %v2162, %v2166
      %v2173 = vunpack.c.l.b16 %v2157
      %v2174 = vunpack.c.l.b16 %v2158
      %v2175 = vunpack.c.l.b16 %v2159
      %v2176 = vunpack.c.l.b16 %v2160
      %v2177 = vpack.c.b16 %v2174, %v2173
      %v2178 = vpack.c.b16 %v2176, %v2175
      %2181 = vmatprep.subr.bf16.mxu0 0
      %2182 = vmatpush1.bf16.msra.mxu0 %v2177
      %2183 = vmatprep.subr.bf16.mxu0 0
      %2184 = vmatpush1.bf16.msra.mxu0 %v2178
      %2185 = vmatprep.subr.bf16.mxu0 0
      %2186 = vmatpush1.bf16.msra.mxu0 0
      %2187 = vmatprep.subr.bf16.mxu0 0
      %2188 = vmatpush1.bf16.msra.mxu0 0
      %2189 = vmatprep.subr.bf16.mxu0 0
      %2190 = vmatpush1.bf16.msra.mxu0 0
      %2191 = vmatprep.subr.bf16.mxu0 0
      %2192 = vmatpush1.bf16.msra.mxu0 0
      %2193 = vmatprep.subr.bf16.mxu0 0
      %2194 = vmatpush1.bf16.msra.mxu0 0
      %2195 = vmatprep.subr.bf16.mxu0 0
      %2196 = vmatpush1.bf16.msra.mxu0 0
      %2197 = vmatprep.subr.bf16.mxu0 0
      %2198 = vmatpush1.bf16.msra.mxu0 0
      %2199 = vmatprep.subr.bf16.mxu0 0
      %2200 = vmatpush1.bf16.msra.mxu0 0
      %2201 = vmatprep.subr.bf16.mxu0 0
      %2202 = vmatpush1.bf16.msra.mxu0 0
      %2203 = vmatprep.subr.bf16.mxu0 0
      %2204 = vmatpush1.bf16.msra.mxu0 0
      %2205 = vmatprep.subr.bf16.mxu0 0
      %2206 = vmatpush1.bf16.msra.mxu0 0
      %2207 = vmatprep.subr.bf16.mxu0 0
      %2208 = vmatpush1.bf16.msra.mxu0 0
      %2209 = vmatprep.subr.bf16.mxu0 0
      %2210 = vmatpush1.bf16.msra.mxu0 0
      %2211 = vmatprep.subr.bf16.mxu0 0
      %2212 = vmatpush1.bf16.msra.mxu0 0
      %2213 = vmatprep.mubr.bf16.mxu0 0
      %2214 = vmatmul.mubr.bf16.gmra.mrb[0].mxu0 %v1348
      %v2215 = vpop.f32.mrb[0].mxu0
      %v2216 = vadd.f32 %v2167, %v2215
      %v2217 = vpop.f32.mrb[0].mxu0
      %v2218 = vpop.f32.mrb[0].mxu0
      %v2219 = vpop.f32.mrb[0].mxu0
      %2220 = vdwg.mxu0
      %v2221 = vpack.c.bf16 %v2086, %v2086
      %v2222 = vpack.c.bf16 %v2151, %v2151
      %v2224 = vsel %vm1518, %v2221, 0
      %v2227 = vsel %vm1518, %v2222, 0
      %2229 = vmatprep.subr.bf16.mxu0 0
      %2230 = vmatpush1.bf16.xpose.msra.mxu0 %v2227
      %2231 = vmatprep.subr.bf16.mxu0 0
      %2232 = vmatpush1.bf16.xpose.msra.mxu0 0
      %2233 = vmatprep.subr.bf16.mxu0 0
      %2234 = vmatpush1.bf16.xpose.msra.mxu0 0
      %2235 = vmatprep.subr.bf16.mxu0 0
      %2236 = vmatpush1.bf16.xpose.msra.mxu0 0
      %2237 = vmatprep.subr.bf16.mxu0 0
      %2238 = vmatpush1.bf16.xpose.msra.mxu0 0
      %2239 = vmatprep.subr.bf16.mxu0 0
      %2240 = vmatpush1.bf16.xpose.msra.mxu0 0
      %2241 = vmatprep.subr.bf16.mxu0 0
      %2242 = vmatpush1.bf16.xpose.msra.mxu0 0
      %2243 = vmatprep.subr.bf16.mxu0 0
      %2244 = vmatpush1.bf16.xpose.msra.mxu0 0
      %2245 = vmatprep.subr.bf16.mxu0 0
      %2246 = vmatpush1.bf16.xpose.msra.mxu0 0
      %2247 = vmatprep.subr.bf16.mxu0 0
      %2248 = vmatpush1.bf16.xpose.msra.mxu0 0
      %2249 = vmatprep.subr.bf16.mxu0 0
      %2250 = vmatpush1.bf16.xpose.msra.mxu0 0
      %2251 = vmatprep.subr.bf16.mxu0 0
      %2252 = vmatpush1.bf16.xpose.msra.mxu0 0
      %2253 = vmatprep.subr.bf16.mxu0 0
      %2254 = vmatpush1.bf16.xpose.msra.mxu0 0
      %2255 = vmatprep.subr.bf16.mxu0 0
      %2256 = vmatpush1.bf16.xpose.msra.mxu0 0
      %2257 = vmatprep.subr.bf16.mxu0 0
      %2258 = vmatpush1.bf16.xpose.msra.mxu0 0
      %2259 = vmatprep.subr.bf16.mxu0 0
      %2260 = vmatpush1.bf16.xpose.msra.mxu0 0
      %2261 = vmatprep.mubr.bf16.mxu0 0
      %2262 = vmatmul.mubr.bf16.gmra.mrb[0].mxu0 %v2224
      %v2263 = vpop.f32.mrb[0].mxu0
      %v2264 = vadd.f32 0.0, %v2263
      %v2265 = vpop.f32.mrb[0].mxu0
      %v2266 = vpop.f32.mrb[0].mxu0
      %v2267 = vpop.f32.mrb[0].mxu0
      %2268 = vdwg.mxu0
      %v2269 = vmul.f32 %v2264, 0.35355338
      %v2270 = vsel %vm1518, %v2269, -inf
      %2271 = vmax.xlane.f32.xlu0 %v2270
      %v2272 = vpop.xlane.xlu0 %2271
      %v2273 = vsub.f32 %v2269, %v2272
      %v2274 = vmul.f32 %v2273, 1.442695
      %v2275 = vpow.pop %v2274
      %v2276 = vsel %vm1518, %v2275, 0.0
      %2277 = vadd.xlane.f32.xlu0 %v2276
      %v2278 = vpop.xlane.xlu0 %2277
      %v2279 = vrcp.pop %v2278
      %v2280 = vmul.f32 %v2275, %v2279
      %v2281 = vpack.c.bf16 %v2280, %v2280
      %v2282 = vpack.c.bf16 %v2216, %v2216
      %v2284 = vsel %vm1518, %v2281, 0
      %v2287 = vsel %vm1582, %v2282, 0
      %2289 = vmatprep.subr.bf16.mxu0 0
      %2290 = vmatpush1.bf16.msra.mxu0 %v2287
      %2291 = vmatprep.subr.bf16.mxu0 0
      %2292 = vmatpush1.bf16.msra.mxu0 0
      %2293 = vmatprep.subr.bf16.mxu0 0
      %2294 = vmatpush1.bf16.msra.mxu0 0
      %2295 = vmatprep.subr.bf16.mxu0 0
      %2296 = vmatpush1.bf16.msra.mxu0 0
      %2297 = vmatprep.subr.bf16.mxu0 0
      %2298 = vmatpush1.bf16.msra.mxu0 0
      %2299 = vmatprep.subr.bf16.mxu0 0
      %2300 = vmatpush1.bf16.msra.mxu0 0
      %2301 = vmatprep.subr.bf16.mxu0 0
      %2302 = vmatpush1.bf16.msra.mxu0 0
      %2303 = vmatprep.subr.bf16.mxu0 0
      %2304 = vmatpush1.bf16.msra.mxu0 0
      %2305 = vmatprep.subr.bf16.mxu0 0
      %2306 = vmatpush1.bf16.msra.mxu0 0
      %2307 = vmatprep.subr.bf16.mxu0 0
      %2308 = vmatpush1.bf16.msra.mxu0 0
      %2309 = vmatprep.subr.bf16.mxu0 0
      %2310 = vmatpush1.bf16.msra.mxu0 0
      %2311 = vmatprep.subr.bf16.mxu0 0
      %2312 = vmatpush1.bf16.msra.mxu0 0
      %2313 = vmatprep.subr.bf16.mxu0 0
      %2314 = vmatpush1.bf16.msra.mxu0 0
      %2315 = vmatprep.subr.bf16.mxu0 0
      %2316 = vmatpush1.bf16.msra.mxu0 0
      %2317 = vmatprep.subr.bf16.mxu0 0
      %2318 = vmatpush1.bf16.msra.mxu0 0
      %2319 = vmatprep.subr.bf16.mxu0 0
      %2320 = vmatpush1.bf16.msra.mxu0 0
      %2321 = vmatprep.mubr.bf16.mxu0 0
      %2322 = vmatmul.mubr.bf16.gmra.mrb[0].mxu0 %v2284
      %v2323 = vpop.f32.mrb[0].mxu0
      %v2324 = vadd.f32 0.0, %v2323
      %v2325 = vpop.f32.mrb[0].mxu0
      %v2326 = vpop.f32.mrb[0].mxu0
      %v2327 = vpop.f32.mrb[0].mxu0
      %2328 = vdwg.mxu0
      %v2329 = vpack.c.bf16 %v2324, %v2324
      %s2330 = scalar_lea.vmem %s1235, 8
      %v2331 = vld [vmem:[%s2330] sm:$0xf]
      %v2333 = vsel %vm1518, %v2329, 0
      %v2336 = vsel %vm1582, %v2331, 0
      %2338 = vmatprep.subr.bf16.mxu0 0
      %2339 = vmatpush1.bf16.msra.mxu0 %v2336
      %2340 = vmatprep.subr.bf16.mxu0 0
      %2341 = vmatpush1.bf16.msra.mxu0 0
      %2342 = vmatprep.subr.bf16.mxu0 0
      %2343 = vmatpush1.bf16.msra.mxu0 0
      %2344 = vmatprep.subr.bf16.mxu0 0
      %2345 = vmatpush1.bf16.msra.mxu0 0
      %2346 = vmatprep.subr.bf16.mxu0 0
      %2347 = vmatpush1.bf16.msra.mxu0 0
      %2348 = vmatprep.subr.bf16.mxu0 0
      %2349 = vmatpush1.bf16.msra.mxu0 0
      %2350 = vmatprep.subr.bf16.mxu0 0
      %2351 = vmatpush1.bf16.msra.mxu0 0
      %2352 = vmatprep.subr.bf16.mxu0 0
      %2353 = vmatpush1.bf16.msra.mxu0 0
      %2354 = vmatprep.subr.bf16.mxu0 0
      %2355 = vmatpush1.bf16.msra.mxu0 0
      %2356 = vmatprep.subr.bf16.mxu0 0
      %2357 = vmatpush1.bf16.msra.mxu0 0
      %2358 = vmatprep.subr.bf16.mxu0 0
      %2359 = vmatpush1.bf16.msra.mxu0 0
      %2360 = vmatprep.subr.bf16.mxu0 0
      %2361 = vmatpush1.bf16.msra.mxu0 0
      %2362 = vmatprep.subr.bf16.mxu0 0
      %2363 = vmatpush1.bf16.msra.mxu0 0
      %2364 = vmatprep.subr.bf16.mxu0 0
      %2365 = vmatpush1.bf16.msra.mxu0 0
      %2366 = vmatprep.subr.bf16.mxu0 0
      %2367 = vmatpush1.bf16.msra.mxu0 0
      %2368 = vmatprep.subr.bf16.mxu0 0
      %2369 = vmatpush1.bf16.msra.mxu0 0
      %2370 = vmatprep.mubr.bf16.mxu0 0
      %2371 = vmatmul.mubr.bf16.gmra.mrb[0].mxu0 %v2333
      %v2372 = vpop.f32.mrb[0].mxu0
      %v2373 = vadd.f32 0.0, %v2372
      %v2374 = vpop.f32.mrb[0].mxu0
      %v2375 = vpop.f32.mrb[0].mxu0
      %v2376 = vpop.f32.mrb[0].mxu0
      %2377 = vdwg.mxu0
      %v2378 = vadd.f32 %v2021, %v2373
      %s2379 = scalar_lea.vmem %s1208, 48
      %v2380 = vld [vmem:[%s2379] sm:$0xf]
      %v2381 = vld [vmem:[%s2379 + $0x4] sm:$0xf]
      %v2382 = vld [vmem:[%s2379 + $0x8] sm:$0xf]
      %v2383 = vld [vmem:[%s2379 + $0xc] sm:$0xf]
      %s2384 = scalar_lea.vmem %s1222, 3
      %v2385 = vld [vmem:[%s2384] sm:$0x1]
      %v2387 = vlaneseq
      %v2388 = vshrl.u32 %v2387, 7
      %v2389 = vsub.s32 0, %v2388
      %v2390 = vrot.slane %v2385, %v2389
      %v2396 = vunpack.c.l.b16 %v2380
      %v2397 = vunpack.c.l.b16 %v2381
      %v2398 = vunpack.c.l.b16 %v2382
      %v2399 = vunpack.c.l.b16 %v2383
      %v2400 = vpack.c.b16 %v2397, %v2396
      %v2401 = vpack.c.b16 %v2399, %v2398
      %2404 = vmatprep.subr.bf16.mxu0 0
      %2405 = vmatpush1.bf16.msra.mxu0 %v2400
      %2406 = vmatprep.subr.bf16.mxu0 0
      %2407 = vmatpush1.bf16.msra.mxu0 %v2401
      %2408 = vmatprep.subr.bf16.mxu0 0
      %2409 = vmatpush1.bf16.msra.mxu0 0
      %2410 = vmatprep.subr.bf16.mxu0 0
      %2411 = vmatpush1.bf16.msra.mxu0 0
      %2412 = vmatprep.subr.bf16.mxu0 0
      %2413 = vmatpush1.bf16.msra.mxu0 0
      %2414 = vmatprep.subr.bf16.mxu0 0
      %2415 = vmatpush1.bf16.msra.mxu0 0
      %2416 = vmatprep.subr.bf16.mxu0 0
      %2417 = vmatpush1.bf16.msra.mxu0 0
      %2418 = vmatprep.subr.bf16.mxu0 0
      %2419 = vmatpush1.bf16.msra.mxu0 0
      %2420 = vmatprep.subr.bf16.mxu0 0
      %2421 = vmatpush1.bf16.msra.mxu0 0
      %2422 = vmatprep.subr.bf16.mxu0 0
      %2423 = vmatpush1.bf16.msra.mxu0 0
      %2424 = vmatprep.subr.bf16.mxu0 0
      %2425 = vmatpush1.bf16.msra.mxu0 0
      %2426 = vmatprep.subr.bf16.mxu0 0
      %2427 = vmatpush1.bf16.msra.mxu0 0
      %2428 = vmatprep.subr.bf16.mxu0 0
      %2429 = vmatpush1.bf16.msra.mxu0 0
      %2430 = vmatprep.subr.bf16.mxu0 0
      %2431 = vmatpush1.bf16.msra.mxu0 0
      %2432 = vmatprep.subr.bf16.mxu0 0
      %2433 = vmatpush1.bf16.msra.mxu0 0
      %2434 = vmatprep.subr.bf16.mxu0 0
      %2435 = vmatpush1.bf16.msra.mxu0 0
      %2436 = vmatprep.mubr.bf16.mxu0 0
      %2437 = vmatmul.mubr.bf16.gmra.mrb[0].mxu0 %v1348
      %v2438 = vpop.f32.mrb[0].mxu0
      %v2439 = vadd.f32 %v2390, %v2438
      %v2440 = vpop.f32.mrb[0].mxu0
      %v2441 = vpop.f32.mrb[0].mxu0
      %v2442 = vpop.f32.mrb[0].mxu0
      %2443 = vdwg.mxu0
      %s2444 = scalar_lea.vmem %s1213, 48
      %v2445 = vld [vmem:[%s2444] sm:$0xf]
      %v2446 = vld [vmem:[%s2444 + $0x4] sm:$0xf]
      %v2447 = vld [vmem:[%s2444 + $0x8] sm:$0xf]
      %v2448 = vld [vmem:[%s2444 + $0xc] sm:$0xf]
      %s2449 = scalar_lea.vmem %s1226, 3
      %v2450 = vld [vmem:[%s2449] sm:$0x1]
      %v2452 = vlaneseq
      %v2453 = vshrl.u32 %v2452, 7
      %v2454 = vsub.s32 0, %v2453
      %v2455 = vrot.slane %v2450, %v2454
      %v2461 = vunpack.c.l.b16 %v2445
      %v2462 = vunpack.c.l.b16 %v2446
      %v2463 = vunpack.c.l.b16 %v2447
      %v2464 = vunpack.c.l.b16 %v2448
      %v2465 = vpack.c.b16 %v2462, %v2461
      %v2466 = vpack.c.b16 %v2464, %v2463
      %2469 = vmatprep.subr.bf16.mxu0 0
      %2470 = vmatpush1.bf16.msra.mxu0 %v2465
      %2471 = vmatprep.subr.bf16.mxu0 0
      %2472 = vmatpush1.bf16.msra.mxu0 %v2466
      %2473 = vmatprep.subr.bf16.mxu0 0
      %2474 = vmatpush1.bf16.msra.mxu0 0
      %2475 = vmatprep.subr.bf16.mxu0 0
      %2476 = vmatpush1.bf16.msra.mxu0 0
      %2477 = vmatprep.subr.bf16.mxu0 0
      %2478 = vmatpush1.bf16.msra.mxu0 0
      %2479 = vmatprep.subr.bf16.mxu0 0
      %2480 = vmatpush1.bf16.msra.mxu0 0
      %2481 = vmatprep.subr.bf16.mxu0 0
      %2482 = vmatpush1.bf16.msra.mxu0 0
      %2483 = vmatprep.subr.bf16.mxu0 0
      %2484 = vmatpush1.bf16.msra.mxu0 0
      %2485 = vmatprep.subr.bf16.mxu0 0
      %2486 = vmatpush1.bf16.msra.mxu0 0
      %2487 = vmatprep.subr.bf16.mxu0 0
      %2488 = vmatpush1.bf16.msra.mxu0 0
      %2489 = vmatprep.subr.bf16.mxu0 0
      %2490 = vmatpush1.bf16.msra.mxu0 0
      %2491 = vmatprep.subr.bf16.mxu0 0
      %2492 = vmatpush1.bf16.msra.mxu0 0
      %2493 = vmatprep.subr.bf16.mxu0 0
      %2494 = vmatpush1.bf16.msra.mxu0 0
      %2495 = vmatprep.subr.bf16.mxu0 0
      %2496 = vmatpush1.bf16.msra.mxu0 0
      %2497 = vmatprep.subr.bf16.mxu0 0
      %2498 = vmatpush1.bf16.msra.mxu0 0
      %2499 = vmatprep.subr.bf16.mxu0 0
      %2500 = vmatpush1.bf16.msra.mxu0 0
      %2501 = vmatprep.mubr.bf16.mxu0 0
      %2502 = vmatmul.mubr.bf16.gmra.mrb[0].mxu0 %v1348
      %v2503 = vpop.f32.mrb[0].mxu0
      %v2504 = vadd.f32 %v2455, %v2503
      %v2505 = vpop.f32.mrb[0].mxu0
      %v2506 = vpop.f32.mrb[0].mxu0
      %v2507 = vpop.f32.mrb[0].mxu0
      %2508 = vdwg.mxu0
      %s2509 = scalar_lea.vmem %s1218, 48
      %v2510 = vld [vmem:[%s2509] sm:$0xf]
      %v2511 = vld [vmem:[%s2509 + $0x4] sm:$0xf]
      %v2512 = vld [vmem:[%s2509 + $0x8] sm:$0xf]
      %v2513 = vld [vmem:[%s2509 + $0xc] sm:$0xf]
      %s2514 = scalar_lea.vmem %s1230, 3
      %v2515 = vld [vmem:[%s2514] sm:$0x1]
      %v2517 = vlaneseq
      %v2518 = vshrl.u32 %v2517, 7
      %v2519 = vsub.s32 0, %v2518
      %v2520 = vrot.slane %v2515, %v2519
      %v2526 = vunpack.c.l.b16 %v2510
      %v2527 = vunpack.c.l.b16 %v2511
      %v2528 = vunpack.c.l.b16 %v2512
      %v2529 = vunpack.c.l.b16 %v2513
      %v2530 = vpack.c.b16 %v2527, %v2526
      %v2531 = vpack.c.b16 %v2529, %v2528
      %2534 = vmatprep.subr.bf16.mxu0 0
      %2535 = vmatpush1.bf16.msra.mxu0 %v2530
      %2536 = vmatprep.subr.bf16.mxu0 0
      %2537 = vmatpush1.bf16.msra.mxu0 %v2531
      %2538 = vmatprep.subr.bf16.mxu0 0
      %2539 = vmatpush1.bf16.msra.mxu0 0
      %2540 = vmatprep.subr.bf16.mxu0 0
      %2541 = vmatpush1.bf16.msra.mxu0 0
      %2542 = vmatprep.subr.bf16.mxu0 0
      %2543 = vmatpush1.bf16.msra.mxu0 0
      %2544 = vmatprep.subr.bf16.mxu0 0
      %2545 = vmatpush1.bf16.msra.mxu0 0
      %2546 = vmatprep.subr.bf16.mxu0 0
      %2547 = vmatpush1.bf16.msra.mxu0 0
      %2548 = vmatprep.subr.bf16.mxu0 0
      %2549 = vmatpush1.bf16.msra.mxu0 0
      %2550 = vmatprep.subr.bf16.mxu0 0
      %2551 = vmatpush1.bf16.msra.mxu0 0
      %2552 = vmatprep.subr.bf16.mxu0 0
      %2553 = vmatpush1.bf16.msra.mxu0 0
      %2554 = vmatprep.subr.bf16.mxu0 0
      %2555 = vmatpush1.bf16.msra.mxu0 0
      %2556 = vmatprep.subr.bf16.mxu0 0
      %2557 = vmatpush1.bf16.msra.mxu0 0
      %2558 = vmatprep.subr.bf16.mxu0 0
      %2559 = vmatpush1.bf16.msra.mxu0 0
      %2560 = vmatprep.subr.bf16.mxu0 0
      %2561 = vmatpush1.bf16.msra.mxu0 0
      %2562 = vmatprep.subr.bf16.mxu0 0
      %2563 = vmatpush1.bf16.msra.mxu0 0
      %2564 = vmatprep.subr.bf16.mxu0 0
      %2565 = vmatpush1.bf16.msra.mxu0 0
      %2566 = vmatprep.mubr.bf16.mxu0 0
      %2567 = vmatmul.mubr.bf16.gmra.mrb[0].mxu0 %v1348
      %v2568 = vpop.f32.mrb[0].mxu0
      %v2569 = vadd.f32 %v2520, %v2568
      %v2570 = vpop.f32.mrb[0].mxu0
      %v2571 = vpop.f32.mrb[0].mxu0
      %v2572 = vpop.f32.mrb[0].mxu0
      %2573 = vdwg.mxu0
      %v2574 = vpack.c.bf16 %v2439, %v2439
      %v2575 = vpack.c.bf16 %v2504, %v2504
      %v2577 = vsel %vm1518, %v2574, 0
      %v2580 = vsel %vm1518, %v2575, 0
      %2582 = vmatprep.subr.bf16.mxu0 0
      %2583 = vmatpush1.bf16.xpose.msra.mxu0 %v2580
      %2584 = vmatprep.subr.bf16.mxu0 0
      %2585 = vmatpush1.bf16.xpose.msra.mxu0 0
      %2586 = vmatprep.subr.bf16.mxu0 0
      %2587 = vmatpush1.bf16.xpose.msra.mxu0 0
      %2588 = vmatprep.subr.bf16.mxu0 0
      %2589 = vmatpush1.bf16.xpose.msra.mxu0 0
      %2590 = vmatprep.subr.bf16.mxu0 0
      %2591 = vmatpush1.bf16.xpose.msra.mxu0 0
      %2592 = vmatprep.subr.bf16.mxu0 0
      %2593 = vmatpush1.bf16.xpose.msra.mxu0 0
      %2594 = vmatprep.subr.bf16.mxu0 0
      %2595 = vmatpush1.bf16.xpose.msra.mxu0 0
      %2596 = vmatprep.subr.bf16.mxu0 0
      %2597 = vmatpush1.bf16.xpose.msra.mxu0 0
      %2598 = vmatprep.subr.bf16.mxu0 0
      %2599 = vmatpush1.bf16.xpose.msra.mxu0 0
      %2600 = vmatprep.subr.bf16.mxu0 0
      %2601 = vmatpush1.bf16.xpose.msra.mxu0 0
      %2602 = vmatprep.subr.bf16.mxu0 0
      %2603 = vmatpush1.bf16.xpose.msra.mxu0 0
      %2604 = vmatprep.subr.bf16.mxu0 0
      %2605 = vmatpush1.bf16.xpose.msra.mxu0 0
      %2606 = vmatprep.subr.bf16.mxu0 0
      %2607 = vmatpush1.bf16.xpose.msra.mxu0 0
      %2608 = vmatprep.subr.bf16.mxu0 0
      %2609 = vmatpush1.bf16.xpose.msra.mxu0 0
      %2610 = vmatprep.subr.bf16.mxu0 0
      %2611 = vmatpush1.bf16.xpose.msra.mxu0 0
      %2612 = vmatprep.subr.bf16.mxu0 0
      %2613 = vmatpush1.bf16.xpose.msra.mxu0 0
      %2614 = vmatprep.mubr.bf16.mxu0 0
      %2615 = vmatmul.mubr.bf16.gmra.mrb[0].mxu0 %v2577
      %v2616 = vpop.f32.mrb[0].mxu0
      %v2617 = vadd.f32 0.0, %v2616
      %v2618 = vpop.f32.mrb[0].mxu0
      %v2619 = vpop.f32.mrb[0].mxu0
      %v2620 = vpop.f32.mrb[0].mxu0
      %2621 = vdwg.mxu0
      %v2622 = vmul.f32 %v2617, 0.35355338
      %v2623 = vsel %vm1518, %v2622, -inf
      %2624 = vmax.xlane.f32.xlu0 %v2623
      %v2625 = vpop.xlane.xlu0 %2624
      %v2626 = vsub.f32 %v2622, %v2625
      %v2627 = vmul.f32 %v2626, 1.442695
      %v2628 = vpow.pop %v2627
      %v2629 = vsel %vm1518, %v2628, 0.0
      %2630 = vadd.xlane.f32.xlu0 %v2629
      %v2631 = vpop.xlane.xlu0 %2630
      %v2632 = vrcp.pop %v2631
      %v2633 = vmul.f32 %v2628, %v2632
      %v2634 = vpack.c.bf16 %v2633, %v2633
      %v2635 = vpack.c.bf16 %v2569, %v2569
      %v2637 = vsel %vm1518, %v2634, 0
      %v2640 = vsel %vm1582, %v2635, 0
      %2642 = vmatprep.subr.bf16.mxu0 0
      %2643 = vmatpush1.bf16.msra.mxu0 %v2640
      %2644 = vmatprep.subr.bf16.mxu0 0
      %2645 = vmatpush1.bf16.msra.mxu0 0
      %2646 = vmatprep.subr.bf16.mxu0 0
      %2647 = vmatpush1.bf16.msra.mxu0 0
      %2648 = vmatprep.subr.bf16.mxu0 0
      %2649 = vmatpush1.bf16.msra.mxu0 0
      %2650 = vmatprep.subr.bf16.mxu0 0
      %2651 = vmatpush1.bf16.msra.mxu0 0
      %2652 = vmatprep.subr.bf16.mxu0 0
      %2653 = vmatpush1.bf16.msra.mxu0 0
      %2654 = vmatprep.subr.bf16.mxu0 0
      %2655 = vmatpush1.bf16.msra.mxu0 0
      %2656 = vmatprep.subr.bf16.mxu0 0
      %2657 = vmatpush1.bf16.msra.mxu0 0
      %2658 = vmatprep.subr.bf16.mxu0 0
      %2659 = vmatpush1.bf16.msra.mxu0 0
      %2660 = vmatprep.subr.bf16.mxu0 0
      %2661 = vmatpush1.bf16.msra.mxu0 0
      %2662 = vmatprep.subr.bf16.mxu0 0
      %2663 = vmatpush1.bf16.msra.mxu0 0
      %2664 = vmatprep.subr.bf16.mxu0 0
      %2665 = vmatpush1.bf16.msra.mxu0 0
      %2666 = vmatprep.subr.bf16.mxu0 0
      %2667 = vmatpush1.bf16.msra.mxu0 0
      %2668 = vmatprep.subr.bf16.mxu0 0
      %2669 = vmatpush1.bf16.msra.mxu0 0
      %2670 = vmatprep.subr.bf16.mxu0 0
      %2671 = vmatpush1.bf16.msra.mxu0 0
      %2672 = vmatprep.subr.bf16.mxu0 0
      %2673 = vmatpush1.bf16.msra.mxu0 0
      %2674 = vmatprep.mubr.bf16.mxu0 0
      %2675 = vmatmul.mubr.bf16.gmra.mrb[0].mxu0 %v2637
      %v2676 = vpop.f32.mrb[0].mxu0
      %v2677 = vadd.f32 0.0, %v2676
      %v2678 = vpop.f32.mrb[0].mxu0
      %v2679 = vpop.f32.mrb[0].mxu0
      %v2680 = vpop.f32.mrb[0].mxu0
      %2681 = vdwg.mxu0
      %v2682 = vpack.c.bf16 %v2677, %v2677
      %s2683 = scalar_lea.vmem %s1235, 12
      %v2684 = vld [vmem:[%s2683] sm:$0xf]
      %v2686 = vsel %vm1518, %v2682, 0
      %v2689 = vsel %vm1582, %v2684, 0
      %2691 = vmatprep.subr.bf16.mxu0 0
      %2692 = vmatpush1.bf16.msra.mxu0 %v2689
      %2693 = vmatprep.subr.bf16.mxu0 0
      %2694 = vmatpush1.bf16.msra.mxu0 0
      %2695 = vmatprep.subr.bf16.mxu0 0
      %2696 = vmatpush1.bf16.msra.mxu0 0
      %2697 = vmatprep.subr.bf16.mxu0 0
      %2698 = vmatpush1.bf16.msra.mxu0 0
      %2699 = vmatprep.subr.bf16.mxu0 0
      %2700 = vmatpush1.bf16.msra.mxu0 0
      %2701 = vmatprep.subr.bf16.mxu0 0
      %2702 = vmatpush1.bf16.msra.mxu0 0
      %2703 = vmatprep.subr.bf16.mxu0 0
      %2704 = vmatpush1.bf16.msra.mxu0 0
      %2705 = vmatprep.subr.bf16.mxu0 0
      %2706 = vmatpush1.bf16.msra.mxu0 0
      %2707 = vmatprep.subr.bf16.mxu0 0
      %2708 = vmatpush1.bf16.msra.mxu0 0
      %2709 = vmatprep.subr.bf16.mxu0 0
      %2710 = vmatpush1.bf16.msra.mxu0 0
      %2711 = vmatprep.subr.bf16.mxu0 0
      %2712 = vmatpush1.bf16.msra.mxu0 0
      %2713 = vmatprep.subr.bf16.mxu0 0
      %2714 = vmatpush1.bf16.msra.mxu0 0
      %2715 = vmatprep.subr.bf16.mxu0 0
      %2716 = vmatpush1.bf16.msra.mxu0 0
      %2717 = vmatprep.subr.bf16.mxu0 0
      %2718 = vmatpush1.bf16.msra.mxu0 0
      %2719 = vmatprep.subr.bf16.mxu0 0
      %2720 = vmatpush1.bf16.msra.mxu0 0
      %2721 = vmatprep.subr.bf16.mxu0 0
      %2722 = vmatpush1.bf16.msra.mxu0 0
      %2723 = vmatprep.mubr.bf16.mxu0 0
      %2724 = vmatmul.mubr.bf16.gmra.mrb[0].mxu0 %v2686
      %v2725 = vpop.f32.mrb[0].mxu0
      %v2726 = vadd.f32 0.0, %v2725
      %v2727 = vpop.f32.mrb[0].mxu0
      %v2728 = vpop.f32.mrb[0].mxu0
      %v2729 = vpop.f32.mrb[0].mxu0
      %2730 = vdwg.mxu0
      %v2731 = vadd.f32 %v2378, %v2726
      %v2732 = vld [vmem:[%s1238] sm:$0x1]
      %v2734 = vlaneseq
      %v2735 = vshrl.u32 %v2734, 7
      %v2736 = vsub.s32 0, %v2735
      %v2737 = vrot.slane %v2732, %v2736
      %v2739 = vadd.f32 %v2731, %v2737
      %v2740 = vadd.f32 %v1320, %v2739
      %v2741 = vld [vmem:[%s1241] sm:$0x1]
      %v2742 = vld [vmem:[%s1244] sm:$0x1]
      %v2743 = vsel %vm1346, %v2740, 0.0
      %2744 = vadd.xlane.f32.xlu0 %v2743
      %v2745 = vpop.xlane.xlu0 %2744
      %v2746 = vrcp.pop 32.0
      %v2747 = vmul.f32 %v2745, %v2746
      %v2748 = vsub.f32 %v2740, %v2747
      %v2749 = vmul.f32 %v2748, %v2748
      %v2750 = vsel %vm1346, %v2749, 0.0
      %2751 = vadd.xlane.f32.xlu0 %v2750
      %v2752 = vpop.xlane.xlu0 %2751
      %v2753 = vmul.f32 %v2752, %v2746
      %v2754 = vadd.f32 %v2753, 1e-05
      %v2755 = vrsqrt.pop %v2754
      %v2756 = vmul.f32 %v2748, %v2755
      %v2758 = vlaneseq
      %v2759 = vshrl.u32 %v2758, 7
      %v2760 = vsub.s32 0, %v2759
      %v2761 = vrot.slane %v2741, %v2760
      %v2763 = vmul.f32 %v2756, %v2761
      %v2765 = vlaneseq
      %v2766 = vshrl.u32 %v2765, 7
      %v2767 = vsub.s32 0, %v2766
      %v2768 = vrot.slane %v2742, %v2767
      %v2770 = vadd.f32 %v2763, %v2768
      %v2771 = vpack.c.bf16 %v2770, %v2770
      %v2772 = vpack.c.bf16 %v1321, %v1321
      %v2773 = vld [vmem:[%s1249] sm:$0xf]
      %v2774 = vld [vmem:[%s1249 + $0x4] sm:$0xf]
      %v2775 = vld [vmem:[%s1249 + $0x8] sm:$0xf]
      %v2776 = vld [vmem:[%s1249 + $0xc] sm:$0xf]
      %v2777 = vld [vmem:[%s1263] sm:$0x1]
      %v2779 = vlaneseq
      %v2780 = vshrl.u32 %v2779, 7
      %v2781 = vsub.s32 0, %v2780
      %v2782 = vrot.slane %v2777, %v2781
      %v2788 = vunpack.c.l.b16 %v2773
      %v2789 = vunpack.c.l.b16 %v2774
      %v2790 = vunpack.c.l.b16 %v2775
      %v2791 = vunpack.c.l.b16 %v2776
      %v2792 = vpack.c.b16 %v2789, %v2788
      %v2793 = vpack.c.b16 %v2791, %v2790
      %v2797 = vsel %vm1346, %v2771, 0
      %2799 = vmatprep.subr.bf16.mxu0 0
      %2800 = vmatpush1.bf16.msra.mxu0 %v2792
      %2801 = vmatprep.subr.bf16.mxu0 0
      %2802 = vmatpush1.bf16.msra.mxu0 %v2793
      %2803 = vmatprep.subr.bf16.mxu0 0
      %2804 = vmatpush1.bf16.msra.mxu0 0
      %2805 = vmatprep.subr.bf16.mxu0 0
      %2806 = vmatpush1.bf16.msra.mxu0 0
      %2807 = vmatprep.subr.bf16.mxu0 0
      %2808 = vmatpush1.bf16.msra.mxu0 0
      %2809 = vmatprep.subr.bf16.mxu0 0
      %2810 = vmatpush1.bf16.msra.mxu0 0
      %2811 = vmatprep.subr.bf16.mxu0 0
      %2812 = vmatpush1.bf16.msra.mxu0 0
      %2813 = vmatprep.subr.bf16.mxu0 0
      %2814 = vmatpush1.bf16.msra.mxu0 0
      %2815 = vmatprep.subr.bf16.mxu0 0
      %2816 = vmatpush1.bf16.msra.mxu0 0
      %2817 = vmatprep.subr.bf16.mxu0 0
      %2818 = vmatpush1.bf16.msra.mxu0 0
      %2819 = vmatprep.subr.bf16.mxu0 0
      %2820 = vmatpush1.bf16.msra.mxu0 0
      %2821 = vmatprep.subr.bf16.mxu0 0
      %2822 = vmatpush1.bf16.msra.mxu0 0
      %2823 = vmatprep.subr.bf16.mxu0 0
      %2824 = vmatpush1.bf16.msra.mxu0 0
      %2825 = vmatprep.subr.bf16.mxu0 0
      %2826 = vmatpush1.bf16.msra.mxu0 0
      %2827 = vmatprep.subr.bf16.mxu0 0
      %2828 = vmatpush1.bf16.msra.mxu0 0
      %2829 = vmatprep.subr.bf16.mxu0 0
      %2830 = vmatpush1.bf16.msra.mxu0 0
      %2831 = vmatprep.mubr.bf16.mxu0 0
      %2832 = vmatmul.mubr.bf16.gmra.mrb[0].mxu0 %v2797
      %v2833 = vpop.f32.mrb[0].mxu0
      %v2834 = vadd.f32 %v2782, %v2833
      %v2835 = vpop.f32.mrb[0].mxu0
      %v2836 = vpop.f32.mrb[0].mxu0
      %v2837 = vpop.f32.mrb[0].mxu0
      %2838 = vdwg.mxu0
      %v2839 = vld [vmem:[%s1254] sm:$0xf]
      %v2840 = vld [vmem:[%s1254 + $0x4] sm:$0xf]
      %v2841 = vld [vmem:[%s1254 + $0x8] sm:$0xf]
      %v2842 = vld [vmem:[%s1254 + $0xc] sm:$0xf]
      %v2843 = vld [vmem:[%s1267] sm:$0x1]
      %v2845 = vlaneseq
      %v2846 = vshrl.u32 %v2845, 7
      %v2847 = vsub.s32 0, %v2846
      %v2848 = vrot.slane %v2843, %v2847
      %v2854 = vunpack.c.l.b16 %v2839
      %v2855 = vunpack.c.l.b16 %v2840
      %v2856 = vunpack.c.l.b16 %v2841
      %v2857 = vunpack.c.l.b16 %v2842
      %v2858 = vpack.c.b16 %v2855, %v2854
      %v2859 = vpack.c.b16 %v2857, %v2856
      %v2863 = vsel %vm1346, %v2772, 0
      %2865 = vmatprep.subr.bf16.mxu0 0
      %2866 = vmatpush1.bf16.msra.mxu0 %v2858
      %2867 = vmatprep.subr.bf16.mxu0 0
      %2868 = vmatpush1.bf16.msra.mxu0 %v2859
      %2869 = vmatprep.subr.bf16.mxu0 0
      %2870 = vmatpush1.bf16.msra.mxu0 0
      %2871 = vmatprep.subr.bf16.mxu0 0
      %2872 = vmatpush1.bf16.msra.mxu0 0
      %2873 = vmatprep.subr.bf16.mxu0 0
      %2874 = vmatpush1.bf16.msra.mxu0 0
      %2875 = vmatprep.subr.bf16.mxu0 0
      %2876 = vmatpush1.bf16.msra.mxu0 0
      %2877 = vmatprep.subr.bf16.mxu0 0
      %2878 = vmatpush1.bf16.msra.mxu0 0
      %2879 = vmatprep.subr.bf16.mxu0 0
      %2880 = vmatpush1.bf16.msra.mxu0 0
      %2881 = vmatprep.subr.bf16.mxu0 0
      %2882 = vmatpush1.bf16.msra.mxu0 0
      %2883 = vmatprep.subr.bf16.mxu0 0
      %2884 = vmatpush1.bf16.msra.mxu0 0
      %2885 = vmatprep.subr.bf16.mxu0 0
      %2886 = vmatpush1.bf16.msra.mxu0 0
      %2887 = vmatprep.subr.bf16.mxu0 0
      %2888 = vmatpush1.bf16.msra.mxu0 0
      %2889 = vmatprep.subr.bf16.mxu0 0
      %2890 = vmatpush1.bf16.msra.mxu0 0
      %2891 = vmatprep.subr.bf16.mxu0 0
      %2892 = vmatpush1.bf16.msra.mxu0 0
      %2893 = vmatprep.subr.bf16.mxu0 0
      %2894 = vmatpush1.bf16.msra.mxu0 0
      %2895 = vmatprep.subr.bf16.mxu0 0
      %2896 = vmatpush1.bf16.msra.mxu0 0
      %2897 = vmatprep.mubr.bf16.mxu0 0
      %2898 = vmatmul.mubr.bf16.gmra.mrb[0].mxu0 %v2863
      %v2899 = vpop.f32.mrb[0].mxu0
      %v2900 = vadd.f32 %v2848, %v2899
      %v2901 = vpop.f32.mrb[0].mxu0
      %v2902 = vpop.f32.mrb[0].mxu0
      %v2903 = vpop.f32.mrb[0].mxu0
      %2904 = vdwg.mxu0
      %v2905 = vld [vmem:[%s1259] sm:$0xf]
      %v2906 = vld [vmem:[%s1259 + $0x4] sm:$0xf]
      %v2907 = vld [vmem:[%s1259 + $0x8] sm:$0xf]
      %v2908 = vld [vmem:[%s1259 + $0xc] sm:$0xf]
      %v2909 = vld [vmem:[%s1271] sm:$0x1]
      %v2911 = vlaneseq
      %v2912 = vshrl.u32 %v2911, 7
      %v2913 = vsub.s32 0, %v2912
      %v2914 = vrot.slane %v2909, %v2913
      %v2920 = vunpack.c.l.b16 %v2905
      %v2921 = vunpack.c.l.b16 %v2906
      %v2922 = vunpack.c.l.b16 %v2907
      %v2923 = vunpack.c.l.b16 %v2908
      %v2924 = vpack.c.b16 %v2921, %v2920
      %v2925 = vpack.c.b16 %v2923, %v2922
      %2928 = vmatprep.subr.bf16.mxu0 0
      %2929 = vmatpush1.bf16.msra.mxu0 %v2924
      %2930 = vmatprep.subr.bf16.mxu0 0
      %2931 = vmatpush1.bf16.msra.mxu0 %v2925
      %2932 = vmatprep.subr.bf16.mxu0 0
      %2933 = vmatpush1.bf16.msra.mxu0 0
      %2934 = vmatprep.subr.bf16.mxu0 0
      %2935 = vmatpush1.bf16.msra.mxu0 0
      %2936 = vmatprep.subr.bf16.mxu0 0
      %2937 = vmatpush1.bf16.msra.mxu0 0
      %2938 = vmatprep.subr.bf16.mxu0 0
      %2939 = vmatpush1.bf16.msra.mxu0 0
      %2940 = vmatprep.subr.bf16.mxu0 0
      %2941 = vmatpush1.bf16.msra.mxu0 0
      %2942 = vmatprep.subr.bf16.mxu0 0
      %2943 = vmatpush1.bf16.msra.mxu0 0
      %2944 = vmatprep.subr.bf16.mxu0 0
      %2945 = vmatpush1.bf16.msra.mxu0 0
      %2946 = vmatprep.subr.bf16.mxu0 0
      %2947 = vmatpush1.bf16.msra.mxu0 0
      %2948 = vmatprep.subr.bf16.mxu0 0
      %2949 = vmatpush1.bf16.msra.mxu0 0
      %2950 = vmatprep.subr.bf16.mxu0 0
      %2951 = vmatpush1.bf16.msra.mxu0 0
      %2952 = vmatprep.subr.bf16.mxu0 0
      %2953 = vmatpush1.bf16.msra.mxu0 0
      %2954 = vmatprep.subr.bf16.mxu0 0
      %2955 = vmatpush1.bf16.msra.mxu0 0
      %2956 = vmatprep.subr.bf16.mxu0 0
      %2957 = vmatpush1.bf16.msra.mxu0 0
      %2958 = vmatprep.subr.bf16.mxu0 0
      %2959 = vmatpush1.bf16.msra.mxu0 0
      %2960 = vmatprep.mubr.bf16.mxu0 0
      %2961 = vmatmul.mubr.bf16.gmra.mrb[0].mxu0 %v2863
      %v2962 = vpop.f32.mrb[0].mxu0
      %v2963 = vadd.f32 %v2914, %v2962
      %v2964 = vpop.f32.mrb[0].mxu0
      %v2965 = vpop.f32.mrb[0].mxu0
      %v2966 = vpop.f32.mrb[0].mxu0
      %2967 = vdwg.mxu0
      %v2968 = vpack.c.bf16 %v2834, %v2834
      %v2969 = vpack.c.bf16 %v2900, %v2900
      %v2971 = vsel %vm1518, %v2968, 0
      %v2974 = vsel %vm1518, %v2969, 0
      %2976 = vmatprep.subr.bf16.mxu0 0
      %2977 = vmatpush1.bf16.xpose.msra.mxu0 %v2974
      %2978 = vmatprep.subr.bf16.mxu0 0
      %2979 = vmatpush1.bf16.xpose.msra.mxu0 0
      %2980 = vmatprep.subr.bf16.mxu0 0
      %2981 = vmatpush1.bf16.xpose.msra.mxu0 0
      %2982 = vmatprep.subr.bf16.mxu0 0
      %2983 = vmatpush1.bf16.xpose.msra.mxu0 0
      %2984 = vmatprep.subr.bf16.mxu0 0
      %2985 = vmatpush1.bf16.xpose.msra.mxu0 0
      %2986 = vmatprep.subr.bf16.mxu0 0
      %2987 = vmatpush1.bf16.xpose.msra.mxu0 0
      %2988 = vmatprep.subr.bf16.mxu0 0
      %2989 = vmatpush1.bf16.xpose.msra.mxu0 0
      %2990 = vmatprep.subr.bf16.mxu0 0
      %2991 = vmatpush1.bf16.xpose.msra.mxu0 0
      %2992 = vmatprep.subr.bf16.mxu0 0
      %2993 = vmatpush1.bf16.xpose.msra.mxu0 0
      %2994 = vmatprep.subr.bf16.mxu0 0
      %2995 = vmatpush1.bf16.xpose.msra.mxu0 0
      %2996 = vmatprep.subr.bf16.mxu0 0
      %2997 = vmatpush1.bf16.xpose.msra.mxu0 0
      %2998 = vmatprep.subr.bf16.mxu0 0
      %2999 = vmatpush1.bf16.xpose.msra.mxu0 0
      %3000 = vmatprep.subr.bf16.mxu0 0
      %3001 = vmatpush1.bf16.xpose.msra.mxu0 0
      %3002 = vmatprep.subr.bf16.mxu0 0
      %3003 = vmatpush1.bf16.xpose.msra.mxu0 0
      %3004 = vmatprep.subr.bf16.mxu0 0
      %3005 = vmatpush1.bf16.xpose.msra.mxu0 0
      %3006 = vmatprep.subr.bf16.mxu0 0
      %3007 = vmatpush1.bf16.xpose.msra.mxu0 0
      %3008 = vmatprep.mubr.bf16.mxu0 0
      %3009 = vmatmul.mubr.bf16.gmra.mrb[0].mxu0 %v2971
      %v3010 = vpop.f32.mrb[0].mxu0
      %v3011 = vadd.f32 0.0, %v3010
      %v3012 = vpop.f32.mrb[0].mxu0
      %v3013 = vpop.f32.mrb[0].mxu0
      %v3014 = vpop.f32.mrb[0].mxu0
      %3015 = vdwg.mxu0
      %v3016 = vmul.f32 %v3011, 0.35355338
      %v3017 = vsel %vm1518, %v3016, -inf
      %3018 = vmax.xlane.f32.xlu0 %v3017
      %v3019 = vpop.xlane.xlu0 %3018
      %v3020 = vsub.f32 %v3016, %v3019
      %v3021 = vmul.f32 %v3020, 1.442695
      %v3022 = vpow.pop %v3021
      %v3023 = vsel %vm1518, %v3022, 0.0
      %3024 = vadd.xlane.f32.xlu0 %v3023
      %v3025 = vpop.xlane.xlu0 %3024
      %v3026 = vrcp.pop %v3025
      %v3027 = vmul.f32 %v3022, %v3026
      %v3028 = vpack.c.bf16 %v3027, %v3027
      %v3029 = vpack.c.bf16 %v2963, %v2963
      %v3031 = vsel %vm1518, %v3028, 0
      %v3034 = vsel %vm1582, %v3029, 0
      %3036 = vmatprep.subr.bf16.mxu0 0
      %3037 = vmatpush1.bf16.msra.mxu0 %v3034
      %3038 = vmatprep.subr.bf16.mxu0 0
      %3039 = vmatpush1.bf16.msra.mxu0 0
      %3040 = vmatprep.subr.bf16.mxu0 0
      %3041 = vmatpush1.bf16.msra.mxu0 0
      %3042 = vmatprep.subr.bf16.mxu0 0
      %3043 = vmatpush1.bf16.msra.mxu0 0
      %3044 = vmatprep.subr.bf16.mxu0 0
      %3045 = vmatpush1.bf16.msra.mxu0 0
      %3046 = vmatprep.subr.bf16.mxu0 0
      %3047 = vmatpush1.bf16.msra.mxu0 0
      %3048 = vmatprep.subr.bf16.mxu0 0
      %3049 = vmatpush1.bf16.msra.mxu0 0
      %3050 = vmatprep.subr.bf16.mxu0 0
      %3051 = vmatpush1.bf16.msra.mxu0 0
      %3052 = vmatprep.subr.bf16.mxu0 0
      %3053 = vmatpush1.bf16.msra.mxu0 0
      %3054 = vmatprep.subr.bf16.mxu0 0
      %3055 = vmatpush1.bf16.msra.mxu0 0
      %3056 = vmatprep.subr.bf16.mxu0 0
      %3057 = vmatpush1.bf16.msra.mxu0 0
      %3058 = vmatprep.subr.bf16.mxu0 0
      %3059 = vmatpush1.bf16.msra.mxu0 0
      %3060 = vmatprep.subr.bf16.mxu0 0
      %3061 = vmatpush1.bf16.msra.mxu0 0
      %3062 = vmatprep.subr.bf16.mxu0 0
      %3063 = vmatpush1.bf16.msra.mxu0 0
      %3064 = vmatprep.subr.bf16.mxu0 0
      %3065 = vmatpush1.bf16.msra.mxu0 0
      %3066 = vmatprep.subr.bf16.mxu0 0
      %3067 = vmatpush1.bf16.msra.mxu0 0
      %3068 = vmatprep.mubr.bf16.mxu0 0
      %3069 = vmatmul.mubr.bf16.gmra.mrb[0].mxu0 %v3031
      %v3070 = vpop.f32.mrb[0].mxu0
      %v3071 = vadd.f32 0.0, %v3070
      %v3072 = vpop.f32.mrb[0].mxu0
      %v3073 = vpop.f32.mrb[0].mxu0
      %v3074 = vpop.f32.mrb[0].mxu0
      %3075 = vdwg.mxu0
      %v3076 = vpack.c.bf16 %v3071, %v3071
      %v3077 = vld [vmem:[%s1276] sm:$0xf]
      %s3078 = scalar_lea.vmem %s1249, 16
      %v3079 = vld [vmem:[%s3078] sm:$0xf]
      %v3080 = vld [vmem:[%s3078 + $0x4] sm:$0xf]
      %v3081 = vld [vmem:[%s3078 + $0x8] sm:$0xf]
      %v3082 = vld [vmem:[%s3078 + $0xc] sm:$0xf]
      %s3083 = scalar_lea.vmem %s1263, 1
      %v3084 = vld [vmem:[%s3083] sm:$0x1]
      %v3086 = vlaneseq
      %v3087 = vshrl.u32 %v3086, 7
      %v3088 = vsub.s32 0, %v3087
      %v3089 = vrot.slane %v3084, %v3088
      %v3095 = vunpack.c.l.b16 %v3079
      %v3096 = vunpack.c.l.b16 %v3080
      %v3097 = vunpack.c.l.b16 %v3081
      %v3098 = vunpack.c.l.b16 %v3082
      %v3099 = vpack.c.b16 %v3096, %v3095
      %v3100 = vpack.c.b16 %v3098, %v3097
      %3103 = vmatprep.subr.bf16.mxu0 0
      %3104 = vmatpush1.bf16.msra.mxu0 %v3099
      %3105 = vmatprep.subr.bf16.mxu0 0
      %3106 = vmatpush1.bf16.msra.mxu0 %v3100
      %3107 = vmatprep.subr.bf16.mxu0 0
      %3108 = vmatpush1.bf16.msra.mxu0 0
      %3109 = vmatprep.subr.bf16.mxu0 0
      %3110 = vmatpush1.bf16.msra.mxu0 0
      %3111 = vmatprep.subr.bf16.mxu0 0
      %3112 = vmatpush1.bf16.msra.mxu0 0
      %3113 = vmatprep.subr.bf16.mxu0 0
      %3114 = vmatpush1.bf16.msra.mxu0 0
      %3115 = vmatprep.subr.bf16.mxu0 0
      %3116 = vmatpush1.bf16.msra.mxu0 0
      %3117 = vmatprep.subr.bf16.mxu0 0
      %3118 = vmatpush1.bf16.msra.mxu0 0
      %3119 = vmatprep.subr.bf16.mxu0 0
      %3120 = vmatpush1.bf16.msra.mxu0 0
      %3121 = vmatprep.subr.bf16.mxu0 0
      %3122 = vmatpush1.bf16.msra.mxu0 0
      %3123 = vmatprep.subr.bf16.mxu0 0
      %3124 = vmatpush1.bf16.msra.mxu0 0
      %3125 = vmatprep.subr.bf16.mxu0 0
      %3126 = vmatpush1.bf16.msra.mxu0 0
      %3127 = vmatprep.subr.bf16.mxu0 0
      %3128 = vmatpush1.bf16.msra.mxu0 0
      %3129 = vmatprep.subr.bf16.mxu0 0
      %3130 = vmatpush1.bf16.msra.mxu0 0
      %3131 = vmatprep.subr.bf16.mxu0 0
      %3132 = vmatpush1.bf16.msra.mxu0 0
      %3133 = vmatprep.subr.bf16.mxu0 0
      %3134 = vmatpush1.bf16.msra.mxu0 0
      %3135 = vmatprep.mubr.bf16.mxu0 0
      %3136 = vmatmul.mubr.bf16.gmra.mrb[0].mxu0 %v2797
      %v3137 = vpop.f32.mrb[0].mxu0
      %v3138 = vadd.f32 %v3089, %v3137
      %v3139 = vpop.f32.mrb[0].mxu0
      %v3140 = vpop.f32.mrb[0].mxu0
      %v3141 = vpop.f32.mrb[0].mxu0
      %3142 = vdwg.mxu0
      %s3143 = scalar_lea.vmem %s1254, 16
      %v3144 = vld [vmem:[%s3143] sm:$0xf]
      %v3145 = vld [vmem:[%s3143 + $0x4] sm:$0xf]
      %v3146 = vld [vmem:[%s3143 + $0x8] sm:$0xf]
      %v3147 = vld [vmem:[%s3143 + $0xc] sm:$0xf]
      %s3148 = scalar_lea.vmem %s1267, 1
      %v3149 = vld [vmem:[%s3148] sm:$0x1]
      %v3151 = vlaneseq
      %v3152 = vshrl.u32 %v3151, 7
      %v3153 = vsub.s32 0, %v3152
      %v3154 = vrot.slane %v3149, %v3153
      %v3160 = vunpack.c.l.b16 %v3144
      %v3161 = vunpack.c.l.b16 %v3145
      %v3162 = vunpack.c.l.b16 %v3146
      %v3163 = vunpack.c.l.b16 %v3147
      %v3164 = vpack.c.b16 %v3161, %v3160
      %v3165 = vpack.c.b16 %v3163, %v3162
      %3168 = vmatprep.subr.bf16.mxu0 0
      %3169 = vmatpush1.bf16.msra.mxu0 %v3164
      %3170 = vmatprep.subr.bf16.mxu0 0
      %3171 = vmatpush1.bf16.msra.mxu0 %v3165
      %3172 = vmatprep.subr.bf16.mxu0 0
      %3173 = vmatpush1.bf16.msra.mxu0 0
      %3174 = vmatprep.subr.bf16.mxu0 0
      %3175 = vmatpush1.bf16.msra.mxu0 0
      %3176 = vmatprep.subr.bf16.mxu0 0
      %3177 = vmatpush1.bf16.msra.mxu0 0
      %3178 = vmatprep.subr.bf16.mxu0 0
      %3179 = vmatpush1.bf16.msra.mxu0 0
      %3180 = vmatprep.subr.bf16.mxu0 0
      %3181 = vmatpush1.bf16.msra.mxu0 0
      %3182 = vmatprep.subr.bf16.mxu0 0
      %3183 = vmatpush1.bf16.msra.mxu0 0
      %3184 = vmatprep.subr.bf16.mxu0 0
      %3185 = vmatpush1.bf16.msra.mxu0 0
      %3186 = vmatprep.subr.bf16.mxu0 0
      %3187 = vmatpush1.bf16.msra.mxu0 0
      %3188 = vmatprep.subr.bf16.mxu0 0
      %3189 = vmatpush1.bf16.msra.mxu0 0
      %3190 = vmatprep.subr.bf16.mxu0 0
      %3191 = vmatpush1.bf16.msra.mxu0 0
      %3192 = vmatprep.subr.bf16.mxu0 0
      %3193 = vmatpush1.bf16.msra.mxu0 0
      %3194 = vmatprep.subr.bf16.mxu0 0
      %3195 = vmatpush1.bf16.msra.mxu0 0
      %3196 = vmatprep.subr.bf16.mxu0 0
      %3197 = vmatpush1.bf16.msra.mxu0 0
      %3198 = vmatprep.subr.bf16.mxu0 0
      %3199 = vmatpush1.bf16.msra.mxu0 0
      %3200 = vmatprep.mubr.bf16.mxu0 0
      %3201 = vmatmul.mubr.bf16.gmra.mrb[0].mxu0 %v2863
      %v3202 = vpop.f32.mrb[0].mxu0
      %v3203 = vadd.f32 %v3154, %v3202
      %v3204 = vpop.f32.mrb[0].mxu0
      %v3205 = vpop.f32.mrb[0].mxu0
      %v3206 = vpop.f32.mrb[0].mxu0
      %3207 = vdwg.mxu0
      %s3208 = scalar_lea.vmem %s1259, 16
      %v3209 = vld [vmem:[%s3208] sm:$0xf]
      %v3210 = vld [vmem:[%s3208 + $0x4] sm:$0xf]
      %v3211 = vld [vmem:[%s3208 + $0x8] sm:$0xf]
      %v3212 = vld [vmem:[%s3208 + $0xc] sm:$0xf]
      %s3213 = scalar_lea.vmem %s1271, 1
      %v3214 = vld [vmem:[%s3213] sm:$0x1]
      %v3216 = vlaneseq
      %v3217 = vshrl.u32 %v3216, 7
      %v3218 = vsub.s32 0, %v3217
      %v3219 = vrot.slane %v3214, %v3218
      %v3225 = vunpack.c.l.b16 %v3209
      %v3226 = vunpack.c.l.b16 %v3210
      %v3227 = vunpack.c.l.b16 %v3211
      %v3228 = vunpack.c.l.b16 %v3212
      %v3229 = vpack.c.b16 %v3226, %v3225
      %v3230 = vpack.c.b16 %v3228, %v3227
      %3233 = vmatprep.subr.bf16.mxu0 0
      %3234 = vmatpush1.bf16.msra.mxu0 %v3229
      %3235 = vmatprep.subr.bf16.mxu0 0
      %3236 = vmatpush1.bf16.msra.mxu0 %v3230
      %3237 = vmatprep.subr.bf16.mxu0 0
      %3238 = vmatpush1.bf16.msra.mxu0 0
      %3239 = vmatprep.subr.bf16.mxu0 0
      %3240 = vmatpush1.bf16.msra.mxu0 0
      %3241 = vmatprep.subr.bf16.mxu0 0
      %3242 = vmatpush1.bf16.msra.mxu0 0
      %3243 = vmatprep.subr.bf16.mxu0 0
      %3244 = vmatpush1.bf16.msra.mxu0 0
      %3245 = vmatprep.subr.bf16.mxu0 0
      %3246 = vmatpush1.bf16.msra.mxu0 0
      %3247 = vmatprep.subr.bf16.mxu0 0
      %3248 = vmatpush1.bf16.msra.mxu0 0
      %3249 = vmatprep.subr.bf16.mxu0 0
      %3250 = vmatpush1.bf16.msra.mxu0 0
      %3251 = vmatprep.subr.bf16.mxu0 0
      %3252 = vmatpush1.bf16.msra.mxu0 0
      %3253 = vmatprep.subr.bf16.mxu0 0
      %3254 = vmatpush1.bf16.msra.mxu0 0
      %3255 = vmatprep.subr.bf16.mxu0 0
      %3256 = vmatpush1.bf16.msra.mxu0 0
      %3257 = vmatprep.subr.bf16.mxu0 0
      %3258 = vmatpush1.bf16.msra.mxu0 0
      %3259 = vmatprep.subr.bf16.mxu0 0
      %3260 = vmatpush1.bf16.msra.mxu0 0
      %3261 = vmatprep.subr.bf16.mxu0 0
      %3262 = vmatpush1.bf16.msra.mxu0 0
      %3263 = vmatprep.subr.bf16.mxu0 0
      %3264 = vmatpush1.bf16.msra.mxu0 0
      %3265 = vmatprep.mubr.bf16.mxu0 0
      %3266 = vmatmul.mubr.bf16.gmra.mrb[0].mxu0 %v2863
      %v3267 = vpop.f32.mrb[0].mxu0
      %v3268 = vadd.f32 %v3219, %v3267
      %v3269 = vpop.f32.mrb[0].mxu0
      %v3270 = vpop.f32.mrb[0].mxu0
      %v3271 = vpop.f32.mrb[0].mxu0
      %3272 = vdwg.mxu0
      %v3273 = vpack.c.bf16 %v3138, %v3138
      %v3274 = vpack.c.bf16 %v3203, %v3203
      %v3276 = vsel %vm1518, %v3273, 0
      %v3279 = vsel %vm1518, %v3274, 0
      %3281 = vmatprep.subr.bf16.mxu0 0
      %3282 = vmatpush1.bf16.xpose.msra.mxu0 %v3279
      %3283 = vmatprep.subr.bf16.mxu0 0
      %3284 = vmatpush1.bf16.xpose.msra.mxu0 0
      %3285 = vmatprep.subr.bf16.mxu0 0
      %3286 = vmatpush1.bf16.xpose.msra.mxu0 0
      %3287 = vmatprep.subr.bf16.mxu0 0
      %3288 = vmatpush1.bf16.xpose.msra.mxu0 0
      %3289 = vmatprep.subr.bf16.mxu0 0
      %3290 = vmatpush1.bf16.xpose.msra.mxu0 0
      %3291 = vmatprep.subr.bf16.mxu0 0
      %3292 = vmatpush1.bf16.xpose.msra.mxu0 0
      %3293 = vmatprep.subr.bf16.mxu0 0
      %3294 = vmatpush1.bf16.xpose.msra.mxu0 0
      %3295 = vmatprep.subr.bf16.mxu0 0
      %3296 = vmatpush1.bf16.xpose.msra.mxu0 0
      %3297 = vmatprep.subr.bf16.mxu0 0
      %3298 = vmatpush1.bf16.xpose.msra.mxu0 0
      %3299 = vmatprep.subr.bf16.mxu0 0
      %3300 = vmatpush1.bf16.xpose.msra.mxu0 0
      %3301 = vmatprep.subr.bf16.mxu0 0
      %3302 = vmatpush1.bf16.xpose.msra.mxu0 0
      %3303 = vmatprep.subr.bf16.mxu0 0
      %3304 = vmatpush1.bf16.xpose.msra.mxu0 0
      %3305 = vmatprep.subr.bf16.mxu0 0
      %3306 = vmatpush1.bf16.xpose.msra.mxu0 0
      %3307 = vmatprep.subr.bf16.mxu0 0
      %3308 = vmatpush1.bf16.xpose.msra.mxu0 0
      %3309 = vmatprep.subr.bf16.mxu0 0
      %3310 = vmatpush1.bf16.xpose.msra.mxu0 0
      %3311 = vmatprep.subr.bf16.mxu0 0
      %3312 = vmatpush1.bf16.xpose.msra.mxu0 0
      %3313 = vmatprep.mubr.bf16.mxu0 0
      %3314 = vmatmul.mubr.bf16.gmra.mrb[0].mxu0 %v3276
      %v3315 = vpop.f32.mrb[0].mxu0
      %v3316 = vadd.f32 0.0, %v3315
      %v3317 = vpop.f32.mrb[0].mxu0
      %v3318 = vpop.f32.mrb[0].mxu0
      %v3319 = vpop.f32.mrb[0].mxu0
      %3320 = vdwg.mxu0
      %v3321 = vmul.f32 %v3316, 0.35355338
      %v3322 = vsel %vm1518, %v3321, -inf
      %3323 = vmax.xlane.f32.xlu0 %v3322
      %v3324 = vpop.xlane.xlu0 %3323
      %v3325 = vsub.f32 %v3321, %v3324
      %v3326 = vmul.f32 %v3325, 1.442695
      %v3327 = vpow.pop %v3326
      %v3328 = vsel %vm1518, %v3327, 0.0
      %3329 = vadd.xlane.f32.xlu0 %v3328
      %v3330 = vpop.xlane.xlu0 %3329
      %v3331 = vrcp.pop %v3330
      %v3332 = vmul.f32 %v3327, %v3331
      %v3333 = vpack.c.bf16 %v3332, %v3332
      %v3334 = vpack.c.bf16 %v3268, %v3268
      %v3336 = vsel %vm1518, %v3333, 0
      %v3339 = vsel %vm1582, %v3334, 0
      %3341 = vmatprep.subr.bf16.mxu0 0
      %3342 = vmatpush1.bf16.msra.mxu0 %v3339
      %3343 = vmatprep.subr.bf16.mxu0 0
      %3344 = vmatpush1.bf16.msra.mxu0 0
      %3345 = vmatprep.subr.bf16.mxu0 0
      %3346 = vmatpush1.bf16.msra.mxu0 0
      %3347 = vmatprep.subr.bf16.mxu0 0
      %3348 = vmatpush1.bf16.msra.mxu0 0
      %3349 = vmatprep.subr.bf16.mxu0 0
      %3350 = vmatpush1.bf16.msra.mxu0 0
      %3351 = vmatprep.subr.bf16.mxu0 0
      %3352 = vmatpush1.bf16.msra.mxu0 0
      %3353 = vmatprep.subr.bf16.mxu0 0
      %3354 = vmatpush1.bf16.msra.mxu0 0
      %3355 = vmatprep.subr.bf16.mxu0 0
      %3356 = vmatpush1.bf16.msra.mxu0 0
      %3357 = vmatprep.subr.bf16.mxu0 0
      %3358 = vmatpush1.bf16.msra.mxu0 0
      %3359 = vmatprep.subr.bf16.mxu0 0
      %3360 = vmatpush1.bf16.msra.mxu0 0
      %3361 = vmatprep.subr.bf16.mxu0 0
      %3362 = vmatpush1.bf16.msra.mxu0 0
      %3363 = vmatprep.subr.bf16.mxu0 0
      %3364 = vmatpush1.bf16.msra.mxu0 0
      %3365 = vmatprep.subr.bf16.mxu0 0
      %3366 = vmatpush1.bf16.msra.mxu0 0
      %3367 = vmatprep.subr.bf16.mxu0 0
      %3368 = vmatpush1.bf16.msra.mxu0 0
      %3369 = vmatprep.subr.bf16.mxu0 0
      %3370 = vmatpush1.bf16.msra.mxu0 0
      %3371 = vmatprep.subr.bf16.mxu0 0
      %3372 = vmatpush1.bf16.msra.mxu0 0
      %3373 = vmatprep.mubr.bf16.mxu0 0
      %3374 = vmatmul.mubr.bf16.gmra.mrb[0].mxu0 %v3336
      %v3375 = vpop.f32.mrb[0].mxu0
      %v3376 = vadd.f32 0.0, %v3375
      %v3377 = vpop.f32.mrb[0].mxu0
      %v3378 = vpop.f32.mrb[0].mxu0
      %v3379 = vpop.f32.mrb[0].mxu0
      %3380 = vdwg.mxu0
      %v3381 = vpack.c.bf16 %v3376, %v3376
      %s3382 = scalar_lea.vmem %s1276, 4
      %v3383 = vld [vmem:[%s3382] sm:$0xf]
      %v3385 = vsel %vm1518, %v3381, 0
      %v3388 = vsel %vm1582, %v3383, 0
      %3390 = vmatprep.subr.bf16.mxu0 0
      %3391 = vmatpush1.bf16.msra.mxu0 %v3388
      %3392 = vmatprep.subr.bf16.mxu0 0
      %3393 = vmatpush1.bf16.msra.mxu0 0
      %3394 = vmatprep.subr.bf16.mxu0 0
      %3395 = vmatpush1.bf16.msra.mxu0 0
      %3396 = vmatprep.subr.bf16.mxu0 0
      %3397 = vmatpush1.bf16.msra.mxu0 0
      %3398 = vmatprep.subr.bf16.mxu0 0
      %3399 = vmatpush1.bf16.msra.mxu0 0
      %3400 = vmatprep.subr.bf16.mxu0 0
      %3401 = vmatpush1.bf16.msra.mxu0 0
      %3402 = vmatprep.subr.bf16.mxu0 0
      %3403 = vmatpush1.bf16.msra.mxu0 0
      %3404 = vmatprep.subr.bf16.mxu0 0
      %3405 = vmatpush1.bf16.msra.mxu0 0
      %3406 = vmatprep.subr.bf16.mxu0 0
      %3407 = vmatpush1.bf16.msra.mxu0 0
      %3408 = vmatprep.subr.bf16.mxu0 0
      %3409 = vmatpush1.bf16.msra.mxu0 0
      %3410 = vmatprep.subr.bf16.mxu0 0
      %3411 = vmatpush1.bf16.msra.mxu0 0
      %3412 = vmatprep.subr.bf16.mxu0 0
      %3413 = vmatpush1.bf16.msra.mxu0 0
      %3414 = vmatprep.subr.bf16.mxu0 0
      %3415 = vmatpush1.bf16.msra.mxu0 0
      %3416 = vmatprep.subr.bf16.mxu0 0
      %3417 = vmatpush1.bf16.msra.mxu0 0
      %3418 = vmatprep.subr.bf16.mxu0 0
      %3419 = vmatpush1.bf16.msra.mxu0 0
      %3420 = vmatprep.subr.bf16.mxu0 0
      %3421 = vmatpush1.bf16.msra.mxu0 0
      %3422 = vmatprep.mubr.bf16.mxu0 0
      %3423 = vmatmul.mubr.bf16.gmra.mrb[0].mxu0 %v3385
      %v3424 = vpop.f32.mrb[0].mxu0
      %v3425 = vadd.f32 0.0, %v3424
      %v3426 = vpop.f32.mrb[0].mxu0
      %v3427 = vpop.f32.mrb[0].mxu0
      %v3428 = vpop.f32.mrb[0].mxu0
      %3429 = vdwg.mxu0
      %v3431 = vsel %vm1518, %v3076, 0
      %v3434 = vsel %vm1582, %v3077, 0
      %3436 = vmatprep.subr.bf16.mxu0 0
      %3437 = vmatpush1.bf16.msra.mxu0 %v3434
      %3438 = vmatprep.subr.bf16.mxu0 0
      %3439 = vmatpush1.bf16.msra.mxu0 0
      %3440 = vmatprep.subr.bf16.mxu0 0
      %3441 = vmatpush1.bf16.msra.mxu0 0
      %3442 = vmatprep.subr.bf16.mxu0 0
      %3443 = vmatpush1.bf16.msra.mxu0 0
      %3444 = vmatprep.subr.bf16.mxu0 0
      %3445 = vmatpush1.bf16.msra.mxu0 0
      %3446 = vmatprep.subr.bf16.mxu0 0
      %3447 = vmatpush1.bf16.msra.mxu0 0
      %3448 = vmatprep.subr.bf16.mxu0 0
      %3449 = vmatpush1.bf16.msra.mxu0 0
      %3450 = vmatprep.subr.bf16.mxu0 0
      %3451 = vmatpush1.bf16.msra.mxu0 0
      %3452 = vmatprep.subr.bf16.mxu0 0
      %3453 = vmatpush1.bf16.msra.mxu0 0
      %3454 = vmatprep.subr.bf16.mxu0 0
      %3455 = vmatpush1.bf16.msra.mxu0 0
      %3456 = vmatprep.subr.bf16.mxu0 0
      %3457 = vmatpush1.bf16.msra.mxu0 0
      %3458 = vmatprep.subr.bf16.mxu0 0
      %3459 = vmatpush1.bf16.msra.mxu0 0
      %3460 = vmatprep.subr.bf16.mxu0 0
      %3461 = vmatpush1.bf16.msra.mxu0 0
      %3462 = vmatprep.subr.bf16.mxu0 0
      %3463 = vmatpush1.bf16.msra.mxu0 0
      %3464 = vmatprep.subr.bf16.mxu0 0
      %3465 = vmatpush1.bf16.msra.mxu0 0
      %3466 = vmatprep.subr.bf16.mxu0 0
      %3467 = vmatpush1.bf16.msra.mxu0 0
      %3468 = vmatprep.mubr.bf16.mxu0 0
      %3469 = vmatmul.mubr.bf16.gmra.mrb[0].mxu0 %v3431
      %v3470 = vpop.f32.mrb[0].mxu0
      %v3471 = vadd.f32 %v3425, %v3470
      %v3472 = vpop.f32.mrb[0].mxu0
      %v3473 = vpop.f32.mrb[0].mxu0
      %v3474 = vpop.f32.mrb[0].mxu0
      %3475 = vdwg.mxu0
      %s3476 = scalar_lea.vmem %s1249, 32
      %v3477 = vld [vmem:[%s3476] sm:$0xf]
      %v3478 = vld [vmem:[%s3476 + $0x4] sm:$0xf]
      %v3479 = vld [vmem:[%s3476 + $0x8] sm:$0xf]
      %v3480 = vld [vmem:[%s3476 + $0xc] sm:$0xf]
      %s3481 = scalar_lea.vmem %s1263, 2
      %v3482 = vld [vmem:[%s3481] sm:$0x1]
      %v3484 = vlaneseq
      %v3485 = vshrl.u32 %v3484, 7
      %v3486 = vsub.s32 0, %v3485
      %v3487 = vrot.slane %v3482, %v3486
      %v3493 = vunpack.c.l.b16 %v3477
      %v3494 = vunpack.c.l.b16 %v3478
      %v3495 = vunpack.c.l.b16 %v3479
      %v3496 = vunpack.c.l.b16 %v3480
      %v3497 = vpack.c.b16 %v3494, %v3493
      %v3498 = vpack.c.b16 %v3496, %v3495
      %3501 = vmatprep.subr.bf16.mxu0 0
      %3502 = vmatpush1.bf16.msra.mxu0 %v3497
      %3503 = vmatprep.subr.bf16.mxu0 0
      %3504 = vmatpush1.bf16.msra.mxu0 %v3498
      %3505 = vmatprep.subr.bf16.mxu0 0
      %3506 = vmatpush1.bf16.msra.mxu0 0
      %3507 = vmatprep.subr.bf16.mxu0 0
      %3508 = vmatpush1.bf16.msra.mxu0 0
      %3509 = vmatprep.subr.bf16.mxu0 0
      %3510 = vmatpush1.bf16.msra.mxu0 0
      %3511 = vmatprep.subr.bf16.mxu0 0
      %3512 = vmatpush1.bf16.msra.mxu0 0
      %3513 = vmatprep.subr.bf16.mxu0 0
      %3514 = vmatpush1.bf16.msra.mxu0 0
      %3515 = vmatprep.subr.bf16.mxu0 0
      %3516 = vmatpush1.bf16.msra.mxu0 0
      %3517 = vmatprep.subr.bf16.mxu0 0
      %3518 = vmatpush1.bf16.msra.mxu0 0
      %3519 = vmatprep.subr.bf16.mxu0 0
      %3520 = vmatpush1.bf16.msra.mxu0 0
      %3521 = vmatprep.subr.bf16.mxu0 0
      %3522 = vmatpush1.bf16.msra.mxu0 0
      %3523 = vmatprep.subr.bf16.mxu0 0
      %3524 = vmatpush1.bf16.msra.mxu0 0
      %3525 = vmatprep.subr.bf16.mxu0 0
      %3526 = vmatpush1.bf16.msra.mxu0 0
      %3527 = vmatprep.subr.bf16.mxu0 0
      %3528 = vmatpush1.bf16.msra.mxu0 0
      %3529 = vmatprep.subr.bf16.mxu0 0
      %3530 = vmatpush1.bf16.msra.mxu0 0
      %3531 = vmatprep.subr.bf16.mxu0 0
      %3532 = vmatpush1.bf16.msra.mxu0 0
      %3533 = vmatprep.mubr.bf16.mxu0 0
      %3534 = vmatmul.mubr.bf16.gmra.mrb[0].mxu0 %v2797
      %v3535 = vpop.f32.mrb[0].mxu0
      %v3536 = vadd.f32 %v3487, %v3535
      %v3537 = vpop.f32.mrb[0].mxu0
      %v3538 = vpop.f32.mrb[0].mxu0
      %v3539 = vpop.f32.mrb[0].mxu0
      %3540 = vdwg.mxu0
      %s3541 = scalar_lea.vmem %s1254, 32
      %v3542 = vld [vmem:[%s3541] sm:$0xf]
      %v3543 = vld [vmem:[%s3541 + $0x4] sm:$0xf]
      %v3544 = vld [vmem:[%s3541 + $0x8] sm:$0xf]
      %v3545 = vld [vmem:[%s3541 + $0xc] sm:$0xf]
      %s3546 = scalar_lea.vmem %s1267, 2
      %v3547 = vld [vmem:[%s3546] sm:$0x1]
      %v3549 = vlaneseq
      %v3550 = vshrl.u32 %v3549, 7
      %v3551 = vsub.s32 0, %v3550
      %v3552 = vrot.slane %v3547, %v3551
      %v3558 = vunpack.c.l.b16 %v3542
      %v3559 = vunpack.c.l.b16 %v3543
      %v3560 = vunpack.c.l.b16 %v3544
      %v3561 = vunpack.c.l.b16 %v3545
      %v3562 = vpack.c.b16 %v3559, %v3558
      %v3563 = vpack.c.b16 %v3561, %v3560
      %3566 = vmatprep.subr.bf16.mxu0 0
      %3567 = vmatpush1.bf16.msra.mxu0 %v3562
      %3568 = vmatprep.subr.bf16.mxu0 0
      %3569 = vmatpush1.bf16.msra.mxu0 %v3563
      %3570 = vmatprep.subr.bf16.mxu0 0
      %3571 = vmatpush1.bf16.msra.mxu0 0
      %3572 = vmatprep.subr.bf16.mxu0 0
      %3573 = vmatpush1.bf16.msra.mxu0 0
      %3574 = vmatprep.subr.bf16.mxu0 0
      %3575 = vmatpush1.bf16.msra.mxu0 0
      %3576 = vmatprep.subr.bf16.mxu0 0
      %3577 = vmatpush1.bf16.msra.mxu0 0
      %3578 = vmatprep.subr.bf16.mxu0 0
      %3579 = vmatpush1.bf16.msra.mxu0 0
      %3580 = vmatprep.subr.bf16.mxu0 0
      %3581 = vmatpush1.bf16.msra.mxu0 0
      %3582 = vmatprep.subr.bf16.mxu0 0
      %3583 = vmatpush1.bf16.msra.mxu0 0
      %3584 = vmatprep.subr.bf16.mxu0 0
      %3585 = vmatpush1.bf16.msra.mxu0 0
      %3586 = vmatprep.subr.bf16.mxu0 0
      %3587 = vmatpush1.bf16.msra.mxu0 0
      %3588 = vmatprep.subr.bf16.mxu0 0
      %3589 = vmatpush1.bf16.msra.mxu0 0
      %3590 = vmatprep.subr.bf16.mxu0 0
      %3591 = vmatpush1.bf16.msra.mxu0 0
      %3592 = vmatprep.subr.bf16.mxu0 0
      %3593 = vmatpush1.bf16.msra.mxu0 0
      %3594 = vmatprep.subr.bf16.mxu0 0
      %3595 = vmatpush1.bf16.msra.mxu0 0
      %3596 = vmatprep.subr.bf16.mxu0 0
      %3597 = vmatpush1.bf16.msra.mxu0 0
      %3598 = vmatprep.mubr.bf16.mxu0 0
      %3599 = vmatmul.mubr.bf16.gmra.mrb[0].mxu0 %v2863
      %v3600 = vpop.f32.mrb[0].mxu0
      %v3601 = vadd.f32 %v3552, %v3600
      %v3602 = vpop.f32.mrb[0].mxu0
      %v3603 = vpop.f32.mrb[0].mxu0
      %v3604 = vpop.f32.mrb[0].mxu0
      %3605 = vdwg.mxu0
      %s3606 = scalar_lea.vmem %s1259, 32
      %v3607 = vld [vmem:[%s3606] sm:$0xf]
      %v3608 = vld [vmem:[%s3606 + $0x4] sm:$0xf]
      %v3609 = vld [vmem:[%s3606 + $0x8] sm:$0xf]
      %v3610 = vld [vmem:[%s3606 + $0xc] sm:$0xf]
      %s3611 = scalar_lea.vmem %s1271, 2
      %v3612 = vld [vmem:[%s3611] sm:$0x1]
      %v3614 = vlaneseq
      %v3615 = vshrl.u32 %v3614, 7
      %v3616 = vsub.s32 0, %v3615
      %v3617 = vrot.slane %v3612, %v3616
      %v3623 = vunpack.c.l.b16 %v3607
      %v3624 = vunpack.c.l.b16 %v3608
      %v3625 = vunpack.c.l.b16 %v3609
      %v3626 = vunpack.c.l.b16 %v3610
      %v3627 = vpack.c.b16 %v3624, %v3623
      %v3628 = vpack.c.b16 %v3626, %v3625
      %3631 = vmatprep.subr.bf16.mxu0 0
      %3632 = vmatpush1.bf16.msra.mxu0 %v3627
      %3633 = vmatprep.subr.bf16.mxu0 0
      %3634 = vmatpush1.bf16.msra.mxu0 %v3628
      %3635 = vmatprep.subr.bf16.mxu0 0
      %3636 = vmatpush1.bf16.msra.mxu0 0
      %3637 = vmatprep.subr.bf16.mxu0 0
      %3638 = vmatpush1.bf16.msra.mxu0 0
      %3639 = vmatprep.subr.bf16.mxu0 0
      %3640 = vmatpush1.bf16.msra.mxu0 0
      %3641 = vmatprep.subr.bf16.mxu0 0
      %3642 = vmatpush1.bf16.msra.mxu0 0
      %3643 = vmatprep.subr.bf16.mxu0 0
      %3644 = vmatpush1.bf16.msra.mxu0 0
      %3645 = vmatprep.subr.bf16.mxu0 0
      %3646 = vmatpush1.bf16.msra.mxu0 0
      %3647 = vmatprep.subr.bf16.mxu0 0
      %3648 = vmatpush1.bf16.msra.mxu0 0
      %3649 = vmatprep.subr.bf16.mxu0 0
      %3650 = vmatpush1.bf16.msra.mxu0 0
      %3651 = vmatprep.subr.bf16.mxu0 0
      %3652 = vmatpush1.bf16.msra.mxu0 0
      %3653 = vmatprep.subr.bf16.mxu0 0
      %3654 = vmatpush1.bf16.msra.mxu0 0
      %3655 = vmatprep.subr.bf16.mxu0 0
      %3656 = vmatpush1.bf16.msra.mxu0 0
      %3657 = vmatprep.subr.bf16.mxu0 0
      %3658 = vmatpush1.bf16.msra.mxu0 0
      %3659 = vmatprep.subr.bf16.mxu0 0
      %3660 = vmatpush1.bf16.msra.mxu0 0
      %3661 = vmatprep.subr.bf16.mxu0 0
      %3662 = vmatpush1.bf16.msra.mxu0 0
      %3663 = vmatprep.mubr.bf16.mxu0 0
      %3664 = vmatmul.mubr.bf16.gmra.mrb[0].mxu0 %v2863
      %v3665 = vpop.f32.mrb[0].mxu0
      %v3666 = vadd.f32 %v3617, %v3665
      %v3667 = vpop.f32.mrb[0].mxu0
      %v3668 = vpop.f32.mrb[0].mxu0
      %v3669 = vpop.f32.mrb[0].mxu0
      %3670 = vdwg.mxu0
      %v3671 = vpack.c.bf16 %v3536, %v3536
      %v3672 = vpack.c.bf16 %v3601, %v3601
      %v3674 = vsel %vm1518, %v3671, 0
      %v3677 = vsel %vm1518, %v3672, 0
      %3679 = vmatprep.subr.bf16.mxu0 0
      %3680 = vmatpush1.bf16.xpose.msra.mxu0 %v3677
      %3681 = vmatprep.subr.bf16.mxu0 0
      %3682 = vmatpush1.bf16.xpose.msra.mxu0 0
      %3683 = vmatprep.subr.bf16.mxu0 0
      %3684 = vmatpush1.bf16.xpose.msra.mxu0 0
      %3685 = vmatprep.subr.bf16.mxu0 0
      %3686 = vmatpush1.bf16.xpose.msra.mxu0 0
      %3687 = vmatprep.subr.bf16.mxu0 0
      %3688 = vmatpush1.bf16.xpose.msra.mxu0 0
      %3689 = vmatprep.subr.bf16.mxu0 0
      %3690 = vmatpush1.bf16.xpose.msra.mxu0 0
      %3691 = vmatprep.subr.bf16.mxu0 0
      %3692 = vmatpush1.bf16.xpose.msra.mxu0 0
      %3693 = vmatprep.subr.bf16.mxu0 0
      %3694 = vmatpush1.bf16.xpose.msra.mxu0 0
      %3695 = vmatprep.subr.bf16.mxu0 0
      %3696 = vmatpush1.bf16.xpose.msra.mxu0 0
      %3697 = vmatprep.subr.bf16.mxu0 0
      %3698 = vmatpush1.bf16.xpose.msra.mxu0 0
      %3699 = vmatprep.subr.bf16.mxu0 0
      %3700 = vmatpush1.bf16.xpose.msra.mxu0 0
      %3701 = vmatprep.subr.bf16.mxu0 0
      %3702 = vmatpush1.bf16.xpose.msra.mxu0 0
      %3703 = vmatprep.subr.bf16.mxu0 0
      %3704 = vmatpush1.bf16.xpose.msra.mxu0 0
      %3705 = vmatprep.subr.bf16.mxu0 0
      %3706 = vmatpush1.bf16.xpose.msra.mxu0 0
      %3707 = vmatprep.subr.bf16.mxu0 0
      %3708 = vmatpush1.bf16.xpose.msra.mxu0 0
      %3709 = vmatprep.subr.bf16.mxu0 0
      %3710 = vmatpush1.bf16.xpose.msra.mxu0 0
      %3711 = vmatprep.mubr.bf16.mxu0 0
      %3712 = vmatmul.mubr.bf16.gmra.mrb[0].mxu0 %v3674
      %v3713 = vpop.f32.mrb[0].mxu0
      %v3714 = vadd.f32 0.0, %v3713
      %v3715 = vpop.f32.mrb[0].mxu0
      %v3716 = vpop.f32.mrb[0].mxu0
      %v3717 = vpop.f32.mrb[0].mxu0
      %3718 = vdwg.mxu0
      %v3719 = vmul.f32 %v3714, 0.35355338
      %v3720 = vsel %vm1518, %v3719, -inf
      %3721 = vmax.xlane.f32.xlu0 %v3720
      %v3722 = vpop.xlane.xlu0 %3721
      %v3723 = vsub.f32 %v3719, %v3722
      %v3724 = vmul.f32 %v3723, 1.442695
      %v3725 = vpow.pop %v3724
      %v3726 = vsel %vm1518, %v3725, 0.0
      %3727 = vadd.xlane.f32.xlu0 %v3726
      %v3728 = vpop.xlane.xlu0 %3727
      %v3729 = vrcp.pop %v3728
      %v3730 = vmul.f32 %v3725, %v3729
      %v3731 = vpack.c.bf16 %v3730, %v3730
      %v3732 = vpack.c.bf16 %v3666, %v3666
      %v3734 = vsel %vm1518, %v3731, 0
      %v3737 = vsel %vm1582, %v3732, 0
      %3739 = vmatprep.subr.bf16.mxu0 0
      %3740 = vmatpush1.bf16.msra.mxu0 %v3737
      %3741 = vmatprep.subr.bf16.mxu0 0
      %3742 = vmatpush1.bf16.msra.mxu0 0
      %3743 = vmatprep.subr.bf16.mxu0 0
      %3744 = vmatpush1.bf16.msra.mxu0 0
      %3745 = vmatprep.subr.bf16.mxu0 0
      %3746 = vmatpush1.bf16.msra.mxu0 0
      %3747 = vmatprep.subr.bf16.mxu0 0
      %3748 = vmatpush1.bf16.msra.mxu0 0
      %3749 = vmatprep.subr.bf16.mxu0 0
      %3750 = vmatpush1.bf16.msra.mxu0 0
      %3751 = vmatprep.subr.bf16.mxu0 0
      %3752 = vmatpush1.bf16.msra.mxu0 0
      %3753 = vmatprep.subr.bf16.mxu0 0
      %3754 = vmatpush1.bf16.msra.mxu0 0
      %3755 = vmatprep.subr.bf16.mxu0 0
      %3756 = vmatpush1.bf16.msra.mxu0 0
      %3757 = vmatprep.subr.bf16.mxu0 0
      %3758 = vmatpush1.bf16.msra.mxu0 0
      %3759 = vmatprep.subr.bf16.mxu0 0
      %3760 = vmatpush1.bf16.msra.mxu0 0
      %3761 = vmatprep.subr.bf16.mxu0 0
      %3762 = vmatpush1.bf16.msra.mxu0 0
      %3763 = vmatprep.subr.bf16.mxu0 0
      %3764 = vmatpush1.bf16.msra.mxu0 0
      %3765 = vmatprep.subr.bf16.mxu0 0
      %3766 = vmatpush1.bf16.msra.mxu0 0
      %3767 = vmatprep.subr.bf16.mxu0 0
      %3768 = vmatpush1.bf16.msra.mxu0 0
      %3769 = vmatprep.subr.bf16.mxu0 0
      %3770 = vmatpush1.bf16.msra.mxu0 0
      %3771 = vmatprep.mubr.bf16.mxu0 0
      %3772 = vmatmul.mubr.bf16.gmra.mrb[0].mxu0 %v3734
      %v3773 = vpop.f32.mrb[0].mxu0
      %v3774 = vadd.f32 0.0, %v3773
      %v3775 = vpop.f32.mrb[0].mxu0
      %v3776 = vpop.f32.mrb[0].mxu0
      %v3777 = vpop.f32.mrb[0].mxu0
      %3778 = vdwg.mxu0
      %v3779 = vpack.c.bf16 %v3774, %v3774
      %s3780 = scalar_lea.vmem %s1276, 8
      %v3781 = vld [vmem:[%s3780] sm:$0xf]
      %v3783 = vsel %vm1518, %v3779, 0
      %v3786 = vsel %vm1582, %v3781, 0
      %3788 = vmatprep.subr.bf16.mxu0 0
      %3789 = vmatpush1.bf16.msra.mxu0 %v3786
      %3790 = vmatprep.subr.bf16.mxu0 0
      %3791 = vmatpush1.bf16.msra.mxu0 0
      %3792 = vmatprep.subr.bf16.mxu0 0
      %3793 = vmatpush1.bf16.msra.mxu0 0
      %3794 = vmatprep.subr.bf16.mxu0 0
      %3795 = vmatpush1.bf16.msra.mxu0 0
      %3796 = vmatprep.subr.bf16.mxu0 0
      %3797 = vmatpush1.bf16.msra.mxu0 0
      %3798 = vmatprep.subr.bf16.mxu0 0
      %3799 = vmatpush1.bf16.msra.mxu0 0
      %3800 = vmatprep.subr.bf16.mxu0 0
      %3801 = vmatpush1.bf16.msra.mxu0 0
      %3802 = vmatprep.subr.bf16.mxu0 0
      %3803 = vmatpush1.bf16.msra.mxu0 0
      %3804 = vmatprep.subr.bf16.mxu0 0
      %3805 = vmatpush1.bf16.msra.mxu0 0
      %3806 = vmatprep.subr.bf16.mxu0 0
      %3807 = vmatpush1.bf16.msra.mxu0 0
      %3808 = vmatprep.subr.bf16.mxu0 0
      %3809 = vmatpush1.bf16.msra.mxu0 0
      %3810 = vmatprep.subr.bf16.mxu0 0
      %3811 = vmatpush1.bf16.msra.mxu0 0
      %3812 = vmatprep.subr.bf16.mxu0 0
      %3813 = vmatpush1.bf16.msra.mxu0 0
      %3814 = vmatprep.subr.bf16.mxu0 0
      %3815 = vmatpush1.bf16.msra.mxu0 0
      %3816 = vmatprep.subr.bf16.mxu0 0
      %3817 = vmatpush1.bf16.msra.mxu0 0
      %3818 = vmatprep.subr.bf16.mxu0 0
      %3819 = vmatpush1.bf16.msra.mxu0 0
      %3820 = vmatprep.mubr.bf16.mxu0 0
      %3821 = vmatmul.mubr.bf16.gmra.mrb[0].mxu0 %v3783
      %v3822 = vpop.f32.mrb[0].mxu0
      %v3823 = vadd.f32 0.0, %v3822
      %v3824 = vpop.f32.mrb[0].mxu0
      %v3825 = vpop.f32.mrb[0].mxu0
      %v3826 = vpop.f32.mrb[0].mxu0
      %3827 = vdwg.mxu0
      %v3828 = vadd.f32 %v3471, %v3823
      %s3829 = scalar_lea.vmem %s1249, 48
      %v3830 = vld [vmem:[%s3829] sm:$0xf]
      %v3831 = vld [vmem:[%s3829 + $0x4] sm:$0xf]
      %v3832 = vld [vmem:[%s3829 + $0x8] sm:$0xf]
      %v3833 = vld [vmem:[%s3829 + $0xc] sm:$0xf]
      %s3834 = scalar_lea.vmem %s1263, 3
      %v3835 = vld [vmem:[%s3834] sm:$0x1]
      %v3837 = vlaneseq
      %v3838 = vshrl.u32 %v3837, 7
      %v3839 = vsub.s32 0, %v3838
      %v3840 = vrot.slane %v3835, %v3839
      %v3846 = vunpack.c.l.b16 %v3830
      %v3847 = vunpack.c.l.b16 %v3831
      %v3848 = vunpack.c.l.b16 %v3832
      %v3849 = vunpack.c.l.b16 %v3833
      %v3850 = vpack.c.b16 %v3847, %v3846
      %v3851 = vpack.c.b16 %v3849, %v3848
      %3854 = vmatprep.subr.bf16.mxu0 0
      %3855 = vmatpush1.bf16.msra.mxu0 %v3850
      %3856 = vmatprep.subr.bf16.mxu0 0
      %3857 = vmatpush1.bf16.msra.mxu0 %v3851
      %3858 = vmatprep.subr.bf16.mxu0 0
      %3859 = vmatpush1.bf16.msra.mxu0 0
      %3860 = vmatprep.subr.bf16.mxu0 0
      %3861 = vmatpush1.bf16.msra.mxu0 0
      %3862 = vmatprep.subr.bf16.mxu0 0
      %3863 = vmatpush1.bf16.msra.mxu0 0
      %3864 = vmatprep.subr.bf16.mxu0 0
      %3865 = vmatpush1.bf16.msra.mxu0 0
      %3866 = vmatprep.subr.bf16.mxu0 0
      %3867 = vmatpush1.bf16.msra.mxu0 0
      %3868 = vmatprep.subr.bf16.mxu0 0
      %3869 = vmatpush1.bf16.msra.mxu0 0
      %3870 = vmatprep.subr.bf16.mxu0 0
      %3871 = vmatpush1.bf16.msra.mxu0 0
      %3872 = vmatprep.subr.bf16.mxu0 0
      %3873 = vmatpush1.bf16.msra.mxu0 0
      %3874 = vmatprep.subr.bf16.mxu0 0
      %3875 = vmatpush1.bf16.msra.mxu0 0
      %3876 = vmatprep.subr.bf16.mxu0 0
      %3877 = vmatpush1.bf16.msra.mxu0 0
      %3878 = vmatprep.subr.bf16.mxu0 0
      %3879 = vmatpush1.bf16.msra.mxu0 0
      %3880 = vmatprep.subr.bf16.mxu0 0
      %3881 = vmatpush1.bf16.msra.mxu0 0
      %3882 = vmatprep.subr.bf16.mxu0 0
      %3883 = vmatpush1.bf16.msra.mxu0 0
      %3884 = vmatprep.subr.bf16.mxu0 0
      %3885 = vmatpush1.bf16.msra.mxu0 0
      %3886 = vmatprep.mubr.bf16.mxu0 0
      %3887 = vmatmul.mubr.bf16.gmra.mrb[0].mxu0 %v2797
      %v3888 = vpop.f32.mrb[0].mxu0
      %v3889 = vadd.f32 %v3840, %v3888
      %v3890 = vpop.f32.mrb[0].mxu0
      %v3891 = vpop.f32.mrb[0].mxu0
      %v3892 = vpop.f32.mrb[0].mxu0
      %3893 = vdwg.mxu0
      %s3894 = scalar_lea.vmem %s1254, 48
      %v3895 = vld [vmem:[%s3894] sm:$0xf]
      %v3896 = vld [vmem:[%s3894 + $0x4] sm:$0xf]
      %v3897 = vld [vmem:[%s3894 + $0x8] sm:$0xf]
      %v3898 = vld [vmem:[%s3894 + $0xc] sm:$0xf]
      %s3899 = scalar_lea.vmem %s1267, 3
      %v3900 = vld [vmem:[%s3899] sm:$0x1]
      %v3902 = vlaneseq
      %v3903 = vshrl.u32 %v3902, 7
      %v3904 = vsub.s32 0, %v3903
      %v3905 = vrot.slane %v3900, %v3904
      %v3911 = vunpack.c.l.b16 %v3895
      %v3912 = vunpack.c.l.b16 %v3896
      %v3913 = vunpack.c.l.b16 %v3897
      %v3914 = vunpack.c.l.b16 %v3898
      %v3915 = vpack.c.b16 %v3912, %v3911
      %v3916 = vpack.c.b16 %v3914, %v3913
      %3919 = vmatprep.subr.bf16.mxu0 0
      %3920 = vmatpush1.bf16.msra.mxu0 %v3915
      %3921 = vmatprep.subr.bf16.mxu0 0
      %3922 = vmatpush1.bf16.msra.mxu0 %v3916
      %3923 = vmatprep.subr.bf16.mxu0 0
      %3924 = vmatpush1.bf16.msra.mxu0 0
      %3925 = vmatprep.subr.bf16.mxu0 0
      %3926 = vmatpush1.bf16.msra.mxu0 0
      %3927 = vmatprep.subr.bf16.mxu0 0
      %3928 = vmatpush1.bf16.msra.mxu0 0
      %3929 = vmatprep.subr.bf16.mxu0 0
      %3930 = vmatpush1.bf16.msra.mxu0 0
      %3931 = vmatprep.subr.bf16.mxu0 0
      %3932 = vmatpush1.bf16.msra.mxu0 0
      %3933 = vmatprep.subr.bf16.mxu0 0
      %3934 = vmatpush1.bf16.msra.mxu0 0
      %3935 = vmatprep.subr.bf16.mxu0 0
      %3936 = vmatpush1.bf16.msra.mxu0 0
      %3937 = vmatprep.subr.bf16.mxu0 0
      %3938 = vmatpush1.bf16.msra.mxu0 0
      %3939 = vmatprep.subr.bf16.mxu0 0
      %3940 = vmatpush1.bf16.msra.mxu0 0
      %3941 = vmatprep.subr.bf16.mxu0 0
      %3942 = vmatpush1.bf16.msra.mxu0 0
      %3943 = vmatprep.subr.bf16.mxu0 0
      %3944 = vmatpush1.bf16.msra.mxu0 0
      %3945 = vmatprep.subr.bf16.mxu0 0
      %3946 = vmatpush1.bf16.msra.mxu0 0
      %3947 = vmatprep.subr.bf16.mxu0 0
      %3948 = vmatpush1.bf16.msra.mxu0 0
      %3949 = vmatprep.subr.bf16.mxu0 0
      %3950 = vmatpush1.bf16.msra.mxu0 0
      %3951 = vmatprep.mubr.bf16.mxu0 0
      %3952 = vmatmul.mubr.bf16.gmra.mrb[0].mxu0 %v2863
      %v3953 = vpop.f32.mrb[0].mxu0
      %v3954 = vadd.f32 %v3905, %v3953
      %v3955 = vpop.f32.mrb[0].mxu0
      %v3956 = vpop.f32.mrb[0].mxu0
      %v3957 = vpop.f32.mrb[0].mxu0
      %3958 = vdwg.mxu0
      %s3959 = scalar_lea.vmem %s1259, 48
      %v3960 = vld [vmem:[%s3959] sm:$0xf]
      %v3961 = vld [vmem:[%s3959 + $0x4] sm:$0xf]
      %v3962 = vld [vmem:[%s3959 + $0x8] sm:$0xf]
      %v3963 = vld [vmem:[%s3959 + $0xc] sm:$0xf]
      %s3964 = scalar_lea.vmem %s1271, 3
      %v3965 = vld [vmem:[%s3964] sm:$0x1]
      %v3967 = vlaneseq
      %v3968 = vshrl.u32 %v3967, 7
      %v3969 = vsub.s32 0, %v3968
      %v3970 = vrot.slane %v3965, %v3969
      %v3976 = vunpack.c.l.b16 %v3960
      %v3977 = vunpack.c.l.b16 %v3961
      %v3978 = vunpack.c.l.b16 %v3962
      %v3979 = vunpack.c.l.b16 %v3963
      %v3980 = vpack.c.b16 %v3977, %v3976
      %v3981 = vpack.c.b16 %v3979, %v3978
      %3984 = vmatprep.subr.bf16.mxu0 0
      %3985 = vmatpush1.bf16.msra.mxu0 %v3980
      %3986 = vmatprep.subr.bf16.mxu0 0
      %3987 = vmatpush1.bf16.msra.mxu0 %v3981
      %3988 = vmatprep.subr.bf16.mxu0 0
      %3989 = vmatpush1.bf16.msra.mxu0 0
      %3990 = vmatprep.subr.bf16.mxu0 0
      %3991 = vmatpush1.bf16.msra.mxu0 0
      %3992 = vmatprep.subr.bf16.mxu0 0
      %3993 = vmatpush1.bf16.msra.mxu0 0
      %3994 = vmatprep.subr.bf16.mxu0 0
      %3995 = vmatpush1.bf16.msra.mxu0 0
      %3996 = vmatprep.subr.bf16.mxu0 0
      %3997 = vmatpush1.bf16.msra.mxu0 0
      %3998 = vmatprep.subr.bf16.mxu0 0
      %3999 = vmatpush1.bf16.msra.mxu0 0
      %4000 = vmatprep.subr.bf16.mxu0 0
      %4001 = vmatpush1.bf16.msra.mxu0 0
      %4002 = vmatprep.subr.bf16.mxu0 0
      %4003 = vmatpush1.bf16.msra.mxu0 0
      %4004 = vmatprep.subr.bf16.mxu0 0
      %4005 = vmatpush1.bf16.msra.mxu0 0
      %4006 = vmatprep.subr.bf16.mxu0 0
      %4007 = vmatpush1.bf16.msra.mxu0 0
      %4008 = vmatprep.subr.bf16.mxu0 0
      %4009 = vmatpush1.bf16.msra.mxu0 0
      %4010 = vmatprep.subr.bf16.mxu0 0
      %4011 = vmatpush1.bf16.msra.mxu0 0
      %4012 = vmatprep.subr.bf16.mxu0 0
      %4013 = vmatpush1.bf16.msra.mxu0 0
      %4014 = vmatprep.subr.bf16.mxu0 0
      %4015 = vmatpush1.bf16.msra.mxu0 0
      %4016 = vmatprep.mubr.bf16.mxu0 0
      %4017 = vmatmul.mubr.bf16.gmra.mrb[0].mxu0 %v2863
      %v4018 = vpop.f32.mrb[0].mxu0
      %v4019 = vadd.f32 %v3970, %v4018
      %v4020 = vpop.f32.mrb[0].mxu0
      %v4021 = vpop.f32.mrb[0].mxu0
      %v4022 = vpop.f32.mrb[0].mxu0
      %4023 = vdwg.mxu0
      %v4024 = vpack.c.bf16 %v3889, %v3889
      %v4025 = vpack.c.bf16 %v3954, %v3954
      %v4027 = vsel %vm1518, %v4024, 0
      %v4030 = vsel %vm1518, %v4025, 0
      %4032 = vmatprep.subr.bf16.mxu0 0
      %4033 = vmatpush1.bf16.xpose.msra.mxu0 %v4030
      %4034 = vmatprep.subr.bf16.mxu0 0
      %4035 = vmatpush1.bf16.xpose.msra.mxu0 0
      %4036 = vmatprep.subr.bf16.mxu0 0
      %4037 = vmatpush1.bf16.xpose.msra.mxu0 0
      %4038 = vmatprep.subr.bf16.mxu0 0
      %4039 = vmatpush1.bf16.xpose.msra.mxu0 0
      %4040 = vmatprep.subr.bf16.mxu0 0
      %4041 = vmatpush1.bf16.xpose.msra.mxu0 0
      %4042 = vmatprep.subr.bf16.mxu0 0
      %4043 = vmatpush1.bf16.xpose.msra.mxu0 0
      %4044 = vmatprep.subr.bf16.mxu0 0
      %4045 = vmatpush1.bf16.xpose.msra.mxu0 0
      %4046 = vmatprep.subr.bf16.mxu0 0
      %4047 = vmatpush1.bf16.xpose.msra.mxu0 0
      %4048 = vmatprep.subr.bf16.mxu0 0
      %4049 = vmatpush1.bf16.xpose.msra.mxu0 0
      %4050 = vmatprep.subr.bf16.mxu0 0
      %4051 = vmatpush1.bf16.xpose.msra.mxu0 0
      %4052 = vmatprep.subr.bf16.mxu0 0
      %4053 = vmatpush1.bf16.xpose.msra.mxu0 0
      %4054 = vmatprep.subr.bf16.mxu0 0
      %4055 = vmatpush1.bf16.xpose.msra.mxu0 0
      %4056 = vmatprep.subr.bf16.mxu0 0
      %4057 = vmatpush1.bf16.xpose.msra.mxu0 0
      %4058 = vmatprep.subr.bf16.mxu0 0
      %4059 = vmatpush1.bf16.xpose.msra.mxu0 0
      %4060 = vmatprep.subr.bf16.mxu0 0
      %4061 = vmatpush1.bf16.xpose.msra.mxu0 0
      %4062 = vmatprep.subr.bf16.mxu0 0
      %4063 = vmatpush1.bf16.xpose.msra.mxu0 0
      %4064 = vmatprep.mubr.bf16.mxu0 0
      %4065 = vmatmul.mubr.bf16.gmra.mrb[0].mxu0 %v4027
      %v4066 = vpop.f32.mrb[0].mxu0
      %v4067 = vadd.f32 0.0, %v4066
      %v4068 = vpop.f32.mrb[0].mxu0
      %v4069 = vpop.f32.mrb[0].mxu0
      %v4070 = vpop.f32.mrb[0].mxu0
      %4071 = vdwg.mxu0
      %v4072 = vmul.f32 %v4067, 0.35355338
      %v4073 = vsel %vm1518, %v4072, -inf
      %4074 = vmax.xlane.f32.xlu0 %v4073
      %v4075 = vpop.xlane.xlu0 %4074
      %v4076 = vsub.f32 %v4072, %v4075
      %v4077 = vmul.f32 %v4076, 1.442695
      %v4078 = vpow.pop %v4077
      %v4079 = vsel %vm1518, %v4078, 0.0
      %4080 = vadd.xlane.f32.xlu0 %v4079
      %v4081 = vpop.xlane.xlu0 %4080
      %v4082 = vrcp.pop %v4081
      %v4083 = vmul.f32 %v4078, %v4082
      %v4084 = vpack.c.bf16 %v4083, %v4083
      %v4085 = vpack.c.bf16 %v4019, %v4019
      %v4087 = vsel %vm1518, %v4084, 0
      %v4090 = vsel %vm1582, %v4085, 0
      %4092 = vmatprep.subr.bf16.mxu0 0
      %4093 = vmatpush1.bf16.msra.mxu0 %v4090
      %4094 = vmatprep.subr.bf16.mxu0 0
      %4095 = vmatpush1.bf16.msra.mxu0 0
      %4096 = vmatprep.subr.bf16.mxu0 0
      %4097 = vmatpush1.bf16.msra.mxu0 0
      %4098 = vmatprep.subr.bf16.mxu0 0
      %4099 = vmatpush1.bf16.msra.mxu0 0
      %4100 = vmatprep.subr.bf16.mxu0 0
      %4101 = vmatpush1.bf16.msra.mxu0 0
      %4102 = vmatprep.subr.bf16.mxu0 0
      %4103 = vmatpush1.bf16.msra.mxu0 0
      %4104 = vmatprep.subr.bf16.mxu0 0
      %4105 = vmatpush1.bf16.msra.mxu0 0
      %4106 = vmatprep.subr.bf16.mxu0 0
      %4107 = vmatpush1.bf16.msra.mxu0 0
      %4108 = vmatprep.subr.bf16.mxu0 0
      %4109 = vmatpush1.bf16.msra.mxu0 0
      %4110 = vmatprep.subr.bf16.mxu0 0
      %4111 = vmatpush1.bf16.msra.mxu0 0
      %4112 = vmatprep.subr.bf16.mxu0 0
      %4113 = vmatpush1.bf16.msra.mxu0 0
      %4114 = vmatprep.subr.bf16.mxu0 0
      %4115 = vmatpush1.bf16.msra.mxu0 0
      %4116 = vmatprep.subr.bf16.mxu0 0
      %4117 = vmatpush1.bf16.msra.mxu0 0
      %4118 = vmatprep.subr.bf16.mxu0 0
      %4119 = vmatpush1.bf16.msra.mxu0 0
      %4120 = vmatprep.subr.bf16.mxu0 0
      %4121 = vmatpush1.bf16.msra.mxu0 0
      %4122 = vmatprep.subr.bf16.mxu0 0
      %4123 = vmatpush1.bf16.msra.mxu0 0
      %4124 = vmatprep.mubr.bf16.mxu0 0
      %4125 = vmatmul.mubr.bf16.gmra.mrb[0].mxu0 %v4087
      %v4126 = vpop.f32.mrb[0].mxu0
      %v4127 = vadd.f32 0.0, %v4126
      %v4128 = vpop.f32.mrb[0].mxu0
      %v4129 = vpop.f32.mrb[0].mxu0
      %v4130 = vpop.f32.mrb[0].mxu0
      %4131 = vdwg.mxu0
      %v4132 = vpack.c.bf16 %v4127, %v4127
      %s4133 = scalar_lea.vmem %s1276, 12
      %v4134 = vld [vmem:[%s4133] sm:$0xf]
      %v4136 = vsel %vm1518, %v4132, 0
      %v4139 = vsel %vm1582, %v4134, 0
      %4141 = vmatprep.subr.bf16.mxu0 0
      %4142 = vmatpush1.bf16.msra.mxu0 %v4139
      %4143 = vmatprep.subr.bf16.mxu0 0
      %4144 = vmatpush1.bf16.msra.mxu0 0
      %4145 = vmatprep.subr.bf16.mxu0 0
      %4146 = vmatpush1.bf16.msra.mxu0 0
      %4147 = vmatprep.subr.bf16.mxu0 0
      %4148 = vmatpush1.bf16.msra.mxu0 0
      %4149 = vmatprep.subr.bf16.mxu0 0
      %4150 = vmatpush1.bf16.msra.mxu0 0
      %4151 = vmatprep.subr.bf16.mxu0 0
      %4152 = vmatpush1.bf16.msra.mxu0 0
      %4153 = vmatprep.subr.bf16.mxu0 0
      %4154 = vmatpush1.bf16.msra.mxu0 0
      %4155 = vmatprep.subr.bf16.mxu0 0
      %4156 = vmatpush1.bf16.msra.mxu0 0
      %4157 = vmatprep.subr.bf16.mxu0 0
      %4158 = vmatpush1.bf16.msra.mxu0 0
      %4159 = vmatprep.subr.bf16.mxu0 0
      %4160 = vmatpush1.bf16.msra.mxu0 0
      %4161 = vmatprep.subr.bf16.mxu0 0
      %4162 = vmatpush1.bf16.msra.mxu0 0
      %4163 = vmatprep.subr.bf16.mxu0 0
      %4164 = vmatpush1.bf16.msra.mxu0 0
      %4165 = vmatprep.subr.bf16.mxu0 0
      %4166 = vmatpush1.bf16.msra.mxu0 0
      %4167 = vmatprep.subr.bf16.mxu0 0
      %4168 = vmatpush1.bf16.msra.mxu0 0
      %4169 = vmatprep.subr.bf16.mxu0 0
      %4170 = vmatpush1.bf16.msra.mxu0 0
      %4171 = vmatprep.subr.bf16.mxu0 0
      %4172 = vmatpush1.bf16.msra.mxu0 0
      %4173 = vmatprep.mubr.bf16.mxu0 0
      %4174 = vmatmul.mubr.bf16.gmra.mrb[0].mxu0 %v4136
      %v4175 = vpop.f32.mrb[0].mxu0
      %v4176 = vadd.f32 0.0, %v4175
      %v4177 = vpop.f32.mrb[0].mxu0
      %v4178 = vpop.f32.mrb[0].mxu0
      %v4179 = vpop.f32.mrb[0].mxu0
      %4180 = vdwg.mxu0
      %v4181 = vadd.f32 %v3828, %v4176
      %v4182 = vld [vmem:[%s1279] sm:$0x1]
      %v4184 = vlaneseq
      %v4185 = vshrl.u32 %v4184, 7
      %v4186 = vsub.s32 0, %v4185
      %v4187 = vrot.slane %v4182, %v4186
      %v4189 = vadd.f32 %v4181, %v4187
      %v4190 = vadd.f32 %v2770, %v4189
      %v4191 = vld [vmem:[%s1282] sm:$0x1]
      %v4192 = vld [vmem:[%s1285] sm:$0x1]
      %v4193 = vsel %vm1346, %v4190, 0.0
      %4194 = vadd.xlane.f32.xlu0 %v4193
      %v4195 = vpop.xlane.xlu0 %4194
      %v4196 = vmul.f32 %v4195, %v2746
      %v4197 = vsub.f32 %v4190, %v4196
      %v4198 = vmul.f32 %v4197, %v4197
      %v4199 = vsel %vm1346, %v4198, 0.0
      %4200 = vadd.xlane.f32.xlu0 %v4199
      %v4201 = vpop.xlane.xlu0 %4200
      %v4202 = vmul.f32 %v4201, %v2746
      %v4203 = vadd.f32 %v4202, 1e-05
      %v4204 = vrsqrt.pop %v4203
      %v4205 = vmul.f32 %v4197, %v4204
      %v4207 = vlaneseq
      %v4208 = vshrl.u32 %v4207, 7
      %v4209 = vsub.s32 0, %v4208
      %v4210 = vrot.slane %v4191, %v4209
      %v4212 = vmul.f32 %v4205, %v4210
      %v4214 = vlaneseq
      %v4215 = vshrl.u32 %v4214, 7
      %v4216 = vsub.s32 0, %v4215
      %v4217 = vrot.slane %v4192, %v4216
      %v4219 = vadd.f32 %v4212, %v4217
      %v4220 = vpack.c.bf16 %v4219, %v4219
      %v4221 = vld [vmem:[%s1290] sm:$0xf]
      %v4222 = vld [vmem:[%s1290 + $0x4] sm:$0xf]
      %v4223 = vld [vmem:[%s1290 + $0x8] sm:$0xf]
      %v4224 = vld [vmem:[%s1290 + $0xc] sm:$0xf]
      %v4225 = vld [vmem:[%s1293] sm:$0x1]
      %v4227 = vlaneseq
      %v4228 = vshrl.u32 %v4227, 7
      %v4229 = vsub.s32 0, %v4228
      %v4230 = vrot.slane %v4225, %v4229
      %v4236 = vunpack.c.l.b16 %v4221
      %v4237 = vunpack.c.l.b16 %v4222
      %v4238 = vunpack.c.l.b16 %v4223
      %v4239 = vunpack.c.l.b16 %v4224
      %v4240 = vpack.c.b16 %v4237, %v4236
      %v4241 = vpack.c.b16 %v4239, %v4238
      %v4245 = vsel %vm1346, %v4220, 0
      %4247 = vmatprep.subr.bf16.mxu0 0
      %4248 = vmatpush1.bf16.msra.mxu0 %v4240
      %4249 = vmatprep.subr.bf16.mxu0 0
      %4250 = vmatpush1.bf16.msra.mxu0 %v4241
      %4251 = vmatprep.subr.bf16.mxu0 0
      %4252 = vmatpush1.bf16.msra.mxu0 0
      %4253 = vmatprep.subr.bf16.mxu0 0
      %4254 = vmatpush1.bf16.msra.mxu0 0
      %4255 = vmatprep.subr.bf16.mxu0 0
      %4256 = vmatpush1.bf16.msra.mxu0 0
      %4257 = vmatprep.subr.bf16.mxu0 0
      %4258 = vmatpush1.bf16.msra.mxu0 0
      %4259 = vmatprep.subr.bf16.mxu0 0
      %4260 = vmatpush1.bf16.msra.mxu0 0
      %4261 = vmatprep.subr.bf16.mxu0 0
      %4262 = vmatpush1.bf16.msra.mxu0 0
      %4263 = vmatprep.subr.bf16.mxu0 0
      %4264 = vmatpush1.bf16.msra.mxu0 0
      %4265 = vmatprep.subr.bf16.mxu0 0
      %4266 = vmatpush1.bf16.msra.mxu0 0
      %4267 = vmatprep.subr.bf16.mxu0 0
      %4268 = vmatpush1.bf16.msra.mxu0 0
      %4269 = vmatprep.subr.bf16.mxu0 0
      %4270 = vmatpush1.bf16.msra.mxu0 0
      %4271 = vmatprep.subr.bf16.mxu0 0
      %4272 = vmatpush1.bf16.msra.mxu0 0
      %4273 = vmatprep.subr.bf16.mxu0 0
      %4274 = vmatpush1.bf16.msra.mxu0 0
      %4275 = vmatprep.subr.bf16.mxu0 0
      %4276 = vmatpush1.bf16.msra.mxu0 0
      %4277 = vmatprep.subr.bf16.mxu0 0
      %4278 = vmatpush1.bf16.msra.mxu0 0
      %4279 = vmatprep.mubr.bf16.mxu0 0
      %4280 = vmatmul.mubr.bf16.gmra.mrb[0].mxu0 %v4245
      %v4281 = vpop.f32.mrb[0].mxu0
      %v4282 = vadd.f32 %v4230, %v4281
      %v4283 = vpop.f32.mrb[0].mxu0
      %v4284 = vpop.f32.mrb[0].mxu0
      %v4285 = vpop.f32.mrb[0].mxu0
      %4286 = vdwg.mxu0
      %v4287 = vmax.f32 %v4282, 0.0
      %v4288 = vpack.c.bf16 %v4287, %v4287
      %v4289 = vld [vmem:[%s1298] sm:$0xf]
      %v4290 = vld [vmem:[%s1298 + $0x4] sm:$0xf]
      %v4291 = vld [vmem:[%s1298 + $0x8] sm:$0xf]
      %v4292 = vld [vmem:[%s1298 + $0xc] sm:$0xf]
      %v4293 = vld [vmem:[%s1298 + $0x10] sm:$0xf]
      %v4294 = vld [vmem:[%s1298 + $0x14] sm:$0xf]
      %v4295 = vld [vmem:[%s1298 + $0x18] sm:$0xf]
      %v4296 = vld [vmem:[%s1298 + $0x1c] sm:$0xf]
      %v4297 = vld [vmem:[%s1301] sm:$0x1]
      %v4299 = vlaneseq
      %v4300 = vshrl.u32 %v4299, 7
      %v4301 = vsub.s32 0, %v4300
      %v4302 = vrot.slane %v4297, %v4301
      %v4312 = vunpack.c.l.b16 %v4289
      %v4313 = vunpack.c.l.b16 %v4290
      %v4314 = vunpack.c.l.b16 %v4291
      %v4315 = vunpack.c.l.b16 %v4292
      %v4316 = vunpack.c.l.b16 %v4293
      %v4317 = vunpack.c.l.b16 %v4294
      %v4318 = vunpack.c.l.b16 %v4295
      %v4319 = vunpack.c.l.b16 %v4296
      %v4320 = vpack.c.b16 %v4313, %v4312
      %v4321 = vpack.c.b16 %v4315, %v4314
      %v4322 = vpack.c.b16 %v4317, %v4316
      %v4323 = vpack.c.b16 %v4319, %v4318
      %vm4328 = vcmask 523264
      %v4330 = vsel %vm4328, %v4288, 0
      %4332 = vmatprep.subr.bf16.mxu0 0
      %4333 = vmatpush1.bf16.msra.mxu0 %v4320
      %4334 = vmatprep.subr.bf16.mxu0 0
      %4335 = vmatpush1.bf16.msra.mxu0 %v4321
      %4336 = vmatprep.subr.bf16.mxu0 0
      %4337 = vmatpush1.bf16.msra.mxu0 %v4322
      %4338 = vmatprep.subr.bf16.mxu0 0
      %4339 = vmatpush1.bf16.msra.mxu0 %v4323
      %4340 = vmatprep.subr.bf16.mxu0 0
      %4341 = vmatpush1.bf16.msra.mxu0 0
      %4342 = vmatprep.subr.bf16.mxu0 0
      %4343 = vmatpush1.bf16.msra.mxu0 0
      %4344 = vmatprep.subr.bf16.mxu0 0
      %4345 = vmatpush1.bf16.msra.mxu0 0
      %4346 = vmatprep.subr.bf16.mxu0 0
      %4347 = vmatpush1.bf16.msra.mxu0 0
      %4348 = vmatprep.subr.bf16.mxu0 0
      %4349 = vmatpush1.bf16.msra.mxu0 0
      %4350 = vmatprep.subr.bf16.mxu0 0
      %4351 = vmatpush1.bf16.msra.mxu0 0
      %4352 = vmatprep.subr.bf16.mxu0 0
      %4353 = vmatpush1.bf16.msra.mxu0 0
      %4354 = vmatprep.subr.bf16.mxu0 0
      %4355 = vmatpush1.bf16.msra.mxu0 0
      %4356 = vmatprep.subr.bf16.mxu0 0
      %4357 = vmatpush1.bf16.msra.mxu0 0
      %4358 = vmatprep.subr.bf16.mxu0 0
      %4359 = vmatpush1.bf16.msra.mxu0 0
      %4360 = vmatprep.subr.bf16.mxu0 0
      %4361 = vmatpush1.bf16.msra.mxu0 0
      %4362 = vmatprep.subr.bf16.mxu0 0
      %4363 = vmatpush1.bf16.msra.mxu0 0
      %4364 = vmatprep.mubr.bf16.mxu0 0
      %4365 = vmatmul.mubr.bf16.gmra.mrb[0].mxu0 %v4330
      %v4366 = vpop.f32.mrb[0].mxu0
      %v4367 = vadd.f32 %v4302, %v4366
      %v4368 = vpop.f32.mrb[0].mxu0
      %v4369 = vpop.f32.mrb[0].mxu0
      %v4370 = vpop.f32.mrb[0].mxu0
      %4371 = vdwg.mxu0
      %v4372 = vadd.f32 %v4219, %v4367
      %v4373 = vld [vmem:[%s1304] sm:$0x1]
      %v4374 = vld [vmem:[%s1307] sm:$0x1]
      %v4375 = vsel %vm1346, %v4372, 0.0
      %4376 = vadd.xlane.f32.xlu0 %v4375
      %v4377 = vpop.xlane.xlu0 %4376
      %v4378 = vmul.f32 %v4377, %v2746
      %v4379 = vsub.f32 %v4372, %v4378
      %v4380 = vmul.f32 %v4379, %v4379
      %v4381 = vsel %vm1346, %v4380, 0.0
      %4382 = vadd.xlane.f32.xlu0 %v4381
      %v4383 = vpop.xlane.xlu0 %4382
      %v4384 = vmul.f32 %v4383, %v2746
      %v4385 = vadd.f32 %v4384, 1e-05
      %v4386 = vrsqrt.pop %v4385
      %v4387 = vmul.f32 %v4379, %v4386
      %v4389 = vlaneseq
      %v4390 = vshrl.u32 %v4389, 7
      %v4391 = vsub.s32 0, %v4390
      %v4392 = vrot.slane %v4373, %v4391
      %v4394 = vmul.f32 %v4387, %v4392
      %v4396 = vlaneseq
      %v4397 = vshrl.u32 %v4396, 7
      %v4398 = vsub.s32 0, %v4397
      %v4399 = vrot.slane %v4374, %v4398
      %v4401 = vadd.f32 %v4394, %v4399
      %4402 = vst.msk [vmem:[#allocation2] sm:$0xff] %vm1346, %v4401
      %4403 = vst.msk [vmem:[%s1311] sm:$0xff] %vm1346, %v4401
      %p4404 = scmp.lt.s32.totalorder %s43, 1
      %s4405 = scalar_select %p4404, %s43, 1
      %s4406 = smul.addr %s4405, 8
      %s4407 = scalar_lea.vmem %s28, %s4406
      // Predicated region
      $region137: #{transformer_translation_forward.4} parent=131 // pred_check
        %p4408 = pneg %p797
      $region138: #{transformer_translation_forward.4} parent=131 // pred_check_branch
        %4410 = sbr.rel (%p4408) target = $region140
      $region139: #{transformer_translation_forward.4} parent=131 // pred_region
        _
      $region140: #{transformer_translation_forward.4} parent=131 // pred_fallthru
        _
    $region132: #{transformer_translation_forward.4} parent=5 // pred_fallthru
      _
    %p4411 = scmp.le.s32.totalorder 2, %s34
    // Predicated region
    $region141: #{transformer_translation_forward.4} parent=5 // pred_check
      %p4412 = pneg %p4411
    $region142: #{transformer_translation_forward.4} parent=5 // pred_check_branch
      %4414 = sbr.rel (%p4412) target = $region144
    $region143: #{transformer_translation_forward.4} parent=5 // pred_region
      %s4415 = ssub.s32 %s34, 2
      // Predicated region
      $region145: #{transformer_translation_forward.4} parent=143 // pred_check
        %p4416 = pneg %p803
      $region146: #{transformer_translation_forward.4} parent=143 // pred_check_branch
        %4418 = sbr.rel (%p4416) target = $region148
      $region147: #{transformer_translation_forward.4} parent=143 // pred_region
        %p4419 = scmp.lt.s32.totalorder %s45, 1
        %s4420 = scalar_select %p4419, %s45, 1
        %s4421 = smul.addr %s4420, 8
        %s4422 = scalar_lea.vmem %s28, %s4421
      $region148: #{transformer_translation_forward.4} parent=143 // pred_fallthru
        _
    $region144: #{transformer_translation_forward.4} parent=5 // pred_fallthru
      _
  $region6: #{transformer_translation_forward.4} parent=0 // loop_footer
    %s38 = sadd.s32 1, %s34
  $region7: #{transformer_translation_forward.4} parent=0 // loop_footer_branch
    %33 = sbr.rel target = $region3
  $region8: #{transformer_translation_forward.4} parent=0 // loop_exit
    _

</llo_original>
